<compile_context>
chip_gen: v7x
topology: tpu7x:2x2x1
jax: 0.10.0
libtpu: 0.0.40
codegen_flags: <defaults>
</compile_context>

<pallas_src>
import math
import jax
import jax.numpy as jnp
from jax.experimental import pallas as pl
from jax.experimental.pallas import tpu as pltpu

# Make the pure-JAX reference matmuls full-precision so the f32 kernel and the
# reference agree to tight tolerances on TPU.
jax.config.update("jax_default_matmul_precision", "highest")

# --- configuration (small, consistent with the module) ---
BATCH = 2
SEQ = 8
D_MODEL = 32
N_HEAD = 4
HEAD_DIM = D_MODEL // N_HEAD
DIM_FF = 64
NUM_LAYERS = 2
EPS = 1e-5

BS = BATCH * SEQ              # batch folded into rows
NEG = -1e9
SCALE = 1.0 / math.sqrt(HEAD_DIM)
HIGHEST = jax.lax.Precision.HIGHEST


def _layer_norm(x, gamma, beta):
    mu = jnp.mean(x, axis=-1, keepdims=True)
    var = jnp.mean((x - mu) ** 2, axis=-1, keepdims=True)
    return (x - mu) * jax.lax.rsqrt(var + EPS) * gamma + beta


# ----------------------------- Pallas kernel ---------------------------------
def encoder_kernel(src_ref, pos_ref, bias_ref, hm_ref,
                   wq_ref, wk_ref, wv_ref, wo_ref, w1_ref, w2_ref, slab_ref,
                   out_ref):
    layer = pl.program_id(0)

    @pl.when(layer == 0)
    def _():
        out_ref[...] = src_ref[...]       # seed the layer carry

    x = out_ref[...]                      # (BS, D) running activation (carry)
    p = pos_ref[...]                      # (BS, D)
    bias = bias_ref[...]                  # (BS, BS) additive attention bias

    slab = slab_ref[0]                    # (10, 64) packed biases / LN params
    bq = slab[0:1, :D_MODEL]
    bk = slab[1:2, :D_MODEL]
    bv = slab[2:3, :D_MODEL]
    bo = slab[3:4, :D_MODEL]
    b1 = slab[4:5, :]                     # (1, FF)
    b2 = slab[5:6, :D_MODEL]
    g1 = slab[6:7, :D_MODEL]
    be1 = slab[7:8, :D_MODEL]
    g2 = slab[8:9, :D_MODEL]
    be2 = slab[9:10, :D_MODEL]

    # --- self attention ---
    xp = x + p                            # with_pos_embed(src, pos) for q and k
    q = (jnp.dot(xp, wq_ref[0], preferred_element_type=jnp.float32,
                 precision=HIGHEST) + bq) * SCALE
    k = jnp.dot(xp, wk_ref[0], preferred_element_type=jnp.float32,
                precision=HIGHEST) + bk
    v = jnp.dot(x, wv_ref[0], preferred_element_type=jnp.float32,
                precision=HIGHEST) + bv

    ctx = jnp.zeros((BS, D_MODEL), jnp.float32)
    for h in range(N_HEAD):               # static unroll, N_HEAD = 4
        mh = hm_ref[h:h + 1, :]           # (1, D) lane mask for head h
        # Scores restricted to head-h feature lanes: q's other lanes are zeroed,
        # so the full-width contraction equals the per-head dot product.
        s = jax.lax.dot_general(q * mh, k, (((1,), (1,)), ((), ())),
                                preferred_element_type=jnp.float32,
                                precision=HIGHEST) + bias        # (BS, BS)
        s = s - jnp.max(s, axis=-1, keepdims=True)
        e = jnp.exp(s)
        a = e / jnp.sum(e, axis=-1, keepdims=True)
        # Masked V: this matmul only contributes to head-h output lanes.
        ctx = ctx + jnp.dot(a, v * mh, preferred_element_type=jnp.float32,
                            precision=HIGHEST)

    attn = jnp.dot(ctx, wo_ref[0], preferred_element_type=jnp.float32,
                   precision=HIGHEST) + bo
    x1 = _layer_norm(x + attn, g1, be1)   # residual + LayerNorm1 (dropout = id)

    # --- feed forward ---
    h1 = jnp.maximum(
        jnp.dot(x1, w1_ref[0], preferred_element_type=jnp.float32,
                precision=HIGHEST) + b1, 0.0)
    ffn = jnp.dot(h1, w2_ref[0], preferred_element_type=jnp.float32,
                  precision=HIGHEST) + b2
    out_ref[...] = _layer_norm(x1 + ffn, g2, be2)   # residual + LayerNorm2


# ------------------- wrapper-side parameter / mask packing -------------------
def _pad64(v):
    return jnp.pad(v, (0, 64 - v.shape[0]))


def pack_params(layer_params):
    wq_t, wk_t, wv_t, wo_t, w1_t, w2_t, slabs = [], [], [], [], [], [], []
    for pr in layer_params:
        wq, wk, wv = jnp.split(pr["wqkv"], 3, axis=0)      # PyTorch (out, in)
        bq, bk, bv = jnp.split(pr["bqkv"][0], 3)
        wq_t.append(wq.T)
        wk_t.append(wk.T)
        wv_t.append(wv.T)
        wo_t.append(pr["wo"].T)                             # (D, D)
        w1_t.append(pr["w1"].T)                             # (D, FF)
        w2_t.append(pr["w2"].T)                             # (FF, D)
        slab = jnp.stack([
            _pad64(bq), _pad64(bk), _pad64(bv), _pad64(pr["bo"][0]),
            pr["b1"][0],                                    # already 64 wide
            _pad64(pr["b2"][0]),
            _pad64(pr["g1"][0]), _pad64(pr["be1"][0]),
            _pad64(pr["g2"][0]), _pad64(pr["be2"][0]),
        ], axis=0)                                          # (10, 64)
        slabs.append(slab)
    return (jnp.stack(wq_t), jnp.stack(wk_t), jnp.stack(wv_t), jnp.stack(wo_t),
            jnp.stack(w1_t), jnp.stack(w2_t), jnp.stack(slabs))


def build_attn_bias(padding_mask):
    """(B, S) bool key_padding_mask -> (B*S, B*S) additive bias: 0 where query
    and key belong to the same batch element and the key is not padded, -1e9
    otherwise (so one row-softmax over B*S keys equals per-batch softmax)."""
    B, S = padding_mask.shape
    row_b = jnp.arange(B * S) // S
    same = row_b[:, None] == row_b[None, :]
    key_ok = ~padding_mask.reshape(B * S)
    ok = same & key_ok[None, :]
    # NOTE: a fully-padded batch row would get a uniform distribution over its
    # padded keys here (PyTorch would emit NaNs); not reachable with these inputs.
    return jnp.where(ok, 0.0, NEG).astype(jnp.float32)


def build_head_masks():
    lane = jnp.arange(D_MODEL) // HEAD_DIM
    return (lane[None, :] == jnp.arange(N_HEAD)[:, None]).astype(jnp.float32)


def transformer_encoder_pallas(src, pos, padding_mask, layer_params):
    """src, pos: (B, S, D); padding_mask: (B, S) bool (True = pad)."""
    B, S, D = src.shape
    L = len(layer_params)
    x0 = src.reshape(B * S, D).astype(jnp.float32)
    pf = pos.reshape(B * S, D).astype(jnp.float32)
    bias = build_attn_bias(padding_mask)
    hm = build_head_masks()
    wq_t, wk_t, wv_t, wo_t, w1_t, w2_t, slabs = pack_params(layer_params)

    def resident(arr):                     # constant block across layer steps
        return pl.BlockSpec(arr.shape, lambda l, _n=arr.ndim: (0,) * _n)

    def per_layer(arr):                    # one layer's slab per grid step
        return pl.BlockSpec((1,) + arr.shape[1:], lambda l: (l, 0, 0))

    out = pl.pallas_call(
        encoder_kernel,
        out_shape=jax.ShapeDtypeStruct((B * S, D), jnp.float32),
        grid_spec=pltpu.PrefetchScalarGridSpec(
            num_scalar_prefetch=0,
            grid=(L,),
            in_specs=[resident(x0), resident(pf), resident(bias), resident(hm),
                      per_layer(wq_t), per_layer(wk_t), per_layer(wv_t),
                      per_layer(wo_t), per_layer(w1_t), per_layer(w2_t),
                      per_layer(slabs)],
            out_specs=pl.BlockSpec((B * S, D), lambda l: (0, 0)),
        ),
        compiler_params=pltpu.CompilerParams(
            dimension_semantics=("arbitrary",)),   # layer axis is a sequential carry
    )(x0, pf, bias, hm, wq_t, wk_t, wv_t, wo_t, w1_t, w2_t, slabs)
    return out.reshape(B, S, D)


# --------------- pure-JAX reference (mirrors PyTorch semantics) ---------------
def _encoder_layer_ref(x, pos, mask_bias, p):
    qk_in = x + pos
    wq, wk, wv = jnp.split(p["wqkv"], 3, axis=0)
    bq, bk, bv = jnp.split(p["bqkv"][0], 3)
    q = qk_in @ wq.T + bq
    k = qk_in @ wk.T + bk
    v = x @ wv.T + bv
    B, S, D = x.shape
    qh = q.reshape(B, S, N_HEAD, HEAD_DIM).transpose(0, 2, 1, 3)
    kh = k.reshape(B, S, N_HEAD, HEAD_DIM).transpose(0, 2, 1, 3)
    vh = v.reshape(B, S, N_HEAD, HEAD_DIM).transpose(0, 2, 1, 3)
    s = jnp.einsum("bhqd,bhkd->bhqk", qh, kh) / math.sqrt(HEAD_DIM)
    s = s + mask_bias[:, None, :, :]
    a = jax.nn.softmax(s, axis=-1)
    ctx = jnp.einsum("bhqk,bhkd->bhqd", a, vh).transpose(0, 2, 1, 3).reshape(B, S, D)
    attn_out = ctx @ p["wo"].T + p["bo"][0]
    x1 = _layer_norm(x + attn_out, p["g1"][0], p["be1"][0])
    ffn = jnp.maximum(x1 @ p["w1"].T + p["b1"][0], 0.0) @ p["w2"].T + p["b2"][0]
    return _layer_norm(x1 + ffn, p["g2"][0], p["be2"][0])


def _encoder_ref(src, pos, padding_mask, layer_params):
    mask_bias = jnp.where(padding_mask, NEG, 0.0).astype(jnp.float32)[:, None, :]
    out = src
    for p in layer_params:
        out = _encoder_layer_ref(out, pos, mask_bias, p)
    return out


# ------------------------------ parameter init --------------------------------
def _xavier(key, shape):
    fan_in, fan_out = shape[1], shape[0]
    lim = math.sqrt(6.0 / (fan_in + fan_out))
    return jax.random.uniform(key, shape, jnp.float32, -lim, lim)


def make_layer_params(key):
    ks = jax.random.split(key, 6)
    return {
        "wqkv": _xavier(ks[0], (3 * D_MODEL, D_MODEL)),
        "bqkv": jnp.zeros((1, 3 * D_MODEL), jnp.float32),
        "wo": _xavier(ks[1], (D_MODEL, D_MODEL)),
        "bo": jnp.zeros((1, D_MODEL), jnp.float32),
        "w1": _xavier(ks[2], (DIM_FF, D_MODEL)),
        "b1": jax.random.normal(ks[3], (1, DIM_FF), jnp.float32) * 0.02,
        "w2": _xavier(ks[4], (D_MODEL, DIM_FF)),
        "b2": jax.random.normal(ks[5], (1, D_MODEL), jnp.float32) * 0.02,
        "g1": jnp.ones((1, D_MODEL), jnp.float32),
        "be1": jnp.zeros((1, D_MODEL), jnp.float32),
        "g2": jnp.ones((1, D_MODEL), jnp.float32),
        "be2": jnp.zeros((1, D_MODEL), jnp.float32),
    }


if __name__ == "__main__":
    root = jax.random.PRNGKey(0)
    k_src, k_pos, k_params = jax.random.split(root, 3)

    src = jax.random.normal(k_src, (BATCH, SEQ, D_MODEL), jnp.float32)
    pos = jax.random.normal(k_pos, (BATCH, SEQ, D_MODEL), jnp.float32)
    # key_padding_mask: True = padded position (last two tokens of batch element 1)
    padding_mask = jnp.zeros((BATCH, SEQ), jnp.bool_).at[1, SEQ - 2:].set(True)

    layer_params = [make_layer_params(k)
                    for k in jax.random.split(k_params, NUM_LAYERS)]

    out = transformer_encoder_pallas(src, pos, padding_mask, layer_params)
    out = jax.block_until_ready(out)

    ref = _encoder_ref(src, pos, padding_mask, layer_params)
    assert out.shape == (BATCH, SEQ, D_MODEL)
    assert jnp.all(jnp.isfinite(out))
    err = jnp.max(jnp.abs(out - ref))
    assert jnp.allclose(out, ref, atol=1e-3, rtol=1e-3), f"max err {err}"

    print("KERNEL_OK")
</pallas_src>

<mosaic_0001>
module attributes {stable_mosaic.version = 11 : i64} {
  func.func @encoder_kernel(%arg0: i32, %arg1: memref<16x32xf32, #tpu.memory_space<vmem>>, %arg2: memref<16x32xf32, #tpu.memory_space<vmem>>, %arg3: memref<16x16xf32, #tpu.memory_space<vmem>>, %arg4: memref<4x32xf32, #tpu.memory_space<vmem>>, %arg5: memref<1x32x32xf32, #tpu.memory_space<vmem>>, %arg6: memref<1x32x32xf32, #tpu.memory_space<vmem>>, %arg7: memref<1x32x32xf32, #tpu.memory_space<vmem>>, %arg8: memref<1x32x32xf32, #tpu.memory_space<vmem>>, %arg9: memref<1x32x64xf32, #tpu.memory_space<vmem>>, %arg10: memref<1x64x32xf32, #tpu.memory_space<vmem>>, %arg11: memref<1x10x64xf32, #tpu.memory_space<vmem>>, %arg12: memref<16x32xf32, #tpu.memory_space<vmem>>) attributes {dimension_semantics = [#tpu.dimension_semantics<arbitrary>], iteration_bounds = array<i64: 2>, scalar_prefetch = 0 : i64, scratch_operands = 0 : i64, tpu.core_type = #tpu.core_type<tc>, window_params = [{pipeline_mode = #tpu.pipeline_mode<synchronous>, transform_indices = @transform_0, window_bounds = array<i64: 16, 32>}, {pipeline_mode = #tpu.pipeline_mode<synchronous>, transform_indices = @transform_1, window_bounds = array<i64: 16, 32>}, {pipeline_mode = #tpu.pipeline_mode<synchronous>, transform_indices = @transform_2, window_bounds = array<i64: 16, 16>}, {pipeline_mode = #tpu.pipeline_mode<synchronous>, transform_indices = @transform_3, window_bounds = array<i64: 4, 32>}, {transform_indices = @transform_4, window_bounds = array<i64: 1, 32, 32>}, {transform_indices = @transform_5, window_bounds = array<i64: 1, 32, 32>}, {transform_indices = @transform_6, window_bounds = array<i64: 1, 32, 32>}, {transform_indices = @transform_7, window_bounds = array<i64: 1, 32, 32>}, {transform_indices = @transform_8, window_bounds = array<i64: 1, 32, 64>}, {transform_indices = @transform_9, window_bounds = array<i64: 1, 64, 32>}, {transform_indices = @transform_10, window_bounds = array<i64: 1, 10, 64>}, {pipeline_mode = #tpu.pipeline_mode<synchronous>, transform_indices = @transform_11, window_bounds = array<i64: 16, 32>}]} {
    %c0_i32 = arith.constant 0 : i32
    %0 = arith.cmpi eq, %arg0, %c0_i32 : i32
    %1 = arith.extui %0 : i1 to i32
    %c0_i32_0 = arith.constant 0 : i32
    %2 = arith.cmpi ne, %1, %c0_i32_0 : i32
    scf.if %2 {
      %c0_68 = arith.constant 0 : index
      %c0_69 = arith.constant 0 : index
      %173 = vector.load %arg1[%c0_68, %c0_69] : memref<16x32xf32, #tpu.memory_space<vmem>>, vector<16x32xf32>
      %c0_70 = arith.constant 0 : index
      %c0_71 = arith.constant 0 : index
      %174 = vector.load %arg12[%c0_70, %c0_71] : memref<16x32xf32, #tpu.memory_space<vmem>>, vector<16x32xf32>
      tpu.vector_store %arg12[%c0_70, %c0_71], %173 {strides = array<i32>} : memref<16x32xf32, #tpu.memory_space<vmem>>, vector<16x32xf32>,
    } else {
    }
    %c0 = arith.constant 0 : index
    %c0_1 = arith.constant 0 : index
    %3 = vector.load %arg12[%c0, %c0_1] : memref<16x32xf32, #tpu.memory_space<vmem>>, vector<16x32xf32>
    %c0_2 = arith.constant 0 : index
    %c0_3 = arith.constant 0 : index
    %4 = vector.load %arg2[%c0_2, %c0_3] : memref<16x32xf32, #tpu.memory_space<vmem>>, vector<16x32xf32>
    %c0_4 = arith.constant 0 : index
    %c0_5 = arith.constant 0 : index
    %5 = vector.load %arg3[%c0_4, %c0_5] : memref<16x16xf32, #tpu.memory_space<vmem>>, vector<16x16xf32>
    %c0_6 = arith.constant 0 : index
    %c0_7 = arith.constant 0 : index
    %c0_8 = arith.constant 0 : index
    %6 = vector.load %arg11[%c0_6, %c0_7, %c0_8] : memref<1x10x64xf32, #tpu.memory_space<vmem>>, vector<1x10x64xf32>
    %7 = vector.shape_cast %6 : vector<1x10x64xf32> to vector<10x64xf32>
    %8 = vector.extract_strided_slice %7 {offsets = [0, 0], sizes = [1, 32], strides = [1, 1]} : vector<10x64xf32> to vector<1x32xf32>
    %9 = vector.extract_strided_slice %7 {offsets = [1, 0], sizes = [1, 32], strides = [1, 1]} : vector<10x64xf32> to vector<1x32xf32>
    %10 = vector.extract_strided_slice %7 {offsets = [2, 0], sizes = [1, 32], strides = [1, 1]} : vector<10x64xf32> to vector<1x32xf32>
    %11 = vector.extract_strided_slice %7 {offsets = [3, 0], sizes = [1, 32], strides = [1, 1]} : vector<10x64xf32> to vector<1x32xf32>
    %12 = vector.extract_strided_slice %7 {offsets = [4, 0], sizes = [1, 64], strides = [1, 1]} : vector<10x64xf32> to vector<1x64xf32>
    %13 = vector.extract_strided_slice %7 {offsets = [5, 0], sizes = [1, 32], strides = [1, 1]} : vector<10x64xf32> to vector<1x32xf32>
    %14 = vector.extract_strided_slice %7 {offsets = [6, 0], sizes = [1, 32], strides = [1, 1]} : vector<10x64xf32> to vector<1x32xf32>
    %15 = vector.extract_strided_slice %7 {offsets = [7, 0], sizes = [1, 32], strides = [1, 1]} : vector<10x64xf32> to vector<1x32xf32>
    %16 = vector.extract_strided_slice %7 {offsets = [8, 0], sizes = [1, 32], strides = [1, 1]} : vector<10x64xf32> to vector<1x32xf32>
    %17 = vector.extract_strided_slice %7 {offsets = [9, 0], sizes = [1, 32], strides = [1, 1]} : vector<10x64xf32> to vector<1x32xf32>
    %18 = arith.addf %3, %4 : vector<16x32xf32>
    %c0_9 = arith.constant 0 : index
    %c0_10 = arith.constant 0 : index
    %c0_11 = arith.constant 0 : index
    %19 = vector.load %arg5[%c0_9, %c0_10, %c0_11] : memref<1x32x32xf32, #tpu.memory_space<vmem>>, vector<1x32x32xf32>
    %20 = vector.shape_cast %19 : vector<1x32x32xf32> to vector<32x32xf32>
    %cst = arith.constant dense<0.000000e+00> : vector<16x32xf32>
    %21 = tpu.matmul %18, %20, %cst {dimension_numbers = #tpu.dot_dimension_numbers<[1], [0], [0], [1], [0, 0, 1, 1], [], []>, precision = #tpu.contract_precision<fp32>} : vector<16x32xf32>, vector<32x32xf32>, vector<16x32xf32> -> vector<16x32xf32>
    %22 = vector.broadcast %8 : vector<1x32xf32> to vector<16x32xf32>
    %23 = arith.addf %21, %22 : vector<16x32xf32>
    %cst_12 = arith.constant 0.353553385 : f32
    %24 = vector.broadcast %cst_12 : f32 to vector<16x32xf32>
    %25 = arith.mulf %23, %24 : vector<16x32xf32>
    %c0_13 = arith.constant 0 : index
    %c0_14 = arith.constant 0 : index
    %c0_15 = arith.constant 0 : index
    %26 = vector.load %arg6[%c0_13, %c0_14, %c0_15] : memref<1x32x32xf32, #tpu.memory_space<vmem>>, vector<1x32x32xf32>
    %27 = vector.shape_cast %26 : vector<1x32x32xf32> to vector<32x32xf32>
    %cst_16 = arith.constant dense<0.000000e+00> : vector<16x32xf32>
    %28 = tpu.matmul %18, %27, %cst_16 {dimension_numbers = #tpu.dot_dimension_numbers<[1], [0], [0], [1], [0, 0, 1, 1], [], []>, precision = #tpu.contract_precision<fp32>} : vector<16x32xf32>, vector<32x32xf32>, vector<16x32xf32> -> vector<16x32xf32>
    %29 = vector.broadcast %9 : vector<1x32xf32> to vector<16x32xf32>
    %30 = arith.addf %28, %29 : vector<16x32xf32>
    %c0_17 = arith.constant 0 : index
    %c0_18 = arith.constant 0 : index
    %c0_19 = arith.constant 0 : index
    %31 = vector.load %arg7[%c0_17, %c0_18, %c0_19] : memref<1x32x32xf32, #tpu.memory_space<vmem>>, vector<1x32x32xf32>
    %32 = vector.shape_cast %31 : vector<1x32x32xf32> to vector<32x32xf32>
    %cst_20 = arith.constant dense<0.000000e+00> : vector<16x32xf32>
    %33 = tpu.matmul %3, %32, %cst_20 {dimension_numbers = #tpu.dot_dimension_numbers<[1], [0], [0], [1], [0, 0, 1, 1], [], []>, precision = #tpu.contract_precision<fp32>} : vector<16x32xf32>, vector<32x32xf32>, vector<16x32xf32> -> vector<16x32xf32>
    %34 = vector.broadcast %10 : vector<1x32xf32> to vector<16x32xf32>
    %35 = arith.addf %33, %34 : vector<16x32xf32>
    %cst_21 = arith.constant 0.000000e+00 : f32
    %36 = vector.broadcast %cst_21 : f32 to vector<16x32xf32>
    %c0_22 = arith.constant 0 : index
    %c0_23 = arith.constant 0 : index
    %37 = vector.load %arg4[%c0_22, %c0_23] : memref<4x32xf32, #tpu.memory_space<vmem>>, vector<1x32xf32>
    %38 = vector.broadcast %37 : vector<1x32xf32> to vector<16x32xf32>
    %39 = arith.mulf %25, %38 : vector<16x32xf32>
    %cst_24 = arith.constant dense<0.000000e+00> : vector<16x16xf32>
    %40 = tpu.matmul %39, %30, %cst_24 {dimension_numbers = #tpu.dot_dimension_numbers<[1], [1], [0], [0], [0, 0, 1, 0], [], []>, precision = #tpu.contract_precision<fp32>} : vector<16x32xf32>, vector<16x32xf32>, vector<16x16xf32> -> vector<16x16xf32>
    %41 = arith.addf %40, %5 : vector<16x16xf32>
    %cst_25 = arith.constant dense<0xFF800000> : vector<16xf32>
    %42 = vector.multi_reduction <maximumf>, %41, %cst_25 [1] : vector<16x16xf32> to vector<16xf32>
    %43 = vector.shape_cast %42 : vector<16xf32> to vector<16x1xf32>
    %44 = vector.broadcast %43 : vector<16x1xf32> to vector<16x16xf32>
    %45 = arith.subf %41, %44 : vector<16x16xf32>
    %46 = math.exp %45 : vector<16x16xf32>
    %cst_26 = arith.constant dense<0.000000e+00> : vector<16xf32>
    %47 = vector.multi_reduction <add>, %46, %cst_26 [1] : vector<16x16xf32> to vector<16xf32>
    %48 = vector.shape_cast %47 : vector<16xf32> to vector<16x1xf32>
    %49 = vector.broadcast %48 : vector<16x1xf32> to vector<16x16xf32>
    %50 = arith.divf %46, %49 : vector<16x16xf32>
    %51 = vector.broadcast %37 : vector<1x32xf32> to vector<16x32xf32>
    %52 = arith.mulf %35, %51 : vector<16x32xf32>
    %cst_27 = arith.constant dense<0.000000e+00> : vector<16x32xf32>
    %53 = tpu.matmul %50, %52, %cst_27 {dimension_numbers = #tpu.dot_dimension_numbers<[1], [0], [0], [1], [0, 0, 1, 1], [], []>, precision = #tpu.contract_precision<fp32>} : vector<16x16xf32>, vector<16x32xf32>, vector<16x32xf32> -> vector<16x32xf32>
    %54 = arith.addf %36, %53 : vector<16x32xf32>
    %c1 = arith.constant 1 : index
    %c0_28 = arith.constant 0 : index
    %55 = vector.load %arg4[%c1, %c0_28] : memref<4x32xf32, #tpu.memory_space<vmem>>, vector<1x32xf32>
    %56 = vector.broadcast %55 : vector<1x32xf32> to vector<16x32xf32>
    %57 = arith.mulf %25, %56 : vector<16x32xf32>
    %cst_29 = arith.constant dense<0.000000e+00> : vector<16x16xf32>
    %58 = tpu.matmul %57, %30, %cst_29 {dimension_numbers = #tpu.dot_dimension_numbers<[1], [1], [0], [0], [0, 0, 1, 0], [], []>, precision = #tpu.contract_precision<fp32>} : vector<16x32xf32>, vector<16x32xf32>, vector<16x16xf32> -> vector<16x16xf32>
    %59 = arith.addf %58, %5 : vector<16x16xf32>
    %cst_30 = arith.constant dense<0xFF800000> : vector<16xf32>
    %60 = vector.multi_reduction <maximumf>, %59, %cst_30 [1] : vector<16x16xf32> to vector<16xf32>
    %61 = vector.shape_cast %60 : vector<16xf32> to vector<16x1xf32>
    %62 = vector.broadcast %61 : vector<16x1xf32> to vector<16x16xf32>
    %63 = arith.subf %59, %62 : vector<16x16xf32>
    %64 = math.exp %63 : vector<16x16xf32>
    %cst_31 = arith.constant dense<0.000000e+00> : vector<16xf32>
    %65 = vector.multi_reduction <add>, %64, %cst_31 [1] : vector<16x16xf32> to vector<16xf32>
    %66 = vector.shape_cast %65 : vector<16xf32> to vector<16x1xf32>
    %67 = vector.broadcast %66 : vector<16x1xf32> to vector<16x16xf32>
    %68 = arith.divf %64, %67 : vector<16x16xf32>
    %69 = vector.broadcast %55 : vector<1x32xf32> to vector<16x32xf32>
    %70 = arith.mulf %35, %69 : vector<16x32xf32>
    %cst_32 = arith.constant dense<0.000000e+00> : vector<16x32xf32>
    %71 = tpu.matmul %68, %70, %cst_32 {dimension_numbers = #tpu.dot_dimension_numbers<[1], [0], [0], [1], [0, 0, 1, 1], [], []>, precision = #tpu.contract_precision<fp32>} : vector<16x16xf32>, vector<16x32xf32>, vector<16x32xf32> -> vector<16x32xf32>
    %72 = arith.addf %54, %71 : vector<16x32xf32>
    %c2 = arith.constant 2 : index
    %c0_33 = arith.constant 0 : index
    %73 = vector.load %arg4[%c2, %c0_33] : memref<4x32xf32, #tpu.memory_space<vmem>>, vector<1x32xf32>
    %74 = vector.broadcast %73 : vector<1x32xf32> to vector<16x32xf32>
    %75 = arith.mulf %25, %74 : vector<16x32xf32>
    %cst_34 = arith.constant dense<0.000000e+00> : vector<16x16xf32>
    %76 = tpu.matmul %75, %30, %cst_34 {dimension_numbers = #tpu.dot_dimension_numbers<[1], [1], [0], [0], [0, 0, 1, 0], [], []>, precision = #tpu.contract_precision<fp32>} : vector<16x32xf32>, vector<16x32xf32>, vector<16x16xf32> -> vector<16x16xf32>
    %77 = arith.addf %76, %5 : vector<16x16xf32>
    %cst_35 = arith.constant dense<0xFF800000> : vector<16xf32>
    %78 = vector.multi_reduction <maximumf>, %77, %cst_35 [1] : vector<16x16xf32> to vector<16xf32>
    %79 = vector.shape_cast %78 : vector<16xf32> to vector<16x1xf32>
    %80 = vector.broadcast %79 : vector<16x1xf32> to vector<16x16xf32>
    %81 = arith.subf %77, %80 : vector<16x16xf32>
    %82 = math.exp %81 : vector<16x16xf32>
    %cst_36 = arith.constant dense<0.000000e+00> : vector<16xf32>
    %83 = vector.multi_reduction <add>, %82, %cst_36 [1] : vector<16x16xf32> to vector<16xf32>
    %84 = vector.shape_cast %83 : vector<16xf32> to vector<16x1xf32>
    %85 = vector.broadcast %84 : vector<16x1xf32> to vector<16x16xf32>
    %86 = arith.divf %82, %85 : vector<16x16xf32>
    %87 = vector.broadcast %73 : vector<1x32xf32> to vector<16x32xf32>
    %88 = arith.mulf %35, %87 : vector<16x32xf32>
    %cst_37 = arith.constant dense<0.000000e+00> : vector<16x32xf32>
    %89 = tpu.matmul %86, %88, %cst_37 {dimension_numbers = #tpu.dot_dimension_numbers<[1], [0], [0], [1], [0, 0, 1, 1], [], []>, precision = #tpu.contract_precision<fp32>} : vector<16x16xf32>, vector<16x32xf32>, vector<16x32xf32> -> vector<16x32xf32>
    %90 = arith.addf %72, %89 : vector<16x32xf32>
    %c3 = arith.constant 3 : index
    %c0_38 = arith.constant 0 : index
    %91 = vector.load %arg4[%c3, %c0_38] : memref<4x32xf32, #tpu.memory_space<vmem>>, vector<1x32xf32>
    %92 = vector.broadcast %91 : vector<1x32xf32> to vector<16x32xf32>
    %93 = arith.mulf %25, %92 : vector<16x32xf32>
    %cst_39 = arith.constant dense<0.000000e+00> : vector<16x16xf32>
    %94 = tpu.matmul %93, %30, %cst_39 {dimension_numbers = #tpu.dot_dimension_numbers<[1], [1], [0], [0], [0, 0, 1, 0], [], []>, precision = #tpu.contract_precision<fp32>} : vector<16x32xf32>, vector<16x32xf32>, vector<16x16xf32> -> vector<16x16xf32>
    %95 = arith.addf %94, %5 : vector<16x16xf32>
    %cst_40 = arith.constant dense<0xFF800000> : vector<16xf32>
    %96 = vector.multi_reduction <maximumf>, %95, %cst_40 [1] : vector<16x16xf32> to vector<16xf32>
    %97 = vector.shape_cast %96 : vector<16xf32> to vector<16x1xf32>
    %98 = vector.broadcast %97 : vector<16x1xf32> to vector<16x16xf32>
    %99 = arith.subf %95, %98 : vector<16x16xf32>
    %100 = math.exp %99 : vector<16x16xf32>
    %cst_41 = arith.constant dense<0.000000e+00> : vector<16xf32>
    %101 = vector.multi_reduction <add>, %100, %cst_41 [1] : vector<16x16xf32> to vector<16xf32>
    %102 = vector.shape_cast %101 : vector<16xf32> to vector<16x1xf32>
    %103 = vector.broadcast %102 : vector<16x1xf32> to vector<16x16xf32>
    %104 = arith.divf %100, %103 : vector<16x16xf32>
    %105 = vector.broadcast %91 : vector<1x32xf32> to vector<16x32xf32>
    %106 = arith.mulf %35, %105 : vector<16x32xf32>
    %cst_42 = arith.constant dense<0.000000e+00> : vector<16x32xf32>
    %107 = tpu.matmul %104, %106, %cst_42 {dimension_numbers = #tpu.dot_dimension_numbers<[1], [0], [0], [1], [0, 0, 1, 1], [], []>, precision = #tpu.contract_precision<fp32>} : vector<16x16xf32>, vector<16x32xf32>, vector<16x32xf32> -> vector<16x32xf32>
    %108 = arith.addf %90, %107 : vector<16x32xf32>
    %c0_43 = arith.constant 0 : index
    %c0_44 = arith.constant 0 : index
    %c0_45 = arith.constant 0 : index
    %109 = vector.load %arg8[%c0_43, %c0_44, %c0_45] : memref<1x32x32xf32, #tpu.memory_space<vmem>>, vector<1x32x32xf32>
    %110 = vector.shape_cast %109 : vector<1x32x32xf32> to vector<32x32xf32>
    %cst_46 = arith.constant dense<0.000000e+00> : vector<16x32xf32>
    %111 = tpu.matmul %108, %110, %cst_46 {dimension_numbers = #tpu.dot_dimension_numbers<[1], [0], [0], [1], [0, 0, 1, 1], [], []>, precision = #tpu.contract_precision<fp32>} : vector<16x32xf32>, vector<32x32xf32>, vector<16x32xf32> -> vector<16x32xf32>
    %112 = vector.broadcast %11 : vector<1x32xf32> to vector<16x32xf32>
    %113 = arith.addf %111, %112 : vector<16x32xf32>
    %114 = arith.addf %3, %113 : vector<16x32xf32>
    %cst_47 = arith.constant dense<0.000000e+00> : vector<16xf32>
    %115 = vector.multi_reduction <add>, %114, %cst_47 [1] : vector<16x32xf32> to vector<16xf32>
    %116 = vector.shape_cast %115 : vector<16xf32> to vector<16x1xf32>
    %cst_48 = arith.constant 3.200000e+01 : f32
    %117 = vector.broadcast %cst_48 : f32 to vector<16x1xf32>
    %118 = arith.divf %116, %117 : vector<16x1xf32>
    %119 = vector.broadcast %118 : vector<16x1xf32> to vector<16x32xf32>
    %120 = arith.subf %114, %119 : vector<16x32xf32>
    %121 = arith.mulf %120, %120 : vector<16x32xf32>
    %cst_49 = arith.constant dense<0.000000e+00> : vector<16xf32>
    %122 = vector.multi_reduction <add>, %121, %cst_49 [1] : vector<16x32xf32> to vector<16xf32>
    %123 = vector.shape_cast %122 : vector<16xf32> to vector<16x1xf32>
    %cst_50 = arith.constant 3.200000e+01 : f32
    %124 = vector.broadcast %cst_50 : f32 to vector<16x1xf32>
    %125 = arith.divf %123, %124 : vector<16x1xf32>
    %126 = vector.broadcast %118 : vector<16x1xf32> to vector<16x32xf32>
    %127 = arith.subf %114, %126 : vector<16x32xf32>
    %cst_51 = arith.constant 9.99999974E-6 : f32
    %128 = vector.broadcast %cst_51 : f32 to vector<16x1xf32>
    %129 = arith.addf %125, %128 : vector<16x1xf32>
    %130 = math.rsqrt %129 : vector<16x1xf32>
    %131 = vector.broadcast %130 : vector<16x1xf32> to vector<16x32xf32>
    %132 = arith.mulf %127, %131 : vector<16x32xf32>
    %133 = vector.broadcast %14 : vector<1x32xf32> to vector<16x32xf32>
    %134 = arith.mulf %132, %133 : vector<16x32xf32>
    %135 = vector.broadcast %15 : vector<1x32xf32> to vector<16x32xf32>
    %136 = arith.addf %134, %135 : vector<16x32xf32>
    %c0_52 = arith.constant 0 : index
    %c0_53 = arith.constant 0 : index
    %c0_54 = arith.constant 0 : index
    %137 = vector.load %arg9[%c0_52, %c0_53, %c0_54] : memref<1x32x64xf32, #tpu.memory_space<vmem>>, vector<1x32x64xf32>
    %138 = vector.shape_cast %137 : vector<1x32x64xf32> to vector<32x64xf32>
    %cst_55 = arith.constant dense<0.000000e+00> : vector<16x64xf32>
    %139 = tpu.matmul %136, %138, %cst_55 {dimension_numbers = #tpu.dot_dimension_numbers<[1], [0], [0], [1], [0, 0, 1, 1], [], []>, precision = #tpu.contract_precision<fp32>} : vector<16x32xf32>, vector<32x64xf32>, vector<16x64xf32> -> vector<16x64xf32>
    %140 = vector.broadcast %12 : vector<1x64xf32> to vector<16x64xf32>
    %141 = arith.addf %139, %140 : vector<16x64xf32>
    %cst_56 = arith.constant 0.000000e+00 : f32
    %142 = vector.broadcast %cst_56 : f32 to vector<16x64xf32>
    %143 = arith.maximumf %141, %142 : vector<16x64xf32>
    %c0_57 = arith.constant 0 : index
    %c0_58 = arith.constant 0 : index
    %c0_59 = arith.constant 0 : index
    %144 = vector.load %arg10[%c0_57, %c0_58, %c0_59] : memref<1x64x32xf32, #tpu.memory_space<vmem>>, vector<1x64x32xf32>
    %145 = vector.shape_cast %144 : vector<1x64x32xf32> to vector<64x32xf32>
    %cst_60 = arith.constant dense<0.000000e+00> : vector<16x32xf32>
    %146 = tpu.matmul %143, %145, %cst_60 {dimension_numbers = #tpu.dot_dimension_numbers<[1], [0], [0], [1], [0, 0, 1, 1], [], []>, precision = #tpu.contract_precision<fp32>} : vector<16x64xf32>, vector<64x32xf32>, vector<16x32xf32> -> vector<16x32xf32>
    %147 = vector.broadcast %13 : vector<1x32xf32> to vector<16x32xf32>
    %148 = arith.addf %146, %147 : vector<16x32xf32>
    %149 = arith.addf %136, %148 : vector<16x32xf32>
    %cst_61 = arith.constant dense<0.000000e+00> : vector<16xf32>
    %150 = vector.multi_reduction <add>, %149, %cst_61 [1] : vector<16x32xf32> to vector<16xf32>
    %151 = vector.shape_cast %150 : vector<16xf32> to vector<16x1xf32>
    %cst_62 = arith.constant 3.200000e+01 : f32
    %152 = vector.broadcast %cst_62 : f32 to vector<16x1xf32>
    %153 = arith.divf %151, %152 : vector<16x1xf32>
    %154 = vector.broadcast %153 : vector<16x1xf32> to vector<16x32xf32>
    %155 = arith.subf %149, %154 : vector<16x32xf32>
    %156 = arith.mulf %155, %155 : vector<16x32xf32>
    %cst_63 = arith.constant dense<0.000000e+00> : vector<16xf32>
    %157 = vector.multi_reduction <add>, %156, %cst_63 [1] : vector<16x32xf32> to vector<16xf32>
    %158 = vector.shape_cast %157 : vector<16xf32> to vector<16x1xf32>
    %cst_64 = arith.constant 3.200000e+01 : f32
    %159 = vector.broadcast %cst_64 : f32 to vector<16x1xf32>
    %160 = arith.divf %158, %159 : vector<16x1xf32>
    %161 = vector.broadcast %153 : vector<16x1xf32> to vector<16x32xf32>
    %162 = arith.subf %149, %161 : vector<16x32xf32>
    %cst_65 = arith.constant 9.99999974E-6 : f32
    %163 = vector.broadcast %cst_65 : f32 to vector<16x1xf32>
    %164 = arith.addf %160, %163 : vector<16x1xf32>
    %165 = math.rsqrt %164 : vector<16x1xf32>
    %166 = vector.broadcast %165 : vector<16x1xf32> to vector<16x32xf32>
    %167 = arith.mulf %162, %166 : vector<16x32xf32>
    %168 = vector.broadcast %16 : vector<1x32xf32> to vector<16x32xf32>
    %169 = arith.mulf %167, %168 : vector<16x32xf32>
    %170 = vector.broadcast %17 : vector<1x32xf32> to vector<16x32xf32>
    %171 = arith.addf %169, %170 : vector<16x32xf32>
    %c0_66 = arith.constant 0 : index
    %c0_67 = arith.constant 0 : index
    %172 = vector.load %arg12[%c0_66, %c0_67] : memref<16x32xf32, #tpu.memory_space<vmem>>, vector<16x32xf32>
    tpu.vector_store %arg12[%c0_66, %c0_67], %171 {strides = array<i32>} : memref<16x32xf32, #tpu.memory_space<vmem>>, vector<16x32xf32>,
    return
  }
  func.func @transform_0(%arg0: i32) -> (i32, i32) {
    %c0_i32 = arith.constant 0 : i32
    %c0_i32_0 = arith.constant 0 : i32
    %c0_i32_1 = arith.constant 0 : i32
    return %c0_i32, %c0_i32_0 : i32, i32
  }
  func.func @transform_1(%arg0: i32) -> (i32, i32) {
    %c0_i32 = arith.constant 0 : i32
    %c0_i32_0 = arith.constant 0 : i32
    %c0_i32_1 = arith.constant 0 : i32
    return %c0_i32, %c0_i32_0 : i32, i32
  }
  func.func @transform_2(%arg0: i32) -> (i32, i32) {
    %c0_i32 = arith.constant 0 : i32
    %c0_i32_0 = arith.constant 0 : i32
    %c0_i32_1 = arith.constant 0 : i32
    return %c0_i32, %c0_i32_0 : i32, i32
  }
  func.func @transform_3(%arg0: i32) -> (i32, i32) {
    %c0_i32 = arith.constant 0 : i32
    %c0_i32_0 = arith.constant 0 : i32
    %c0_i32_1 = arith.constant 0 : i32
    return %c0_i32, %c0_i32_0 : i32, i32
  }
  func.func @transform_4(%arg0: i32) -> (i32, i32, i32) {
    %c0_i32 = arith.constant 0 : i32
    %c0_i32_0 = arith.constant 0 : i32
    %c0_i32_1 = arith.constant 0 : i32
    return %arg0, %c0_i32, %c0_i32_0 : i32, i32, i32
  }
  func.func @transform_5(%arg0: i32) -> (i32, i32, i32) {
    %c0_i32 = arith.constant 0 : i32
    %c0_i32_0 = arith.constant 0 : i32
    %c0_i32_1 = arith.constant 0 : i32
    return %arg0, %c0_i32, %c0_i32_0 : i32, i32, i32
  }
  func.func @transform_6(%arg0: i32) -> (i32, i32, i32) {
    %c0_i32 = arith.constant 0 : i32
    %c0_i32_0 = arith.constant 0 : i32
    %c0_i32_1 = arith.constant 0 : i32
    return %arg0, %c0_i32, %c0_i32_0 : i32, i32, i32
  }
  func.func @transform_7(%arg0: i32) -> (i32, i32, i32) {
    %c0_i32 = arith.constant 0 : i32
    %c0_i32_0 = arith.constant 0 : i32
    %c0_i32_1 = arith.constant 0 : i32
    return %arg0, %c0_i32, %c0_i32_0 : i32, i32, i32
  }
  func.func @transform_8(%arg0: i32) -> (i32, i32, i32) {
    %c0_i32 = arith.constant 0 : i32
    %c0_i32_0 = arith.constant 0 : i32
    %c0_i32_1 = arith.constant 0 : i32
    return %arg0, %c0_i32, %c0_i32_0 : i32, i32, i32
  }
  func.func @transform_9(%arg0: i32) -> (i32, i32, i32) {
    %c0_i32 = arith.constant 0 : i32
    %c0_i32_0 = arith.constant 0 : i32
    %c0_i32_1 = arith.constant 0 : i32
    return %arg0, %c0_i32, %c0_i32_0 : i32, i32, i32
  }
  func.func @transform_10(%arg0: i32) -> (i32, i32, i32) {
    %c0_i32 = arith.constant 0 : i32
    %c0_i32_0 = arith.constant 0 : i32
    %c0_i32_1 = arith.constant 0 : i32
    return %arg0, %c0_i32, %c0_i32_0 : i32, i32, i32
  }
  func.func @transform_11(%arg0: i32) -> (i32, i32) {
    %c0_i32 = arith.constant 0 : i32
    %c0_i32_0 = arith.constant 0 : i32
    %c0_i32_1 = arith.constant 0 : i32
    return %c0_i32, %c0_i32_0 : i32, i32
  }
}

</mosaic_0001>

<llo_original>
// kernel: tpu_custom_call.1
$region0: #{tpu_custom_call.1}
  #allocation0 [shape = 'u32[]', space=smem, size = 0x4, offset = 0x4, fixed_abs, tag = 'smem constant byte address 0x4 - core index']
  #allocation1 [shape = 'u32[144,128]{1,0:T(1,128)}', space=vmem, size = 0x12000, scoped, tag = 'internal scratch']
  %s0 = inlined_call_operand.hbm [shape: f32[16,32], index: 0, kind: input, shape index: {}]
  %s1 = inlined_call_operand.hbm [shape: f32[16,32], index: 1, kind: input, shape index: {}]
  %s2 = inlined_call_operand.hbm [shape: f32[16,16], index: 2, kind: input, shape index: {}]
  %s3 = inlined_call_operand.vmem [shape: f32[4,32], index: 3, kind: input, shape index: {}]
  %s4 = inlined_call_operand.vmem [shape: f32[2,32,32], index: 4, kind: input, shape index: {}]
  %s5 = inlined_call_operand.vmem [shape: f32[2,32,32], index: 5, kind: input, shape index: {}]
  %s6 = inlined_call_operand.vmem [shape: f32[2,32,32], index: 6, kind: input, shape index: {}]
  %s7 = inlined_call_operand.hbm [shape: f32[2,32,32], index: 7, kind: input, shape index: {}]
  %s8 = inlined_call_operand.hbm [shape: f32[2,32,64], index: 8, kind: input, shape index: {}]
  %s9 = inlined_call_operand.vmem [shape: f32[2,64,32], index: 9, kind: input, shape index: {}]
  %s10 = inlined_call_operand.vmem [shape: f32[2,10,64], index: 10, kind: input, shape index: {}]
  %s11 = inlined_call_operand.hbm [shape: f32[16,32], index: 11, kind: output, shape index: {}]
  %s12 = sld [smem:[#allocation0]]
  $region101: #{tpu_custom_call.1} parent=0
    _
  %s14 = ssub.s32 1, %s12
  %s15 = scalar_select 0, %s14, %s12
  $region1: #{tpu_custom_call.1} parent=0
    #allocation2 [shape = 'u8[8192]{0}', space=vmem, size = 0x2000, scoped, tag = 'input window, operand 0, single buffered']
    #allocation3 [shape = 's32[2]{0}', space=sflag, size = 0x8, scoped, tag = 'scoped memory for tpu_custom_call.1']
    #allocation4 [shape = 's32[2]{0}', space=sflag, size = 0x8, scoped, tag = 'scoped memory for tpu_custom_call.1']
    #allocation5 [shape = 'u8[8192]{0}', space=vmem, size = 0x2000, scoped, tag = 'input window, operand 1, single buffered']
    #allocation6 [shape = 's32[1]{0}', space=sflag, size = 0x4, scoped, tag = 'scoped memory for tpu_custom_call.1']
    #allocation7 [shape = 'u8[8192]{0}', space=vmem, size = 0x2000, scoped, tag = 'input window, operand 2, single buffered']
    #allocation8 [shape = 'u8[32768]{0}', space=vmem, size = 0x8000, scoped, tag = 'input window, operand 7']
    #allocation9 [shape = 's32[2]{0}', space=sflag, size = 0x8, scoped, tag = 'scoped memory for tpu_custom_call.1']
    #allocation10 [shape = 'u8[32768]{0}', space=vmem, size = 0x8000, scoped, tag = 'input window, operand 8']
    #allocation11 [shape = 'u8[8192]{0}', space=vmem, size = 0x2000, scoped, tag = 'output window, operand 0, single buffered']
    %16 = vsyncpa [#allocation3], 0
    %17 = vsyncpa [#allocation6], 0
    %18 = vsyncpa [#allocation9], 0
    %s19 = scalar_lea.sflag [#allocation9], 1
    %20 = vsyncpa %s19, 0
    %21 = vsyncpa [#allocation4], 0
    loop: start=0, step=1, limit=4
    $region2: #{tpu_custom_call.1} parent=1 // loop_pre_header
      _
    $region3: #{tpu_custom_call.1} parent=1 // loop_header
      %s23 = sphi 0, %s27
      %p24 = scmp.ge.s32.totalorder %s23, 4
      %s31 = sphi 0, %s31
      %s33 = sphi 0, %s31
      %s34 = sphi 0, %s33
      %s48 = sphi 0, %s34
      %s52 = sphi 0, %s52
      %s54 = sphi 0, %s52
      %s55 = sphi 0, %s54
      %s69 = sphi 0, %s55
      %s73 = sphi 0, %s73
      %s75 = sphi 0, %s73
      %s76 = sphi 0, %s75
      %s90 = sphi 0, %s76
      %s94 = sphi 0, %s94
      %s96 = sphi 0, %s94
      %s97 = sphi 0, %s96
      %s111 = sphi 0, %s97
      %s117 = sphi 0, %s119
      %s120 = sphi 0, %s117
      %s121 = sphi 0, %s120
      %s137 = sphi 0, %s121
      %s143 = sphi 0, %s145
      %s146 = sphi 0, %s143
      %s147 = sphi 0, %s146
      %s163 = sphi 0, %s147
      %s169 = sphi 0, %s171
      %s172 = sphi 0, %s169
      %s173 = sphi 0, %s172
      %s189 = sphi 0, %s173
      %s195 = sphi 0, %s197
      %s198 = sphi 0, %s195
      %s199 = sphi 0, %s198
      %s215 = sphi 0, %s199
      %s221 = sphi 0, %s223
      %s224 = sphi 0, %s221
      %s225 = sphi 0, %s224
      %s241 = sphi 0, %s225
      %s247 = sphi 0, %s249
      %s250 = sphi 0, %s247
      %s251 = sphi 0, %s250
      %s267 = sphi 0, %s251
      %s273 = sphi 0, %s275
      %s276 = sphi 0, %s273
      %s277 = sphi 0, %s276
      %s293 = sphi 0, %s277
      %s297 = sphi 0, %s297
      %s299 = sphi 0, %s297
      %s300 = sphi 0, %s299
      %s314 = sphi 0, %s300
    $region4: #{tpu_custom_call.1} parent=1 // loop_header_branch
      %26 = sbr.rel (%p24) target = $region8
    $region5: #{tpu_custom_call.1} parent=1 // loop_body
      %s28 = ssub.s32 %s23, 1
      %s29 = ssub.s32 %s23, 2
      %s30 = sadd.s32 %s23, 1
      %s32 = sadd.s32 %s31, 1
      %p35 = scmp.eq.s32.totalorder %s23, 1
      %p36 = scmp.ne.s32.totalorder %s31, %s33
      %p37 = scmp.eq.s32.totalorder %s23, 0
      %p38 = por %p36, %p37
      %p39 = scmp.ne.s32.totalorder %s31, %s33
      %p40 = scmp.eq.s32.totalorder %s28, 1
      %p41 = por %p39, %p40
      %p42 = scmp.ne.s32.totalorder %s33, %s34
      %p43 = scmp.eq.s32.totalorder %s28, 0
      %p44 = por %p42, %p43
      %p45 = scmp.ne.s32.totalorder %s33, %s34
      %p46 = scmp.eq.s32.totalorder %s29, 1
      %p47 = por %p45, %p46
      %p49 = scmp.ne.s32.totalorder %s34, %s48
      %p50 = scmp.eq.s32.totalorder %s29, 0
      %p51 = por %p49, %p50
      %s53 = sadd.s32 %s52, 1
      %p56 = scmp.eq.s32.totalorder %s23, 1
      %p57 = scmp.ne.s32.totalorder %s52, %s54
      %p58 = scmp.eq.s32.totalorder %s23, 0
      %p59 = por %p57, %p58
      %p60 = scmp.ne.s32.totalorder %s52, %s54
      %p61 = scmp.eq.s32.totalorder %s28, 1
      %p62 = por %p60, %p61
      %p63 = scmp.ne.s32.totalorder %s54, %s55
      %p64 = scmp.eq.s32.totalorder %s28, 0
      %p65 = por %p63, %p64
      %p66 = scmp.ne.s32.totalorder %s54, %s55
      %p67 = scmp.eq.s32.totalorder %s29, 1
      %p68 = por %p66, %p67
      %p70 = scmp.ne.s32.totalorder %s55, %s69
      %p71 = scmp.eq.s32.totalorder %s29, 0
      %p72 = por %p70, %p71
      %s74 = sadd.s32 %s73, 1
      %p77 = scmp.eq.s32.totalorder %s23, 1
      %p78 = scmp.ne.s32.totalorder %s73, %s75
      %p79 = scmp.eq.s32.totalorder %s23, 0
      %p80 = por %p78, %p79
      %p81 = scmp.ne.s32.totalorder %s73, %s75
      %p82 = scmp.eq.s32.totalorder %s28, 1
      %p83 = por %p81, %p82
      %p84 = scmp.ne.s32.totalorder %s75, %s76
      %p85 = scmp.eq.s32.totalorder %s28, 0
      %p86 = por %p84, %p85
      %p87 = scmp.ne.s32.totalorder %s75, %s76
      %p88 = scmp.eq.s32.totalorder %s29, 1
      %p89 = por %p87, %p88
      %p91 = scmp.ne.s32.totalorder %s76, %s90
      %p92 = scmp.eq.s32.totalorder %s29, 0
      %p93 = por %p91, %p92
      %s95 = sadd.s32 %s94, 1
      %p98 = scmp.eq.s32.totalorder %s23, 1
      %p99 = scmp.ne.s32.totalorder %s94, %s96
      %p100 = scmp.eq.s32.totalorder %s23, 0
      %p101 = por %p99, %p100
      %p102 = scmp.ne.s32.totalorder %s94, %s96
      %p103 = scmp.eq.s32.totalorder %s28, 1
      %p104 = por %p102, %p103
      %p105 = scmp.ne.s32.totalorder %s96, %s97
      %p106 = scmp.eq.s32.totalorder %s28, 0
      %p107 = por %p105, %p106
      %p108 = scmp.ne.s32.totalorder %s96, %s97
      %p109 = scmp.eq.s32.totalorder %s29, 1
      %p110 = por %p108, %p109
      %p112 = scmp.ne.s32.totalorder %s97, %s111
      %p113 = scmp.eq.s32.totalorder %s29, 0
      %p114 = por %p112, %p113
      %s115 = ssub.s32 %s23, %s30
      %p116 = scmp.eq.s32.totalorder %s115, 0
      %s118 = sadd.s32 %s117, 1
      %s119 = scalar_select %p116, %s117, %s118
      %p122 = pneg %p116
      %p123 = scmp.eq.s32.totalorder %s23, 1
      %p124 = por %p122, %p123
      %p125 = scmp.ne.s32.totalorder %s117, %s120
      %p126 = scmp.eq.s32.totalorder %s23, 0
      %p127 = por %p125, %p126
      %p128 = scmp.ne.s32.totalorder %s117, %s120
      %p129 = scmp.eq.s32.totalorder %s28, 1
      %p130 = por %p128, %p129
      %p131 = scmp.ne.s32.totalorder %s120, %s121
      %p132 = scmp.eq.s32.totalorder %s28, 0
      %p133 = por %p131, %p132
      %p134 = scmp.ne.s32.totalorder %s120, %s121
      %p135 = scmp.eq.s32.totalorder %s29, 1
      %p136 = por %p134, %p135
      %p138 = scmp.ne.s32.totalorder %s121, %s137
      %p139 = scmp.eq.s32.totalorder %s29, 0
      %p140 = por %p138, %p139
      %s141 = ssub.s32 %s23, %s30
      %p142 = scmp.eq.s32.totalorder %s141, 0
      %s144 = sadd.s32 %s143, 1
      %s145 = scalar_select %p142, %s143, %s144
      %p148 = pneg %p142
      %p149 = scmp.eq.s32.totalorder %s23, 1
      %p150 = por %p148, %p149
      %p151 = scmp.ne.s32.totalorder %s143, %s146
      %p152 = scmp.eq.s32.totalorder %s23, 0
      %p153 = por %p151, %p152
      %p154 = scmp.ne.s32.totalorder %s143, %s146
      %p155 = scmp.eq.s32.totalorder %s28, 1
      %p156 = por %p154, %p155
      %p157 = scmp.ne.s32.totalorder %s146, %s147
      %p158 = scmp.eq.s32.totalorder %s28, 0
      %p159 = por %p157, %p158
      %p160 = scmp.ne.s32.totalorder %s146, %s147
      %p161 = scmp.eq.s32.totalorder %s29, 1
      %p162 = por %p160, %p161
      %p164 = scmp.ne.s32.totalorder %s147, %s163
      %p165 = scmp.eq.s32.totalorder %s29, 0
      %p166 = por %p164, %p165
      %s167 = ssub.s32 %s23, %s30
      %p168 = scmp.eq.s32.totalorder %s167, 0
      %s170 = sadd.s32 %s169, 1
      %s171 = scalar_select %p168, %s169, %s170
      %p174 = pneg %p168
      %p175 = scmp.eq.s32.totalorder %s23, 1
      %p176 = por %p174, %p175
      %p177 = scmp.ne.s32.totalorder %s169, %s172
      %p178 = scmp.eq.s32.totalorder %s23, 0
      %p179 = por %p177, %p178
      %p180 = scmp.ne.s32.totalorder %s169, %s172
      %p181 = scmp.eq.s32.totalorder %s28, 1
      %p182 = por %p180, %p181
      %p183 = scmp.ne.s32.totalorder %s172, %s173
      %p184 = scmp.eq.s32.totalorder %s28, 0
      %p185 = por %p183, %p184
      %p186 = scmp.ne.s32.totalorder %s172, %s173
      %p187 = scmp.eq.s32.totalorder %s29, 1
      %p188 = por %p186, %p187
      %p190 = scmp.ne.s32.totalorder %s173, %s189
      %p191 = scmp.eq.s32.totalorder %s29, 0
      %p192 = por %p190, %p191
      %s193 = ssub.s32 %s23, %s30
      %p194 = scmp.eq.s32.totalorder %s193, 0
      %s196 = sadd.s32 %s195, 1
      %s197 = scalar_select %p194, %s195, %s196
      %p200 = pneg %p194
      %p201 = scmp.eq.s32.totalorder %s23, 1
      %p202 = por %p200, %p201
      %p203 = scmp.ne.s32.totalorder %s195, %s198
      %p204 = scmp.eq.s32.totalorder %s23, 0
      %p205 = por %p203, %p204
      %p206 = scmp.ne.s32.totalorder %s195, %s198
      %p207 = scmp.eq.s32.totalorder %s28, 1
      %p208 = por %p206, %p207
      %p209 = scmp.ne.s32.totalorder %s198, %s199
      %p210 = scmp.eq.s32.totalorder %s28, 0
      %p211 = por %p209, %p210
      %p212 = scmp.ne.s32.totalorder %s198, %s199
      %p213 = scmp.eq.s32.totalorder %s29, 1
      %p214 = por %p212, %p213
      %p216 = scmp.ne.s32.totalorder %s199, %s215
      %p217 = scmp.eq.s32.totalorder %s29, 0
      %p218 = por %p216, %p217
      %s219 = ssub.s32 %s23, %s30
      %p220 = scmp.eq.s32.totalorder %s219, 0
      %s222 = sadd.s32 %s221, 1
      %s223 = scalar_select %p220, %s221, %s222
      %p226 = pneg %p220
      %p227 = scmp.eq.s32.totalorder %s23, 1
      %p228 = por %p226, %p227
      %p229 = scmp.ne.s32.totalorder %s221, %s224
      %p230 = scmp.eq.s32.totalorder %s23, 0
      %p231 = por %p229, %p230
      %p232 = scmp.ne.s32.totalorder %s221, %s224
      %p233 = scmp.eq.s32.totalorder %s28, 1
      %p234 = por %p232, %p233
      %p235 = scmp.ne.s32.totalorder %s224, %s225
      %p236 = scmp.eq.s32.totalorder %s28, 0
      %p237 = por %p235, %p236
      %p238 = scmp.ne.s32.totalorder %s224, %s225
      %p239 = scmp.eq.s32.totalorder %s29, 1
      %p240 = por %p238, %p239
      %p242 = scmp.ne.s32.totalorder %s225, %s241
      %p243 = scmp.eq.s32.totalorder %s29, 0
      %p244 = por %p242, %p243
      %s245 = ssub.s32 %s23, %s30
      %p246 = scmp.eq.s32.totalorder %s245, 0
      %s248 = sadd.s32 %s247, 1
      %s249 = scalar_select %p246, %s247, %s248
      %p252 = pneg %p246
      %p253 = scmp.eq.s32.totalorder %s23, 1
      %p254 = por %p252, %p253
      %p255 = scmp.ne.s32.totalorder %s247, %s250
      %p256 = scmp.eq.s32.totalorder %s23, 0
      %p257 = por %p255, %p256
      %p258 = scmp.ne.s32.totalorder %s247, %s250
      %p259 = scmp.eq.s32.totalorder %s28, 1
      %p260 = por %p258, %p259
      %p261 = scmp.ne.s32.totalorder %s250, %s251
      %p262 = scmp.eq.s32.totalorder %s28, 0
      %p263 = por %p261, %p262
      %p264 = scmp.ne.s32.totalorder %s250, %s251
      %p265 = scmp.eq.s32.totalorder %s29, 1
      %p266 = por %p264, %p265
      %p268 = scmp.ne.s32.totalorder %s251, %s267
      %p269 = scmp.eq.s32.totalorder %s29, 0
      %p270 = por %p268, %p269
      %s271 = ssub.s32 %s23, %s30
      %p272 = scmp.eq.s32.totalorder %s271, 0
      %s274 = sadd.s32 %s273, 1
      %s275 = scalar_select %p272, %s273, %s274
      %p278 = pneg %p272
      %p279 = scmp.eq.s32.totalorder %s23, 1
      %p280 = por %p278, %p279
      %p281 = scmp.ne.s32.totalorder %s273, %s276
      %p282 = scmp.eq.s32.totalorder %s23, 0
      %p283 = por %p281, %p282
      %p284 = scmp.ne.s32.totalorder %s273, %s276
      %p285 = scmp.eq.s32.totalorder %s28, 1
      %p286 = por %p284, %p285
      %p287 = scmp.ne.s32.totalorder %s276, %s277
      %p288 = scmp.eq.s32.totalorder %s28, 0
      %p289 = por %p287, %p288
      %p290 = scmp.ne.s32.totalorder %s276, %s277
      %p291 = scmp.eq.s32.totalorder %s29, 1
      %p292 = por %p290, %p291
      %p294 = scmp.ne.s32.totalorder %s277, %s293
      %p295 = scmp.eq.s32.totalorder %s29, 0
      %p296 = por %p294, %p295
      %s298 = sadd.s32 %s297, 1
      %p301 = scmp.eq.s32.totalorder %s23, 1
      %p302 = scmp.ne.s32.totalorder %s297, %s299
      %p303 = scmp.eq.s32.totalorder %s23, 0
      %p304 = por %p302, %p303
      %p305 = scmp.ne.s32.totalorder %s297, %s299
      %p306 = scmp.eq.s32.totalorder %s28, 1
      %p307 = por %p305, %p306
      %p308 = scmp.ne.s32.totalorder %s299, %s300
      %p309 = scmp.eq.s32.totalorder %s28, 0
      %p310 = por %p308, %p309
      %p311 = scmp.ne.s32.totalorder %s299, %s300
      %p312 = scmp.eq.s32.totalorder %s29, 1
      %p313 = por %p311, %p312
      %p315 = scmp.ne.s32.totalorder %s300, %s314
      %p316 = scmp.eq.s32.totalorder %s29, 0
      %p317 = por %p315, %p316
      %p318 = scmp.le.s32.totalorder 1, %s23
      %p319 = scmp.lt.s32.totalorder %s23, 3
      %p320 = pnand %p318, %p319
      %p321 = pneg %p320
      // Predicated region
      $region9: #{tpu_custom_call.1} parent=5 // pred_check
        _
      $region10: #{tpu_custom_call.1} parent=5 // pred_check_branch
        %323 = sbr.rel (%p320) target = $region12
      $region11: #{tpu_custom_call.1} parent=5 // pred_region
        %s324 = ssub.s32 %s23, 1
        // Predicated region
        $region13: #{tpu_custom_call.1} parent=11 // pred_check
          %p325 = pneg %p44
        $region14: #{tpu_custom_call.1} parent=11 // pred_check_branch
          %327 = sbr.rel (%p325) target = $region16
        $region15: #{tpu_custom_call.1} parent=11 // pred_region
          %s329 = ssub.s32 256, 256
          %330 = vsyncadd [#allocation3], %s329
          %s331 = sshll.u32 [#allocation2], 4
          %s332 = int_to_ptr.vmem [resolvable:$true] %s331
          %337 = dma.hbm_to_vmem [thread:$0]  %s0, 256, %s332, [#allocation3], 128, 128, 8
        $region16: #{tpu_custom_call.1} parent=11 // pred_fallthru
          _
        // Predicated region
        $region17: #{tpu_custom_call.1} parent=11 // pred_check
          %p338 = pneg %p65
        $region18: #{tpu_custom_call.1} parent=11 // pred_check_branch
          %340 = sbr.rel (%p338) target = $region20
        $region19: #{tpu_custom_call.1} parent=11 // pred_region
          %s342 = ssub.s32 256, 256
          %343 = vsyncadd [#allocation6], %s342
          %s344 = sshll.u32 [#allocation5], 4
          %s345 = int_to_ptr.vmem [resolvable:$true] %s344
          %350 = dma.hbm_to_vmem [thread:$0]  %s1, 256, %s345, [#allocation6], 128, 128, 8
        $region20: #{tpu_custom_call.1} parent=11 // pred_fallthru
          _
        // Predicated region
        $region21: #{tpu_custom_call.1} parent=11 // pred_check
          %p351 = pneg %p86
        $region22: #{tpu_custom_call.1} parent=11 // pred_check_branch
          %353 = sbr.rel (%p351) target = $region24
        $region23: #{tpu_custom_call.1} parent=11 // pred_region
          %s355 = ssub.s32 256, 256
          %356 = vsyncadd [#allocation6], %s355
          %s357 = sshll.u32 [#allocation7], 4
          %s358 = int_to_ptr.vmem [resolvable:$true] %s357
          %363 = dma.hbm_to_vmem [thread:$0]  %s2, 256, %s358, [#allocation6], 128, 128, 8
        $region24: #{tpu_custom_call.1} parent=11 // pred_fallthru
          _
        // Predicated region
        $region25: #{tpu_custom_call.1} parent=11 // pred_check
          %p364 = pneg %p107
        $region26: #{tpu_custom_call.1} parent=11 // pred_check_branch
          %366 = sbr.rel (%p364) target = $region28
        $region27: #{tpu_custom_call.1} parent=11 // pred_region
          _
        $region28: #{tpu_custom_call.1} parent=11 // pred_fallthru
          _
      $region12: #{tpu_custom_call.1} parent=5 // pred_fallthru
        _
      %p367 = scmp.lt.s32.totalorder %s23, 2
      // Predicated region
      $region29: #{tpu_custom_call.1} parent=5 // pred_check
        %p368 = pneg %p367
      $region30: #{tpu_custom_call.1} parent=5 // pred_check_branch
        %370 = sbr.rel (%p368) target = $region32
      $region31: #{tpu_custom_call.1} parent=5 // pred_region
        // Predicated region
        $region33: #{tpu_custom_call.1} parent=31 // pred_check
          %p371 = pneg %p127
        $region34: #{tpu_custom_call.1} parent=31 // pred_check_branch
          %373 = sbr.rel (%p371) target = $region36
        $region35: #{tpu_custom_call.1} parent=31 // pred_region
          %p374 = scmp.lt.s32.totalorder %s23, 1
          %s375 = scalar_select %p374, %s23, 1
          %s376 = smul.addr %s375, 4
          %s377 = smul.addr %s376, 8
          %s378 = scalar_lea.vmem %s4, %s377
        $region36: #{tpu_custom_call.1} parent=31 // pred_fallthru
          _
        // Predicated region
        $region37: #{tpu_custom_call.1} parent=31 // pred_check
          %p379 = pneg %p153
        $region38: #{tpu_custom_call.1} parent=31 // pred_check_branch
          %381 = sbr.rel (%p379) target = $region40
        $region39: #{tpu_custom_call.1} parent=31 // pred_region
          %p382 = scmp.lt.s32.totalorder %s23, 1
          %s383 = scalar_select %p382, %s23, 1
          %s384 = smul.addr %s383, 4
          %s385 = smul.addr %s384, 8
          %s386 = scalar_lea.vmem %s5, %s385
        $region40: #{tpu_custom_call.1} parent=31 // pred_fallthru
          _
        // Predicated region
        $region41: #{tpu_custom_call.1} parent=31 // pred_check
          %p387 = pneg %p179
        $region42: #{tpu_custom_call.1} parent=31 // pred_check_branch
          %389 = sbr.rel (%p387) target = $region44
        $region43: #{tpu_custom_call.1} parent=31 // pred_region
          %p390 = scmp.lt.s32.totalorder %s23, 1
          %s391 = scalar_select %p390, %s23, 1
          %s392 = smul.addr %s391, 4
          %s393 = smul.addr %s392, 8
          %s394 = scalar_lea.vmem %s6, %s393
        $region44: #{tpu_custom_call.1} parent=31 // pred_fallthru
          _
        // Predicated region
        $region45: #{tpu_custom_call.1} parent=31 // pred_check
          %p395 = pneg %p205
        $region46: #{tpu_custom_call.1} parent=31 // pred_check_branch
          %397 = sbr.rel (%p395) target = $region48
        $region47: #{tpu_custom_call.1} parent=31 // pred_region
          %s398 = sand.u32 %s23, 1
          %s399 = scalar_lea.sflag [#allocation9], %s398
          %s400 = sand.u32 %s195, 1
          %s401 = smul.addr %s400, 32
          %s402 = scalar_lea.vmem [#allocation8], %s401
          %s404 = ssub.s32 512, 512
          %405 = vsyncadd %s399, %s404
          %s406 = smul.addr %s23, 4
          %s407 = smul.addr %s406, 128
          %s408 = scalar_lea.hbm %s7, %s407
          %s409 = sshll.u32 %s402, 4
          %s410 = int_to_ptr.vmem [resolvable:$true] %s409
          %415 = dma.hbm_to_vmem [thread:$0]  %s408, 512, %s410, %s399, 128, 128, 8
        $region48: #{tpu_custom_call.1} parent=31 // pred_fallthru
          _
        // Predicated region
        $region49: #{tpu_custom_call.1} parent=31 // pred_check
          %p416 = pneg %p231
        $region50: #{tpu_custom_call.1} parent=31 // pred_check_branch
          %418 = sbr.rel (%p416) target = $region52
        $region51: #{tpu_custom_call.1} parent=31 // pred_region
          %s419 = sand.u32 %s23, 1
          %s420 = scalar_lea.sflag [#allocation9], %s419
          %s421 = sand.u32 %s221, 1
          %s422 = smul.addr %s421, 32
          %s423 = scalar_lea.vmem [#allocation10], %s422
          %s425 = ssub.s32 512, 512
          %426 = vsyncadd %s420, %s425
          %s427 = smul.addr %s23, 4
          %s428 = smul.addr %s427, 128
          %s429 = scalar_lea.hbm %s8, %s428
          %s430 = sshll.u32 %s423, 4
          %s431 = int_to_ptr.vmem [resolvable:$true] %s430
          %436 = dma.hbm_to_vmem [thread:$0]  %s429, 512, %s431, %s420, 128, 128, 8
        $region52: #{tpu_custom_call.1} parent=31 // pred_fallthru
          _
        // Predicated region
        $region53: #{tpu_custom_call.1} parent=31 // pred_check
          %p437 = pneg %p257
        $region54: #{tpu_custom_call.1} parent=31 // pred_check_branch
          %439 = sbr.rel (%p437) target = $region56
        $region55: #{tpu_custom_call.1} parent=31 // pred_region
          %p440 = scmp.lt.s32.totalorder %s23, 1
          %s441 = scalar_select %p440, %s23, 1
          %s442 = smul.addr %s441, 8
          %s443 = smul.addr %s442, 8
          %s444 = scalar_lea.vmem %s9, %s443
        $region56: #{tpu_custom_call.1} parent=31 // pred_fallthru
          _
        // Predicated region
        $region57: #{tpu_custom_call.1} parent=31 // pred_check
          %p445 = pneg %p283
        $region58: #{tpu_custom_call.1} parent=31 // pred_check_branch
          %447 = sbr.rel (%p445) target = $region60
        $region59: #{tpu_custom_call.1} parent=31 // pred_region
          %p448 = scmp.lt.s32.totalorder %s23, 1
          %s449 = scalar_select %p448, %s23, 1
          %s450 = smul.addr %s449, 2
          %s451 = smul.addr %s450, 8
          %s452 = scalar_lea.vmem %s10, %s451
        $region60: #{tpu_custom_call.1} parent=31 // pred_fallthru
          _
      $region32: #{tpu_custom_call.1} parent=5 // pred_fallthru
        _
      %p453 = scmp.le.s32.totalorder 1, %s23
      %p454 = scmp.lt.s32.totalorder %s23, 3
      %p455 = pnand %p453, %p454
      %p456 = pneg %p455
      // Predicated region
      $region61: #{tpu_custom_call.1} parent=5 // pred_check
        _
      $region62: #{tpu_custom_call.1} parent=5 // pred_check_branch
        %458 = sbr.rel (%p455) target = $region64
      $region63: #{tpu_custom_call.1} parent=5 // pred_region
        %s459 = ssub.s32 %s23, 1
        // Predicated region
        $region65: #{tpu_custom_call.1} parent=63 // pred_check
          %p460 = pneg %p44
        $region66: #{tpu_custom_call.1} parent=63 // pred_check_branch
          %462 = sbr.rel (%p460) target = $region68
        $region67: #{tpu_custom_call.1} parent=63 // pred_region
          %463 = dma.done [#allocation3], 256
        $region68: #{tpu_custom_call.1} parent=63 // pred_fallthru
          _
        // Predicated region
        $region69: #{tpu_custom_call.1} parent=63 // pred_check
          %p464 = pneg %p65
        $region70: #{tpu_custom_call.1} parent=63 // pred_check_branch
          %466 = sbr.rel (%p464) target = $region72
        $region71: #{tpu_custom_call.1} parent=63 // pred_region
          %467 = dma.done [#allocation6], 256
        $region72: #{tpu_custom_call.1} parent=63 // pred_fallthru
          _
        // Predicated region
        $region73: #{tpu_custom_call.1} parent=63 // pred_check
          %p468 = pneg %p86
        $region74: #{tpu_custom_call.1} parent=63 // pred_check_branch
          %470 = sbr.rel (%p468) target = $region76
        $region75: #{tpu_custom_call.1} parent=63 // pred_region
          %471 = dma.done [#allocation6], 256
        $region76: #{tpu_custom_call.1} parent=63 // pred_fallthru
          _
        %s472 = sand.u32 %s28, 1
        %s473 = scalar_lea.sflag [#allocation9], %s472
        %s474 = sand.u32 %s198, 1
        %s475 = smul.addr %s474, 32
        %s476 = scalar_lea.vmem [#allocation8], %s475
        // Predicated region
        $region77: #{tpu_custom_call.1} parent=63 // pred_check
          %p477 = pneg %p211
        $region78: #{tpu_custom_call.1} parent=63 // pred_check_branch
          %479 = sbr.rel (%p477) target = $region80
        $region79: #{tpu_custom_call.1} parent=63 // pred_region
          %480 = dma.done %s473, 512
        $region80: #{tpu_custom_call.1} parent=63 // pred_fallthru
          _
        %s481 = sand.u32 %s28, 1
        %s482 = scalar_lea.sflag [#allocation9], %s481
        %s483 = sand.u32 %s224, 1
        %s484 = smul.addr %s483, 32
        %s485 = scalar_lea.vmem [#allocation10], %s484
        // Predicated region
        $region81: #{tpu_custom_call.1} parent=63 // pred_check
          %p486 = pneg %p237
        $region82: #{tpu_custom_call.1} parent=63 // pred_check_branch
          %488 = sbr.rel (%p486) target = $region84
        $region83: #{tpu_custom_call.1} parent=63 // pred_region
          %489 = dma.done %s482, 512
        $region84: #{tpu_custom_call.1} parent=63 // pred_fallthru
          _
        %p490 = pneg %p44
        %p491 = pneg %p41
        %p492 = pneg %p65
        %p493 = pneg %p62
        %p494 = pneg %p86
        %p495 = pneg %p83
        %p496 = pneg %p107
        %p497 = pneg %p104
        %p498 = scmp.lt.s32.totalorder %s28, 1
        %s499 = scalar_select %p498, %s28, 1
        %s500 = smul.addr %s499, 4
        %s501 = smul.addr %s500, 8
        %s502 = scalar_lea.vmem %s4, %s501
        %p503 = pneg %p133
        %p504 = pneg %p130
        %p505 = scmp.lt.s32.totalorder %s28, 1
        %s506 = scalar_select %p505, %s28, 1
        %s507 = smul.addr %s506, 4
        %s508 = smul.addr %s507, 8
        %s509 = scalar_lea.vmem %s5, %s508
        %p510 = pneg %p159
        %p511 = pneg %p156
        %p512 = scmp.lt.s32.totalorder %s28, 1
        %s513 = scalar_select %p512, %s28, 1
        %s514 = smul.addr %s513, 4
        %s515 = smul.addr %s514, 8
        %s516 = scalar_lea.vmem %s6, %s515
        %p517 = pneg %p185
        %p518 = pneg %p182
        %s519 = sand.u32 %s28, 1
        %s520 = scalar_lea.sflag [#allocation9], %s519
        %s521 = sand.u32 %s198, 1
        %s522 = smul.addr %s521, 32
        %s523 = scalar_lea.vmem [#allocation8], %s522
        %p524 = pneg %p211
        %p525 = pneg %p208
        %s526 = sand.u32 %s28, 1
        %s527 = scalar_lea.sflag [#allocation9], %s526
        %s528 = sand.u32 %s224, 1
        %s529 = smul.addr %s528, 32
        %s530 = scalar_lea.vmem [#allocation10], %s529
        %p531 = pneg %p237
        %p532 = pneg %p234
        %p533 = scmp.lt.s32.totalorder %s28, 1
        %s534 = scalar_select %p533, %s28, 1
        %s535 = smul.addr %s534, 8
        %s536 = smul.addr %s535, 8
        %s537 = scalar_lea.vmem %s9, %s536
        %p538 = pneg %p263
        %p539 = pneg %p260
        %p540 = scmp.lt.s32.totalorder %s28, 1
        %s541 = scalar_select %p540, %s28, 1
        %s542 = smul.addr %s541, 2
        %s543 = smul.addr %s542, 8
        %s544 = scalar_lea.vmem %s10, %s543
        %p545 = pneg %p289
        %p546 = pneg %p286
        %p547 = pneg %p310
        %p548 = pneg %p307
        %p549 = scmp.lt.s32.totalorder %s28, 1
        %s550 = scalar_select %p549, %s28, 1
        %s551 = smul.addr %s550, 4
        %s552 = smul.addr %s551, 8
        %s553 = scalar_lea.vmem %s4, %s552
        %p554 = scmp.lt.s32.totalorder %s28, 1
        %s555 = scalar_select %p554, %s28, 1
        %s556 = smul.addr %s555, 4
        %s557 = smul.addr %s556, 8
        %s558 = scalar_lea.vmem %s5, %s557
        %p559 = scmp.lt.s32.totalorder %s28, 1
        %s560 = scalar_select %p559, %s28, 1
        %s561 = smul.addr %s560, 4
        %s562 = smul.addr %s561, 8
        %s563 = scalar_lea.vmem %s6, %s562
        %p564 = scmp.lt.s32.totalorder %s28, 1
        %s565 = scalar_select %p564, %s28, 1
        %s566 = smul.addr %s565, 8
        %s567 = smul.addr %s566, 8
        %s568 = scalar_lea.vmem %s9, %s567
        %p569 = scmp.lt.s32.totalorder %s28, 1
        %s570 = scalar_select %p569, %s28, 1
        %s571 = smul.addr %s570, 2
        %s572 = smul.addr %s571, 8
        %s573 = scalar_lea.vmem %s10, %s572
        %p574 = scmp.eq.s32.totalorder %s28, 0
        // Predicated region
        $region85: #{tpu_custom_call.1} parent=63 // pred_check
          %p575 = pneg %p574
        $region86: #{tpu_custom_call.1} parent=63 // pred_check_branch
          %577 = sbr.rel (%p575) target = $region88
        $region87: #{tpu_custom_call.1} parent=63 // pred_region
          %v578 = vld [vmem:[#allocation2] sm:$0xff]
          %v579 = vld [vmem:[#allocation2 + $0x8] sm:$0xff]
          %vm580 = vcmask 261120
          %581 = vst.msk [vmem:[#allocation11] sm:$0xff] %vm580, %v578
          %582 = vst.msk [vmem:[#allocation11 + $0x8] sm:$0xff] %vm580, %v579
        $region88: #{tpu_custom_call.1} parent=63 // pred_fallthru
          _
        %v583 = vld [vmem:[#allocation11] sm:$0xff]
        %v584 = vld [vmem:[#allocation11 + $0x8] sm:$0xff]
        %v585 = vld [vmem:[#allocation5] sm:$0xff]
        %v586 = vld [vmem:[#allocation5 + $0x8] sm:$0xff]
        %v587 = vld [vmem:[#allocation7] sm:$0xff]
        %v588 = vld [vmem:[#allocation7 + $0x8] sm:$0xff]
        %v589 = vld [vmem:[%s573] sm:$0xff]
        %v590 = vld [vmem:[%s573 + $0x8] sm:$0x3]
        %v591 = vadd.f32 %v583, %v585
        %v592 = vadd.f32 %v584, %v586
        %v593 = vld [vmem:[%s553] sm:$0xff]
        %v594 = vld [vmem:[%s553 + $0x8] sm:$0xff]
        %v595 = vld [vmem:[%s553 + $0x10] sm:$0xff]
        %v596 = vld [vmem:[%s553 + $0x18] sm:$0xff]
        %v597 = vlaneseq
        %v598 = vshrl.u32 %v597, 7
        %v599 = vsub.s32 0, %v598
        %v600 = vrot.slane %v589, %v599
        %vm601 = vcmask 261120
        %v603 = vsel %vm601, %v591, 0
        %v606 = vsel %vm601, %v592, 0
        %608 = vmatprep.subr.mxu0 0.0
        %v609 = vand.u32 %v593, 4294901760
        %610 = vmatpush1.msra.mxu0 %v609
        %611 = vmatprep.subr.mxu0 0.0
        %v612 = vand.u32 %v594, 4294901760
        %613 = vmatpush1.msra.mxu0 %v612
        %614 = vmatprep.subr.mxu0 0.0
        %v615 = vand.u32 %v595, 4294901760
        %616 = vmatpush1.msra.mxu0 %v615
        %617 = vmatprep.subr.mxu0 0.0
        %v618 = vand.u32 %v596, 4294901760
        %619 = vmatpush1.msra.mxu0 %v618
        %620 = vmatprep.subr.mxu0 0.0
        %621 = vmatpush1.msra.mxu0 0.0
        %622 = vmatprep.subr.mxu0 0.0
        %623 = vmatpush1.msra.mxu0 0.0
        %624 = vmatprep.subr.mxu0 0.0
        %625 = vmatpush1.msra.mxu0 0.0
        %626 = vmatprep.subr.mxu0 0.0
        %627 = vmatpush1.msra.mxu0 0.0
        %628 = vmatprep.subr.mxu0 0.0
        %629 = vmatpush1.msra.mxu0 0.0
        %630 = vmatprep.subr.mxu0 0.0
        %631 = vmatpush1.msra.mxu0 0.0
        %632 = vmatprep.subr.mxu0 0.0
        %633 = vmatpush1.msra.mxu0 0.0
        %634 = vmatprep.subr.mxu0 0.0
        %635 = vmatpush1.msra.mxu0 0.0
        %636 = vmatprep.subr.mxu0 0.0
        %637 = vmatpush1.msra.mxu0 0.0
        %638 = vmatprep.subr.mxu0 0.0
        %639 = vmatpush1.msra.mxu0 0.0
        %640 = vmatprep.subr.mxu0 0.0
        %641 = vmatpush1.msra.mxu0 0.0
        %642 = vmatprep.subr.mxu0 0.0
        %643 = vmatpush1.msra.mxu0 0.0
        %644 = vmatprep.subr.mxu0 0.0
        %645 = vmatpush1.msra.mxu0 0.0
        %646 = vmatprep.subr.mxu0 0.0
        %647 = vmatpush1.msra.mxu0 0.0
        %648 = vmatprep.subr.mxu0 0.0
        %649 = vmatpush1.msra.mxu0 0.0
        %650 = vmatprep.subr.mxu0 0.0
        %651 = vmatpush1.msra.mxu0 0.0
        %652 = vmatprep.subr.mxu0 0.0
        %653 = vmatpush1.msra.mxu0 0.0
        %654 = vmatprep.subr.mxu0 0.0
        %655 = vmatpush1.msra.mxu0 0.0
        %656 = vmatprep.subr.mxu0 0.0
        %657 = vmatpush1.msra.mxu0 0.0
        %658 = vmatprep.subr.mxu0 0.0
        %659 = vmatpush1.msra.mxu0 0.0
        %660 = vmatprep.subr.mxu0 0.0
        %661 = vmatpush1.msra.mxu0 0.0
        %662 = vmatprep.subr.mxu0 0.0
        %663 = vmatpush1.msra.mxu0 0.0
        %664 = vmatprep.subr.mxu0 0.0
        %665 = vmatpush1.msra.mxu0 0.0
        %666 = vmatprep.subr.mxu0 0.0
        %667 = vmatpush1.msra.mxu0 0.0
        %668 = vmatprep.subr.mxu0 0.0
        %669 = vmatpush1.msra.mxu0 0.0
        %670 = vmatprep.subr.mxu0 0.0
        %671 = vmatpush1.msra.mxu0 0.0
        %672 = vmatprep.subr.mxu0 0.0
        %673 = vmatpush1.msra.mxu0 0.0
        %674 = vmatprep.subr.mxu0 0.0
        %675 = vmatpush1.msra.mxu0 0.0
        %676 = vmatprep.mubr.f32.mxu0 0.0
        %v677 = vand.u32 %v603, 4294901760
        %v678 = vsub.f32 %v603, %v677
        %v679 = vand.u32 %v678, 4294901760
        %v680 = vsub.f32 %v678, %v679
        %v681 = vand.u32 %v680, 4294901760
        %682 = vmatmul.mubr.f32.gmra.mrb[0].mxu0 %v681
        %v683 = vpop.f32.mrb[0].mxu0
        %v684 = vadd.f32 %v600, %v683
        %v685 = vpop.f32.mrb[0].mxu0
        %686 = vmatprep.mubr.f32.mxu0 0.0
        %v687 = vand.u32 %v606, 4294901760
        %v688 = vsub.f32 %v606, %v687
        %v689 = vand.u32 %v688, 4294901760
        %v690 = vsub.f32 %v688, %v689
        %v691 = vand.u32 %v690, 4294901760
        %692 = vmatmul.mubr.f32.gmra.mrb[0].mxu0 %v691
        %v693 = vpop.f32.mrb[0].mxu0
        %v694 = vadd.f32 %v600, %v693
        %v695 = vpop.f32.mrb[0].mxu0
        %696 = vdwg.mxu0
        %697 = vmatprep.subr.mxu0 0.0
        %v698 = vand.u32 %v593, 4294901760
        %v699 = vsub.f32 %v593, %v698
        %v700 = vand.u32 %v699, 4294901760
        %v701 = vsub.f32 %v699, %v700
        %v702 = vand.u32 %v701, 4294901760
        %703 = vmatpush1.msra.mxu0 %v702
        %704 = vmatprep.subr.mxu0 0.0
        %v705 = vand.u32 %v594, 4294901760
        %v706 = vsub.f32 %v594, %v705
        %v707 = vand.u32 %v706, 4294901760
        %v708 = vsub.f32 %v706, %v707
        %v709 = vand.u32 %v708, 4294901760
        %710 = vmatpush1.msra.mxu0 %v709
        %711 = vmatprep.subr.mxu0 0.0
        %v712 = vand.u32 %v595, 4294901760
        %v713 = vsub.f32 %v595, %v712
        %v714 = vand.u32 %v713, 4294901760
        %v715 = vsub.f32 %v713, %v714
        %v716 = vand.u32 %v715, 4294901760
        %717 = vmatpush1.msra.mxu0 %v716
        %718 = vmatprep.subr.mxu0 0.0
        %v719 = vand.u32 %v596, 4294901760
        %v720 = vsub.f32 %v596, %v719
        %v721 = vand.u32 %v720, 4294901760
        %v722 = vsub.f32 %v720, %v721
        %v723 = vand.u32 %v722, 4294901760
        %724 = vmatpush1.msra.mxu0 %v723
        %725 = vmatprep.subr.mxu0 0.0
        %726 = vmatpush1.msra.mxu0 0.0
        %727 = vmatprep.subr.mxu0 0.0
        %728 = vmatpush1.msra.mxu0 0.0
        %729 = vmatprep.subr.mxu0 0.0
        %730 = vmatpush1.msra.mxu0 0.0
        %731 = vmatprep.subr.mxu0 0.0
        %732 = vmatpush1.msra.mxu0 0.0
        %733 = vmatprep.subr.mxu0 0.0
        %734 = vmatpush1.msra.mxu0 0.0
        %735 = vmatprep.subr.mxu0 0.0
        %736 = vmatpush1.msra.mxu0 0.0
        %737 = vmatprep.subr.mxu0 0.0
        %738 = vmatpush1.msra.mxu0 0.0
        %739 = vmatprep.subr.mxu0 0.0
        %740 = vmatpush1.msra.mxu0 0.0
        %741 = vmatprep.subr.mxu0 0.0
        %742 = vmatpush1.msra.mxu0 0.0
        %743 = vmatprep.subr.mxu0 0.0
        %744 = vmatpush1.msra.mxu0 0.0
        %745 = vmatprep.subr.mxu0 0.0
        %746 = vmatpush1.msra.mxu0 0.0
        %747 = vmatprep.subr.mxu0 0.0
        %748 = vmatpush1.msra.mxu0 0.0
        %749 = vmatprep.subr.mxu0 0.0
        %750 = vmatpush1.msra.mxu0 0.0
        %751 = vmatprep.subr.mxu0 0.0
        %752 = vmatpush1.msra.mxu0 0.0
        %753 = vmatprep.subr.mxu0 0.0
        %754 = vmatpush1.msra.mxu0 0.0
        %755 = vmatprep.subr.mxu0 0.0
        %756 = vmatpush1.msra.mxu0 0.0
        %757 = vmatprep.subr.mxu0 0.0
        %758 = vmatpush1.msra.mxu0 0.0
        %759 = vmatprep.subr.mxu0 0.0
        %760 = vmatpush1.msra.mxu0 0.0
        %761 = vmatprep.subr.mxu0 0.0
        %762 = vmatpush1.msra.mxu0 0.0
        %763 = vmatprep.subr.mxu0 0.0
        %764 = vmatpush1.msra.mxu0 0.0
        %765 = vmatprep.subr.mxu0 0.0
        %766 = vmatpush1.msra.mxu0 0.0
        %767 = vmatprep.subr.mxu0 0.0
        %768 = vmatpush1.msra.mxu0 0.0
        %769 = vmatprep.subr.mxu0 0.0
        %770 = vmatpush1.msra.mxu0 0.0
        %771 = vmatprep.subr.mxu0 0.0
        %772 = vmatpush1.msra.mxu0 0.0
        %773 = vmatprep.subr.mxu0 0.0
        %774 = vmatpush1.msra.mxu0 0.0
        %775 = vmatprep.subr.mxu0 0.0
        %776 = vmatpush1.msra.mxu0 0.0
        %777 = vmatprep.subr.mxu0 0.0
        %778 = vmatpush1.msra.mxu0 0.0
        %779 = vmatprep.subr.mxu0 0.0
        %780 = vmatpush1.msra.mxu0 0.0
        %781 = vmatprep.mubr.f32.mxu0 0.0
        %v782 = vand.u32 %v603, 4294901760
        %783 = vmatmul.mubr.f32.gmra.mrb[0].mxu0 %v782
        %v784 = vpop.f32.mrb[0].mxu0
        %v785 = vadd.f32 %v684, %v784
        %v786 = vpop.f32.mrb[0].mxu0
        %787 = vmatprep.mubr.f32.mxu0 0.0
        %v788 = vand.u32 %v606, 4294901760
        %789 = vmatmul.mubr.f32.gmra.mrb[0].mxu0 %v788
        %v790 = vpop.f32.mrb[0].mxu0
        %v791 = vadd.f32 %v694, %v790
        %v792 = vpop.f32.mrb[0].mxu0
        %793 = vdwg.mxu0
        %794 = vmatprep.subr.mxu0 0.0
        %v795 = vand.u32 %v593, 4294901760
        %v796 = vsub.f32 %v593, %v795
        %797 = vmatpush1.msra.mxu0 %v796
        %798 = vmatprep.subr.mxu0 0.0
        %v799 = vand.u32 %v594, 4294901760
        %v800 = vsub.f32 %v594, %v799
        %801 = vmatpush1.msra.mxu0 %v800
        %802 = vmatprep.subr.mxu0 0.0
        %v803 = vand.u32 %v595, 4294901760
        %v804 = vsub.f32 %v595, %v803
        %805 = vmatpush1.msra.mxu0 %v804
        %806 = vmatprep.subr.mxu0 0.0
        %v807 = vand.u32 %v596, 4294901760
        %v808 = vsub.f32 %v596, %v807
        %809 = vmatpush1.msra.mxu0 %v808
        %810 = vmatprep.subr.mxu0 0.0
        %811 = vmatpush1.msra.mxu0 0.0
        %812 = vmatprep.subr.mxu0 0.0
        %813 = vmatpush1.msra.mxu0 0.0
        %814 = vmatprep.subr.mxu0 0.0
        %815 = vmatpush1.msra.mxu0 0.0
        %816 = vmatprep.subr.mxu0 0.0
        %817 = vmatpush1.msra.mxu0 0.0
        %818 = vmatprep.subr.mxu0 0.0
        %819 = vmatpush1.msra.mxu0 0.0
        %820 = vmatprep.subr.mxu0 0.0
        %821 = vmatpush1.msra.mxu0 0.0
        %822 = vmatprep.subr.mxu0 0.0
        %823 = vmatpush1.msra.mxu0 0.0
        %824 = vmatprep.subr.mxu0 0.0
        %825 = vmatpush1.msra.mxu0 0.0
        %826 = vmatprep.subr.mxu0 0.0
        %827 = vmatpush1.msra.mxu0 0.0
        %828 = vmatprep.subr.mxu0 0.0
        %829 = vmatpush1.msra.mxu0 0.0
        %830 = vmatprep.subr.mxu0 0.0
        %831 = vmatpush1.msra.mxu0 0.0
        %832 = vmatprep.subr.mxu0 0.0
        %833 = vmatpush1.msra.mxu0 0.0
        %834 = vmatprep.subr.mxu0 0.0
        %835 = vmatpush1.msra.mxu0 0.0
        %836 = vmatprep.subr.mxu0 0.0
        %837 = vmatpush1.msra.mxu0 0.0
        %838 = vmatprep.subr.mxu0 0.0
        %839 = vmatpush1.msra.mxu0 0.0
        %840 = vmatprep.subr.mxu0 0.0
        %841 = vmatpush1.msra.mxu0 0.0
        %842 = vmatprep.subr.mxu0 0.0
        %843 = vmatpush1.msra.mxu0 0.0
        %844 = vmatprep.subr.mxu0 0.0
        %845 = vmatpush1.msra.mxu0 0.0
        %846 = vmatprep.subr.mxu0 0.0
        %847 = vmatpush1.msra.mxu0 0.0
        %848 = vmatprep.subr.mxu0 0.0
        %849 = vmatpush1.msra.mxu0 0.0
        %850 = vmatprep.subr.mxu0 0.0
        %851 = vmatpush1.msra.mxu0 0.0
        %852 = vmatprep.subr.mxu0 0.0
        %853 = vmatpush1.msra.mxu0 0.0
        %854 = vmatprep.subr.mxu0 0.0
        %855 = vmatpush1.msra.mxu0 0.0
        %856 = vmatprep.subr.mxu0 0.0
        %857 = vmatpush1.msra.mxu0 0.0
        %858 = vmatprep.subr.mxu0 0.0
        %859 = vmatpush1.msra.mxu0 0.0
        %860 = vmatprep.subr.mxu0 0.0
        %861 = vmatpush1.msra.mxu0 0.0
        %862 = vmatprep.subr.mxu0 0.0
        %863 = vmatpush1.msra.mxu0 0.0
        %864 = vmatprep.subr.mxu0 0.0
        %865 = vmatpush1.msra.mxu0 0.0
        %866 = vmatprep.mubr.f32.mxu0 0.0
        %v867 = vand.u32 %v603, 4294901760
        %v868 = vsub.f32 %v603, %v867
        %869 = vmatmul.mubr.f32.gmra.mrb[0].mxu0 %v868
        %v870 = vpop.f32.mrb[0].mxu0
        %v871 = vadd.f32 %v785, %v870
        %v872 = vpop.f32.mrb[0].mxu0
        %873 = vmatprep.mubr.f32.mxu0 0.0
        %v874 = vand.u32 %v606, 4294901760
        %v875 = vsub.f32 %v606, %v874
        %876 = vmatmul.mubr.f32.gmra.mrb[0].mxu0 %v875
        %v877 = vpop.f32.mrb[0].mxu0
        %v878 = vadd.f32 %v791, %v877
        %v879 = vpop.f32.mrb[0].mxu0
        %880 = vdwg.mxu0
        %881 = vmatprep.subr.mxu0 0.0
        %v882 = vand.u32 %v593, 4294901760
        %883 = vmatpush1.msra.mxu0 %v882
        %884 = vmatprep.subr.mxu0 0.0
        %v885 = vand.u32 %v594, 4294901760
        %886 = vmatpush1.msra.mxu0 %v885
        %887 = vmatprep.subr.mxu0 0.0
        %v888 = vand.u32 %v595, 4294901760
        %889 = vmatpush1.msra.mxu0 %v888
        %890 = vmatprep.subr.mxu0 0.0
        %v891 = vand.u32 %v596, 4294901760
        %892 = vmatpush1.msra.mxu0 %v891
        %893 = vmatprep.subr.mxu0 0.0
        %894 = vmatpush1.msra.mxu0 0.0
        %895 = vmatprep.subr.mxu0 0.0
        %896 = vmatpush1.msra.mxu0 0.0
        %897 = vmatprep.subr.mxu0 0.0
        %898 = vmatpush1.msra.mxu0 0.0
        %899 = vmatprep.subr.mxu0 0.0
        %900 = vmatpush1.msra.mxu0 0.0
        %901 = vmatprep.subr.mxu0 0.0
        %902 = vmatpush1.msra.mxu0 0.0
        %903 = vmatprep.subr.mxu0 0.0
        %904 = vmatpush1.msra.mxu0 0.0
        %905 = vmatprep.subr.mxu0 0.0
        %906 = vmatpush1.msra.mxu0 0.0
        %907 = vmatprep.subr.mxu0 0.0
        %908 = vmatpush1.msra.mxu0 0.0
        %909 = vmatprep.subr.mxu0 0.0
        %910 = vmatpush1.msra.mxu0 0.0
        %911 = vmatprep.subr.mxu0 0.0
        %912 = vmatpush1.msra.mxu0 0.0
        %913 = vmatprep.subr.mxu0 0.0
        %914 = vmatpush1.msra.mxu0 0.0
        %915 = vmatprep.subr.mxu0 0.0
        %916 = vmatpush1.msra.mxu0 0.0
        %917 = vmatprep.subr.mxu0 0.0
        %918 = vmatpush1.msra.mxu0 0.0
        %919 = vmatprep.subr.mxu0 0.0
        %920 = vmatpush1.msra.mxu0 0.0
        %921 = vmatprep.subr.mxu0 0.0
        %922 = vmatpush1.msra.mxu0 0.0
        %923 = vmatprep.subr.mxu0 0.0
        %924 = vmatpush1.msra.mxu0 0.0
        %925 = vmatprep.subr.mxu0 0.0
        %926 = vmatpush1.msra.mxu0 0.0
        %927 = vmatprep.subr.mxu0 0.0
        %928 = vmatpush1.msra.mxu0 0.0
        %929 = vmatprep.subr.mxu0 0.0
        %930 = vmatpush1.msra.mxu0 0.0
        %931 = vmatprep.subr.mxu0 0.0
        %932 = vmatpush1.msra.mxu0 0.0
        %933 = vmatprep.subr.mxu0 0.0
        %934 = vmatpush1.msra.mxu0 0.0
        %935 = vmatprep.subr.mxu0 0.0
        %936 = vmatpush1.msra.mxu0 0.0
        %937 = vmatprep.subr.mxu0 0.0
        %938 = vmatpush1.msra.mxu0 0.0
        %939 = vmatprep.subr.mxu0 0.0
        %940 = vmatpush1.msra.mxu0 0.0
        %941 = vmatprep.subr.mxu0 0.0
        %942 = vmatpush1.msra.mxu0 0.0
        %943 = vmatprep.subr.mxu0 0.0
        %944 = vmatpush1.msra.mxu0 0.0
        %945 = vmatprep.subr.mxu0 0.0
        %946 = vmatpush1.msra.mxu0 0.0
        %947 = vmatprep.subr.mxu0 0.0
        %948 = vmatpush1.msra.mxu0 0.0
        %949 = vmatprep.mubr.f32.mxu0 0.0
        %v950 = vand.u32 %v603, 4294901760
        %v951 = vsub.f32 %v603, %v950
        %v952 = vand.u32 %v951, 4294901760
        %953 = vmatmul.mubr.f32.gmra.mrb[0].mxu0 %v952
        %v954 = vpop.f32.mrb[0].mxu0
        %v955 = vadd.f32 %v871, %v954
        %v956 = vpop.f32.mrb[0].mxu0
        %957 = vmatprep.mubr.f32.mxu0 0.0
        %v958 = vand.u32 %v606, 4294901760
        %v959 = vsub.f32 %v606, %v958
        %v960 = vand.u32 %v959, 4294901760
        %961 = vmatmul.mubr.f32.gmra.mrb[0].mxu0 %v960
        %v962 = vpop.f32.mrb[0].mxu0
        %v963 = vadd.f32 %v878, %v962
        %v964 = vpop.f32.mrb[0].mxu0
        %965 = vdwg.mxu0
        %966 = vmatprep.subr.mxu0 0.0
        %v967 = vand.u32 %v593, 4294901760
        %v968 = vsub.f32 %v593, %v967
        %v969 = vand.u32 %v968, 4294901760
        %970 = vmatpush1.msra.mxu0 %v969
        %971 = vmatprep.subr.mxu0 0.0
        %v972 = vand.u32 %v594, 4294901760
        %v973 = vsub.f32 %v594, %v972
        %v974 = vand.u32 %v973, 4294901760
        %975 = vmatpush1.msra.mxu0 %v974
        %976 = vmatprep.subr.mxu0 0.0
        %v977 = vand.u32 %v595, 4294901760
        %v978 = vsub.f32 %v595, %v977
        %v979 = vand.u32 %v978, 4294901760
        %980 = vmatpush1.msra.mxu0 %v979
        %981 = vmatprep.subr.mxu0 0.0
        %v982 = vand.u32 %v596, 4294901760
        %v983 = vsub.f32 %v596, %v982
        %v984 = vand.u32 %v983, 4294901760
        %985 = vmatpush1.msra.mxu0 %v984
        %986 = vmatprep.subr.mxu0 0.0
        %987 = vmatpush1.msra.mxu0 0.0
        %988 = vmatprep.subr.mxu0 0.0
        %989 = vmatpush1.msra.mxu0 0.0
        %990 = vmatprep.subr.mxu0 0.0
        %991 = vmatpush1.msra.mxu0 0.0
        %992 = vmatprep.subr.mxu0 0.0
        %993 = vmatpush1.msra.mxu0 0.0
        %994 = vmatprep.subr.mxu0 0.0
        %995 = vmatpush1.msra.mxu0 0.0
        %996 = vmatprep.subr.mxu0 0.0
        %997 = vmatpush1.msra.mxu0 0.0
        %998 = vmatprep.subr.mxu0 0.0
        %999 = vmatpush1.msra.mxu0 0.0
        %1000 = vmatprep.subr.mxu0 0.0
        %1001 = vmatpush1.msra.mxu0 0.0
        %1002 = vmatprep.subr.mxu0 0.0
        %1003 = vmatpush1.msra.mxu0 0.0
        %1004 = vmatprep.subr.mxu0 0.0
        %1005 = vmatpush1.msra.mxu0 0.0
        %1006 = vmatprep.subr.mxu0 0.0
        %1007 = vmatpush1.msra.mxu0 0.0
        %1008 = vmatprep.subr.mxu0 0.0
        %1009 = vmatpush1.msra.mxu0 0.0
        %1010 = vmatprep.subr.mxu0 0.0
        %1011 = vmatpush1.msra.mxu0 0.0
        %1012 = vmatprep.subr.mxu0 0.0
        %1013 = vmatpush1.msra.mxu0 0.0
        %1014 = vmatprep.subr.mxu0 0.0
        %1015 = vmatpush1.msra.mxu0 0.0
        %1016 = vmatprep.subr.mxu0 0.0
        %1017 = vmatpush1.msra.mxu0 0.0
        %1018 = vmatprep.subr.mxu0 0.0
        %1019 = vmatpush1.msra.mxu0 0.0
        %1020 = vmatprep.subr.mxu0 0.0
        %1021 = vmatpush1.msra.mxu0 0.0
        %1022 = vmatprep.subr.mxu0 0.0
        %1023 = vmatpush1.msra.mxu0 0.0
        %1024 = vmatprep.subr.mxu0 0.0
        %1025 = vmatpush1.msra.mxu0 0.0
        %1026 = vmatprep.subr.mxu0 0.0
        %1027 = vmatpush1.msra.mxu0 0.0
        %1028 = vmatprep.subr.mxu0 0.0
        %1029 = vmatpush1.msra.mxu0 0.0
        %1030 = vmatprep.subr.mxu0 0.0
        %1031 = vmatpush1.msra.mxu0 0.0
        %1032 = vmatprep.subr.mxu0 0.0
        %1033 = vmatpush1.msra.mxu0 0.0
        %1034 = vmatprep.subr.mxu0 0.0
        %1035 = vmatpush1.msra.mxu0 0.0
        %1036 = vmatprep.subr.mxu0 0.0
        %1037 = vmatpush1.msra.mxu0 0.0
        %1038 = vmatprep.subr.mxu0 0.0
        %1039 = vmatpush1.msra.mxu0 0.0
        %1040 = vmatprep.subr.mxu0 0.0
        %1041 = vmatpush1.msra.mxu0 0.0
        %1042 = vmatprep.mubr.f32.mxu0 0.0
        %v1043 = vand.u32 %v603, 4294901760
        %1044 = vmatmul.mubr.f32.gmra.mrb[0].mxu0 %v1043
        %v1045 = vpop.f32.mrb[0].mxu0
        %v1046 = vadd.f32 %v955, %v1045
        %v1047 = vpop.f32.mrb[0].mxu0
        %1048 = vmatprep.mubr.f32.mxu0 0.0
        %v1049 = vand.u32 %v606, 4294901760
        %1050 = vmatmul.mubr.f32.gmra.mrb[0].mxu0 %v1049
        %v1051 = vpop.f32.mrb[0].mxu0
        %v1052 = vadd.f32 %v963, %v1051
        %v1053 = vpop.f32.mrb[0].mxu0
        %1054 = vdwg.mxu0
        %1055 = vmatprep.subr.mxu0 0.0
        %v1056 = vand.u32 %v593, 4294901760
        %1057 = vmatpush1.msra.mxu0 %v1056
        %1058 = vmatprep.subr.mxu0 0.0
        %v1059 = vand.u32 %v594, 4294901760
        %1060 = vmatpush1.msra.mxu0 %v1059
        %1061 = vmatprep.subr.mxu0 0.0
        %v1062 = vand.u32 %v595, 4294901760
        %1063 = vmatpush1.msra.mxu0 %v1062
        %1064 = vmatprep.subr.mxu0 0.0
        %v1065 = vand.u32 %v596, 4294901760
        %1066 = vmatpush1.msra.mxu0 %v1065
        %1067 = vmatprep.subr.mxu0 0.0
        %1068 = vmatpush1.msra.mxu0 0.0
        %1069 = vmatprep.subr.mxu0 0.0
        %1070 = vmatpush1.msra.mxu0 0.0
        %1071 = vmatprep.subr.mxu0 0.0
        %1072 = vmatpush1.msra.mxu0 0.0
        %1073 = vmatprep.subr.mxu0 0.0
        %1074 = vmatpush1.msra.mxu0 0.0
        %1075 = vmatprep.subr.mxu0 0.0
        %1076 = vmatpush1.msra.mxu0 0.0
        %1077 = vmatprep.subr.mxu0 0.0
        %1078 = vmatpush1.msra.mxu0 0.0
        %1079 = vmatprep.subr.mxu0 0.0
        %1080 = vmatpush1.msra.mxu0 0.0
        %1081 = vmatprep.subr.mxu0 0.0
        %1082 = vmatpush1.msra.mxu0 0.0
        %1083 = vmatprep.subr.mxu0 0.0
        %1084 = vmatpush1.msra.mxu0 0.0
        %1085 = vmatprep.subr.mxu0 0.0
        %1086 = vmatpush1.msra.mxu0 0.0
        %1087 = vmatprep.subr.mxu0 0.0
        %1088 = vmatpush1.msra.mxu0 0.0
        %1089 = vmatprep.subr.mxu0 0.0
        %1090 = vmatpush1.msra.mxu0 0.0
        %1091 = vmatprep.subr.mxu0 0.0
        %1092 = vmatpush1.msra.mxu0 0.0
        %1093 = vmatprep.subr.mxu0 0.0
        %1094 = vmatpush1.msra.mxu0 0.0
        %1095 = vmatprep.subr.mxu0 0.0
        %1096 = vmatpush1.msra.mxu0 0.0
        %1097 = vmatprep.subr.mxu0 0.0
        %1098 = vmatpush1.msra.mxu0 0.0
        %1099 = vmatprep.subr.mxu0 0.0
        %1100 = vmatpush1.msra.mxu0 0.0
        %1101 = vmatprep.subr.mxu0 0.0
        %1102 = vmatpush1.msra.mxu0 0.0
        %1103 = vmatprep.subr.mxu0 0.0
        %1104 = vmatpush1.msra.mxu0 0.0
        %1105 = vmatprep.subr.mxu0 0.0
        %1106 = vmatpush1.msra.mxu0 0.0
        %1107 = vmatprep.subr.mxu0 0.0
        %1108 = vmatpush1.msra.mxu0 0.0
        %1109 = vmatprep.subr.mxu0 0.0
        %1110 = vmatpush1.msra.mxu0 0.0
        %1111 = vmatprep.subr.mxu0 0.0
        %1112 = vmatpush1.msra.mxu0 0.0
        %1113 = vmatprep.subr.mxu0 0.0
        %1114 = vmatpush1.msra.mxu0 0.0
        %1115 = vmatprep.subr.mxu0 0.0
        %1116 = vmatpush1.msra.mxu0 0.0
        %1117 = vmatprep.subr.mxu0 0.0
        %1118 = vmatpush1.msra.mxu0 0.0
        %1119 = vmatprep.subr.mxu0 0.0
        %1120 = vmatpush1.msra.mxu0 0.0
        %1121 = vmatprep.subr.mxu0 0.0
        %1122 = vmatpush1.msra.mxu0 0.0
        %1123 = vmatprep.mubr.f32.mxu0 0.0
        %v1124 = vand.u32 %v603, 4294901760
        %1125 = vmatmul.mubr.f32.gmra.mrb[0].mxu0 %v1124
        %v1126 = vpop.f32.mrb[0].mxu0
        %v1127 = vadd.f32 %v1046, %v1126
        %v1128 = vpop.f32.mrb[0].mxu0
        %1129 = vmatprep.mubr.f32.mxu0 0.0
        %v1130 = vand.u32 %v606, 4294901760
        %1131 = vmatmul.mubr.f32.gmra.mrb[0].mxu0 %v1130
        %v1132 = vpop.f32.mrb[0].mxu0
        %v1133 = vadd.f32 %v1052, %v1132
        %v1134 = vpop.f32.mrb[0].mxu0
        %1135 = vdwg.mxu0
        %v1136 = vmul.f32 %v1127, 0.35355338
        %v1137 = vmul.f32 %v1133, 0.35355338
        %v1138 = vld [vmem:[%s558] sm:$0xff]
        %v1139 = vld [vmem:[%s558 + $0x8] sm:$0xff]
        %v1140 = vld [vmem:[%s558 + $0x10] sm:$0xff]
        %v1141 = vld [vmem:[%s558 + $0x18] sm:$0xff]
        %v1142 = vlaneseq
        %v1143 = vshrl.u32 %v1142, 7
        %v1144 = vsub.s32 1, %v1143
        %v1145 = vrot.slane %v589, %v1144
        %1146 = vmatprep.subr.mxu0 0.0
        %v1147 = vand.u32 %v1138, 4294901760
        %1148 = vmatpush1.msra.mxu0 %v1147
        %1149 = vmatprep.subr.mxu0 0.0
        %v1150 = vand.u32 %v1139, 4294901760
        %1151 = vmatpush1.msra.mxu0 %v1150
        %1152 = vmatprep.subr.mxu0 0.0
        %v1153 = vand.u32 %v1140, 4294901760
        %1154 = vmatpush1.msra.mxu0 %v1153
        %1155 = vmatprep.subr.mxu0 0.0
        %v1156 = vand.u32 %v1141, 4294901760
        %1157 = vmatpush1.msra.mxu0 %v1156
        %1158 = vmatprep.subr.mxu0 0.0
        %1159 = vmatpush1.msra.mxu0 0.0
        %1160 = vmatprep.subr.mxu0 0.0
        %1161 = vmatpush1.msra.mxu0 0.0
        %1162 = vmatprep.subr.mxu0 0.0
        %1163 = vmatpush1.msra.mxu0 0.0
        %1164 = vmatprep.subr.mxu0 0.0
        %1165 = vmatpush1.msra.mxu0 0.0
        %1166 = vmatprep.subr.mxu0 0.0
        %1167 = vmatpush1.msra.mxu0 0.0
        %1168 = vmatprep.subr.mxu0 0.0
        %1169 = vmatpush1.msra.mxu0 0.0
        %1170 = vmatprep.subr.mxu0 0.0
        %1171 = vmatpush1.msra.mxu0 0.0
        %1172 = vmatprep.subr.mxu0 0.0
        %1173 = vmatpush1.msra.mxu0 0.0
        %1174 = vmatprep.subr.mxu0 0.0
        %1175 = vmatpush1.msra.mxu0 0.0
        %1176 = vmatprep.subr.mxu0 0.0
        %1177 = vmatpush1.msra.mxu0 0.0
        %1178 = vmatprep.subr.mxu0 0.0
        %1179 = vmatpush1.msra.mxu0 0.0
        %1180 = vmatprep.subr.mxu0 0.0
        %1181 = vmatpush1.msra.mxu0 0.0
        %1182 = vmatprep.subr.mxu0 0.0
        %1183 = vmatpush1.msra.mxu0 0.0
        %1184 = vmatprep.subr.mxu0 0.0
        %1185 = vmatpush1.msra.mxu0 0.0
        %1186 = vmatprep.subr.mxu0 0.0
        %1187 = vmatpush1.msra.mxu0 0.0
        %1188 = vmatprep.subr.mxu0 0.0
        %1189 = vmatpush1.msra.mxu0 0.0
        %1190 = vmatprep.subr.mxu0 0.0
        %1191 = vmatpush1.msra.mxu0 0.0
        %1192 = vmatprep.subr.mxu0 0.0
        %1193 = vmatpush1.msra.mxu0 0.0
        %1194 = vmatprep.subr.mxu0 0.0
        %1195 = vmatpush1.msra.mxu0 0.0
        %1196 = vmatprep.subr.mxu0 0.0
        %1197 = vmatpush1.msra.mxu0 0.0
        %1198 = vmatprep.subr.mxu0 0.0
        %1199 = vmatpush1.msra.mxu0 0.0
        %1200 = vmatprep.subr.mxu0 0.0
        %1201 = vmatpush1.msra.mxu0 0.0
        %1202 = vmatprep.subr.mxu0 0.0
        %1203 = vmatpush1.msra.mxu0 0.0
        %1204 = vmatprep.subr.mxu0 0.0
        %1205 = vmatpush1.msra.mxu0 0.0
        %1206 = vmatprep.subr.mxu0 0.0
        %1207 = vmatpush1.msra.mxu0 0.0
        %1208 = vmatprep.subr.mxu0 0.0
        %1209 = vmatpush1.msra.mxu0 0.0
        %1210 = vmatprep.subr.mxu0 0.0
        %1211 = vmatpush1.msra.mxu0 0.0
        %1212 = vmatprep.subr.mxu0 0.0
        %1213 = vmatpush1.msra.mxu0 0.0
        %1214 = vmatprep.mubr.f32.mxu0 0.0
        %v1215 = vand.u32 %v603, 4294901760
        %v1216 = vsub.f32 %v603, %v1215
        %v1217 = vand.u32 %v1216, 4294901760
        %v1218 = vsub.f32 %v1216, %v1217
        %v1219 = vand.u32 %v1218, 4294901760
        %1220 = vmatmul.mubr.f32.gmra.mrb[0].mxu0 %v1219
        %v1221 = vpop.f32.mrb[0].mxu0
        %v1222 = vadd.f32 %v1145, %v1221
        %v1223 = vpop.f32.mrb[0].mxu0
        %1224 = vmatprep.mubr.f32.mxu0 0.0
        %v1225 = vand.u32 %v606, 4294901760
        %v1226 = vsub.f32 %v606, %v1225
        %v1227 = vand.u32 %v1226, 4294901760
        %v1228 = vsub.f32 %v1226, %v1227
        %v1229 = vand.u32 %v1228, 4294901760
        %1230 = vmatmul.mubr.f32.gmra.mrb[0].mxu0 %v1229
        %v1231 = vpop.f32.mrb[0].mxu0
        %v1232 = vadd.f32 %v1145, %v1231
        %v1233 = vpop.f32.mrb[0].mxu0
        %1234 = vdwg.mxu0
        %1235 = vmatprep.subr.mxu0 0.0
        %v1236 = vand.u32 %v1138, 4294901760
        %v1237 = vsub.f32 %v1138, %v1236
        %v1238 = vand.u32 %v1237, 4294901760
        %v1239 = vsub.f32 %v1237, %v1238
        %v1240 = vand.u32 %v1239, 4294901760
        %1241 = vmatpush1.msra.mxu0 %v1240
        %1242 = vmatprep.subr.mxu0 0.0
        %v1243 = vand.u32 %v1139, 4294901760
        %v1244 = vsub.f32 %v1139, %v1243
        %v1245 = vand.u32 %v1244, 4294901760
        %v1246 = vsub.f32 %v1244, %v1245
        %v1247 = vand.u32 %v1246, 4294901760
        %1248 = vmatpush1.msra.mxu0 %v1247
        %1249 = vmatprep.subr.mxu0 0.0
        %v1250 = vand.u32 %v1140, 4294901760
        %v1251 = vsub.f32 %v1140, %v1250
        %v1252 = vand.u32 %v1251, 4294901760
        %v1253 = vsub.f32 %v1251, %v1252
        %v1254 = vand.u32 %v1253, 4294901760
        %1255 = vmatpush1.msra.mxu0 %v1254
        %1256 = vmatprep.subr.mxu0 0.0
        %v1257 = vand.u32 %v1141, 4294901760
        %v1258 = vsub.f32 %v1141, %v1257
        %v1259 = vand.u32 %v1258, 4294901760
        %v1260 = vsub.f32 %v1258, %v1259
        %v1261 = vand.u32 %v1260, 4294901760
        %1262 = vmatpush1.msra.mxu0 %v1261
        %1263 = vmatprep.subr.mxu0 0.0
        %1264 = vmatpush1.msra.mxu0 0.0
        %1265 = vmatprep.subr.mxu0 0.0
        %1266 = vmatpush1.msra.mxu0 0.0
        %1267 = vmatprep.subr.mxu0 0.0
        %1268 = vmatpush1.msra.mxu0 0.0
        %1269 = vmatprep.subr.mxu0 0.0
        %1270 = vmatpush1.msra.mxu0 0.0
        %1271 = vmatprep.subr.mxu0 0.0
        %1272 = vmatpush1.msra.mxu0 0.0
        %1273 = vmatprep.subr.mxu0 0.0
        %1274 = vmatpush1.msra.mxu0 0.0
        %1275 = vmatprep.subr.mxu0 0.0
        %1276 = vmatpush1.msra.mxu0 0.0
        %1277 = vmatprep.subr.mxu0 0.0
        %1278 = vmatpush1.msra.mxu0 0.0
        %1279 = vmatprep.subr.mxu0 0.0
        %1280 = vmatpush1.msra.mxu0 0.0
        %1281 = vmatprep.subr.mxu0 0.0
        %1282 = vmatpush1.msra.mxu0 0.0
        %1283 = vmatprep.subr.mxu0 0.0
        %1284 = vmatpush1.msra.mxu0 0.0
        %1285 = vmatprep.subr.mxu0 0.0
        %1286 = vmatpush1.msra.mxu0 0.0
        %1287 = vmatprep.subr.mxu0 0.0
        %1288 = vmatpush1.msra.mxu0 0.0
        %1289 = vmatprep.subr.mxu0 0.0
        %1290 = vmatpush1.msra.mxu0 0.0
        %1291 = vmatprep.subr.mxu0 0.0
        %1292 = vmatpush1.msra.mxu0 0.0
        %1293 = vmatprep.subr.mxu0 0.0
        %1294 = vmatpush1.msra.mxu0 0.0
        %1295 = vmatprep.subr.mxu0 0.0
        %1296 = vmatpush1.msra.mxu0 0.0
        %1297 = vmatprep.subr.mxu0 0.0
        %1298 = vmatpush1.msra.mxu0 0.0
        %1299 = vmatprep.subr.mxu0 0.0
        %1300 = vmatpush1.msra.mxu0 0.0
        %1301 = vmatprep.subr.mxu0 0.0
        %1302 = vmatpush1.msra.mxu0 0.0
        %1303 = vmatprep.subr.mxu0 0.0
        %1304 = vmatpush1.msra.mxu0 0.0
        %1305 = vmatprep.subr.mxu0 0.0
        %1306 = vmatpush1.msra.mxu0 0.0
        %1307 = vmatprep.subr.mxu0 0.0
        %1308 = vmatpush1.msra.mxu0 0.0
        %1309 = vmatprep.subr.mxu0 0.0
        %1310 = vmatpush1.msra.mxu0 0.0
        %1311 = vmatprep.subr.mxu0 0.0
        %1312 = vmatpush1.msra.mxu0 0.0
        %1313 = vmatprep.subr.mxu0 0.0
        %1314 = vmatpush1.msra.mxu0 0.0
        %1315 = vmatprep.subr.mxu0 0.0
        %1316 = vmatpush1.msra.mxu0 0.0
        %1317 = vmatprep.subr.mxu0 0.0
        %1318 = vmatpush1.msra.mxu0 0.0
        %1319 = vmatprep.mubr.f32.mxu0 0.0
        %v1320 = vand.u32 %v603, 4294901760
        %1321 = vmatmul.mubr.f32.gmra.mrb[0].mxu0 %v1320
        %v1322 = vpop.f32.mrb[0].mxu0
        %v1323 = vadd.f32 %v1222, %v1322
        %v1324 = vpop.f32.mrb[0].mxu0
        %1325 = vmatprep.mubr.f32.mxu0 0.0
        %v1326 = vand.u32 %v606, 4294901760
        %1327 = vmatmul.mubr.f32.gmra.mrb[0].mxu0 %v1326
        %v1328 = vpop.f32.mrb[0].mxu0
        %v1329 = vadd.f32 %v1232, %v1328
        %v1330 = vpop.f32.mrb[0].mxu0
        %1331 = vdwg.mxu0
        %1332 = vmatprep.subr.mxu0 0.0
        %v1333 = vand.u32 %v1138, 4294901760
        %v1334 = vsub.f32 %v1138, %v1333
        %1335 = vmatpush1.msra.mxu0 %v1334
        %1336 = vmatprep.subr.mxu0 0.0
        %v1337 = vand.u32 %v1139, 4294901760
        %v1338 = vsub.f32 %v1139, %v1337
        %1339 = vmatpush1.msra.mxu0 %v1338
        %1340 = vmatprep.subr.mxu0 0.0
        %v1341 = vand.u32 %v1140, 4294901760
        %v1342 = vsub.f32 %v1140, %v1341
        %1343 = vmatpush1.msra.mxu0 %v1342
        %1344 = vmatprep.subr.mxu0 0.0
        %v1345 = vand.u32 %v1141, 4294901760
        %v1346 = vsub.f32 %v1141, %v1345
        %1347 = vmatpush1.msra.mxu0 %v1346
        %1348 = vmatprep.subr.mxu0 0.0
        %1349 = vmatpush1.msra.mxu0 0.0
        %1350 = vmatprep.subr.mxu0 0.0
        %1351 = vmatpush1.msra.mxu0 0.0
        %1352 = vmatprep.subr.mxu0 0.0
        %1353 = vmatpush1.msra.mxu0 0.0
        %1354 = vmatprep.subr.mxu0 0.0
        %1355 = vmatpush1.msra.mxu0 0.0
        %1356 = vmatprep.subr.mxu0 0.0
        %1357 = vmatpush1.msra.mxu0 0.0
        %1358 = vmatprep.subr.mxu0 0.0
        %1359 = vmatpush1.msra.mxu0 0.0
        %1360 = vmatprep.subr.mxu0 0.0
        %1361 = vmatpush1.msra.mxu0 0.0
        %1362 = vmatprep.subr.mxu0 0.0
        %1363 = vmatpush1.msra.mxu0 0.0
        %1364 = vmatprep.subr.mxu0 0.0
        %1365 = vmatpush1.msra.mxu0 0.0
        %1366 = vmatprep.subr.mxu0 0.0
        %1367 = vmatpush1.msra.mxu0 0.0
        %1368 = vmatprep.subr.mxu0 0.0
        %1369 = vmatpush1.msra.mxu0 0.0
        %1370 = vmatprep.subr.mxu0 0.0
        %1371 = vmatpush1.msra.mxu0 0.0
        %1372 = vmatprep.subr.mxu0 0.0
        %1373 = vmatpush1.msra.mxu0 0.0
        %1374 = vmatprep.subr.mxu0 0.0
        %1375 = vmatpush1.msra.mxu0 0.0
        %1376 = vmatprep.subr.mxu0 0.0
        %1377 = vmatpush1.msra.mxu0 0.0
        %1378 = vmatprep.subr.mxu0 0.0
        %1379 = vmatpush1.msra.mxu0 0.0
        %1380 = vmatprep.subr.mxu0 0.0
        %1381 = vmatpush1.msra.mxu0 0.0
        %1382 = vmatprep.subr.mxu0 0.0
        %1383 = vmatpush1.msra.mxu0 0.0
        %1384 = vmatprep.subr.mxu0 0.0
        %1385 = vmatpush1.msra.mxu0 0.0
        %1386 = vmatprep.subr.mxu0 0.0
        %1387 = vmatpush1.msra.mxu0 0.0
        %1388 = vmatprep.subr.mxu0 0.0
        %1389 = vmatpush1.msra.mxu0 0.0
        %1390 = vmatprep.subr.mxu0 0.0
        %1391 = vmatpush1.msra.mxu0 0.0
        %1392 = vmatprep.subr.mxu0 0.0
        %1393 = vmatpush1.msra.mxu0 0.0
        %1394 = vmatprep.subr.mxu0 0.0
        %1395 = vmatpush1.msra.mxu0 0.0
        %1396 = vmatprep.subr.mxu0 0.0
        %1397 = vmatpush1.msra.mxu0 0.0
        %1398 = vmatprep.subr.mxu0 0.0
        %1399 = vmatpush1.msra.mxu0 0.0
        %1400 = vmatprep.subr.mxu0 0.0
        %1401 = vmatpush1.msra.mxu0 0.0
        %1402 = vmatprep.subr.mxu0 0.0
        %1403 = vmatpush1.msra.mxu0 0.0
        %1404 = vmatprep.mubr.f32.mxu0 0.0
        %v1405 = vand.u32 %v603, 4294901760
        %v1406 = vsub.f32 %v603, %v1405
        %1407 = vmatmul.mubr.f32.gmra.mrb[0].mxu0 %v1406
        %v1408 = vpop.f32.mrb[0].mxu0
        %v1409 = vadd.f32 %v1323, %v1408
        %v1410 = vpop.f32.mrb[0].mxu0
        %1411 = vmatprep.mubr.f32.mxu0 0.0
        %v1412 = vand.u32 %v606, 4294901760
        %v1413 = vsub.f32 %v606, %v1412
        %1414 = vmatmul.mubr.f32.gmra.mrb[0].mxu0 %v1413
        %v1415 = vpop.f32.mrb[0].mxu0
        %v1416 = vadd.f32 %v1329, %v1415
        %v1417 = vpop.f32.mrb[0].mxu0
        %1418 = vdwg.mxu0
        %1419 = vmatprep.subr.mxu0 0.0
        %v1420 = vand.u32 %v1138, 4294901760
        %1421 = vmatpush1.msra.mxu0 %v1420
        %1422 = vmatprep.subr.mxu0 0.0
        %v1423 = vand.u32 %v1139, 4294901760
        %1424 = vmatpush1.msra.mxu0 %v1423
        %1425 = vmatprep.subr.mxu0 0.0
        %v1426 = vand.u32 %v1140, 4294901760
        %1427 = vmatpush1.msra.mxu0 %v1426
        %1428 = vmatprep.subr.mxu0 0.0
        %v1429 = vand.u32 %v1141, 4294901760
        %1430 = vmatpush1.msra.mxu0 %v1429
        %1431 = vmatprep.subr.mxu0 0.0
        %1432 = vmatpush1.msra.mxu0 0.0
        %1433 = vmatprep.subr.mxu0 0.0
        %1434 = vmatpush1.msra.mxu0 0.0
        %1435 = vmatprep.subr.mxu0 0.0
        %1436 = vmatpush1.msra.mxu0 0.0
        %1437 = vmatprep.subr.mxu0 0.0
        %1438 = vmatpush1.msra.mxu0 0.0
        %1439 = vmatprep.subr.mxu0 0.0
        %1440 = vmatpush1.msra.mxu0 0.0
        %1441 = vmatprep.subr.mxu0 0.0
        %1442 = vmatpush1.msra.mxu0 0.0
        %1443 = vmatprep.subr.mxu0 0.0
        %1444 = vmatpush1.msra.mxu0 0.0
        %1445 = vmatprep.subr.mxu0 0.0
        %1446 = vmatpush1.msra.mxu0 0.0
        %1447 = vmatprep.subr.mxu0 0.0
        %1448 = vmatpush1.msra.mxu0 0.0
        %1449 = vmatprep.subr.mxu0 0.0
        %1450 = vmatpush1.msra.mxu0 0.0
        %1451 = vmatprep.subr.mxu0 0.0
        %1452 = vmatpush1.msra.mxu0 0.0
        %1453 = vmatprep.subr.mxu0 0.0
        %1454 = vmatpush1.msra.mxu0 0.0
        %1455 = vmatprep.subr.mxu0 0.0
        %1456 = vmatpush1.msra.mxu0 0.0
        %1457 = vmatprep.subr.mxu0 0.0
        %1458 = vmatpush1.msra.mxu0 0.0
        %1459 = vmatprep.subr.mxu0 0.0
        %1460 = vmatpush1.msra.mxu0 0.0
        %1461 = vmatprep.subr.mxu0 0.0
        %1462 = vmatpush1.msra.mxu0 0.0
        %1463 = vmatprep.subr.mxu0 0.0
        %1464 = vmatpush1.msra.mxu0 0.0
        %1465 = vmatprep.subr.mxu0 0.0
        %1466 = vmatpush1.msra.mxu0 0.0
        %1467 = vmatprep.subr.mxu0 0.0
        %1468 = vmatpush1.msra.mxu0 0.0
        %1469 = vmatprep.subr.mxu0 0.0
        %1470 = vmatpush1.msra.mxu0 0.0
        %1471 = vmatprep.subr.mxu0 0.0
        %1472 = vmatpush1.msra.mxu0 0.0
        %1473 = vmatprep.subr.mxu0 0.0
        %1474 = vmatpush1.msra.mxu0 0.0
        %1475 = vmatprep.subr.mxu0 0.0
        %1476 = vmatpush1.msra.mxu0 0.0
        %1477 = vmatprep.subr.mxu0 0.0
        %1478 = vmatpush1.msra.mxu0 0.0
        %1479 = vmatprep.subr.mxu0 0.0
        %1480 = vmatpush1.msra.mxu0 0.0
        %1481 = vmatprep.subr.mxu0 0.0
        %1482 = vmatpush1.msra.mxu0 0.0
        %1483 = vmatprep.subr.mxu0 0.0
        %1484 = vmatpush1.msra.mxu0 0.0
        %1485 = vmatprep.subr.mxu0 0.0
        %1486 = vmatpush1.msra.mxu0 0.0
        %1487 = vmatprep.mubr.f32.mxu0 0.0
        %v1488 = vand.u32 %v603, 4294901760
        %v1489 = vsub.f32 %v603, %v1488
        %v1490 = vand.u32 %v1489, 4294901760
        %1491 = vmatmul.mubr.f32.gmra.mrb[0].mxu0 %v1490
        %v1492 = vpop.f32.mrb[0].mxu0
        %v1493 = vadd.f32 %v1409, %v1492
        %v1494 = vpop.f32.mrb[0].mxu0
        %1495 = vmatprep.mubr.f32.mxu0 0.0
        %v1496 = vand.u32 %v606, 4294901760
        %v1497 = vsub.f32 %v606, %v1496
        %v1498 = vand.u32 %v1497, 4294901760
        %1499 = vmatmul.mubr.f32.gmra.mrb[0].mxu0 %v1498
        %v1500 = vpop.f32.mrb[0].mxu0
        %v1501 = vadd.f32 %v1416, %v1500
        %v1502 = vpop.f32.mrb[0].mxu0
        %1503 = vdwg.mxu0
        %1504 = vmatprep.subr.mxu0 0.0
        %v1505 = vand.u32 %v1138, 4294901760
        %v1506 = vsub.f32 %v1138, %v1505
        %v1507 = vand.u32 %v1506, 4294901760
        %1508 = vmatpush1.msra.mxu0 %v1507
        %1509 = vmatprep.subr.mxu0 0.0
        %v1510 = vand.u32 %v1139, 4294901760
        %v1511 = vsub.f32 %v1139, %v1510
        %v1512 = vand.u32 %v1511, 4294901760
        %1513 = vmatpush1.msra.mxu0 %v1512
        %1514 = vmatprep.subr.mxu0 0.0
        %v1515 = vand.u32 %v1140, 4294901760
        %v1516 = vsub.f32 %v1140, %v1515
        %v1517 = vand.u32 %v1516, 4294901760
        %1518 = vmatpush1.msra.mxu0 %v1517
        %1519 = vmatprep.subr.mxu0 0.0
        %v1520 = vand.u32 %v1141, 4294901760
        %v1521 = vsub.f32 %v1141, %v1520
        %v1522 = vand.u32 %v1521, 4294901760
        %1523 = vmatpush1.msra.mxu0 %v1522
        %1524 = vmatprep.subr.mxu0 0.0
        %1525 = vmatpush1.msra.mxu0 0.0
        %1526 = vmatprep.subr.mxu0 0.0
        %1527 = vmatpush1.msra.mxu0 0.0
        %1528 = vmatprep.subr.mxu0 0.0
        %1529 = vmatpush1.msra.mxu0 0.0
        %1530 = vmatprep.subr.mxu0 0.0
        %1531 = vmatpush1.msra.mxu0 0.0
        %1532 = vmatprep.subr.mxu0 0.0
        %1533 = vmatpush1.msra.mxu0 0.0
        %1534 = vmatprep.subr.mxu0 0.0
        %1535 = vmatpush1.msra.mxu0 0.0
        %1536 = vmatprep.subr.mxu0 0.0
        %1537 = vmatpush1.msra.mxu0 0.0
        %1538 = vmatprep.subr.mxu0 0.0
        %1539 = vmatpush1.msra.mxu0 0.0
        %1540 = vmatprep.subr.mxu0 0.0
        %1541 = vmatpush1.msra.mxu0 0.0
        %1542 = vmatprep.subr.mxu0 0.0
        %1543 = vmatpush1.msra.mxu0 0.0
        %1544 = vmatprep.subr.mxu0 0.0
        %1545 = vmatpush1.msra.mxu0 0.0
        %1546 = vmatprep.subr.mxu0 0.0
        %1547 = vmatpush1.msra.mxu0 0.0
        %1548 = vmatprep.subr.mxu0 0.0
        %1549 = vmatpush1.msra.mxu0 0.0
        %1550 = vmatprep.subr.mxu0 0.0
        %1551 = vmatpush1.msra.mxu0 0.0
        %1552 = vmatprep.subr.mxu0 0.0
        %1553 = vmatpush1.msra.mxu0 0.0
        %1554 = vmatprep.subr.mxu0 0.0
        %1555 = vmatpush1.msra.mxu0 0.0
        %1556 = vmatprep.subr.mxu0 0.0
        %1557 = vmatpush1.msra.mxu0 0.0
        %1558 = vmatprep.subr.mxu0 0.0
        %1559 = vmatpush1.msra.mxu0 0.0
        %1560 = vmatprep.subr.mxu0 0.0
        %1561 = vmatpush1.msra.mxu0 0.0
        %1562 = vmatprep.subr.mxu0 0.0
        %1563 = vmatpush1.msra.mxu0 0.0
        %1564 = vmatprep.subr.mxu0 0.0
        %1565 = vmatpush1.msra.mxu0 0.0
        %1566 = vmatprep.subr.mxu0 0.0
        %1567 = vmatpush1.msra.mxu0 0.0
        %1568 = vmatprep.subr.mxu0 0.0
        %1569 = vmatpush1.msra.mxu0 0.0
        %1570 = vmatprep.subr.mxu0 0.0
        %1571 = vmatpush1.msra.mxu0 0.0
        %1572 = vmatprep.subr.mxu0 0.0
        %1573 = vmatpush1.msra.mxu0 0.0
        %1574 = vmatprep.subr.mxu0 0.0
        %1575 = vmatpush1.msra.mxu0 0.0
        %1576 = vmatprep.subr.mxu0 0.0
        %1577 = vmatpush1.msra.mxu0 0.0
        %1578 = vmatprep.subr.mxu0 0.0
        %1579 = vmatpush1.msra.mxu0 0.0
        %1580 = vmatprep.mubr.f32.mxu0 0.0
        %v1581 = vand.u32 %v603, 4294901760
        %1582 = vmatmul.mubr.f32.gmra.mrb[0].mxu0 %v1581
        %v1583 = vpop.f32.mrb[0].mxu0
        %v1584 = vadd.f32 %v1493, %v1583
        %v1585 = vpop.f32.mrb[0].mxu0
        %1586 = vmatprep.mubr.f32.mxu0 0.0
        %v1587 = vand.u32 %v606, 4294901760
        %1588 = vmatmul.mubr.f32.gmra.mrb[0].mxu0 %v1587
        %v1589 = vpop.f32.mrb[0].mxu0
        %v1590 = vadd.f32 %v1501, %v1589
        %v1591 = vpop.f32.mrb[0].mxu0
        %1592 = vdwg.mxu0
        %1593 = vmatprep.subr.mxu0 0.0
        %v1594 = vand.u32 %v1138, 4294901760
        %1595 = vmatpush1.msra.mxu0 %v1594
        %1596 = vmatprep.subr.mxu0 0.0
        %v1597 = vand.u32 %v1139, 4294901760
        %1598 = vmatpush1.msra.mxu0 %v1597
        %1599 = vmatprep.subr.mxu0 0.0
        %v1600 = vand.u32 %v1140, 4294901760
        %1601 = vmatpush1.msra.mxu0 %v1600
        %1602 = vmatprep.subr.mxu0 0.0
        %v1603 = vand.u32 %v1141, 4294901760
        %1604 = vmatpush1.msra.mxu0 %v1603
        %1605 = vmatprep.subr.mxu0 0.0
        %1606 = vmatpush1.msra.mxu0 0.0
        %1607 = vmatprep.subr.mxu0 0.0
        %1608 = vmatpush1.msra.mxu0 0.0
        %1609 = vmatprep.subr.mxu0 0.0
        %1610 = vmatpush1.msra.mxu0 0.0
        %1611 = vmatprep.subr.mxu0 0.0
        %1612 = vmatpush1.msra.mxu0 0.0
        %1613 = vmatprep.subr.mxu0 0.0
        %1614 = vmatpush1.msra.mxu0 0.0
        %1615 = vmatprep.subr.mxu0 0.0
        %1616 = vmatpush1.msra.mxu0 0.0
        %1617 = vmatprep.subr.mxu0 0.0
        %1618 = vmatpush1.msra.mxu0 0.0
        %1619 = vmatprep.subr.mxu0 0.0
        %1620 = vmatpush1.msra.mxu0 0.0
        %1621 = vmatprep.subr.mxu0 0.0
        %1622 = vmatpush1.msra.mxu0 0.0
        %1623 = vmatprep.subr.mxu0 0.0
        %1624 = vmatpush1.msra.mxu0 0.0
        %1625 = vmatprep.subr.mxu0 0.0
        %1626 = vmatpush1.msra.mxu0 0.0
        %1627 = vmatprep.subr.mxu0 0.0
        %1628 = vmatpush1.msra.mxu0 0.0
        %1629 = vmatprep.subr.mxu0 0.0
        %1630 = vmatpush1.msra.mxu0 0.0
        %1631 = vmatprep.subr.mxu0 0.0
        %1632 = vmatpush1.msra.mxu0 0.0
        %1633 = vmatprep.subr.mxu0 0.0
        %1634 = vmatpush1.msra.mxu0 0.0
        %1635 = vmatprep.subr.mxu0 0.0
        %1636 = vmatpush1.msra.mxu0 0.0
        %1637 = vmatprep.subr.mxu0 0.0
        %1638 = vmatpush1.msra.mxu0 0.0
        %1639 = vmatprep.subr.mxu0 0.0
        %1640 = vmatpush1.msra.mxu0 0.0
        %1641 = vmatprep.subr.mxu0 0.0
        %1642 = vmatpush1.msra.mxu0 0.0
        %1643 = vmatprep.subr.mxu0 0.0
        %1644 = vmatpush1.msra.mxu0 0.0
        %1645 = vmatprep.subr.mxu0 0.0
        %1646 = vmatpush1.msra.mxu0 0.0
        %1647 = vmatprep.subr.mxu0 0.0
        %1648 = vmatpush1.msra.mxu0 0.0
        %1649 = vmatprep.subr.mxu0 0.0
        %1650 = vmatpush1.msra.mxu0 0.0
        %1651 = vmatprep.subr.mxu0 0.0
        %1652 = vmatpush1.msra.mxu0 0.0
        %1653 = vmatprep.subr.mxu0 0.0
        %1654 = vmatpush1.msra.mxu0 0.0
        %1655 = vmatprep.subr.mxu0 0.0
        %1656 = vmatpush1.msra.mxu0 0.0
        %1657 = vmatprep.subr.mxu0 0.0
        %1658 = vmatpush1.msra.mxu0 0.0
        %1659 = vmatprep.subr.mxu0 0.0
        %1660 = vmatpush1.msra.mxu0 0.0
        %1661 = vmatprep.mubr.f32.mxu0 0.0
        %v1662 = vand.u32 %v603, 4294901760
        %1663 = vmatmul.mubr.f32.gmra.mrb[0].mxu0 %v1662
        %v1664 = vpop.f32.mrb[0].mxu0
        %v1665 = vadd.f32 %v1584, %v1664
        %v1666 = vpop.f32.mrb[0].mxu0
        %1667 = vmatprep.mubr.f32.mxu0 0.0
        %v1668 = vand.u32 %v606, 4294901760
        %1669 = vmatmul.mubr.f32.gmra.mrb[0].mxu0 %v1668
        %v1670 = vpop.f32.mrb[0].mxu0
        %v1671 = vadd.f32 %v1590, %v1670
        %v1672 = vpop.f32.mrb[0].mxu0
        %1673 = vdwg.mxu0
        %v1674 = vld [vmem:[%s563] sm:$0xff]
        %v1675 = vld [vmem:[%s563 + $0x8] sm:$0xff]
        %v1676 = vld [vmem:[%s563 + $0x10] sm:$0xff]
        %v1677 = vld [vmem:[%s563 + $0x18] sm:$0xff]
        %v1678 = vlaneseq
        %v1679 = vshrl.u32 %v1678, 7
        %v1680 = vsub.s32 2, %v1679
        %v1681 = vrot.slane %v589, %v1680
        %v1683 = vsel %vm601, %v583, 0
        %v1686 = vsel %vm601, %v584, 0
        %1688 = vmatprep.subr.mxu0 0.0
        %v1689 = vand.u32 %v1674, 4294901760
        %1690 = vmatpush1.msra.mxu0 %v1689
        %1691 = vmatprep.subr.mxu0 0.0
        %v1692 = vand.u32 %v1675, 4294901760
        %1693 = vmatpush1.msra.mxu0 %v1692
        %1694 = vmatprep.subr.mxu0 0.0
        %v1695 = vand.u32 %v1676, 4294901760
        %1696 = vmatpush1.msra.mxu0 %v1695
        %1697 = vmatprep.subr.mxu0 0.0
        %v1698 = vand.u32 %v1677, 4294901760
        %1699 = vmatpush1.msra.mxu0 %v1698
        %1700 = vmatprep.subr.mxu0 0.0
        %1701 = vmatpush1.msra.mxu0 0.0
        %1702 = vmatprep.subr.mxu0 0.0
        %1703 = vmatpush1.msra.mxu0 0.0
        %1704 = vmatprep.subr.mxu0 0.0
        %1705 = vmatpush1.msra.mxu0 0.0
        %1706 = vmatprep.subr.mxu0 0.0
        %1707 = vmatpush1.msra.mxu0 0.0
        %1708 = vmatprep.subr.mxu0 0.0
        %1709 = vmatpush1.msra.mxu0 0.0
        %1710 = vmatprep.subr.mxu0 0.0
        %1711 = vmatpush1.msra.mxu0 0.0
        %1712 = vmatprep.subr.mxu0 0.0
        %1713 = vmatpush1.msra.mxu0 0.0
        %1714 = vmatprep.subr.mxu0 0.0
        %1715 = vmatpush1.msra.mxu0 0.0
        %1716 = vmatprep.subr.mxu0 0.0
        %1717 = vmatpush1.msra.mxu0 0.0
        %1718 = vmatprep.subr.mxu0 0.0
        %1719 = vmatpush1.msra.mxu0 0.0
        %1720 = vmatprep.subr.mxu0 0.0
        %1721 = vmatpush1.msra.mxu0 0.0
        %1722 = vmatprep.subr.mxu0 0.0
        %1723 = vmatpush1.msra.mxu0 0.0
        %1724 = vmatprep.subr.mxu0 0.0
        %1725 = vmatpush1.msra.mxu0 0.0
        %1726 = vmatprep.subr.mxu0 0.0
        %1727 = vmatpush1.msra.mxu0 0.0
        %1728 = vmatprep.subr.mxu0 0.0
        %1729 = vmatpush1.msra.mxu0 0.0
        %1730 = vmatprep.subr.mxu0 0.0
        %1731 = vmatpush1.msra.mxu0 0.0
        %1732 = vmatprep.subr.mxu0 0.0
        %1733 = vmatpush1.msra.mxu0 0.0
        %1734 = vmatprep.subr.mxu0 0.0
        %1735 = vmatpush1.msra.mxu0 0.0
        %1736 = vmatprep.subr.mxu0 0.0
        %1737 = vmatpush1.msra.mxu0 0.0
        %1738 = vmatprep.subr.mxu0 0.0
        %1739 = vmatpush1.msra.mxu0 0.0
        %1740 = vmatprep.subr.mxu0 0.0
        %1741 = vmatpush1.msra.mxu0 0.0
        %1742 = vmatprep.subr.mxu0 0.0
        %1743 = vmatpush1.msra.mxu0 0.0
        %1744 = vmatprep.subr.mxu0 0.0
        %1745 = vmatpush1.msra.mxu0 0.0
        %1746 = vmatprep.subr.mxu0 0.0
        %1747 = vmatpush1.msra.mxu0 0.0
        %1748 = vmatprep.subr.mxu0 0.0
        %1749 = vmatpush1.msra.mxu0 0.0
        %1750 = vmatprep.subr.mxu0 0.0
        %1751 = vmatpush1.msra.mxu0 0.0
        %1752 = vmatprep.subr.mxu0 0.0
        %1753 = vmatpush1.msra.mxu0 0.0
        %1754 = vmatprep.subr.mxu0 0.0
        %1755 = vmatpush1.msra.mxu0 0.0
        %1756 = vmatprep.mubr.f32.mxu0 0.0
        %v1757 = vand.u32 %v1683, 4294901760
        %v1758 = vsub.f32 %v1683, %v1757
        %v1759 = vand.u32 %v1758, 4294901760
        %v1760 = vsub.f32 %v1758, %v1759
        %v1761 = vand.u32 %v1760, 4294901760
        %1762 = vmatmul.mubr.f32.gmra.mrb[0].mxu0 %v1761
        %v1763 = vpop.f32.mrb[0].mxu0
        %v1764 = vadd.f32 %v1681, %v1763
        %v1765 = vpop.f32.mrb[0].mxu0
        %1766 = vmatprep.mubr.f32.mxu0 0.0
        %v1767 = vand.u32 %v1686, 4294901760
        %v1768 = vsub.f32 %v1686, %v1767
        %v1769 = vand.u32 %v1768, 4294901760
        %v1770 = vsub.f32 %v1768, %v1769
        %v1771 = vand.u32 %v1770, 4294901760
        %1772 = vmatmul.mubr.f32.gmra.mrb[0].mxu0 %v1771
        %v1773 = vpop.f32.mrb[0].mxu0
        %v1774 = vadd.f32 %v1681, %v1773
        %v1775 = vpop.f32.mrb[0].mxu0
        %1776 = vdwg.mxu0
        %1777 = vmatprep.subr.mxu0 0.0
        %v1778 = vand.u32 %v1674, 4294901760
        %v1779 = vsub.f32 %v1674, %v1778
        %v1780 = vand.u32 %v1779, 4294901760
        %v1781 = vsub.f32 %v1779, %v1780
        %v1782 = vand.u32 %v1781, 4294901760
        %1783 = vmatpush1.msra.mxu0 %v1782
        %1784 = vmatprep.subr.mxu0 0.0
        %v1785 = vand.u32 %v1675, 4294901760
        %v1786 = vsub.f32 %v1675, %v1785
        %v1787 = vand.u32 %v1786, 4294901760
        %v1788 = vsub.f32 %v1786, %v1787
        %v1789 = vand.u32 %v1788, 4294901760
        %1790 = vmatpush1.msra.mxu0 %v1789
        %1791 = vmatprep.subr.mxu0 0.0
        %v1792 = vand.u32 %v1676, 4294901760
        %v1793 = vsub.f32 %v1676, %v1792
        %v1794 = vand.u32 %v1793, 4294901760
        %v1795 = vsub.f32 %v1793, %v1794
        %v1796 = vand.u32 %v1795, 4294901760
        %1797 = vmatpush1.msra.mxu0 %v1796
        %1798 = vmatprep.subr.mxu0 0.0
        %v1799 = vand.u32 %v1677, 4294901760
        %v1800 = vsub.f32 %v1677, %v1799
        %v1801 = vand.u32 %v1800, 4294901760
        %v1802 = vsub.f32 %v1800, %v1801
        %v1803 = vand.u32 %v1802, 4294901760
        %1804 = vmatpush1.msra.mxu0 %v1803
        %1805 = vmatprep.subr.mxu0 0.0
        %1806 = vmatpush1.msra.mxu0 0.0
        %1807 = vmatprep.subr.mxu0 0.0
        %1808 = vmatpush1.msra.mxu0 0.0
        %1809 = vmatprep.subr.mxu0 0.0
        %1810 = vmatpush1.msra.mxu0 0.0
        %1811 = vmatprep.subr.mxu0 0.0
        %1812 = vmatpush1.msra.mxu0 0.0
        %1813 = vmatprep.subr.mxu0 0.0
        %1814 = vmatpush1.msra.mxu0 0.0
        %1815 = vmatprep.subr.mxu0 0.0
        %1816 = vmatpush1.msra.mxu0 0.0
        %1817 = vmatprep.subr.mxu0 0.0
        %1818 = vmatpush1.msra.mxu0 0.0
        %1819 = vmatprep.subr.mxu0 0.0
        %1820 = vmatpush1.msra.mxu0 0.0
        %1821 = vmatprep.subr.mxu0 0.0
        %1822 = vmatpush1.msra.mxu0 0.0
        %1823 = vmatprep.subr.mxu0 0.0
        %1824 = vmatpush1.msra.mxu0 0.0
        %1825 = vmatprep.subr.mxu0 0.0
        %1826 = vmatpush1.msra.mxu0 0.0
        %1827 = vmatprep.subr.mxu0 0.0
        %1828 = vmatpush1.msra.mxu0 0.0
        %1829 = vmatprep.subr.mxu0 0.0
        %1830 = vmatpush1.msra.mxu0 0.0
        %1831 = vmatprep.subr.mxu0 0.0
        %1832 = vmatpush1.msra.mxu0 0.0
        %1833 = vmatprep.subr.mxu0 0.0
        %1834 = vmatpush1.msra.mxu0 0.0
        %1835 = vmatprep.subr.mxu0 0.0
        %1836 = vmatpush1.msra.mxu0 0.0
        %1837 = vmatprep.subr.mxu0 0.0
        %1838 = vmatpush1.msra.mxu0 0.0
        %1839 = vmatprep.subr.mxu0 0.0
        %1840 = vmatpush1.msra.mxu0 0.0
        %1841 = vmatprep.subr.mxu0 0.0
        %1842 = vmatpush1.msra.mxu0 0.0
        %1843 = vmatprep.subr.mxu0 0.0
        %1844 = vmatpush1.msra.mxu0 0.0
        %1845 = vmatprep.subr.mxu0 0.0
        %1846 = vmatpush1.msra.mxu0 0.0
        %1847 = vmatprep.subr.mxu0 0.0
        %1848 = vmatpush1.msra.mxu0 0.0
        %1849 = vmatprep.subr.mxu0 0.0
        %1850 = vmatpush1.msra.mxu0 0.0
        %1851 = vmatprep.subr.mxu0 0.0
        %1852 = vmatpush1.msra.mxu0 0.0
        %1853 = vmatprep.subr.mxu0 0.0
        %1854 = vmatpush1.msra.mxu0 0.0
        %1855 = vmatprep.subr.mxu0 0.0
        %1856 = vmatpush1.msra.mxu0 0.0
        %1857 = vmatprep.subr.mxu0 0.0
        %1858 = vmatpush1.msra.mxu0 0.0
        %1859 = vmatprep.subr.mxu0 0.0
        %1860 = vmatpush1.msra.mxu0 0.0
        %1861 = vmatprep.mubr.f32.mxu0 0.0
        %v1862 = vand.u32 %v1683, 4294901760
        %1863 = vmatmul.mubr.f32.gmra.mrb[0].mxu0 %v1862
        %v1864 = vpop.f32.mrb[0].mxu0
        %v1865 = vadd.f32 %v1764, %v1864
        %v1866 = vpop.f32.mrb[0].mxu0
        %1867 = vmatprep.mubr.f32.mxu0 0.0
        %v1868 = vand.u32 %v1686, 4294901760
        %1869 = vmatmul.mubr.f32.gmra.mrb[0].mxu0 %v1868
        %v1870 = vpop.f32.mrb[0].mxu0
        %v1871 = vadd.f32 %v1774, %v1870
        %v1872 = vpop.f32.mrb[0].mxu0
        %1873 = vdwg.mxu0
        %1874 = vmatprep.subr.mxu0 0.0
        %v1875 = vand.u32 %v1674, 4294901760
        %v1876 = vsub.f32 %v1674, %v1875
        %1877 = vmatpush1.msra.mxu0 %v1876
        %1878 = vmatprep.subr.mxu0 0.0
        %v1879 = vand.u32 %v1675, 4294901760
        %v1880 = vsub.f32 %v1675, %v1879
        %1881 = vmatpush1.msra.mxu0 %v1880
        %1882 = vmatprep.subr.mxu0 0.0
        %v1883 = vand.u32 %v1676, 4294901760
        %v1884 = vsub.f32 %v1676, %v1883
        %1885 = vmatpush1.msra.mxu0 %v1884
        %1886 = vmatprep.subr.mxu0 0.0
        %v1887 = vand.u32 %v1677, 4294901760
        %v1888 = vsub.f32 %v1677, %v1887
        %1889 = vmatpush1.msra.mxu0 %v1888
        %1890 = vmatprep.subr.mxu0 0.0
        %1891 = vmatpush1.msra.mxu0 0.0
        %1892 = vmatprep.subr.mxu0 0.0
        %1893 = vmatpush1.msra.mxu0 0.0
        %1894 = vmatprep.subr.mxu0 0.0
        %1895 = vmatpush1.msra.mxu0 0.0
        %1896 = vmatprep.subr.mxu0 0.0
        %1897 = vmatpush1.msra.mxu0 0.0
        %1898 = vmatprep.subr.mxu0 0.0
        %1899 = vmatpush1.msra.mxu0 0.0
        %1900 = vmatprep.subr.mxu0 0.0
        %1901 = vmatpush1.msra.mxu0 0.0
        %1902 = vmatprep.subr.mxu0 0.0
        %1903 = vmatpush1.msra.mxu0 0.0
        %1904 = vmatprep.subr.mxu0 0.0
        %1905 = vmatpush1.msra.mxu0 0.0
        %1906 = vmatprep.subr.mxu0 0.0
        %1907 = vmatpush1.msra.mxu0 0.0
        %1908 = vmatprep.subr.mxu0 0.0
        %1909 = vmatpush1.msra.mxu0 0.0
        %1910 = vmatprep.subr.mxu0 0.0
        %1911 = vmatpush1.msra.mxu0 0.0
        %1912 = vmatprep.subr.mxu0 0.0
        %1913 = vmatpush1.msra.mxu0 0.0
        %1914 = vmatprep.subr.mxu0 0.0
        %1915 = vmatpush1.msra.mxu0 0.0
        %1916 = vmatprep.subr.mxu0 0.0
        %1917 = vmatpush1.msra.mxu0 0.0
        %1918 = vmatprep.subr.mxu0 0.0
        %1919 = vmatpush1.msra.mxu0 0.0
        %1920 = vmatprep.subr.mxu0 0.0
        %1921 = vmatpush1.msra.mxu0 0.0
        %1922 = vmatprep.subr.mxu0 0.0
        %1923 = vmatpush1.msra.mxu0 0.0
        %1924 = vmatprep.subr.mxu0 0.0
        %1925 = vmatpush1.msra.mxu0 0.0
        %1926 = vmatprep.subr.mxu0 0.0
        %1927 = vmatpush1.msra.mxu0 0.0
        %1928 = vmatprep.subr.mxu0 0.0
        %1929 = vmatpush1.msra.mxu0 0.0
        %1930 = vmatprep.subr.mxu0 0.0
        %1931 = vmatpush1.msra.mxu0 0.0
        %1932 = vmatprep.subr.mxu0 0.0
        %1933 = vmatpush1.msra.mxu0 0.0
        %1934 = vmatprep.subr.mxu0 0.0
        %1935 = vmatpush1.msra.mxu0 0.0
        %1936 = vmatprep.subr.mxu0 0.0
        %1937 = vmatpush1.msra.mxu0 0.0
        %1938 = vmatprep.subr.mxu0 0.0
        %1939 = vmatpush1.msra.mxu0 0.0
        %1940 = vmatprep.subr.mxu0 0.0
        %1941 = vmatpush1.msra.mxu0 0.0
        %1942 = vmatprep.subr.mxu0 0.0
        %1943 = vmatpush1.msra.mxu0 0.0
        %1944 = vmatprep.subr.mxu0 0.0
        %1945 = vmatpush1.msra.mxu0 0.0
        %1946 = vmatprep.mubr.f32.mxu0 0.0
        %v1947 = vand.u32 %v1683, 4294901760
        %v1948 = vsub.f32 %v1683, %v1947
        %1949 = vmatmul.mubr.f32.gmra.mrb[0].mxu0 %v1948
        %v1950 = vpop.f32.mrb[0].mxu0
        %v1951 = vadd.f32 %v1865, %v1950
        %v1952 = vpop.f32.mrb[0].mxu0
        %1953 = vmatprep.mubr.f32.mxu0 0.0
        %v1954 = vand.u32 %v1686, 4294901760
        %v1955 = vsub.f32 %v1686, %v1954
        %1956 = vmatmul.mubr.f32.gmra.mrb[0].mxu0 %v1955
        %v1957 = vpop.f32.mrb[0].mxu0
        %v1958 = vadd.f32 %v1871, %v1957
        %v1959 = vpop.f32.mrb[0].mxu0
        %1960 = vdwg.mxu0
        %1961 = vmatprep.subr.mxu0 0.0
        %v1962 = vand.u32 %v1674, 4294901760
        %1963 = vmatpush1.msra.mxu0 %v1962
        %1964 = vmatprep.subr.mxu0 0.0
        %v1965 = vand.u32 %v1675, 4294901760
        %1966 = vmatpush1.msra.mxu0 %v1965
        %1967 = vmatprep.subr.mxu0 0.0
        %v1968 = vand.u32 %v1676, 4294901760
        %1969 = vmatpush1.msra.mxu0 %v1968
        %1970 = vmatprep.subr.mxu0 0.0
        %v1971 = vand.u32 %v1677, 4294901760
        %1972 = vmatpush1.msra.mxu0 %v1971
        %1973 = vmatprep.subr.mxu0 0.0
        %1974 = vmatpush1.msra.mxu0 0.0
        %1975 = vmatprep.subr.mxu0 0.0
        %1976 = vmatpush1.msra.mxu0 0.0
        %1977 = vmatprep.subr.mxu0 0.0
        %1978 = vmatpush1.msra.mxu0 0.0
        %1979 = vmatprep.subr.mxu0 0.0
        %1980 = vmatpush1.msra.mxu0 0.0
        %1981 = vmatprep.subr.mxu0 0.0
        %1982 = vmatpush1.msra.mxu0 0.0
        %1983 = vmatprep.subr.mxu0 0.0
        %1984 = vmatpush1.msra.mxu0 0.0
        %1985 = vmatprep.subr.mxu0 0.0
        %1986 = vmatpush1.msra.mxu0 0.0
        %1987 = vmatprep.subr.mxu0 0.0
        %1988 = vmatpush1.msra.mxu0 0.0
        %1989 = vmatprep.subr.mxu0 0.0
        %1990 = vmatpush1.msra.mxu0 0.0
        %1991 = vmatprep.subr.mxu0 0.0
        %1992 = vmatpush1.msra.mxu0 0.0
        %1993 = vmatprep.subr.mxu0 0.0
        %1994 = vmatpush1.msra.mxu0 0.0
        %1995 = vmatprep.subr.mxu0 0.0
        %1996 = vmatpush1.msra.mxu0 0.0
        %1997 = vmatprep.subr.mxu0 0.0
        %1998 = vmatpush1.msra.mxu0 0.0
        %1999 = vmatprep.subr.mxu0 0.0
        %2000 = vmatpush1.msra.mxu0 0.0
        %2001 = vmatprep.subr.mxu0 0.0
        %2002 = vmatpush1.msra.mxu0 0.0
        %2003 = vmatprep.subr.mxu0 0.0
        %2004 = vmatpush1.msra.mxu0 0.0
        %2005 = vmatprep.subr.mxu0 0.0
        %2006 = vmatpush1.msra.mxu0 0.0
        %2007 = vmatprep.subr.mxu0 0.0
        %2008 = vmatpush1.msra.mxu0 0.0
        %2009 = vmatprep.subr.mxu0 0.0
        %2010 = vmatpush1.msra.mxu0 0.0
        %2011 = vmatprep.subr.mxu0 0.0
        %2012 = vmatpush1.msra.mxu0 0.0
        %2013 = vmatprep.subr.mxu0 0.0
        %2014 = vmatpush1.msra.mxu0 0.0
        %2015 = vmatprep.subr.mxu0 0.0
        %2016 = vmatpush1.msra.mxu0 0.0
        %2017 = vmatprep.subr.mxu0 0.0
        %2018 = vmatpush1.msra.mxu0 0.0
        %2019 = vmatprep.subr.mxu0 0.0
        %2020 = vmatpush1.msra.mxu0 0.0
        %2021 = vmatprep.subr.mxu0 0.0
        %2022 = vmatpush1.msra.mxu0 0.0
        %2023 = vmatprep.subr.mxu0 0.0
        %2024 = vmatpush1.msra.mxu0 0.0
        %2025 = vmatprep.subr.mxu0 0.0
        %2026 = vmatpush1.msra.mxu0 0.0
        %2027 = vmatprep.subr.mxu0 0.0
        %2028 = vmatpush1.msra.mxu0 0.0
        %2029 = vmatprep.mubr.f32.mxu0 0.0
        %v2030 = vand.u32 %v1683, 4294901760
        %v2031 = vsub.f32 %v1683, %v2030
        %v2032 = vand.u32 %v2031, 4294901760
        %2033 = vmatmul.mubr.f32.gmra.mrb[0].mxu0 %v2032
        %v2034 = vpop.f32.mrb[0].mxu0
        %v2035 = vadd.f32 %v1951, %v2034
        %v2036 = vpop.f32.mrb[0].mxu0
        %2037 = vmatprep.mubr.f32.mxu0 0.0
        %v2038 = vand.u32 %v1686, 4294901760
        %v2039 = vsub.f32 %v1686, %v2038
        %v2040 = vand.u32 %v2039, 4294901760
        %2041 = vmatmul.mubr.f32.gmra.mrb[0].mxu0 %v2040
        %v2042 = vpop.f32.mrb[0].mxu0
        %v2043 = vadd.f32 %v1958, %v2042
        %v2044 = vpop.f32.mrb[0].mxu0
        %2045 = vdwg.mxu0
        %2046 = vmatprep.subr.mxu0 0.0
        %v2047 = vand.u32 %v1674, 4294901760
        %v2048 = vsub.f32 %v1674, %v2047
        %v2049 = vand.u32 %v2048, 4294901760
        %2050 = vmatpush1.msra.mxu0 %v2049
        %2051 = vmatprep.subr.mxu0 0.0
        %v2052 = vand.u32 %v1675, 4294901760
        %v2053 = vsub.f32 %v1675, %v2052
        %v2054 = vand.u32 %v2053, 4294901760
        %2055 = vmatpush1.msra.mxu0 %v2054
        %2056 = vmatprep.subr.mxu0 0.0
        %v2057 = vand.u32 %v1676, 4294901760
        %v2058 = vsub.f32 %v1676, %v2057
        %v2059 = vand.u32 %v2058, 4294901760
        %2060 = vmatpush1.msra.mxu0 %v2059
        %2061 = vmatprep.subr.mxu0 0.0
        %v2062 = vand.u32 %v1677, 4294901760
        %v2063 = vsub.f32 %v1677, %v2062
        %v2064 = vand.u32 %v2063, 4294901760
        %2065 = vmatpush1.msra.mxu0 %v2064
        %2066 = vmatprep.subr.mxu0 0.0
        %2067 = vmatpush1.msra.mxu0 0.0
        %2068 = vmatprep.subr.mxu0 0.0
        %2069 = vmatpush1.msra.mxu0 0.0
        %2070 = vmatprep.subr.mxu0 0.0
        %2071 = vmatpush1.msra.mxu0 0.0
        %2072 = vmatprep.subr.mxu0 0.0
        %2073 = vmatpush1.msra.mxu0 0.0
        %2074 = vmatprep.subr.mxu0 0.0
        %2075 = vmatpush1.msra.mxu0 0.0
        %2076 = vmatprep.subr.mxu0 0.0
        %2077 = vmatpush1.msra.mxu0 0.0
        %2078 = vmatprep.subr.mxu0 0.0
        %2079 = vmatpush1.msra.mxu0 0.0
        %2080 = vmatprep.subr.mxu0 0.0
        %2081 = vmatpush1.msra.mxu0 0.0
        %2082 = vmatprep.subr.mxu0 0.0
        %2083 = vmatpush1.msra.mxu0 0.0
        %2084 = vmatprep.subr.mxu0 0.0
        %2085 = vmatpush1.msra.mxu0 0.0
        %2086 = vmatprep.subr.mxu0 0.0
        %2087 = vmatpush1.msra.mxu0 0.0
        %2088 = vmatprep.subr.mxu0 0.0
        %2089 = vmatpush1.msra.mxu0 0.0
        %2090 = vmatprep.subr.mxu0 0.0
        %2091 = vmatpush1.msra.mxu0 0.0
        %2092 = vmatprep.subr.mxu0 0.0
        %2093 = vmatpush1.msra.mxu0 0.0
        %2094 = vmatprep.subr.mxu0 0.0
        %2095 = vmatpush1.msra.mxu0 0.0
        %2096 = vmatprep.subr.mxu0 0.0
        %2097 = vmatpush1.msra.mxu0 0.0
        %2098 = vmatprep.subr.mxu0 0.0
        %2099 = vmatpush1.msra.mxu0 0.0
        %2100 = vmatprep.subr.mxu0 0.0
        %2101 = vmatpush1.msra.mxu0 0.0
        %2102 = vmatprep.subr.mxu0 0.0
        %2103 = vmatpush1.msra.mxu0 0.0
        %2104 = vmatprep.subr.mxu0 0.0
        %2105 = vmatpush1.msra.mxu0 0.0
        %2106 = vmatprep.subr.mxu0 0.0
        %2107 = vmatpush1.msra.mxu0 0.0
        %2108 = vmatprep.subr.mxu0 0.0
        %2109 = vmatpush1.msra.mxu0 0.0
        %2110 = vmatprep.subr.mxu0 0.0
        %2111 = vmatpush1.msra.mxu0 0.0
        %2112 = vmatprep.subr.mxu0 0.0
        %2113 = vmatpush1.msra.mxu0 0.0
        %2114 = vmatprep.subr.mxu0 0.0
        %2115 = vmatpush1.msra.mxu0 0.0
        %2116 = vmatprep.subr.mxu0 0.0
        %2117 = vmatpush1.msra.mxu0 0.0
        %2118 = vmatprep.subr.mxu0 0.0
        %2119 = vmatpush1.msra.mxu0 0.0
        %2120 = vmatprep.subr.mxu0 0.0
        %2121 = vmatpush1.msra.mxu0 0.0
        %2122 = vmatprep.mubr.f32.mxu0 0.0
        %v2123 = vand.u32 %v1683, 4294901760
        %2124 = vmatmul.mubr.f32.gmra.mrb[0].mxu0 %v2123
        %v2125 = vpop.f32.mrb[0].mxu0
        %v2126 = vadd.f32 %v2035, %v2125
        %v2127 = vpop.f32.mrb[0].mxu0
        %2128 = vmatprep.mubr.f32.mxu0 0.0
        %v2129 = vand.u32 %v1686, 4294901760
        %2130 = vmatmul.mubr.f32.gmra.mrb[0].mxu0 %v2129
        %v2131 = vpop.f32.mrb[0].mxu0
        %v2132 = vadd.f32 %v2043, %v2131
        %v2133 = vpop.f32.mrb[0].mxu0
        %2134 = vdwg.mxu0
        %2135 = vmatprep.subr.mxu0 0.0
        %v2136 = vand.u32 %v1674, 4294901760
        %2137 = vmatpush1.msra.mxu0 %v2136
        %2138 = vmatprep.subr.mxu0 0.0
        %v2139 = vand.u32 %v1675, 4294901760
        %2140 = vmatpush1.msra.mxu0 %v2139
        %2141 = vmatprep.subr.mxu0 0.0
        %v2142 = vand.u32 %v1676, 4294901760
        %2143 = vmatpush1.msra.mxu0 %v2142
        %2144 = vmatprep.subr.mxu0 0.0
        %v2145 = vand.u32 %v1677, 4294901760
        %2146 = vmatpush1.msra.mxu0 %v2145
        %2147 = vmatprep.subr.mxu0 0.0
        %2148 = vmatpush1.msra.mxu0 0.0
        %2149 = vmatprep.subr.mxu0 0.0
        %2150 = vmatpush1.msra.mxu0 0.0
        %2151 = vmatprep.subr.mxu0 0.0
        %2152 = vmatpush1.msra.mxu0 0.0
        %2153 = vmatprep.subr.mxu0 0.0
        %2154 = vmatpush1.msra.mxu0 0.0
        %2155 = vmatprep.subr.mxu0 0.0
        %2156 = vmatpush1.msra.mxu0 0.0
        %2157 = vmatprep.subr.mxu0 0.0
        %2158 = vmatpush1.msra.mxu0 0.0
        %2159 = vmatprep.subr.mxu0 0.0
        %2160 = vmatpush1.msra.mxu0 0.0
        %2161 = vmatprep.subr.mxu0 0.0
        %2162 = vmatpush1.msra.mxu0 0.0
        %2163 = vmatprep.subr.mxu0 0.0
        %2164 = vmatpush1.msra.mxu0 0.0
        %2165 = vmatprep.subr.mxu0 0.0
        %2166 = vmatpush1.msra.mxu0 0.0
        %2167 = vmatprep.subr.mxu0 0.0
        %2168 = vmatpush1.msra.mxu0 0.0
        %2169 = vmatprep.subr.mxu0 0.0
        %2170 = vmatpush1.msra.mxu0 0.0
        %2171 = vmatprep.subr.mxu0 0.0
        %2172 = vmatpush1.msra.mxu0 0.0
        %2173 = vmatprep.subr.mxu0 0.0
        %2174 = vmatpush1.msra.mxu0 0.0
        %2175 = vmatprep.subr.mxu0 0.0
        %2176 = vmatpush1.msra.mxu0 0.0
        %2177 = vmatprep.subr.mxu0 0.0
        %2178 = vmatpush1.msra.mxu0 0.0
        %2179 = vmatprep.subr.mxu0 0.0
        %2180 = vmatpush1.msra.mxu0 0.0
        %2181 = vmatprep.subr.mxu0 0.0
        %2182 = vmatpush1.msra.mxu0 0.0
        %2183 = vmatprep.subr.mxu0 0.0
        %2184 = vmatpush1.msra.mxu0 0.0
        %2185 = vmatprep.subr.mxu0 0.0
        %2186 = vmatpush1.msra.mxu0 0.0
        %2187 = vmatprep.subr.mxu0 0.0
        %2188 = vmatpush1.msra.mxu0 0.0
        %2189 = vmatprep.subr.mxu0 0.0
        %2190 = vmatpush1.msra.mxu0 0.0
        %2191 = vmatprep.subr.mxu0 0.0
        %2192 = vmatpush1.msra.mxu0 0.0
        %2193 = vmatprep.subr.mxu0 0.0
        %2194 = vmatpush1.msra.mxu0 0.0
        %2195 = vmatprep.subr.mxu0 0.0
        %2196 = vmatpush1.msra.mxu0 0.0
        %2197 = vmatprep.subr.mxu0 0.0
        %2198 = vmatpush1.msra.mxu0 0.0
        %2199 = vmatprep.subr.mxu0 0.0
        %2200 = vmatpush1.msra.mxu0 0.0
        %2201 = vmatprep.subr.mxu0 0.0
        %2202 = vmatpush1.msra.mxu0 0.0
        %2203 = vmatprep.mubr.f32.mxu0 0.0
        %v2204 = vand.u32 %v1683, 4294901760
        %2205 = vmatmul.mubr.f32.gmra.mrb[0].mxu0 %v2204
        %v2206 = vpop.f32.mrb[0].mxu0
        %v2207 = vadd.f32 %v2126, %v2206
        %v2208 = vpop.f32.mrb[0].mxu0
        %2209 = vmatprep.mubr.f32.mxu0 0.0
        %v2210 = vand.u32 %v1686, 4294901760
        %2211 = vmatmul.mubr.f32.gmra.mrb[0].mxu0 %v2210
        %v2212 = vpop.f32.mrb[0].mxu0
        %v2213 = vadd.f32 %v2132, %v2212
        %v2214 = vpop.f32.mrb[0].mxu0
        %2215 = vdwg.mxu0
        %v2216 = vld [vmem:[%s3] sm:$0x1]
        %v2217 = vlaneseq
        %v2218 = vshrl.u32 %v2217, 7
        %v2219 = vsub.s32 0, %v2218
        %v2220 = vrot.slane %v2216, %v2219
        %v2221 = vmul.f32 %v1136, %v2220
        %v2222 = vmul.f32 %v1137, %v2220
        %v2224 = vsel %vm601, %v2221, 0
        %v2227 = vsel %vm601, %v2222, 0
        %v2230 = vsel %vm601, %v1665, 0
        %v2233 = vsel %vm601, %v1671, 0
        %2235 = vmatprep.subr.mxu0 0.0
        %v2236 = vand.u32 %v2230, 4294901760
        %2237 = vmatpush1.xpose.msra.mxu0 %v2236
        %2238 = vmatprep.subr.mxu0 0.0
        %v2239 = vand.u32 %v2233, 4294901760
        %2240 = vmatpush1.xpose.msra.mxu0 %v2239
        %2241 = vmatprep.subr.mxu0 0.0
        %2242 = vmatpush1.xpose.msra.mxu0 0.0
        %2243 = vmatprep.subr.mxu0 0.0
        %2244 = vmatpush1.xpose.msra.mxu0 0.0
        %2245 = vmatprep.subr.mxu0 0.0
        %2246 = vmatpush1.xpose.msra.mxu0 0.0
        %2247 = vmatprep.subr.mxu0 0.0
        %2248 = vmatpush1.xpose.msra.mxu0 0.0
        %2249 = vmatprep.subr.mxu0 0.0
        %2250 = vmatpush1.xpose.msra.mxu0 0.0
        %2251 = vmatprep.subr.mxu0 0.0
        %2252 = vmatpush1.xpose.msra.mxu0 0.0
        %2253 = vmatprep.subr.mxu0 0.0
        %2254 = vmatpush1.xpose.msra.mxu0 0.0
        %2255 = vmatprep.subr.mxu0 0.0
        %2256 = vmatpush1.xpose.msra.mxu0 0.0
        %2257 = vmatprep.subr.mxu0 0.0
        %2258 = vmatpush1.xpose.msra.mxu0 0.0
        %2259 = vmatprep.subr.mxu0 0.0
        %2260 = vmatpush1.xpose.msra.mxu0 0.0
        %2261 = vmatprep.subr.mxu0 0.0
        %2262 = vmatpush1.xpose.msra.mxu0 0.0
        %2263 = vmatprep.subr.mxu0 0.0
        %2264 = vmatpush1.xpose.msra.mxu0 0.0
        %2265 = vmatprep.subr.mxu0 0.0
        %2266 = vmatpush1.xpose.msra.mxu0 0.0
        %2267 = vmatprep.subr.mxu0 0.0
        %2268 = vmatpush1.xpose.msra.mxu0 0.0
        %2269 = vmatprep.subr.mxu0 0.0
        %2270 = vmatpush1.xpose.msra.mxu0 0.0
        %2271 = vmatprep.subr.mxu0 0.0
        %2272 = vmatpush1.xpose.msra.mxu0 0.0
        %2273 = vmatprep.subr.mxu0 0.0
        %2274 = vmatpush1.xpose.msra.mxu0 0.0
        %2275 = vmatprep.subr.mxu0 0.0
        %2276 = vmatpush1.xpose.msra.mxu0 0.0
        %2277 = vmatprep.subr.mxu0 0.0
        %2278 = vmatpush1.xpose.msra.mxu0 0.0
        %2279 = vmatprep.subr.mxu0 0.0
        %2280 = vmatpush1.xpose.msra.mxu0 0.0
        %2281 = vmatprep.subr.mxu0 0.0
        %2282 = vmatpush1.xpose.msra.mxu0 0.0
        %2283 = vmatprep.subr.mxu0 0.0
        %2284 = vmatpush1.xpose.msra.mxu0 0.0
        %2285 = vmatprep.subr.mxu0 0.0
        %2286 = vmatpush1.xpose.msra.mxu0 0.0
        %2287 = vmatprep.subr.mxu0 0.0
        %2288 = vmatpush1.xpose.msra.mxu0 0.0
        %2289 = vmatprep.subr.mxu0 0.0
        %2290 = vmatpush1.xpose.msra.mxu0 0.0
        %2291 = vmatprep.subr.mxu0 0.0
        %2292 = vmatpush1.xpose.msra.mxu0 0.0
        %2293 = vmatprep.subr.mxu0 0.0
        %2294 = vmatpush1.xpose.msra.mxu0 0.0
        %2295 = vmatprep.subr.mxu0 0.0
        %2296 = vmatpush1.xpose.msra.mxu0 0.0
        %2297 = vmatprep.subr.mxu0 0.0
        %2298 = vmatpush1.xpose.msra.mxu0 0.0
        %2299 = vmatprep.subr.mxu0 0.0
        %2300 = vmatpush1.xpose.msra.mxu0 0.0
        %2301 = vmatprep.mubr.f32.mxu0 0.0
        %v2302 = vand.u32 %v2224, 4294901760
        %v2303 = vsub.f32 %v2224, %v2302
        %v2304 = vand.u32 %v2303, 4294901760
        %v2305 = vsub.f32 %v2303, %v2304
        %v2306 = vand.u32 %v2305, 4294901760
        %2307 = vmatmul.mubr.f32.gmra.mrb[0].mxu0 %v2306
        %v2308 = vpop.f32.mrb[0].mxu0
        %v2309 = vadd.f32 %v587, %v2308
        %v2310 = vpop.f32.mrb[0].mxu0
        %2311 = vmatprep.mubr.f32.mxu0 0.0
        %v2312 = vand.u32 %v2227, 4294901760
        %v2313 = vsub.f32 %v2227, %v2312
        %v2314 = vand.u32 %v2313, 4294901760
        %v2315 = vsub.f32 %v2313, %v2314
        %v2316 = vand.u32 %v2315, 4294901760
        %2317 = vmatmul.mubr.f32.gmra.mrb[0].mxu0 %v2316
        %v2318 = vpop.f32.mrb[0].mxu0
        %v2319 = vadd.f32 %v588, %v2318
        %v2320 = vpop.f32.mrb[0].mxu0
        %2321 = vdwg.mxu0
        %2322 = vmatprep.subr.mxu0 0.0
        %v2323 = vand.u32 %v2230, 4294901760
        %v2324 = vsub.f32 %v2230, %v2323
        %v2325 = vand.u32 %v2324, 4294901760
        %v2326 = vsub.f32 %v2324, %v2325
        %v2327 = vand.u32 %v2326, 4294901760
        %2328 = vmatpush1.xpose.msra.mxu0 %v2327
        %2329 = vmatprep.subr.mxu0 0.0
        %v2330 = vand.u32 %v2233, 4294901760
        %v2331 = vsub.f32 %v2233, %v2330
        %v2332 = vand.u32 %v2331, 4294901760
        %v2333 = vsub.f32 %v2331, %v2332
        %v2334 = vand.u32 %v2333, 4294901760
        %2335 = vmatpush1.xpose.msra.mxu0 %v2334
        %2336 = vmatprep.subr.mxu0 0.0
        %2337 = vmatpush1.xpose.msra.mxu0 0.0
        %2338 = vmatprep.subr.mxu0 0.0
        %2339 = vmatpush1.xpose.msra.mxu0 0.0
        %2340 = vmatprep.subr.mxu0 0.0
        %2341 = vmatpush1.xpose.msra.mxu0 0.0
        %2342 = vmatprep.subr.mxu0 0.0
        %2343 = vmatpush1.xpose.msra.mxu0 0.0
        %2344 = vmatprep.subr.mxu0 0.0
        %2345 = vmatpush1.xpose.msra.mxu0 0.0
        %2346 = vmatprep.subr.mxu0 0.0
        %2347 = vmatpush1.xpose.msra.mxu0 0.0
        %2348 = vmatprep.subr.mxu0 0.0
        %2349 = vmatpush1.xpose.msra.mxu0 0.0
        %2350 = vmatprep.subr.mxu0 0.0
        %2351 = vmatpush1.xpose.msra.mxu0 0.0
        %2352 = vmatprep.subr.mxu0 0.0
        %2353 = vmatpush1.xpose.msra.mxu0 0.0
        %2354 = vmatprep.subr.mxu0 0.0
        %2355 = vmatpush1.xpose.msra.mxu0 0.0
        %2356 = vmatprep.subr.mxu0 0.0
        %2357 = vmatpush1.xpose.msra.mxu0 0.0
        %2358 = vmatprep.subr.mxu0 0.0
        %2359 = vmatpush1.xpose.msra.mxu0 0.0
        %2360 = vmatprep.subr.mxu0 0.0
        %2361 = vmatpush1.xpose.msra.mxu0 0.0
        %2362 = vmatprep.subr.mxu0 0.0
        %2363 = vmatpush1.xpose.msra.mxu0 0.0
        %2364 = vmatprep.subr.mxu0 0.0
        %2365 = vmatpush1.xpose.msra.mxu0 0.0
        %2366 = vmatprep.subr.mxu0 0.0
        %2367 = vmatpush1.xpose.msra.mxu0 0.0
        %2368 = vmatprep.subr.mxu0 0.0
        %2369 = vmatpush1.xpose.msra.mxu0 0.0
        %2370 = vmatprep.subr.mxu0 0.0
        %2371 = vmatpush1.xpose.msra.mxu0 0.0
        %2372 = vmatprep.subr.mxu0 0.0
        %2373 = vmatpush1.xpose.msra.mxu0 0.0
        %2374 = vmatprep.subr.mxu0 0.0
        %2375 = vmatpush1.xpose.msra.mxu0 0.0
        %2376 = vmatprep.subr.mxu0 0.0
        %2377 = vmatpush1.xpose.msra.mxu0 0.0
        %2378 = vmatprep.subr.mxu0 0.0
        %2379 = vmatpush1.xpose.msra.mxu0 0.0
        %2380 = vmatprep.subr.mxu0 0.0
        %2381 = vmatpush1.xpose.msra.mxu0 0.0
        %2382 = vmatprep.subr.mxu0 0.0
        %2383 = vmatpush1.xpose.msra.mxu0 0.0
        %2384 = vmatprep.subr.mxu0 0.0
        %2385 = vmatpush1.xpose.msra.mxu0 0.0
        %2386 = vmatprep.subr.mxu0 0.0
        %2387 = vmatpush1.xpose.msra.mxu0 0.0
        %2388 = vmatprep.subr.mxu0 0.0
        %2389 = vmatpush1.xpose.msra.mxu0 0.0
        %2390 = vmatprep.subr.mxu0 0.0
        %2391 = vmatpush1.xpose.msra.mxu0 0.0
        %2392 = vmatprep.subr.mxu0 0.0
        %2393 = vmatpush1.xpose.msra.mxu0 0.0
        %2394 = vmatprep.subr.mxu0 0.0
        %2395 = vmatpush1.xpose.msra.mxu0 0.0
        %2396 = vmatprep.mubr.f32.mxu0 0.0
        %v2397 = vand.u32 %v2224, 4294901760
        %2398 = vmatmul.mubr.f32.gmra.mrb[0].mxu0 %v2397
        %v2399 = vpop.f32.mrb[0].mxu0
        %v2400 = vadd.f32 %v2309, %v2399
        %v2401 = vpop.f32.mrb[0].mxu0
        %2402 = vmatprep.mubr.f32.mxu0 0.0
        %v2403 = vand.u32 %v2227, 4294901760
        %2404 = vmatmul.mubr.f32.gmra.mrb[0].mxu0 %v2403
        %v2405 = vpop.f32.mrb[0].mxu0
        %v2406 = vadd.f32 %v2319, %v2405
        %v2407 = vpop.f32.mrb[0].mxu0
        %2408 = vdwg.mxu0
        %2409 = vmatprep.subr.mxu0 0.0
        %v2410 = vand.u32 %v2230, 4294901760
        %v2411 = vsub.f32 %v2230, %v2410
        %2412 = vmatpush1.xpose.msra.mxu0 %v2411
        %2413 = vmatprep.subr.mxu0 0.0
        %v2414 = vand.u32 %v2233, 4294901760
        %v2415 = vsub.f32 %v2233, %v2414
        %2416 = vmatpush1.xpose.msra.mxu0 %v2415
        %2417 = vmatprep.subr.mxu0 0.0
        %2418 = vmatpush1.xpose.msra.mxu0 0.0
        %2419 = vmatprep.subr.mxu0 0.0
        %2420 = vmatpush1.xpose.msra.mxu0 0.0
        %2421 = vmatprep.subr.mxu0 0.0
        %2422 = vmatpush1.xpose.msra.mxu0 0.0
        %2423 = vmatprep.subr.mxu0 0.0
        %2424 = vmatpush1.xpose.msra.mxu0 0.0
        %2425 = vmatprep.subr.mxu0 0.0
        %2426 = vmatpush1.xpose.msra.mxu0 0.0
        %2427 = vmatprep.subr.mxu0 0.0
        %2428 = vmatpush1.xpose.msra.mxu0 0.0
        %2429 = vmatprep.subr.mxu0 0.0
        %2430 = vmatpush1.xpose.msra.mxu0 0.0
        %2431 = vmatprep.subr.mxu0 0.0
        %2432 = vmatpush1.xpose.msra.mxu0 0.0
        %2433 = vmatprep.subr.mxu0 0.0
        %2434 = vmatpush1.xpose.msra.mxu0 0.0
        %2435 = vmatprep.subr.mxu0 0.0
        %2436 = vmatpush1.xpose.msra.mxu0 0.0
        %2437 = vmatprep.subr.mxu0 0.0
        %2438 = vmatpush1.xpose.msra.mxu0 0.0
        %2439 = vmatprep.subr.mxu0 0.0
        %2440 = vmatpush1.xpose.msra.mxu0 0.0
        %2441 = vmatprep.subr.mxu0 0.0
        %2442 = vmatpush1.xpose.msra.mxu0 0.0
        %2443 = vmatprep.subr.mxu0 0.0
        %2444 = vmatpush1.xpose.msra.mxu0 0.0
        %2445 = vmatprep.subr.mxu0 0.0
        %2446 = vmatpush1.xpose.msra.mxu0 0.0
        %2447 = vmatprep.subr.mxu0 0.0
        %2448 = vmatpush1.xpose.msra.mxu0 0.0
        %2449 = vmatprep.subr.mxu0 0.0
        %2450 = vmatpush1.xpose.msra.mxu0 0.0
        %2451 = vmatprep.subr.mxu0 0.0
        %2452 = vmatpush1.xpose.msra.mxu0 0.0
        %2453 = vmatprep.subr.mxu0 0.0
        %2454 = vmatpush1.xpose.msra.mxu0 0.0
        %2455 = vmatprep.subr.mxu0 0.0
        %2456 = vmatpush1.xpose.msra.mxu0 0.0
        %2457 = vmatprep.subr.mxu0 0.0
        %2458 = vmatpush1.xpose.msra.mxu0 0.0
        %2459 = vmatprep.subr.mxu0 0.0
        %2460 = vmatpush1.xpose.msra.mxu0 0.0
        %2461 = vmatprep.subr.mxu0 0.0
        %2462 = vmatpush1.xpose.msra.mxu0 0.0
        %2463 = vmatprep.subr.mxu0 0.0
        %2464 = vmatpush1.xpose.msra.mxu0 0.0
        %2465 = vmatprep.subr.mxu0 0.0
        %2466 = vmatpush1.xpose.msra.mxu0 0.0
        %2467 = vmatprep.subr.mxu0 0.0
        %2468 = vmatpush1.xpose.msra.mxu0 0.0
        %2469 = vmatprep.subr.mxu0 0.0
        %2470 = vmatpush1.xpose.msra.mxu0 0.0
        %2471 = vmatprep.subr.mxu0 0.0
        %2472 = vmatpush1.xpose.msra.mxu0 0.0
        %2473 = vmatprep.subr.mxu0 0.0
        %2474 = vmatpush1.xpose.msra.mxu0 0.0
        %2475 = vmatprep.subr.mxu0 0.0
        %2476 = vmatpush1.xpose.msra.mxu0 0.0
        %2477 = vmatprep.mubr.f32.mxu0 0.0
        %v2478 = vand.u32 %v2224, 4294901760
        %v2479 = vsub.f32 %v2224, %v2478
        %2480 = vmatmul.mubr.f32.gmra.mrb[0].mxu0 %v2479
        %v2481 = vpop.f32.mrb[0].mxu0
        %v2482 = vadd.f32 %v2400, %v2481
        %v2483 = vpop.f32.mrb[0].mxu0
        %2484 = vmatprep.mubr.f32.mxu0 0.0
        %v2485 = vand.u32 %v2227, 4294901760
        %v2486 = vsub.f32 %v2227, %v2485
        %2487 = vmatmul.mubr.f32.gmra.mrb[0].mxu0 %v2486
        %v2488 = vpop.f32.mrb[0].mxu0
        %v2489 = vadd.f32 %v2406, %v2488
        %v2490 = vpop.f32.mrb[0].mxu0
        %2491 = vdwg.mxu0
        %2492 = vmatprep.subr.mxu0 0.0
        %v2493 = vand.u32 %v2230, 4294901760
        %2494 = vmatpush1.xpose.msra.mxu0 %v2493
        %2495 = vmatprep.subr.mxu0 0.0
        %v2496 = vand.u32 %v2233, 4294901760
        %2497 = vmatpush1.xpose.msra.mxu0 %v2496
        %2498 = vmatprep.subr.mxu0 0.0
        %2499 = vmatpush1.xpose.msra.mxu0 0.0
        %2500 = vmatprep.subr.mxu0 0.0
        %2501 = vmatpush1.xpose.msra.mxu0 0.0
        %2502 = vmatprep.subr.mxu0 0.0
        %2503 = vmatpush1.xpose.msra.mxu0 0.0
        %2504 = vmatprep.subr.mxu0 0.0
        %2505 = vmatpush1.xpose.msra.mxu0 0.0
        %2506 = vmatprep.subr.mxu0 0.0
        %2507 = vmatpush1.xpose.msra.mxu0 0.0
        %2508 = vmatprep.subr.mxu0 0.0
        %2509 = vmatpush1.xpose.msra.mxu0 0.0
        %2510 = vmatprep.subr.mxu0 0.0
        %2511 = vmatpush1.xpose.msra.mxu0 0.0
        %2512 = vmatprep.subr.mxu0 0.0
        %2513 = vmatpush1.xpose.msra.mxu0 0.0
        %2514 = vmatprep.subr.mxu0 0.0
        %2515 = vmatpush1.xpose.msra.mxu0 0.0
        %2516 = vmatprep.subr.mxu0 0.0
        %2517 = vmatpush1.xpose.msra.mxu0 0.0
        %2518 = vmatprep.subr.mxu0 0.0
        %2519 = vmatpush1.xpose.msra.mxu0 0.0
        %2520 = vmatprep.subr.mxu0 0.0
        %2521 = vmatpush1.xpose.msra.mxu0 0.0
        %2522 = vmatprep.subr.mxu0 0.0
        %2523 = vmatpush1.xpose.msra.mxu0 0.0
        %2524 = vmatprep.subr.mxu0 0.0
        %2525 = vmatpush1.xpose.msra.mxu0 0.0
        %2526 = vmatprep.subr.mxu0 0.0
        %2527 = vmatpush1.xpose.msra.mxu0 0.0
        %2528 = vmatprep.subr.mxu0 0.0
        %2529 = vmatpush1.xpose.msra.mxu0 0.0
        %2530 = vmatprep.subr.mxu0 0.0
        %2531 = vmatpush1.xpose.msra.mxu0 0.0
        %2532 = vmatprep.subr.mxu0 0.0
        %2533 = vmatpush1.xpose.msra.mxu0 0.0
        %2534 = vmatprep.subr.mxu0 0.0
        %2535 = vmatpush1.xpose.msra.mxu0 0.0
        %2536 = vmatprep.subr.mxu0 0.0
        %2537 = vmatpush1.xpose.msra.mxu0 0.0
        %2538 = vmatprep.subr.mxu0 0.0
        %2539 = vmatpush1.xpose.msra.mxu0 0.0
        %2540 = vmatprep.subr.mxu0 0.0
        %2541 = vmatpush1.xpose.msra.mxu0 0.0
        %2542 = vmatprep.subr.mxu0 0.0
        %2543 = vmatpush1.xpose.msra.mxu0 0.0
        %2544 = vmatprep.subr.mxu0 0.0
        %2545 = vmatpush1.xpose.msra.mxu0 0.0
        %2546 = vmatprep.subr.mxu0 0.0
        %2547 = vmatpush1.xpose.msra.mxu0 0.0
        %2548 = vmatprep.subr.mxu0 0.0
        %2549 = vmatpush1.xpose.msra.mxu0 0.0
        %2550 = vmatprep.subr.mxu0 0.0
        %2551 = vmatpush1.xpose.msra.mxu0 0.0
        %2552 = vmatprep.subr.mxu0 0.0
        %2553 = vmatpush1.xpose.msra.mxu0 0.0
        %2554 = vmatprep.subr.mxu0 0.0
        %2555 = vmatpush1.xpose.msra.mxu0 0.0
        %2556 = vmatprep.subr.mxu0 0.0
        %2557 = vmatpush1.xpose.msra.mxu0 0.0
        %2558 = vmatprep.mubr.f32.mxu0 0.0
        %v2559 = vand.u32 %v2224, 4294901760
        %v2560 = vsub.f32 %v2224, %v2559
        %v2561 = vand.u32 %v2560, 4294901760
        %2562 = vmatmul.mubr.f32.gmra.mrb[0].mxu0 %v2561
        %v2563 = vpop.f32.mrb[0].mxu0
        %v2564 = vadd.f32 %v2482, %v2563
        %v2565 = vpop.f32.mrb[0].mxu0
        %2566 = vmatprep.mubr.f32.mxu0 0.0
        %v2567 = vand.u32 %v2227, 4294901760
        %v2568 = vsub.f32 %v2227, %v2567
        %v2569 = vand.u32 %v2568, 4294901760
        %2570 = vmatmul.mubr.f32.gmra.mrb[0].mxu0 %v2569
        %v2571 = vpop.f32.mrb[0].mxu0
        %v2572 = vadd.f32 %v2489, %v2571
        %v2573 = vpop.f32.mrb[0].mxu0
        %2574 = vdwg.mxu0
        %2575 = vmatprep.subr.mxu0 0.0
        %v2576 = vand.u32 %v2230, 4294901760
        %v2577 = vsub.f32 %v2230, %v2576
        %v2578 = vand.u32 %v2577, 4294901760
        %2579 = vmatpush1.xpose.msra.mxu0 %v2578
        %2580 = vmatprep.subr.mxu0 0.0
        %v2581 = vand.u32 %v2233, 4294901760
        %v2582 = vsub.f32 %v2233, %v2581
        %v2583 = vand.u32 %v2582, 4294901760
        %2584 = vmatpush1.xpose.msra.mxu0 %v2583
        %2585 = vmatprep.subr.mxu0 0.0
        %2586 = vmatpush1.xpose.msra.mxu0 0.0
        %2587 = vmatprep.subr.mxu0 0.0
        %2588 = vmatpush1.xpose.msra.mxu0 0.0
        %2589 = vmatprep.subr.mxu0 0.0
        %2590 = vmatpush1.xpose.msra.mxu0 0.0
        %2591 = vmatprep.subr.mxu0 0.0
        %2592 = vmatpush1.xpose.msra.mxu0 0.0
        %2593 = vmatprep.subr.mxu0 0.0
        %2594 = vmatpush1.xpose.msra.mxu0 0.0
        %2595 = vmatprep.subr.mxu0 0.0
        %2596 = vmatpush1.xpose.msra.mxu0 0.0
        %2597 = vmatprep.subr.mxu0 0.0
        %2598 = vmatpush1.xpose.msra.mxu0 0.0
        %2599 = vmatprep.subr.mxu0 0.0
        %2600 = vmatpush1.xpose.msra.mxu0 0.0
        %2601 = vmatprep.subr.mxu0 0.0
        %2602 = vmatpush1.xpose.msra.mxu0 0.0
        %2603 = vmatprep.subr.mxu0 0.0
        %2604 = vmatpush1.xpose.msra.mxu0 0.0
        %2605 = vmatprep.subr.mxu0 0.0
        %2606 = vmatpush1.xpose.msra.mxu0 0.0
        %2607 = vmatprep.subr.mxu0 0.0
        %2608 = vmatpush1.xpose.msra.mxu0 0.0
        %2609 = vmatprep.subr.mxu0 0.0
        %2610 = vmatpush1.xpose.msra.mxu0 0.0
        %2611 = vmatprep.subr.mxu0 0.0
        %2612 = vmatpush1.xpose.msra.mxu0 0.0
        %2613 = vmatprep.subr.mxu0 0.0
        %2614 = vmatpush1.xpose.msra.mxu0 0.0
        %2615 = vmatprep.subr.mxu0 0.0
        %2616 = vmatpush1.xpose.msra.mxu0 0.0
        %2617 = vmatprep.subr.mxu0 0.0
        %2618 = vmatpush1.xpose.msra.mxu0 0.0
        %2619 = vmatprep.subr.mxu0 0.0
        %2620 = vmatpush1.xpose.msra.mxu0 0.0
        %2621 = vmatprep.subr.mxu0 0.0
        %2622 = vmatpush1.xpose.msra.mxu0 0.0
        %2623 = vmatprep.subr.mxu0 0.0
        %2624 = vmatpush1.xpose.msra.mxu0 0.0
        %2625 = vmatprep.subr.mxu0 0.0
        %2626 = vmatpush1.xpose.msra.mxu0 0.0
        %2627 = vmatprep.subr.mxu0 0.0
        %2628 = vmatpush1.xpose.msra.mxu0 0.0
        %2629 = vmatprep.subr.mxu0 0.0
        %2630 = vmatpush1.xpose.msra.mxu0 0.0
        %2631 = vmatprep.subr.mxu0 0.0
        %2632 = vmatpush1.xpose.msra.mxu0 0.0
        %2633 = vmatprep.subr.mxu0 0.0
        %2634 = vmatpush1.xpose.msra.mxu0 0.0
        %2635 = vmatprep.subr.mxu0 0.0
        %2636 = vmatpush1.xpose.msra.mxu0 0.0
        %2637 = vmatprep.subr.mxu0 0.0
        %2638 = vmatpush1.xpose.msra.mxu0 0.0
        %2639 = vmatprep.subr.mxu0 0.0
        %2640 = vmatpush1.xpose.msra.mxu0 0.0
        %2641 = vmatprep.subr.mxu0 0.0
        %2642 = vmatpush1.xpose.msra.mxu0 0.0
        %2643 = vmatprep.subr.mxu0 0.0
        %2644 = vmatpush1.xpose.msra.mxu0 0.0
        %2645 = vmatprep.mubr.f32.mxu0 0.0
        %v2646 = vand.u32 %v2224, 4294901760
        %2647 = vmatmul.mubr.f32.gmra.mrb[0].mxu0 %v2646
        %v2648 = vpop.f32.mrb[0].mxu0
        %v2649 = vadd.f32 %v2564, %v2648
        %v2650 = vpop.f32.mrb[0].mxu0
        %2651 = vmatprep.mubr.f32.mxu0 0.0
        %v2652 = vand.u32 %v2227, 4294901760
        %2653 = vmatmul.mubr.f32.gmra.mrb[0].mxu0 %v2652
        %v2654 = vpop.f32.mrb[0].mxu0
        %v2655 = vadd.f32 %v2572, %v2654
        %v2656 = vpop.f32.mrb[0].mxu0
        %2657 = vdwg.mxu0
        %2658 = vmatprep.subr.mxu0 0.0
        %v2659 = vand.u32 %v2230, 4294901760
        %2660 = vmatpush1.xpose.msra.mxu0 %v2659
        %2661 = vmatprep.subr.mxu0 0.0
        %v2662 = vand.u32 %v2233, 4294901760
        %2663 = vmatpush1.xpose.msra.mxu0 %v2662
        %2664 = vmatprep.subr.mxu0 0.0
        %2665 = vmatpush1.xpose.msra.mxu0 0.0
        %2666 = vmatprep.subr.mxu0 0.0
        %2667 = vmatpush1.xpose.msra.mxu0 0.0
        %2668 = vmatprep.subr.mxu0 0.0
        %2669 = vmatpush1.xpose.msra.mxu0 0.0
        %2670 = vmatprep.subr.mxu0 0.0
        %2671 = vmatpush1.xpose.msra.mxu0 0.0
        %2672 = vmatprep.subr.mxu0 0.0
        %2673 = vmatpush1.xpose.msra.mxu0 0.0
        %2674 = vmatprep.subr.mxu0 0.0
        %2675 = vmatpush1.xpose.msra.mxu0 0.0
        %2676 = vmatprep.subr.mxu0 0.0
        %2677 = vmatpush1.xpose.msra.mxu0 0.0
        %2678 = vmatprep.subr.mxu0 0.0
        %2679 = vmatpush1.xpose.msra.mxu0 0.0
        %2680 = vmatprep.subr.mxu0 0.0
        %2681 = vmatpush1.xpose.msra.mxu0 0.0
        %2682 = vmatprep.subr.mxu0 0.0
        %2683 = vmatpush1.xpose.msra.mxu0 0.0
        %2684 = vmatprep.subr.mxu0 0.0
        %2685 = vmatpush1.xpose.msra.mxu0 0.0
        %2686 = vmatprep.subr.mxu0 0.0
        %2687 = vmatpush1.xpose.msra.mxu0 0.0
        %2688 = vmatprep.subr.mxu0 0.0
        %2689 = vmatpush1.xpose.msra.mxu0 0.0
        %2690 = vmatprep.subr.mxu0 0.0
        %2691 = vmatpush1.xpose.msra.mxu0 0.0
        %2692 = vmatprep.subr.mxu0 0.0
        %2693 = vmatpush1.xpose.msra.mxu0 0.0
        %2694 = vmatprep.subr.mxu0 0.0
        %2695 = vmatpush1.xpose.msra.mxu0 0.0
        %2696 = vmatprep.subr.mxu0 0.0
        %2697 = vmatpush1.xpose.msra.mxu0 0.0
        %2698 = vmatprep.subr.mxu0 0.0
        %2699 = vmatpush1.xpose.msra.mxu0 0.0
        %2700 = vmatprep.subr.mxu0 0.0
        %2701 = vmatpush1.xpose.msra.mxu0 0.0
        %2702 = vmatprep.subr.mxu0 0.0
        %2703 = vmatpush1.xpose.msra.mxu0 0.0
        %2704 = vmatprep.subr.mxu0 0.0
        %2705 = vmatpush1.xpose.msra.mxu0 0.0
        %2706 = vmatprep.subr.mxu0 0.0
        %2707 = vmatpush1.xpose.msra.mxu0 0.0
        %2708 = vmatprep.subr.mxu0 0.0
        %2709 = vmatpush1.xpose.msra.mxu0 0.0
        %2710 = vmatprep.subr.mxu0 0.0
        %2711 = vmatpush1.xpose.msra.mxu0 0.0
        %2712 = vmatprep.subr.mxu0 0.0
        %2713 = vmatpush1.xpose.msra.mxu0 0.0
        %2714 = vmatprep.subr.mxu0 0.0
        %2715 = vmatpush1.xpose.msra.mxu0 0.0
        %2716 = vmatprep.subr.mxu0 0.0
        %2717 = vmatpush1.xpose.msra.mxu0 0.0
        %2718 = vmatprep.subr.mxu0 0.0
        %2719 = vmatpush1.xpose.msra.mxu0 0.0
        %2720 = vmatprep.subr.mxu0 0.0
        %2721 = vmatpush1.xpose.msra.mxu0 0.0
        %2722 = vmatprep.subr.mxu0 0.0
        %2723 = vmatpush1.xpose.msra.mxu0 0.0
        %2724 = vmatprep.mubr.f32.mxu0 0.0
        %v2725 = vand.u32 %v2224, 4294901760
        %2726 = vmatmul.mubr.f32.gmra.mrb[0].mxu0 %v2725
        %v2727 = vpop.f32.mrb[0].mxu0
        %v2728 = vadd.f32 %v2649, %v2727
        %v2729 = vpop.f32.mrb[0].mxu0
        %2730 = vmatprep.mubr.f32.mxu0 0.0
        %v2731 = vand.u32 %v2227, 4294901760
        %2732 = vmatmul.mubr.f32.gmra.mrb[0].mxu0 %v2731
        %v2733 = vpop.f32.mrb[0].mxu0
        %v2734 = vadd.f32 %v2655, %v2733
        %v2735 = vpop.f32.mrb[0].mxu0
        %2736 = vdwg.mxu0
        %vm2737 = vcmask 130048
        %v2738 = vsel %vm2737, %v2728, -inf
        %2739 = vmax.xlane.f32.xlu0 %v2738
        %v2740 = vpop.xlane.xlu0 %2739
        %v2741 = vsel %vm2737, %v2734, -inf
        %2742 = vmax.xlane.f32.xlu0 %v2741
        %v2743 = vpop.xlane.xlu0 %2742
        %v2744 = vsub.f32 %v2728, %v2740
        %v2745 = vsub.f32 %v2734, %v2743
        %v2746 = vmul.f32 %v2744, 1.442695
        %v2747 = vpow.pop %v2746
        %v2748 = vmul.f32 %v2745, 1.442695
        %v2749 = vpow.pop %v2748
        %v2750 = vsel %vm2737, %v2747, 0.0
        %2751 = vadd.xlane.f32.xlu0 %v2750
        %v2752 = vpop.xlane.xlu0 %2751
        %v2753 = vsel %vm2737, %v2749, 0.0
        %2754 = vadd.xlane.f32.xlu0 %v2753
        %v2755 = vpop.xlane.xlu0 %2754
        %v2756 = vrcp.pop %v2752
        %v2757 = vmul.f32 %v2747, %v2756
        %v2758 = vrcp.pop %v2755
        %v2759 = vmul.f32 %v2749, %v2758
        %v2760 = vmul.f32 %v2207, %v2220
        %v2761 = vmul.f32 %v2213, %v2220
        %v2762 = vld [vmem:[%s3 + $0x1] sm:$0x1]
        %v2763 = vlaneseq
        %v2764 = vshrl.u32 %v2763, 7
        %v2765 = vsub.s32 0, %v2764
        %v2766 = vrot.slane %v2762, %v2765
        %v2767 = vmul.f32 %v1136, %v2766
        %v2768 = vmul.f32 %v1137, %v2766
        %v2770 = vsel %vm601, %v2767, 0
        %v2773 = vsel %vm601, %v2768, 0
        %2775 = vmatprep.subr.mxu0 0.0
        %v2776 = vand.u32 %v2230, 4294901760
        %2777 = vmatpush1.xpose.msra.mxu0 %v2776
        %2778 = vmatprep.subr.mxu0 0.0
        %v2779 = vand.u32 %v2233, 4294901760
        %2780 = vmatpush1.xpose.msra.mxu0 %v2779
        %2781 = vmatprep.subr.mxu0 0.0
        %2782 = vmatpush1.xpose.msra.mxu0 0.0
        %2783 = vmatprep.subr.mxu0 0.0
        %2784 = vmatpush1.xpose.msra.mxu0 0.0
        %2785 = vmatprep.subr.mxu0 0.0
        %2786 = vmatpush1.xpose.msra.mxu0 0.0
        %2787 = vmatprep.subr.mxu0 0.0
        %2788 = vmatpush1.xpose.msra.mxu0 0.0
        %2789 = vmatprep.subr.mxu0 0.0
        %2790 = vmatpush1.xpose.msra.mxu0 0.0
        %2791 = vmatprep.subr.mxu0 0.0
        %2792 = vmatpush1.xpose.msra.mxu0 0.0
        %2793 = vmatprep.subr.mxu0 0.0
        %2794 = vmatpush1.xpose.msra.mxu0 0.0
        %2795 = vmatprep.subr.mxu0 0.0
        %2796 = vmatpush1.xpose.msra.mxu0 0.0
        %2797 = vmatprep.subr.mxu0 0.0
        %2798 = vmatpush1.xpose.msra.mxu0 0.0
        %2799 = vmatprep.subr.mxu0 0.0
        %2800 = vmatpush1.xpose.msra.mxu0 0.0
        %2801 = vmatprep.subr.mxu0 0.0
        %2802 = vmatpush1.xpose.msra.mxu0 0.0
        %2803 = vmatprep.subr.mxu0 0.0
        %2804 = vmatpush1.xpose.msra.mxu0 0.0
        %2805 = vmatprep.subr.mxu0 0.0
        %2806 = vmatpush1.xpose.msra.mxu0 0.0
        %2807 = vmatprep.subr.mxu0 0.0
        %2808 = vmatpush1.xpose.msra.mxu0 0.0
        %2809 = vmatprep.subr.mxu0 0.0
        %2810 = vmatpush1.xpose.msra.mxu0 0.0
        %2811 = vmatprep.subr.mxu0 0.0
        %2812 = vmatpush1.xpose.msra.mxu0 0.0
        %2813 = vmatprep.subr.mxu0 0.0
        %2814 = vmatpush1.xpose.msra.mxu0 0.0
        %2815 = vmatprep.subr.mxu0 0.0
        %2816 = vmatpush1.xpose.msra.mxu0 0.0
        %2817 = vmatprep.subr.mxu0 0.0
        %2818 = vmatpush1.xpose.msra.mxu0 0.0
        %2819 = vmatprep.subr.mxu0 0.0
        %2820 = vmatpush1.xpose.msra.mxu0 0.0
        %2821 = vmatprep.subr.mxu0 0.0
        %2822 = vmatpush1.xpose.msra.mxu0 0.0
        %2823 = vmatprep.subr.mxu0 0.0
        %2824 = vmatpush1.xpose.msra.mxu0 0.0
        %2825 = vmatprep.subr.mxu0 0.0
        %2826 = vmatpush1.xpose.msra.mxu0 0.0
        %2827 = vmatprep.subr.mxu0 0.0
        %2828 = vmatpush1.xpose.msra.mxu0 0.0
        %2829 = vmatprep.subr.mxu0 0.0
        %2830 = vmatpush1.xpose.msra.mxu0 0.0
        %2831 = vmatprep.subr.mxu0 0.0
        %2832 = vmatpush1.xpose.msra.mxu0 0.0
        %2833 = vmatprep.subr.mxu0 0.0
        %2834 = vmatpush1.xpose.msra.mxu0 0.0
        %2835 = vmatprep.subr.mxu0 0.0
        %2836 = vmatpush1.xpose.msra.mxu0 0.0
        %2837 = vmatprep.subr.mxu0 0.0
        %2838 = vmatpush1.xpose.msra.mxu0 0.0
        %2839 = vmatprep.subr.mxu0 0.0
        %2840 = vmatpush1.xpose.msra.mxu0 0.0
        %2841 = vmatprep.mubr.f32.mxu0 0.0
        %v2842 = vand.u32 %v2770, 4294901760
        %v2843 = vsub.f32 %v2770, %v2842
        %v2844 = vand.u32 %v2843, 4294901760
        %v2845 = vsub.f32 %v2843, %v2844
        %v2846 = vand.u32 %v2845, 4294901760
        %2847 = vmatmul.mubr.f32.gmra.mrb[0].mxu0 %v2846
        %v2848 = vpop.f32.mrb[0].mxu0
        %v2849 = vadd.f32 %v587, %v2848
        %v2850 = vpop.f32.mrb[0].mxu0
        %2851 = vmatprep.mubr.f32.mxu0 0.0
        %v2852 = vand.u32 %v2773, 4294901760
        %v2853 = vsub.f32 %v2773, %v2852
        %v2854 = vand.u32 %v2853, 4294901760
        %v2855 = vsub.f32 %v2853, %v2854
        %v2856 = vand.u32 %v2855, 4294901760
        %2857 = vmatmul.mubr.f32.gmra.mrb[0].mxu0 %v2856
        %v2858 = vpop.f32.mrb[0].mxu0
        %v2859 = vadd.f32 %v588, %v2858
        %v2860 = vpop.f32.mrb[0].mxu0
        %2861 = vdwg.mxu0
        %2862 = vmatprep.subr.mxu0 0.0
        %v2863 = vand.u32 %v2230, 4294901760
        %v2864 = vsub.f32 %v2230, %v2863
        %v2865 = vand.u32 %v2864, 4294901760
        %v2866 = vsub.f32 %v2864, %v2865
        %v2867 = vand.u32 %v2866, 4294901760
        %2868 = vmatpush1.xpose.msra.mxu0 %v2867
        %2869 = vmatprep.subr.mxu0 0.0
        %v2870 = vand.u32 %v2233, 4294901760
        %v2871 = vsub.f32 %v2233, %v2870
        %v2872 = vand.u32 %v2871, 4294901760
        %v2873 = vsub.f32 %v2871, %v2872
        %v2874 = vand.u32 %v2873, 4294901760
        %2875 = vmatpush1.xpose.msra.mxu0 %v2874
        %2876 = vmatprep.subr.mxu0 0.0
        %2877 = vmatpush1.xpose.msra.mxu0 0.0
        %2878 = vmatprep.subr.mxu0 0.0
        %2879 = vmatpush1.xpose.msra.mxu0 0.0
        %2880 = vmatprep.subr.mxu0 0.0
        %2881 = vmatpush1.xpose.msra.mxu0 0.0
        %2882 = vmatprep.subr.mxu0 0.0
        %2883 = vmatpush1.xpose.msra.mxu0 0.0
        %2884 = vmatprep.subr.mxu0 0.0
        %2885 = vmatpush1.xpose.msra.mxu0 0.0
        %2886 = vmatprep.subr.mxu0 0.0
        %2887 = vmatpush1.xpose.msra.mxu0 0.0
        %2888 = vmatprep.subr.mxu0 0.0
        %2889 = vmatpush1.xpose.msra.mxu0 0.0
        %2890 = vmatprep.subr.mxu0 0.0
        %2891 = vmatpush1.xpose.msra.mxu0 0.0
        %2892 = vmatprep.subr.mxu0 0.0
        %2893 = vmatpush1.xpose.msra.mxu0 0.0
        %2894 = vmatprep.subr.mxu0 0.0
        %2895 = vmatpush1.xpose.msra.mxu0 0.0
        %2896 = vmatprep.subr.mxu0 0.0
        %2897 = vmatpush1.xpose.msra.mxu0 0.0
        %2898 = vmatprep.subr.mxu0 0.0
        %2899 = vmatpush1.xpose.msra.mxu0 0.0
        %2900 = vmatprep.subr.mxu0 0.0
        %2901 = vmatpush1.xpose.msra.mxu0 0.0
        %2902 = vmatprep.subr.mxu0 0.0
        %2903 = vmatpush1.xpose.msra.mxu0 0.0
        %2904 = vmatprep.subr.mxu0 0.0
        %2905 = vmatpush1.xpose.msra.mxu0 0.0
        %2906 = vmatprep.subr.mxu0 0.0
        %2907 = vmatpush1.xpose.msra.mxu0 0.0
        %2908 = vmatprep.subr.mxu0 0.0
        %2909 = vmatpush1.xpose.msra.mxu0 0.0
        %2910 = vmatprep.subr.mxu0 0.0
        %2911 = vmatpush1.xpose.msra.mxu0 0.0
        %2912 = vmatprep.subr.mxu0 0.0
        %2913 = vmatpush1.xpose.msra.mxu0 0.0
        %2914 = vmatprep.subr.mxu0 0.0
        %2915 = vmatpush1.xpose.msra.mxu0 0.0
        %2916 = vmatprep.subr.mxu0 0.0
        %2917 = vmatpush1.xpose.msra.mxu0 0.0
        %2918 = vmatprep.subr.mxu0 0.0
        %2919 = vmatpush1.xpose.msra.mxu0 0.0
        %2920 = vmatprep.subr.mxu0 0.0
        %2921 = vmatpush1.xpose.msra.mxu0 0.0
        %2922 = vmatprep.subr.mxu0 0.0
        %2923 = vmatpush1.xpose.msra.mxu0 0.0
        %2924 = vmatprep.subr.mxu0 0.0
        %2925 = vmatpush1.xpose.msra.mxu0 0.0
        %2926 = vmatprep.subr.mxu0 0.0
        %2927 = vmatpush1.xpose.msra.mxu0 0.0
        %2928 = vmatprep.subr.mxu0 0.0
        %2929 = vmatpush1.xpose.msra.mxu0 0.0
        %2930 = vmatprep.subr.mxu0 0.0
        %2931 = vmatpush1.xpose.msra.mxu0 0.0
        %2932 = vmatprep.subr.mxu0 0.0
        %2933 = vmatpush1.xpose.msra.mxu0 0.0
        %2934 = vmatprep.subr.mxu0 0.0
        %2935 = vmatpush1.xpose.msra.mxu0 0.0
        %2936 = vmatprep.mubr.f32.mxu0 0.0
        %v2937 = vand.u32 %v2770, 4294901760
        %2938 = vmatmul.mubr.f32.gmra.mrb[0].mxu0 %v2937
        %v2939 = vpop.f32.mrb[0].mxu0
        %v2940 = vadd.f32 %v2849, %v2939
        %v2941 = vpop.f32.mrb[0].mxu0
        %2942 = vmatprep.mubr.f32.mxu0 0.0
        %v2943 = vand.u32 %v2773, 4294901760
        %2944 = vmatmul.mubr.f32.gmra.mrb[0].mxu0 %v2943
        %v2945 = vpop.f32.mrb[0].mxu0
        %v2946 = vadd.f32 %v2859, %v2945
        %v2947 = vpop.f32.mrb[0].mxu0
        %2948 = vdwg.mxu0
        %2949 = vmatprep.subr.mxu0 0.0
        %v2950 = vand.u32 %v2230, 4294901760
        %v2951 = vsub.f32 %v2230, %v2950
        %2952 = vmatpush1.xpose.msra.mxu0 %v2951
        %2953 = vmatprep.subr.mxu0 0.0
        %v2954 = vand.u32 %v2233, 4294901760
        %v2955 = vsub.f32 %v2233, %v2954
        %2956 = vmatpush1.xpose.msra.mxu0 %v2955
        %2957 = vmatprep.subr.mxu0 0.0
        %2958 = vmatpush1.xpose.msra.mxu0 0.0
        %2959 = vmatprep.subr.mxu0 0.0
        %2960 = vmatpush1.xpose.msra.mxu0 0.0
        %2961 = vmatprep.subr.mxu0 0.0
        %2962 = vmatpush1.xpose.msra.mxu0 0.0
        %2963 = vmatprep.subr.mxu0 0.0
        %2964 = vmatpush1.xpose.msra.mxu0 0.0
        %2965 = vmatprep.subr.mxu0 0.0
        %2966 = vmatpush1.xpose.msra.mxu0 0.0
        %2967 = vmatprep.subr.mxu0 0.0
        %2968 = vmatpush1.xpose.msra.mxu0 0.0
        %2969 = vmatprep.subr.mxu0 0.0
        %2970 = vmatpush1.xpose.msra.mxu0 0.0
        %2971 = vmatprep.subr.mxu0 0.0
        %2972 = vmatpush1.xpose.msra.mxu0 0.0
        %2973 = vmatprep.subr.mxu0 0.0
        %2974 = vmatpush1.xpose.msra.mxu0 0.0
        %2975 = vmatprep.subr.mxu0 0.0
        %2976 = vmatpush1.xpose.msra.mxu0 0.0
        %2977 = vmatprep.subr.mxu0 0.0
        %2978 = vmatpush1.xpose.msra.mxu0 0.0
        %2979 = vmatprep.subr.mxu0 0.0
        %2980 = vmatpush1.xpose.msra.mxu0 0.0
        %2981 = vmatprep.subr.mxu0 0.0
        %2982 = vmatpush1.xpose.msra.mxu0 0.0
        %2983 = vmatprep.subr.mxu0 0.0
        %2984 = vmatpush1.xpose.msra.mxu0 0.0
        %2985 = vmatprep.subr.mxu0 0.0
        %2986 = vmatpush1.xpose.msra.mxu0 0.0
        %2987 = vmatprep.subr.mxu0 0.0
        %2988 = vmatpush1.xpose.msra.mxu0 0.0
        %2989 = vmatprep.subr.mxu0 0.0
        %2990 = vmatpush1.xpose.msra.mxu0 0.0
        %2991 = vmatprep.subr.mxu0 0.0
        %2992 = vmatpush1.xpose.msra.mxu0 0.0
        %2993 = vmatprep.subr.mxu0 0.0
        %2994 = vmatpush1.xpose.msra.mxu0 0.0
        %2995 = vmatprep.subr.mxu0 0.0
        %2996 = vmatpush1.xpose.msra.mxu0 0.0
        %2997 = vmatprep.subr.mxu0 0.0
        %2998 = vmatpush1.xpose.msra.mxu0 0.0
        %2999 = vmatprep.subr.mxu0 0.0
        %3000 = vmatpush1.xpose.msra.mxu0 0.0
        %3001 = vmatprep.subr.mxu0 0.0
        %3002 = vmatpush1.xpose.msra.mxu0 0.0
        %3003 = vmatprep.subr.mxu0 0.0
        %3004 = vmatpush1.xpose.msra.mxu0 0.0
        %3005 = vmatprep.subr.mxu0 0.0
        %3006 = vmatpush1.xpose.msra.mxu0 0.0
        %3007 = vmatprep.subr.mxu0 0.0
        %3008 = vmatpush1.xpose.msra.mxu0 0.0
        %3009 = vmatprep.subr.mxu0 0.0
        %3010 = vmatpush1.xpose.msra.mxu0 0.0
        %3011 = vmatprep.subr.mxu0 0.0
        %3012 = vmatpush1.xpose.msra.mxu0 0.0
        %3013 = vmatprep.subr.mxu0 0.0
        %3014 = vmatpush1.xpose.msra.mxu0 0.0
        %3015 = vmatprep.subr.mxu0 0.0
        %3016 = vmatpush1.xpose.msra.mxu0 0.0
        %3017 = vmatprep.mubr.f32.mxu0 0.0
        %v3018 = vand.u32 %v2770, 4294901760
        %v3019 = vsub.f32 %v2770, %v3018
        %3020 = vmatmul.mubr.f32.gmra.mrb[0].mxu0 %v3019
        %v3021 = vpop.f32.mrb[0].mxu0
        %v3022 = vadd.f32 %v2940, %v3021
        %v3023 = vpop.f32.mrb[0].mxu0
        %3024 = vmatprep.mubr.f32.mxu0 0.0
        %v3025 = vand.u32 %v2773, 4294901760
        %v3026 = vsub.f32 %v2773, %v3025
        %3027 = vmatmul.mubr.f32.gmra.mrb[0].mxu0 %v3026
        %v3028 = vpop.f32.mrb[0].mxu0
        %v3029 = vadd.f32 %v2946, %v3028
        %v3030 = vpop.f32.mrb[0].mxu0
        %3031 = vdwg.mxu0
        %3032 = vmatprep.subr.mxu0 0.0
        %v3033 = vand.u32 %v2230, 4294901760
        %3034 = vmatpush1.xpose.msra.mxu0 %v3033
        %3035 = vmatprep.subr.mxu0 0.0
        %v3036 = vand.u32 %v2233, 4294901760
        %3037 = vmatpush1.xpose.msra.mxu0 %v3036
        %3038 = vmatprep.subr.mxu0 0.0
        %3039 = vmatpush1.xpose.msra.mxu0 0.0
        %3040 = vmatprep.subr.mxu0 0.0
        %3041 = vmatpush1.xpose.msra.mxu0 0.0
        %3042 = vmatprep.subr.mxu0 0.0
        %3043 = vmatpush1.xpose.msra.mxu0 0.0
        %3044 = vmatprep.subr.mxu0 0.0
        %3045 = vmatpush1.xpose.msra.mxu0 0.0
        %3046 = vmatprep.subr.mxu0 0.0
        %3047 = vmatpush1.xpose.msra.mxu0 0.0
        %3048 = vmatprep.subr.mxu0 0.0
        %3049 = vmatpush1.xpose.msra.mxu0 0.0
        %3050 = vmatprep.subr.mxu0 0.0
        %3051 = vmatpush1.xpose.msra.mxu0 0.0
        %3052 = vmatprep.subr.mxu0 0.0
        %3053 = vmatpush1.xpose.msra.mxu0 0.0
        %3054 = vmatprep.subr.mxu0 0.0
        %3055 = vmatpush1.xpose.msra.mxu0 0.0
        %3056 = vmatprep.subr.mxu0 0.0
        %3057 = vmatpush1.xpose.msra.mxu0 0.0
        %3058 = vmatprep.subr.mxu0 0.0
        %3059 = vmatpush1.xpose.msra.mxu0 0.0
        %3060 = vmatprep.subr.mxu0 0.0
        %3061 = vmatpush1.xpose.msra.mxu0 0.0
        %3062 = vmatprep.subr.mxu0 0.0
        %3063 = vmatpush1.xpose.msra.mxu0 0.0
        %3064 = vmatprep.subr.mxu0 0.0
        %3065 = vmatpush1.xpose.msra.mxu0 0.0
        %3066 = vmatprep.subr.mxu0 0.0
        %3067 = vmatpush1.xpose.msra.mxu0 0.0
        %3068 = vmatprep.subr.mxu0 0.0
        %3069 = vmatpush1.xpose.msra.mxu0 0.0
        %3070 = vmatprep.subr.mxu0 0.0
        %3071 = vmatpush1.xpose.msra.mxu0 0.0
        %3072 = vmatprep.subr.mxu0 0.0
        %3073 = vmatpush1.xpose.msra.mxu0 0.0
        %3074 = vmatprep.subr.mxu0 0.0
        %3075 = vmatpush1.xpose.msra.mxu0 0.0
        %3076 = vmatprep.subr.mxu0 0.0
        %3077 = vmatpush1.xpose.msra.mxu0 0.0
        %3078 = vmatprep.subr.mxu0 0.0
        %3079 = vmatpush1.xpose.msra.mxu0 0.0
        %3080 = vmatprep.subr.mxu0 0.0
        %3081 = vmatpush1.xpose.msra.mxu0 0.0
        %3082 = vmatprep.subr.mxu0 0.0
        %3083 = vmatpush1.xpose.msra.mxu0 0.0
        %3084 = vmatprep.subr.mxu0 0.0
        %3085 = vmatpush1.xpose.msra.mxu0 0.0
        %3086 = vmatprep.subr.mxu0 0.0
        %3087 = vmatpush1.xpose.msra.mxu0 0.0
        %3088 = vmatprep.subr.mxu0 0.0
        %3089 = vmatpush1.xpose.msra.mxu0 0.0
        %3090 = vmatprep.subr.mxu0 0.0
        %3091 = vmatpush1.xpose.msra.mxu0 0.0
        %3092 = vmatprep.subr.mxu0 0.0
        %3093 = vmatpush1.xpose.msra.mxu0 0.0
        %3094 = vmatprep.subr.mxu0 0.0
        %3095 = vmatpush1.xpose.msra.mxu0 0.0
        %3096 = vmatprep.subr.mxu0 0.0
        %3097 = vmatpush1.xpose.msra.mxu0 0.0
        %3098 = vmatprep.mubr.f32.mxu0 0.0
        %v3099 = vand.u32 %v2770, 4294901760
        %v3100 = vsub.f32 %v2770, %v3099
        %v3101 = vand.u32 %v3100, 4294901760
        %3102 = vmatmul.mubr.f32.gmra.mrb[0].mxu0 %v3101
        %v3103 = vpop.f32.mrb[0].mxu0
        %v3104 = vadd.f32 %v3022, %v3103
        %v3105 = vpop.f32.mrb[0].mxu0
        %3106 = vmatprep.mubr.f32.mxu0 0.0
        %v3107 = vand.u32 %v2773, 4294901760
        %v3108 = vsub.f32 %v2773, %v3107
        %v3109 = vand.u32 %v3108, 4294901760
        %3110 = vmatmul.mubr.f32.gmra.mrb[0].mxu0 %v3109
        %v3111 = vpop.f32.mrb[0].mxu0
        %v3112 = vadd.f32 %v3029, %v3111
        %v3113 = vpop.f32.mrb[0].mxu0
        %3114 = vdwg.mxu0
        %3115 = vmatprep.subr.mxu0 0.0
        %v3116 = vand.u32 %v2230, 4294901760
        %v3117 = vsub.f32 %v2230, %v3116
        %v3118 = vand.u32 %v3117, 4294901760
        %3119 = vmatpush1.xpose.msra.mxu0 %v3118
        %3120 = vmatprep.subr.mxu0 0.0
        %v3121 = vand.u32 %v2233, 4294901760
        %v3122 = vsub.f32 %v2233, %v3121
        %v3123 = vand.u32 %v3122, 4294901760
        %3124 = vmatpush1.xpose.msra.mxu0 %v3123
        %3125 = vmatprep.subr.mxu0 0.0
        %3126 = vmatpush1.xpose.msra.mxu0 0.0
        %3127 = vmatprep.subr.mxu0 0.0
        %3128 = vmatpush1.xpose.msra.mxu0 0.0
        %3129 = vmatprep.subr.mxu0 0.0
        %3130 = vmatpush1.xpose.msra.mxu0 0.0
        %3131 = vmatprep.subr.mxu0 0.0
        %3132 = vmatpush1.xpose.msra.mxu0 0.0
        %3133 = vmatprep.subr.mxu0 0.0
        %3134 = vmatpush1.xpose.msra.mxu0 0.0
        %3135 = vmatprep.subr.mxu0 0.0
        %3136 = vmatpush1.xpose.msra.mxu0 0.0
        %3137 = vmatprep.subr.mxu0 0.0
        %3138 = vmatpush1.xpose.msra.mxu0 0.0
        %3139 = vmatprep.subr.mxu0 0.0
        %3140 = vmatpush1.xpose.msra.mxu0 0.0
        %3141 = vmatprep.subr.mxu0 0.0
        %3142 = vmatpush1.xpose.msra.mxu0 0.0
        %3143 = vmatprep.subr.mxu0 0.0
        %3144 = vmatpush1.xpose.msra.mxu0 0.0
        %3145 = vmatprep.subr.mxu0 0.0
        %3146 = vmatpush1.xpose.msra.mxu0 0.0
        %3147 = vmatprep.subr.mxu0 0.0
        %3148 = vmatpush1.xpose.msra.mxu0 0.0
        %3149 = vmatprep.subr.mxu0 0.0
        %3150 = vmatpush1.xpose.msra.mxu0 0.0
        %3151 = vmatprep.subr.mxu0 0.0
        %3152 = vmatpush1.xpose.msra.mxu0 0.0
        %3153 = vmatprep.subr.mxu0 0.0
        %3154 = vmatpush1.xpose.msra.mxu0 0.0
        %3155 = vmatprep.subr.mxu0 0.0
        %3156 = vmatpush1.xpose.msra.mxu0 0.0
        %3157 = vmatprep.subr.mxu0 0.0
        %3158 = vmatpush1.xpose.msra.mxu0 0.0
        %3159 = vmatprep.subr.mxu0 0.0
        %3160 = vmatpush1.xpose.msra.mxu0 0.0
        %3161 = vmatprep.subr.mxu0 0.0
        %3162 = vmatpush1.xpose.msra.mxu0 0.0
        %3163 = vmatprep.subr.mxu0 0.0
        %3164 = vmatpush1.xpose.msra.mxu0 0.0
        %3165 = vmatprep.subr.mxu0 0.0
        %3166 = vmatpush1.xpose.msra.mxu0 0.0
        %3167 = vmatprep.subr.mxu0 0.0
        %3168 = vmatpush1.xpose.msra.mxu0 0.0
        %3169 = vmatprep.subr.mxu0 0.0
        %3170 = vmatpush1.xpose.msra.mxu0 0.0
        %3171 = vmatprep.subr.mxu0 0.0
        %3172 = vmatpush1.xpose.msra.mxu0 0.0
        %3173 = vmatprep.subr.mxu0 0.0
        %3174 = vmatpush1.xpose.msra.mxu0 0.0
        %3175 = vmatprep.subr.mxu0 0.0
        %3176 = vmatpush1.xpose.msra.mxu0 0.0
        %3177 = vmatprep.subr.mxu0 0.0
        %3178 = vmatpush1.xpose.msra.mxu0 0.0
        %3179 = vmatprep.subr.mxu0 0.0
        %3180 = vmatpush1.xpose.msra.mxu0 0.0
        %3181 = vmatprep.subr.mxu0 0.0
        %3182 = vmatpush1.xpose.msra.mxu0 0.0
        %3183 = vmatprep.subr.mxu0 0.0
        %3184 = vmatpush1.xpose.msra.mxu0 0.0
        %3185 = vmatprep.mubr.f32.mxu0 0.0
        %v3186 = vand.u32 %v2770, 4294901760
        %3187 = vmatmul.mubr.f32.gmra.mrb[0].mxu0 %v3186
        %v3188 = vpop.f32.mrb[0].mxu0
        %v3189 = vadd.f32 %v3104, %v3188
        %v3190 = vpop.f32.mrb[0].mxu0
        %3191 = vmatprep.mubr.f32.mxu0 0.0
        %v3192 = vand.u32 %v2773, 4294901760
        %3193 = vmatmul.mubr.f32.gmra.mrb[0].mxu0 %v3192
        %v3194 = vpop.f32.mrb[0].mxu0
        %v3195 = vadd.f32 %v3112, %v3194
        %v3196 = vpop.f32.mrb[0].mxu0
        %3197 = vdwg.mxu0
        %3198 = vmatprep.subr.mxu0 0.0
        %v3199 = vand.u32 %v2230, 4294901760
        %3200 = vmatpush1.xpose.msra.mxu0 %v3199
        %3201 = vmatprep.subr.mxu0 0.0
        %v3202 = vand.u32 %v2233, 4294901760
        %3203 = vmatpush1.xpose.msra.mxu0 %v3202
        %3204 = vmatprep.subr.mxu0 0.0
        %3205 = vmatpush1.xpose.msra.mxu0 0.0
        %3206 = vmatprep.subr.mxu0 0.0
        %3207 = vmatpush1.xpose.msra.mxu0 0.0
        %3208 = vmatprep.subr.mxu0 0.0
        %3209 = vmatpush1.xpose.msra.mxu0 0.0
        %3210 = vmatprep.subr.mxu0 0.0
        %3211 = vmatpush1.xpose.msra.mxu0 0.0
        %3212 = vmatprep.subr.mxu0 0.0
        %3213 = vmatpush1.xpose.msra.mxu0 0.0
        %3214 = vmatprep.subr.mxu0 0.0
        %3215 = vmatpush1.xpose.msra.mxu0 0.0
        %3216 = vmatprep.subr.mxu0 0.0
        %3217 = vmatpush1.xpose.msra.mxu0 0.0
        %3218 = vmatprep.subr.mxu0 0.0
        %3219 = vmatpush1.xpose.msra.mxu0 0.0
        %3220 = vmatprep.subr.mxu0 0.0
        %3221 = vmatpush1.xpose.msra.mxu0 0.0
        %3222 = vmatprep.subr.mxu0 0.0
        %3223 = vmatpush1.xpose.msra.mxu0 0.0
        %3224 = vmatprep.subr.mxu0 0.0
        %3225 = vmatpush1.xpose.msra.mxu0 0.0
        %3226 = vmatprep.subr.mxu0 0.0
        %3227 = vmatpush1.xpose.msra.mxu0 0.0
        %3228 = vmatprep.subr.mxu0 0.0
        %3229 = vmatpush1.xpose.msra.mxu0 0.0
        %3230 = vmatprep.subr.mxu0 0.0
        %3231 = vmatpush1.xpose.msra.mxu0 0.0
        %3232 = vmatprep.subr.mxu0 0.0
        %3233 = vmatpush1.xpose.msra.mxu0 0.0
        %3234 = vmatprep.subr.mxu0 0.0
        %3235 = vmatpush1.xpose.msra.mxu0 0.0
        %3236 = vmatprep.subr.mxu0 0.0
        %3237 = vmatpush1.xpose.msra.mxu0 0.0
        %3238 = vmatprep.subr.mxu0 0.0
        %3239 = vmatpush1.xpose.msra.mxu0 0.0
        %3240 = vmatprep.subr.mxu0 0.0
        %3241 = vmatpush1.xpose.msra.mxu0 0.0
        %3242 = vmatprep.subr.mxu0 0.0
        %3243 = vmatpush1.xpose.msra.mxu0 0.0
        %3244 = vmatprep.subr.mxu0 0.0
        %3245 = vmatpush1.xpose.msra.mxu0 0.0
        %3246 = vmatprep.subr.mxu0 0.0
        %3247 = vmatpush1.xpose.msra.mxu0 0.0
        %3248 = vmatprep.subr.mxu0 0.0
        %3249 = vmatpush1.xpose.msra.mxu0 0.0
        %3250 = vmatprep.subr.mxu0 0.0
        %3251 = vmatpush1.xpose.msra.mxu0 0.0
        %3252 = vmatprep.subr.mxu0 0.0
        %3253 = vmatpush1.xpose.msra.mxu0 0.0
        %3254 = vmatprep.subr.mxu0 0.0
        %3255 = vmatpush1.xpose.msra.mxu0 0.0
        %3256 = vmatprep.subr.mxu0 0.0
        %3257 = vmatpush1.xpose.msra.mxu0 0.0
        %3258 = vmatprep.subr.mxu0 0.0
        %3259 = vmatpush1.xpose.msra.mxu0 0.0
        %3260 = vmatprep.subr.mxu0 0.0
        %3261 = vmatpush1.xpose.msra.mxu0 0.0
        %3262 = vmatprep.subr.mxu0 0.0
        %3263 = vmatpush1.xpose.msra.mxu0 0.0
        %3264 = vmatprep.mubr.f32.mxu0 0.0
        %v3265 = vand.u32 %v2770, 4294901760
        %3266 = vmatmul.mubr.f32.gmra.mrb[0].mxu0 %v3265
        %v3267 = vpop.f32.mrb[0].mxu0
        %v3268 = vadd.f32 %v3189, %v3267
        %v3269 = vpop.f32.mrb[0].mxu0
        %3270 = vmatprep.mubr.f32.mxu0 0.0
        %v3271 = vand.u32 %v2773, 4294901760
        %3272 = vmatmul.mubr.f32.gmra.mrb[0].mxu0 %v3271
        %v3273 = vpop.f32.mrb[0].mxu0
        %v3274 = vadd.f32 %v3195, %v3273
        %v3275 = vpop.f32.mrb[0].mxu0
        %3276 = vdwg.mxu0
        %v3277 = vsel %vm2737, %v3268, -inf
        %3278 = vmax.xlane.f32.xlu0 %v3277
        %v3279 = vpop.xlane.xlu0 %3278
        %v3280 = vsel %vm2737, %v3274, -inf
        %3281 = vmax.xlane.f32.xlu0 %v3280
        %v3282 = vpop.xlane.xlu0 %3281
        %v3283 = vsub.f32 %v3268, %v3279
        %v3284 = vsub.f32 %v3274, %v3282
        %v3285 = vmul.f32 %v3283, 1.442695
        %v3286 = vpow.pop %v3285
        %v3287 = vmul.f32 %v3284, 1.442695
        %v3288 = vpow.pop %v3287
        %v3289 = vsel %vm2737, %v3286, 0.0
        %3290 = vadd.xlane.f32.xlu0 %v3289
        %v3291 = vpop.xlane.xlu0 %3290
        %v3292 = vsel %vm2737, %v3288, 0.0
        %3293 = vadd.xlane.f32.xlu0 %v3292
        %v3294 = vpop.xlane.xlu0 %3293
        %v3295 = vrcp.pop %v3291
        %v3296 = vmul.f32 %v3286, %v3295
        %v3297 = vrcp.pop %v3294
        %v3298 = vmul.f32 %v3288, %v3297
        %v3299 = vmul.f32 %v2207, %v2766
        %v3300 = vmul.f32 %v2213, %v2766
        %v3302 = vsel %vm2737, %v3296, 0
        %v3305 = vsel %vm2737, %v3298, 0
        %3307 = vmatprep.subr.mxu0 0.0
        %v3308 = vand.u32 %v3299, 4294901760
        %3309 = vmatpush1.msra.mxu0 %v3308
        %3310 = vmatprep.subr.mxu0 0.0
        %v3311 = vand.u32 %v3300, 4294901760
        %3312 = vmatpush1.msra.mxu0 %v3311
        %3313 = vmatprep.subr.mxu0 0.0
        %3314 = vmatpush1.msra.mxu0 0.0
        %3315 = vmatprep.subr.mxu0 0.0
        %3316 = vmatpush1.msra.mxu0 0.0
        %3317 = vmatprep.subr.mxu0 0.0
        %3318 = vmatpush1.msra.mxu0 0.0
        %3319 = vmatprep.subr.mxu0 0.0
        %3320 = vmatpush1.msra.mxu0 0.0
        %3321 = vmatprep.subr.mxu0 0.0
        %3322 = vmatpush1.msra.mxu0 0.0
        %3323 = vmatprep.subr.mxu0 0.0
        %3324 = vmatpush1.msra.mxu0 0.0
        %3325 = vmatprep.subr.mxu0 0.0
        %3326 = vmatpush1.msra.mxu0 0.0
        %3327 = vmatprep.subr.mxu0 0.0
        %3328 = vmatpush1.msra.mxu0 0.0
        %3329 = vmatprep.subr.mxu0 0.0
        %3330 = vmatpush1.msra.mxu0 0.0
        %3331 = vmatprep.subr.mxu0 0.0
        %3332 = vmatpush1.msra.mxu0 0.0
        %3333 = vmatprep.subr.mxu0 0.0
        %3334 = vmatpush1.msra.mxu0 0.0
        %3335 = vmatprep.subr.mxu0 0.0
        %3336 = vmatpush1.msra.mxu0 0.0
        %3337 = vmatprep.subr.mxu0 0.0
        %3338 = vmatpush1.msra.mxu0 0.0
        %3339 = vmatprep.subr.mxu0 0.0
        %3340 = vmatpush1.msra.mxu0 0.0
        %3341 = vmatprep.subr.mxu0 0.0
        %3342 = vmatpush1.msra.mxu0 0.0
        %3343 = vmatprep.subr.mxu0 0.0
        %3344 = vmatpush1.msra.mxu0 0.0
        %3345 = vmatprep.subr.mxu0 0.0
        %3346 = vmatpush1.msra.mxu0 0.0
        %3347 = vmatprep.subr.mxu0 0.0
        %3348 = vmatpush1.msra.mxu0 0.0
        %3349 = vmatprep.subr.mxu0 0.0
        %3350 = vmatpush1.msra.mxu0 0.0
        %3351 = vmatprep.subr.mxu0 0.0
        %3352 = vmatpush1.msra.mxu0 0.0
        %3353 = vmatprep.subr.mxu0 0.0
        %3354 = vmatpush1.msra.mxu0 0.0
        %3355 = vmatprep.subr.mxu0 0.0
        %3356 = vmatpush1.msra.mxu0 0.0
        %3357 = vmatprep.subr.mxu0 0.0
        %3358 = vmatpush1.msra.mxu0 0.0
        %3359 = vmatprep.subr.mxu0 0.0
        %3360 = vmatpush1.msra.mxu0 0.0
        %3361 = vmatprep.subr.mxu0 0.0
        %3362 = vmatpush1.msra.mxu0 0.0
        %3363 = vmatprep.subr.mxu0 0.0
        %3364 = vmatpush1.msra.mxu0 0.0
        %3365 = vmatprep.subr.mxu0 0.0
        %3366 = vmatpush1.msra.mxu0 0.0
        %3367 = vmatprep.subr.mxu0 0.0
        %3368 = vmatpush1.msra.mxu0 0.0
        %3369 = vmatprep.subr.mxu0 0.0
        %3370 = vmatpush1.msra.mxu0 0.0
        %3371 = vmatprep.subr.mxu0 0.0
        %3372 = vmatpush1.msra.mxu0 0.0
        %3373 = vmatprep.mubr.f32.mxu0 0.0
        %v3374 = vand.u32 %v3302, 4294901760
        %v3375 = vsub.f32 %v3302, %v3374
        %v3376 = vand.u32 %v3375, 4294901760
        %v3377 = vsub.f32 %v3375, %v3376
        %v3378 = vand.u32 %v3377, 4294901760
        %3379 = vmatmul.mubr.f32.gmra.mrb[0].mxu0 %v3378
        %v3380 = vpop.f32.mrb[0].mxu0
        %v3381 = vadd.f32 0.0, %v3380
        %v3382 = vpop.f32.mrb[0].mxu0
        %3383 = vmatprep.mubr.f32.mxu0 0.0
        %v3384 = vand.u32 %v3305, 4294901760
        %v3385 = vsub.f32 %v3305, %v3384
        %v3386 = vand.u32 %v3385, 4294901760
        %v3387 = vsub.f32 %v3385, %v3386
        %v3388 = vand.u32 %v3387, 4294901760
        %3389 = vmatmul.mubr.f32.gmra.mrb[0].mxu0 %v3388
        %v3390 = vpop.f32.mrb[0].mxu0
        %v3391 = vadd.f32 0.0, %v3390
        %v3392 = vpop.f32.mrb[0].mxu0
        %3393 = vdwg.mxu0
        %3394 = vmatprep.subr.mxu0 0.0
        %v3395 = vand.u32 %v3299, 4294901760
        %v3396 = vsub.f32 %v3299, %v3395
        %v3397 = vand.u32 %v3396, 4294901760
        %v3398 = vsub.f32 %v3396, %v3397
        %v3399 = vand.u32 %v3398, 4294901760
        %3400 = vmatpush1.msra.mxu0 %v3399
        %3401 = vmatprep.subr.mxu0 0.0
        %v3402 = vand.u32 %v3300, 4294901760
        %v3403 = vsub.f32 %v3300, %v3402
        %v3404 = vand.u32 %v3403, 4294901760
        %v3405 = vsub.f32 %v3403, %v3404
        %v3406 = vand.u32 %v3405, 4294901760
        %3407 = vmatpush1.msra.mxu0 %v3406
        %3408 = vmatprep.subr.mxu0 0.0
        %3409 = vmatpush1.msra.mxu0 0.0
        %3410 = vmatprep.subr.mxu0 0.0
        %3411 = vmatpush1.msra.mxu0 0.0
        %3412 = vmatprep.subr.mxu0 0.0
        %3413 = vmatpush1.msra.mxu0 0.0
        %3414 = vmatprep.subr.mxu0 0.0
        %3415 = vmatpush1.msra.mxu0 0.0
        %3416 = vmatprep.subr.mxu0 0.0
        %3417 = vmatpush1.msra.mxu0 0.0
        %3418 = vmatprep.subr.mxu0 0.0
        %3419 = vmatpush1.msra.mxu0 0.0
        %3420 = vmatprep.subr.mxu0 0.0
        %3421 = vmatpush1.msra.mxu0 0.0
        %3422 = vmatprep.subr.mxu0 0.0
        %3423 = vmatpush1.msra.mxu0 0.0
        %3424 = vmatprep.subr.mxu0 0.0
        %3425 = vmatpush1.msra.mxu0 0.0
        %3426 = vmatprep.subr.mxu0 0.0
        %3427 = vmatpush1.msra.mxu0 0.0
        %3428 = vmatprep.subr.mxu0 0.0
        %3429 = vmatpush1.msra.mxu0 0.0
        %3430 = vmatprep.subr.mxu0 0.0
        %3431 = vmatpush1.msra.mxu0 0.0
        %3432 = vmatprep.subr.mxu0 0.0
        %3433 = vmatpush1.msra.mxu0 0.0
        %3434 = vmatprep.subr.mxu0 0.0
        %3435 = vmatpush1.msra.mxu0 0.0
        %3436 = vmatprep.subr.mxu0 0.0
        %3437 = vmatpush1.msra.mxu0 0.0
        %3438 = vmatprep.subr.mxu0 0.0
        %3439 = vmatpush1.msra.mxu0 0.0
        %3440 = vmatprep.subr.mxu0 0.0
        %3441 = vmatpush1.msra.mxu0 0.0
        %3442 = vmatprep.subr.mxu0 0.0
        %3443 = vmatpush1.msra.mxu0 0.0
        %3444 = vmatprep.subr.mxu0 0.0
        %3445 = vmatpush1.msra.mxu0 0.0
        %3446 = vmatprep.subr.mxu0 0.0
        %3447 = vmatpush1.msra.mxu0 0.0
        %3448 = vmatprep.subr.mxu0 0.0
        %3449 = vmatpush1.msra.mxu0 0.0
        %3450 = vmatprep.subr.mxu0 0.0
        %3451 = vmatpush1.msra.mxu0 0.0
        %3452 = vmatprep.subr.mxu0 0.0
        %3453 = vmatpush1.msra.mxu0 0.0
        %3454 = vmatprep.subr.mxu0 0.0
        %3455 = vmatpush1.msra.mxu0 0.0
        %3456 = vmatprep.subr.mxu0 0.0
        %3457 = vmatpush1.msra.mxu0 0.0
        %3458 = vmatprep.subr.mxu0 0.0
        %3459 = vmatpush1.msra.mxu0 0.0
        %3460 = vmatprep.subr.mxu0 0.0
        %3461 = vmatpush1.msra.mxu0 0.0
        %3462 = vmatprep.subr.mxu0 0.0
        %3463 = vmatpush1.msra.mxu0 0.0
        %3464 = vmatprep.subr.mxu0 0.0
        %3465 = vmatpush1.msra.mxu0 0.0
        %3466 = vmatprep.subr.mxu0 0.0
        %3467 = vmatpush1.msra.mxu0 0.0
        %3468 = vmatprep.mubr.f32.mxu0 0.0
        %v3469 = vand.u32 %v3302, 4294901760
        %3470 = vmatmul.mubr.f32.gmra.mrb[0].mxu0 %v3469
        %v3471 = vpop.f32.mrb[0].mxu0
        %v3472 = vadd.f32 %v3381, %v3471
        %v3473 = vpop.f32.mrb[0].mxu0
        %3474 = vmatprep.mubr.f32.mxu0 0.0
        %v3475 = vand.u32 %v3305, 4294901760
        %3476 = vmatmul.mubr.f32.gmra.mrb[0].mxu0 %v3475
        %v3477 = vpop.f32.mrb[0].mxu0
        %v3478 = vadd.f32 %v3391, %v3477
        %v3479 = vpop.f32.mrb[0].mxu0
        %3480 = vdwg.mxu0
        %3481 = vmatprep.subr.mxu0 0.0
        %v3482 = vand.u32 %v3299, 4294901760
        %v3483 = vsub.f32 %v3299, %v3482
        %3484 = vmatpush1.msra.mxu0 %v3483
        %3485 = vmatprep.subr.mxu0 0.0
        %v3486 = vand.u32 %v3300, 4294901760
        %v3487 = vsub.f32 %v3300, %v3486
        %3488 = vmatpush1.msra.mxu0 %v3487
        %3489 = vmatprep.subr.mxu0 0.0
        %3490 = vmatpush1.msra.mxu0 0.0
        %3491 = vmatprep.subr.mxu0 0.0
        %3492 = vmatpush1.msra.mxu0 0.0
        %3493 = vmatprep.subr.mxu0 0.0
        %3494 = vmatpush1.msra.mxu0 0.0
        %3495 = vmatprep.subr.mxu0 0.0
        %3496 = vmatpush1.msra.mxu0 0.0
        %3497 = vmatprep.subr.mxu0 0.0
        %3498 = vmatpush1.msra.mxu0 0.0
        %3499 = vmatprep.subr.mxu0 0.0
        %3500 = vmatpush1.msra.mxu0 0.0
        %3501 = vmatprep.subr.mxu0 0.0
        %3502 = vmatpush1.msra.mxu0 0.0
        %3503 = vmatprep.subr.mxu0 0.0
        %3504 = vmatpush1.msra.mxu0 0.0
        %3505 = vmatprep.subr.mxu0 0.0
        %3506 = vmatpush1.msra.mxu0 0.0
        %3507 = vmatprep.subr.mxu0 0.0
        %3508 = vmatpush1.msra.mxu0 0.0
        %3509 = vmatprep.subr.mxu0 0.0
        %3510 = vmatpush1.msra.mxu0 0.0
        %3511 = vmatprep.subr.mxu0 0.0
        %3512 = vmatpush1.msra.mxu0 0.0
        %3513 = vmatprep.subr.mxu0 0.0
        %3514 = vmatpush1.msra.mxu0 0.0
        %3515 = vmatprep.subr.mxu0 0.0
        %3516 = vmatpush1.msra.mxu0 0.0
        %3517 = vmatprep.subr.mxu0 0.0
        %3518 = vmatpush1.msra.mxu0 0.0
        %3519 = vmatprep.subr.mxu0 0.0
        %3520 = vmatpush1.msra.mxu0 0.0
        %3521 = vmatprep.subr.mxu0 0.0
        %3522 = vmatpush1.msra.mxu0 0.0
        %3523 = vmatprep.subr.mxu0 0.0
        %3524 = vmatpush1.msra.mxu0 0.0
        %3525 = vmatprep.subr.mxu0 0.0
        %3526 = vmatpush1.msra.mxu0 0.0
        %3527 = vmatprep.subr.mxu0 0.0
        %3528 = vmatpush1.msra.mxu0 0.0
        %3529 = vmatprep.subr.mxu0 0.0
        %3530 = vmatpush1.msra.mxu0 0.0
        %3531 = vmatprep.subr.mxu0 0.0
        %3532 = vmatpush1.msra.mxu0 0.0
        %3533 = vmatprep.subr.mxu0 0.0
        %3534 = vmatpush1.msra.mxu0 0.0
        %3535 = vmatprep.subr.mxu0 0.0
        %3536 = vmatpush1.msra.mxu0 0.0
        %3537 = vmatprep.subr.mxu0 0.0
        %3538 = vmatpush1.msra.mxu0 0.0
        %3539 = vmatprep.subr.mxu0 0.0
        %3540 = vmatpush1.msra.mxu0 0.0
        %3541 = vmatprep.subr.mxu0 0.0
        %3542 = vmatpush1.msra.mxu0 0.0
        %3543 = vmatprep.subr.mxu0 0.0
        %3544 = vmatpush1.msra.mxu0 0.0
        %3545 = vmatprep.subr.mxu0 0.0
        %3546 = vmatpush1.msra.mxu0 0.0
        %3547 = vmatprep.subr.mxu0 0.0
        %3548 = vmatpush1.msra.mxu0 0.0
        %3549 = vmatprep.mubr.f32.mxu0 0.0
        %v3550 = vand.u32 %v3302, 4294901760
        %v3551 = vsub.f32 %v3302, %v3550
        %3552 = vmatmul.mubr.f32.gmra.mrb[0].mxu0 %v3551
        %v3553 = vpop.f32.mrb[0].mxu0
        %v3554 = vadd.f32 %v3472, %v3553
        %v3555 = vpop.f32.mrb[0].mxu0
        %3556 = vmatprep.mubr.f32.mxu0 0.0
        %v3557 = vand.u32 %v3305, 4294901760
        %v3558 = vsub.f32 %v3305, %v3557
        %3559 = vmatmul.mubr.f32.gmra.mrb[0].mxu0 %v3558
        %v3560 = vpop.f32.mrb[0].mxu0
        %v3561 = vadd.f32 %v3478, %v3560
        %v3562 = vpop.f32.mrb[0].mxu0
        %3563 = vdwg.mxu0
        %3564 = vmatprep.subr.mxu0 0.0
        %v3565 = vand.u32 %v3299, 4294901760
        %3566 = vmatpush1.msra.mxu0 %v3565
        %3567 = vmatprep.subr.mxu0 0.0
        %v3568 = vand.u32 %v3300, 4294901760
        %3569 = vmatpush1.msra.mxu0 %v3568
        %3570 = vmatprep.subr.mxu0 0.0
        %3571 = vmatpush1.msra.mxu0 0.0
        %3572 = vmatprep.subr.mxu0 0.0
        %3573 = vmatpush1.msra.mxu0 0.0
        %3574 = vmatprep.subr.mxu0 0.0
        %3575 = vmatpush1.msra.mxu0 0.0
        %3576 = vmatprep.subr.mxu0 0.0
        %3577 = vmatpush1.msra.mxu0 0.0
        %3578 = vmatprep.subr.mxu0 0.0
        %3579 = vmatpush1.msra.mxu0 0.0
        %3580 = vmatprep.subr.mxu0 0.0
        %3581 = vmatpush1.msra.mxu0 0.0
        %3582 = vmatprep.subr.mxu0 0.0
        %3583 = vmatpush1.msra.mxu0 0.0
        %3584 = vmatprep.subr.mxu0 0.0
        %3585 = vmatpush1.msra.mxu0 0.0
        %3586 = vmatprep.subr.mxu0 0.0
        %3587 = vmatpush1.msra.mxu0 0.0
        %3588 = vmatprep.subr.mxu0 0.0
        %3589 = vmatpush1.msra.mxu0 0.0
        %3590 = vmatprep.subr.mxu0 0.0
        %3591 = vmatpush1.msra.mxu0 0.0
        %3592 = vmatprep.subr.mxu0 0.0
        %3593 = vmatpush1.msra.mxu0 0.0
        %3594 = vmatprep.subr.mxu0 0.0
        %3595 = vmatpush1.msra.mxu0 0.0
        %3596 = vmatprep.subr.mxu0 0.0
        %3597 = vmatpush1.msra.mxu0 0.0
        %3598 = vmatprep.subr.mxu0 0.0
        %3599 = vmatpush1.msra.mxu0 0.0
        %3600 = vmatprep.subr.mxu0 0.0
        %3601 = vmatpush1.msra.mxu0 0.0
        %3602 = vmatprep.subr.mxu0 0.0
        %3603 = vmatpush1.msra.mxu0 0.0
        %3604 = vmatprep.subr.mxu0 0.0
        %3605 = vmatpush1.msra.mxu0 0.0
        %3606 = vmatprep.subr.mxu0 0.0
        %3607 = vmatpush1.msra.mxu0 0.0
        %3608 = vmatprep.subr.mxu0 0.0
        %3609 = vmatpush1.msra.mxu0 0.0
        %3610 = vmatprep.subr.mxu0 0.0
        %3611 = vmatpush1.msra.mxu0 0.0
        %3612 = vmatprep.subr.mxu0 0.0
        %3613 = vmatpush1.msra.mxu0 0.0
        %3614 = vmatprep.subr.mxu0 0.0
        %3615 = vmatpush1.msra.mxu0 0.0
        %3616 = vmatprep.subr.mxu0 0.0
        %3617 = vmatpush1.msra.mxu0 0.0
        %3618 = vmatprep.subr.mxu0 0.0
        %3619 = vmatpush1.msra.mxu0 0.0
        %3620 = vmatprep.subr.mxu0 0.0
        %3621 = vmatpush1.msra.mxu0 0.0
        %3622 = vmatprep.subr.mxu0 0.0
        %3623 = vmatpush1.msra.mxu0 0.0
        %3624 = vmatprep.subr.mxu0 0.0
        %3625 = vmatpush1.msra.mxu0 0.0
        %3626 = vmatprep.subr.mxu0 0.0
        %3627 = vmatpush1.msra.mxu0 0.0
        %3628 = vmatprep.subr.mxu0 0.0
        %3629 = vmatpush1.msra.mxu0 0.0
        %3630 = vmatprep.mubr.f32.mxu0 0.0
        %v3631 = vand.u32 %v3302, 4294901760
        %v3632 = vsub.f32 %v3302, %v3631
        %v3633 = vand.u32 %v3632, 4294901760
        %3634 = vmatmul.mubr.f32.gmra.mrb[0].mxu0 %v3633
        %v3635 = vpop.f32.mrb[0].mxu0
        %v3636 = vadd.f32 %v3554, %v3635
        %v3637 = vpop.f32.mrb[0].mxu0
        %3638 = vmatprep.mubr.f32.mxu0 0.0
        %v3639 = vand.u32 %v3305, 4294901760
        %v3640 = vsub.f32 %v3305, %v3639
        %v3641 = vand.u32 %v3640, 4294901760
        %3642 = vmatmul.mubr.f32.gmra.mrb[0].mxu0 %v3641
        %v3643 = vpop.f32.mrb[0].mxu0
        %v3644 = vadd.f32 %v3561, %v3643
        %v3645 = vpop.f32.mrb[0].mxu0
        %3646 = vdwg.mxu0
        %3647 = vmatprep.subr.mxu0 0.0
        %v3648 = vand.u32 %v3299, 4294901760
        %v3649 = vsub.f32 %v3299, %v3648
        %v3650 = vand.u32 %v3649, 4294901760
        %3651 = vmatpush1.msra.mxu0 %v3650
        %3652 = vmatprep.subr.mxu0 0.0
        %v3653 = vand.u32 %v3300, 4294901760
        %v3654 = vsub.f32 %v3300, %v3653
        %v3655 = vand.u32 %v3654, 4294901760
        %3656 = vmatpush1.msra.mxu0 %v3655
        %3657 = vmatprep.subr.mxu0 0.0
        %3658 = vmatpush1.msra.mxu0 0.0
        %3659 = vmatprep.subr.mxu0 0.0
        %3660 = vmatpush1.msra.mxu0 0.0
        %3661 = vmatprep.subr.mxu0 0.0
        %3662 = vmatpush1.msra.mxu0 0.0
        %3663 = vmatprep.subr.mxu0 0.0
        %3664 = vmatpush1.msra.mxu0 0.0
        %3665 = vmatprep.subr.mxu0 0.0
        %3666 = vmatpush1.msra.mxu0 0.0
        %3667 = vmatprep.subr.mxu0 0.0
        %3668 = vmatpush1.msra.mxu0 0.0
        %3669 = vmatprep.subr.mxu0 0.0
        %3670 = vmatpush1.msra.mxu0 0.0
        %3671 = vmatprep.subr.mxu0 0.0
        %3672 = vmatpush1.msra.mxu0 0.0
        %3673 = vmatprep.subr.mxu0 0.0
        %3674 = vmatpush1.msra.mxu0 0.0
        %3675 = vmatprep.subr.mxu0 0.0
        %3676 = vmatpush1.msra.mxu0 0.0
        %3677 = vmatprep.subr.mxu0 0.0
        %3678 = vmatpush1.msra.mxu0 0.0
        %3679 = vmatprep.subr.mxu0 0.0
        %3680 = vmatpush1.msra.mxu0 0.0
        %3681 = vmatprep.subr.mxu0 0.0
        %3682 = vmatpush1.msra.mxu0 0.0
        %3683 = vmatprep.subr.mxu0 0.0
        %3684 = vmatpush1.msra.mxu0 0.0
        %3685 = vmatprep.subr.mxu0 0.0
        %3686 = vmatpush1.msra.mxu0 0.0
        %3687 = vmatprep.subr.mxu0 0.0
        %3688 = vmatpush1.msra.mxu0 0.0
        %3689 = vmatprep.subr.mxu0 0.0
        %3690 = vmatpush1.msra.mxu0 0.0
        %3691 = vmatprep.subr.mxu0 0.0
        %3692 = vmatpush1.msra.mxu0 0.0
        %3693 = vmatprep.subr.mxu0 0.0
        %3694 = vmatpush1.msra.mxu0 0.0
        %3695 = vmatprep.subr.mxu0 0.0
        %3696 = vmatpush1.msra.mxu0 0.0
        %3697 = vmatprep.subr.mxu0 0.0
        %3698 = vmatpush1.msra.mxu0 0.0
        %3699 = vmatprep.subr.mxu0 0.0
        %3700 = vmatpush1.msra.mxu0 0.0
        %3701 = vmatprep.subr.mxu0 0.0
        %3702 = vmatpush1.msra.mxu0 0.0
        %3703 = vmatprep.subr.mxu0 0.0
        %3704 = vmatpush1.msra.mxu0 0.0
        %3705 = vmatprep.subr.mxu0 0.0
        %3706 = vmatpush1.msra.mxu0 0.0
        %3707 = vmatprep.subr.mxu0 0.0
        %3708 = vmatpush1.msra.mxu0 0.0
        %3709 = vmatprep.subr.mxu0 0.0
        %3710 = vmatpush1.msra.mxu0 0.0
        %3711 = vmatprep.subr.mxu0 0.0
        %3712 = vmatpush1.msra.mxu0 0.0
        %3713 = vmatprep.subr.mxu0 0.0
        %3714 = vmatpush1.msra.mxu0 0.0
        %3715 = vmatprep.subr.mxu0 0.0
        %3716 = vmatpush1.msra.mxu0 0.0
        %3717 = vmatprep.mubr.f32.mxu0 0.0
        %v3718 = vand.u32 %v3302, 4294901760
        %3719 = vmatmul.mubr.f32.gmra.mrb[0].mxu0 %v3718
        %v3720 = vpop.f32.mrb[0].mxu0
        %v3721 = vadd.f32 %v3636, %v3720
        %v3722 = vpop.f32.mrb[0].mxu0
        %3723 = vmatprep.mubr.f32.mxu0 0.0
        %v3724 = vand.u32 %v3305, 4294901760
        %3725 = vmatmul.mubr.f32.gmra.mrb[0].mxu0 %v3724
        %v3726 = vpop.f32.mrb[0].mxu0
        %v3727 = vadd.f32 %v3644, %v3726
        %v3728 = vpop.f32.mrb[0].mxu0
        %3729 = vdwg.mxu0
        %3730 = vmatprep.subr.mxu0 0.0
        %v3731 = vand.u32 %v3299, 4294901760
        %3732 = vmatpush1.msra.mxu0 %v3731
        %3733 = vmatprep.subr.mxu0 0.0
        %v3734 = vand.u32 %v3300, 4294901760
        %3735 = vmatpush1.msra.mxu0 %v3734
        %3736 = vmatprep.subr.mxu0 0.0
        %3737 = vmatpush1.msra.mxu0 0.0
        %3738 = vmatprep.subr.mxu0 0.0
        %3739 = vmatpush1.msra.mxu0 0.0
        %3740 = vmatprep.subr.mxu0 0.0
        %3741 = vmatpush1.msra.mxu0 0.0
        %3742 = vmatprep.subr.mxu0 0.0
        %3743 = vmatpush1.msra.mxu0 0.0
        %3744 = vmatprep.subr.mxu0 0.0
        %3745 = vmatpush1.msra.mxu0 0.0
        %3746 = vmatprep.subr.mxu0 0.0
        %3747 = vmatpush1.msra.mxu0 0.0
        %3748 = vmatprep.subr.mxu0 0.0
        %3749 = vmatpush1.msra.mxu0 0.0
        %3750 = vmatprep.subr.mxu0 0.0
        %3751 = vmatpush1.msra.mxu0 0.0
        %3752 = vmatprep.subr.mxu0 0.0
        %3753 = vmatpush1.msra.mxu0 0.0
        %3754 = vmatprep.subr.mxu0 0.0
        %3755 = vmatpush1.msra.mxu0 0.0
        %3756 = vmatprep.subr.mxu0 0.0
        %3757 = vmatpush1.msra.mxu0 0.0
        %3758 = vmatprep.subr.mxu0 0.0
        %3759 = vmatpush1.msra.mxu0 0.0
        %3760 = vmatprep.subr.mxu0 0.0
        %3761 = vmatpush1.msra.mxu0 0.0
        %3762 = vmatprep.subr.mxu0 0.0
        %3763 = vmatpush1.msra.mxu0 0.0
        %3764 = vmatprep.subr.mxu0 0.0
        %3765 = vmatpush1.msra.mxu0 0.0
        %3766 = vmatprep.subr.mxu0 0.0
        %3767 = vmatpush1.msra.mxu0 0.0
        %3768 = vmatprep.subr.mxu0 0.0
        %3769 = vmatpush1.msra.mxu0 0.0
        %3770 = vmatprep.subr.mxu0 0.0
        %3771 = vmatpush1.msra.mxu0 0.0
        %3772 = vmatprep.subr.mxu0 0.0
        %3773 = vmatpush1.msra.mxu0 0.0
        %3774 = vmatprep.subr.mxu0 0.0
        %3775 = vmatpush1.msra.mxu0 0.0
        %3776 = vmatprep.subr.mxu0 0.0
        %3777 = vmatpush1.msra.mxu0 0.0
        %3778 = vmatprep.subr.mxu0 0.0
        %3779 = vmatpush1.msra.mxu0 0.0
        %3780 = vmatprep.subr.mxu0 0.0
        %3781 = vmatpush1.msra.mxu0 0.0
        %3782 = vmatprep.subr.mxu0 0.0
        %3783 = vmatpush1.msra.mxu0 0.0
        %3784 = vmatprep.subr.mxu0 0.0
        %3785 = vmatpush1.msra.mxu0 0.0
        %3786 = vmatprep.subr.mxu0 0.0
        %3787 = vmatpush1.msra.mxu0 0.0
        %3788 = vmatprep.subr.mxu0 0.0
        %3789 = vmatpush1.msra.mxu0 0.0
        %3790 = vmatprep.subr.mxu0 0.0
        %3791 = vmatpush1.msra.mxu0 0.0
        %3792 = vmatprep.subr.mxu0 0.0
        %3793 = vmatpush1.msra.mxu0 0.0
        %3794 = vmatprep.subr.mxu0 0.0
        %3795 = vmatpush1.msra.mxu0 0.0
        %3796 = vmatprep.mubr.f32.mxu0 0.0
        %v3797 = vand.u32 %v3302, 4294901760
        %3798 = vmatmul.mubr.f32.gmra.mrb[0].mxu0 %v3797
        %v3799 = vpop.f32.mrb[0].mxu0
        %v3800 = vadd.f32 %v3721, %v3799
        %v3801 = vpop.f32.mrb[0].mxu0
        %3802 = vmatprep.mubr.f32.mxu0 0.0
        %v3803 = vand.u32 %v3305, 4294901760
        %3804 = vmatmul.mubr.f32.gmra.mrb[0].mxu0 %v3803
        %v3805 = vpop.f32.mrb[0].mxu0
        %v3806 = vadd.f32 %v3727, %v3805
        %v3807 = vpop.f32.mrb[0].mxu0
        %3808 = vdwg.mxu0
        %v3810 = vsel %vm2737, %v2757, 0
        %v3813 = vsel %vm2737, %v2759, 0
        %3815 = vmatprep.subr.mxu0 0.0
        %v3816 = vand.u32 %v2760, 4294901760
        %3817 = vmatpush1.msra.mxu0 %v3816
        %3818 = vmatprep.subr.mxu0 0.0
        %v3819 = vand.u32 %v2761, 4294901760
        %3820 = vmatpush1.msra.mxu0 %v3819
        %3821 = vmatprep.subr.mxu0 0.0
        %3822 = vmatpush1.msra.mxu0 0.0
        %3823 = vmatprep.subr.mxu0 0.0
        %3824 = vmatpush1.msra.mxu0 0.0
        %3825 = vmatprep.subr.mxu0 0.0
        %3826 = vmatpush1.msra.mxu0 0.0
        %3827 = vmatprep.subr.mxu0 0.0
        %3828 = vmatpush1.msra.mxu0 0.0
        %3829 = vmatprep.subr.mxu0 0.0
        %3830 = vmatpush1.msra.mxu0 0.0
        %3831 = vmatprep.subr.mxu0 0.0
        %3832 = vmatpush1.msra.mxu0 0.0
        %3833 = vmatprep.subr.mxu0 0.0
        %3834 = vmatpush1.msra.mxu0 0.0
        %3835 = vmatprep.subr.mxu0 0.0
        %3836 = vmatpush1.msra.mxu0 0.0
        %3837 = vmatprep.subr.mxu0 0.0
        %3838 = vmatpush1.msra.mxu0 0.0
        %3839 = vmatprep.subr.mxu0 0.0
        %3840 = vmatpush1.msra.mxu0 0.0
        %3841 = vmatprep.subr.mxu0 0.0
        %3842 = vmatpush1.msra.mxu0 0.0
        %3843 = vmatprep.subr.mxu0 0.0
        %3844 = vmatpush1.msra.mxu0 0.0
        %3845 = vmatprep.subr.mxu0 0.0
        %3846 = vmatpush1.msra.mxu0 0.0
        %3847 = vmatprep.subr.mxu0 0.0
        %3848 = vmatpush1.msra.mxu0 0.0
        %3849 = vmatprep.subr.mxu0 0.0
        %3850 = vmatpush1.msra.mxu0 0.0
        %3851 = vmatprep.subr.mxu0 0.0
        %3852 = vmatpush1.msra.mxu0 0.0
        %3853 = vmatprep.subr.mxu0 0.0
        %3854 = vmatpush1.msra.mxu0 0.0
        %3855 = vmatprep.subr.mxu0 0.0
        %3856 = vmatpush1.msra.mxu0 0.0
        %3857 = vmatprep.subr.mxu0 0.0
        %3858 = vmatpush1.msra.mxu0 0.0
        %3859 = vmatprep.subr.mxu0 0.0
        %3860 = vmatpush1.msra.mxu0 0.0
        %3861 = vmatprep.subr.mxu0 0.0
        %3862 = vmatpush1.msra.mxu0 0.0
        %3863 = vmatprep.subr.mxu0 0.0
        %3864 = vmatpush1.msra.mxu0 0.0
        %3865 = vmatprep.subr.mxu0 0.0
        %3866 = vmatpush1.msra.mxu0 0.0
        %3867 = vmatprep.subr.mxu0 0.0
        %3868 = vmatpush1.msra.mxu0 0.0
        %3869 = vmatprep.subr.mxu0 0.0
        %3870 = vmatpush1.msra.mxu0 0.0
        %3871 = vmatprep.subr.mxu0 0.0
        %3872 = vmatpush1.msra.mxu0 0.0
        %3873 = vmatprep.subr.mxu0 0.0
        %3874 = vmatpush1.msra.mxu0 0.0
        %3875 = vmatprep.subr.mxu0 0.0
        %3876 = vmatpush1.msra.mxu0 0.0
        %3877 = vmatprep.subr.mxu0 0.0
        %3878 = vmatpush1.msra.mxu0 0.0
        %3879 = vmatprep.subr.mxu0 0.0
        %3880 = vmatpush1.msra.mxu0 0.0
        %3881 = vmatprep.mubr.f32.mxu0 0.0
        %v3882 = vand.u32 %v3810, 4294901760
        %v3883 = vsub.f32 %v3810, %v3882
        %v3884 = vand.u32 %v3883, 4294901760
        %v3885 = vsub.f32 %v3883, %v3884
        %v3886 = vand.u32 %v3885, 4294901760
        %3887 = vmatmul.mubr.f32.gmra.mrb[0].mxu0 %v3886
        %v3888 = vpop.f32.mrb[0].mxu0
        %v3889 = vadd.f32 %v3800, %v3888
        %v3890 = vpop.f32.mrb[0].mxu0
        %3891 = vmatprep.mubr.f32.mxu0 0.0
        %v3892 = vand.u32 %v3813, 4294901760
        %v3893 = vsub.f32 %v3813, %v3892
        %v3894 = vand.u32 %v3893, 4294901760
        %v3895 = vsub.f32 %v3893, %v3894
        %v3896 = vand.u32 %v3895, 4294901760
        %3897 = vmatmul.mubr.f32.gmra.mrb[0].mxu0 %v3896
        %v3898 = vpop.f32.mrb[0].mxu0
        %v3899 = vadd.f32 %v3806, %v3898
        %v3900 = vpop.f32.mrb[0].mxu0
        %3901 = vdwg.mxu0
        %3902 = vmatprep.subr.mxu0 0.0
        %v3903 = vand.u32 %v2760, 4294901760
        %v3904 = vsub.f32 %v2760, %v3903
        %v3905 = vand.u32 %v3904, 4294901760
        %v3906 = vsub.f32 %v3904, %v3905
        %v3907 = vand.u32 %v3906, 4294901760
        %3908 = vmatpush1.msra.mxu0 %v3907
        %3909 = vmatprep.subr.mxu0 0.0
        %v3910 = vand.u32 %v2761, 4294901760
        %v3911 = vsub.f32 %v2761, %v3910
        %v3912 = vand.u32 %v3911, 4294901760
        %v3913 = vsub.f32 %v3911, %v3912
        %v3914 = vand.u32 %v3913, 4294901760
        %3915 = vmatpush1.msra.mxu0 %v3914
        %3916 = vmatprep.subr.mxu0 0.0
        %3917 = vmatpush1.msra.mxu0 0.0
        %3918 = vmatprep.subr.mxu0 0.0
        %3919 = vmatpush1.msra.mxu0 0.0
        %3920 = vmatprep.subr.mxu0 0.0
        %3921 = vmatpush1.msra.mxu0 0.0
        %3922 = vmatprep.subr.mxu0 0.0
        %3923 = vmatpush1.msra.mxu0 0.0
        %3924 = vmatprep.subr.mxu0 0.0
        %3925 = vmatpush1.msra.mxu0 0.0
        %3926 = vmatprep.subr.mxu0 0.0
        %3927 = vmatpush1.msra.mxu0 0.0
        %3928 = vmatprep.subr.mxu0 0.0
        %3929 = vmatpush1.msra.mxu0 0.0
        %3930 = vmatprep.subr.mxu0 0.0
        %3931 = vmatpush1.msra.mxu0 0.0
        %3932 = vmatprep.subr.mxu0 0.0
        %3933 = vmatpush1.msra.mxu0 0.0
        %3934 = vmatprep.subr.mxu0 0.0
        %3935 = vmatpush1.msra.mxu0 0.0
        %3936 = vmatprep.subr.mxu0 0.0
        %3937 = vmatpush1.msra.mxu0 0.0
        %3938 = vmatprep.subr.mxu0 0.0
        %3939 = vmatpush1.msra.mxu0 0.0
        %3940 = vmatprep.subr.mxu0 0.0
        %3941 = vmatpush1.msra.mxu0 0.0
        %3942 = vmatprep.subr.mxu0 0.0
        %3943 = vmatpush1.msra.mxu0 0.0
        %3944 = vmatprep.subr.mxu0 0.0
        %3945 = vmatpush1.msra.mxu0 0.0
        %3946 = vmatprep.subr.mxu0 0.0
        %3947 = vmatpush1.msra.mxu0 0.0
        %3948 = vmatprep.subr.mxu0 0.0
        %3949 = vmatpush1.msra.mxu0 0.0
        %3950 = vmatprep.subr.mxu0 0.0
        %3951 = vmatpush1.msra.mxu0 0.0
        %3952 = vmatprep.subr.mxu0 0.0
        %3953 = vmatpush1.msra.mxu0 0.0
        %3954 = vmatprep.subr.mxu0 0.0
        %3955 = vmatpush1.msra.mxu0 0.0
        %3956 = vmatprep.subr.mxu0 0.0
        %3957 = vmatpush1.msra.mxu0 0.0
        %3958 = vmatprep.subr.mxu0 0.0
        %3959 = vmatpush1.msra.mxu0 0.0
        %3960 = vmatprep.subr.mxu0 0.0
        %3961 = vmatpush1.msra.mxu0 0.0
        %3962 = vmatprep.subr.mxu0 0.0
        %3963 = vmatpush1.msra.mxu0 0.0
        %3964 = vmatprep.subr.mxu0 0.0
        %3965 = vmatpush1.msra.mxu0 0.0
        %3966 = vmatprep.subr.mxu0 0.0
        %3967 = vmatpush1.msra.mxu0 0.0
        %3968 = vmatprep.subr.mxu0 0.0
        %3969 = vmatpush1.msra.mxu0 0.0
        %3970 = vmatprep.subr.mxu0 0.0
        %3971 = vmatpush1.msra.mxu0 0.0
        %3972 = vmatprep.subr.mxu0 0.0
        %3973 = vmatpush1.msra.mxu0 0.0
        %3974 = vmatprep.subr.mxu0 0.0
        %3975 = vmatpush1.msra.mxu0 0.0
        %3976 = vmatprep.mubr.f32.mxu0 0.0
        %v3977 = vand.u32 %v3810, 4294901760
        %3978 = vmatmul.mubr.f32.gmra.mrb[0].mxu0 %v3977
        %v3979 = vpop.f32.mrb[0].mxu0
        %v3980 = vadd.f32 %v3889, %v3979
        %v3981 = vpop.f32.mrb[0].mxu0
        %3982 = vmatprep.mubr.f32.mxu0 0.0
        %v3983 = vand.u32 %v3813, 4294901760
        %3984 = vmatmul.mubr.f32.gmra.mrb[0].mxu0 %v3983
        %v3985 = vpop.f32.mrb[0].mxu0
        %v3986 = vadd.f32 %v3899, %v3985
        %v3987 = vpop.f32.mrb[0].mxu0
        %3988 = vdwg.mxu0
        %3989 = vmatprep.subr.mxu0 0.0
        %v3990 = vand.u32 %v2760, 4294901760
        %v3991 = vsub.f32 %v2760, %v3990
        %3992 = vmatpush1.msra.mxu0 %v3991
        %3993 = vmatprep.subr.mxu0 0.0
        %v3994 = vand.u32 %v2761, 4294901760
        %v3995 = vsub.f32 %v2761, %v3994
        %3996 = vmatpush1.msra.mxu0 %v3995
        %3997 = vmatprep.subr.mxu0 0.0
        %3998 = vmatpush1.msra.mxu0 0.0
        %3999 = vmatprep.subr.mxu0 0.0
        %4000 = vmatpush1.msra.mxu0 0.0
        %4001 = vmatprep.subr.mxu0 0.0
        %4002 = vmatpush1.msra.mxu0 0.0
        %4003 = vmatprep.subr.mxu0 0.0
        %4004 = vmatpush1.msra.mxu0 0.0
        %4005 = vmatprep.subr.mxu0 0.0
        %4006 = vmatpush1.msra.mxu0 0.0
        %4007 = vmatprep.subr.mxu0 0.0
        %4008 = vmatpush1.msra.mxu0 0.0
        %4009 = vmatprep.subr.mxu0 0.0
        %4010 = vmatpush1.msra.mxu0 0.0
        %4011 = vmatprep.subr.mxu0 0.0
        %4012 = vmatpush1.msra.mxu0 0.0
        %4013 = vmatprep.subr.mxu0 0.0
        %4014 = vmatpush1.msra.mxu0 0.0
        %4015 = vmatprep.subr.mxu0 0.0
        %4016 = vmatpush1.msra.mxu0 0.0
        %4017 = vmatprep.subr.mxu0 0.0
        %4018 = vmatpush1.msra.mxu0 0.0
        %4019 = vmatprep.subr.mxu0 0.0
        %4020 = vmatpush1.msra.mxu0 0.0
        %4021 = vmatprep.subr.mxu0 0.0
        %4022 = vmatpush1.msra.mxu0 0.0
        %4023 = vmatprep.subr.mxu0 0.0
        %4024 = vmatpush1.msra.mxu0 0.0
        %4025 = vmatprep.subr.mxu0 0.0
        %4026 = vmatpush1.msra.mxu0 0.0
        %4027 = vmatprep.subr.mxu0 0.0
        %4028 = vmatpush1.msra.mxu0 0.0
        %4029 = vmatprep.subr.mxu0 0.0
        %4030 = vmatpush1.msra.mxu0 0.0
        %4031 = vmatprep.subr.mxu0 0.0
        %4032 = vmatpush1.msra.mxu0 0.0
        %4033 = vmatprep.subr.mxu0 0.0
        %4034 = vmatpush1.msra.mxu0 0.0
        %4035 = vmatprep.subr.mxu0 0.0
        %4036 = vmatpush1.msra.mxu0 0.0
        %4037 = vmatprep.subr.mxu0 0.0
        %4038 = vmatpush1.msra.mxu0 0.0
        %4039 = vmatprep.subr.mxu0 0.0
        %4040 = vmatpush1.msra.mxu0 0.0
        %4041 = vmatprep.subr.mxu0 0.0
        %4042 = vmatpush1.msra.mxu0 0.0
        %4043 = vmatprep.subr.mxu0 0.0
        %4044 = vmatpush1.msra.mxu0 0.0
        %4045 = vmatprep.subr.mxu0 0.0
        %4046 = vmatpush1.msra.mxu0 0.0
        %4047 = vmatprep.subr.mxu0 0.0
        %4048 = vmatpush1.msra.mxu0 0.0
        %4049 = vmatprep.subr.mxu0 0.0
        %4050 = vmatpush1.msra.mxu0 0.0
        %4051 = vmatprep.subr.mxu0 0.0
        %4052 = vmatpush1.msra.mxu0 0.0
        %4053 = vmatprep.subr.mxu0 0.0
        %4054 = vmatpush1.msra.mxu0 0.0
        %4055 = vmatprep.subr.mxu0 0.0
        %4056 = vmatpush1.msra.mxu0 0.0
        %4057 = vmatprep.mubr.f32.mxu0 0.0
        %v4058 = vand.u32 %v3810, 4294901760
        %v4059 = vsub.f32 %v3810, %v4058
        %4060 = vmatmul.mubr.f32.gmra.mrb[0].mxu0 %v4059
        %v4061 = vpop.f32.mrb[0].mxu0
        %v4062 = vadd.f32 %v3980, %v4061
        %v4063 = vpop.f32.mrb[0].mxu0
        %4064 = vmatprep.mubr.f32.mxu0 0.0
        %v4065 = vand.u32 %v3813, 4294901760
        %v4066 = vsub.f32 %v3813, %v4065
        %4067 = vmatmul.mubr.f32.gmra.mrb[0].mxu0 %v4066
        %v4068 = vpop.f32.mrb[0].mxu0
        %v4069 = vadd.f32 %v3986, %v4068
        %v4070 = vpop.f32.mrb[0].mxu0
        %4071 = vdwg.mxu0
        %4072 = vmatprep.subr.mxu0 0.0
        %v4073 = vand.u32 %v2760, 4294901760
        %4074 = vmatpush1.msra.mxu0 %v4073
        %4075 = vmatprep.subr.mxu0 0.0
        %v4076 = vand.u32 %v2761, 4294901760
        %4077 = vmatpush1.msra.mxu0 %v4076
        %4078 = vmatprep.subr.mxu0 0.0
        %4079 = vmatpush1.msra.mxu0 0.0
        %4080 = vmatprep.subr.mxu0 0.0
        %4081 = vmatpush1.msra.mxu0 0.0
        %4082 = vmatprep.subr.mxu0 0.0
        %4083 = vmatpush1.msra.mxu0 0.0
        %4084 = vmatprep.subr.mxu0 0.0
        %4085 = vmatpush1.msra.mxu0 0.0
        %4086 = vmatprep.subr.mxu0 0.0
        %4087 = vmatpush1.msra.mxu0 0.0
        %4088 = vmatprep.subr.mxu0 0.0
        %4089 = vmatpush1.msra.mxu0 0.0
        %4090 = vmatprep.subr.mxu0 0.0
        %4091 = vmatpush1.msra.mxu0 0.0
        %4092 = vmatprep.subr.mxu0 0.0
        %4093 = vmatpush1.msra.mxu0 0.0
        %4094 = vmatprep.subr.mxu0 0.0
        %4095 = vmatpush1.msra.mxu0 0.0
        %4096 = vmatprep.subr.mxu0 0.0
        %4097 = vmatpush1.msra.mxu0 0.0
        %4098 = vmatprep.subr.mxu0 0.0
        %4099 = vmatpush1.msra.mxu0 0.0
        %4100 = vmatprep.subr.mxu0 0.0
        %4101 = vmatpush1.msra.mxu0 0.0
        %4102 = vmatprep.subr.mxu0 0.0
        %4103 = vmatpush1.msra.mxu0 0.0
        %4104 = vmatprep.subr.mxu0 0.0
        %4105 = vmatpush1.msra.mxu0 0.0
        %4106 = vmatprep.subr.mxu0 0.0
        %4107 = vmatpush1.msra.mxu0 0.0
        %4108 = vmatprep.subr.mxu0 0.0
        %4109 = vmatpush1.msra.mxu0 0.0
        %4110 = vmatprep.subr.mxu0 0.0
        %4111 = vmatpush1.msra.mxu0 0.0
        %4112 = vmatprep.subr.mxu0 0.0
        %4113 = vmatpush1.msra.mxu0 0.0
        %4114 = vmatprep.subr.mxu0 0.0
        %4115 = vmatpush1.msra.mxu0 0.0
        %4116 = vmatprep.subr.mxu0 0.0
        %4117 = vmatpush1.msra.mxu0 0.0
        %4118 = vmatprep.subr.mxu0 0.0
        %4119 = vmatpush1.msra.mxu0 0.0
        %4120 = vmatprep.subr.mxu0 0.0
        %4121 = vmatpush1.msra.mxu0 0.0
        %4122 = vmatprep.subr.mxu0 0.0
        %4123 = vmatpush1.msra.mxu0 0.0
        %4124 = vmatprep.subr.mxu0 0.0
        %4125 = vmatpush1.msra.mxu0 0.0
        %4126 = vmatprep.subr.mxu0 0.0
        %4127 = vmatpush1.msra.mxu0 0.0
        %4128 = vmatprep.subr.mxu0 0.0
        %4129 = vmatpush1.msra.mxu0 0.0
        %4130 = vmatprep.subr.mxu0 0.0
        %4131 = vmatpush1.msra.mxu0 0.0
        %4132 = vmatprep.subr.mxu0 0.0
        %4133 = vmatpush1.msra.mxu0 0.0
        %4134 = vmatprep.subr.mxu0 0.0
        %4135 = vmatpush1.msra.mxu0 0.0
        %4136 = vmatprep.subr.mxu0 0.0
        %4137 = vmatpush1.msra.mxu0 0.0
        %4138 = vmatprep.mubr.f32.mxu0 0.0
        %v4139 = vand.u32 %v3810, 4294901760
        %v4140 = vsub.f32 %v3810, %v4139
        %v4141 = vand.u32 %v4140, 4294901760
        %4142 = vmatmul.mubr.f32.gmra.mrb[0].mxu0 %v4141
        %v4143 = vpop.f32.mrb[0].mxu0
        %v4144 = vadd.f32 %v4062, %v4143
        %v4145 = vpop.f32.mrb[0].mxu0
        %4146 = vmatprep.mubr.f32.mxu0 0.0
        %v4147 = vand.u32 %v3813, 4294901760
        %v4148 = vsub.f32 %v3813, %v4147
        %v4149 = vand.u32 %v4148, 4294901760
        %4150 = vmatmul.mubr.f32.gmra.mrb[0].mxu0 %v4149
        %v4151 = vpop.f32.mrb[0].mxu0
        %v4152 = vadd.f32 %v4069, %v4151
        %v4153 = vpop.f32.mrb[0].mxu0
        %4154 = vdwg.mxu0
        %4155 = vmatprep.subr.mxu0 0.0
        %v4156 = vand.u32 %v2760, 4294901760
        %v4157 = vsub.f32 %v2760, %v4156
        %v4158 = vand.u32 %v4157, 4294901760
        %4159 = vmatpush1.msra.mxu0 %v4158
        %4160 = vmatprep.subr.mxu0 0.0
        %v4161 = vand.u32 %v2761, 4294901760
        %v4162 = vsub.f32 %v2761, %v4161
        %v4163 = vand.u32 %v4162, 4294901760
        %4164 = vmatpush1.msra.mxu0 %v4163
        %4165 = vmatprep.subr.mxu0 0.0
        %4166 = vmatpush1.msra.mxu0 0.0
        %4167 = vmatprep.subr.mxu0 0.0
        %4168 = vmatpush1.msra.mxu0 0.0
        %4169 = vmatprep.subr.mxu0 0.0
        %4170 = vmatpush1.msra.mxu0 0.0
        %4171 = vmatprep.subr.mxu0 0.0
        %4172 = vmatpush1.msra.mxu0 0.0
        %4173 = vmatprep.subr.mxu0 0.0
        %4174 = vmatpush1.msra.mxu0 0.0
        %4175 = vmatprep.subr.mxu0 0.0
        %4176 = vmatpush1.msra.mxu0 0.0
        %4177 = vmatprep.subr.mxu0 0.0
        %4178 = vmatpush1.msra.mxu0 0.0
        %4179 = vmatprep.subr.mxu0 0.0
        %4180 = vmatpush1.msra.mxu0 0.0
        %4181 = vmatprep.subr.mxu0 0.0
        %4182 = vmatpush1.msra.mxu0 0.0
        %4183 = vmatprep.subr.mxu0 0.0
        %4184 = vmatpush1.msra.mxu0 0.0
        %4185 = vmatprep.subr.mxu0 0.0
        %4186 = vmatpush1.msra.mxu0 0.0
        %4187 = vmatprep.subr.mxu0 0.0
        %4188 = vmatpush1.msra.mxu0 0.0
        %4189 = vmatprep.subr.mxu0 0.0
        %4190 = vmatpush1.msra.mxu0 0.0
        %4191 = vmatprep.subr.mxu0 0.0
        %4192 = vmatpush1.msra.mxu0 0.0
        %4193 = vmatprep.subr.mxu0 0.0
        %4194 = vmatpush1.msra.mxu0 0.0
        %4195 = vmatprep.subr.mxu0 0.0
        %4196 = vmatpush1.msra.mxu0 0.0
        %4197 = vmatprep.subr.mxu0 0.0
        %4198 = vmatpush1.msra.mxu0 0.0
        %4199 = vmatprep.subr.mxu0 0.0
        %4200 = vmatpush1.msra.mxu0 0.0
        %4201 = vmatprep.subr.mxu0 0.0
        %4202 = vmatpush1.msra.mxu0 0.0
        %4203 = vmatprep.subr.mxu0 0.0
        %4204 = vmatpush1.msra.mxu0 0.0
        %4205 = vmatprep.subr.mxu0 0.0
        %4206 = vmatpush1.msra.mxu0 0.0
        %4207 = vmatprep.subr.mxu0 0.0
        %4208 = vmatpush1.msra.mxu0 0.0
        %4209 = vmatprep.subr.mxu0 0.0
        %4210 = vmatpush1.msra.mxu0 0.0
        %4211 = vmatprep.subr.mxu0 0.0
        %4212 = vmatpush1.msra.mxu0 0.0
        %4213 = vmatprep.subr.mxu0 0.0
        %4214 = vmatpush1.msra.mxu0 0.0
        %4215 = vmatprep.subr.mxu0 0.0
        %4216 = vmatpush1.msra.mxu0 0.0
        %4217 = vmatprep.subr.mxu0 0.0
        %4218 = vmatpush1.msra.mxu0 0.0
        %4219 = vmatprep.subr.mxu0 0.0
        %4220 = vmatpush1.msra.mxu0 0.0
        %4221 = vmatprep.subr.mxu0 0.0
        %4222 = vmatpush1.msra.mxu0 0.0
        %4223 = vmatprep.subr.mxu0 0.0
        %4224 = vmatpush1.msra.mxu0 0.0
        %4225 = vmatprep.mubr.f32.mxu0 0.0
        %v4226 = vand.u32 %v3810, 4294901760
        %4227 = vmatmul.mubr.f32.gmra.mrb[0].mxu0 %v4226
        %v4228 = vpop.f32.mrb[0].mxu0
        %v4229 = vadd.f32 %v4144, %v4228
        %v4230 = vpop.f32.mrb[0].mxu0
        %4231 = vmatprep.mubr.f32.mxu0 0.0
        %v4232 = vand.u32 %v3813, 4294901760
        %4233 = vmatmul.mubr.f32.gmra.mrb[0].mxu0 %v4232
        %v4234 = vpop.f32.mrb[0].mxu0
        %v4235 = vadd.f32 %v4152, %v4234
        %v4236 = vpop.f32.mrb[0].mxu0
        %4237 = vdwg.mxu0
        %4238 = vmatprep.subr.mxu0 0.0
        %v4239 = vand.u32 %v2760, 4294901760
        %4240 = vmatpush1.msra.mxu0 %v4239
        %4241 = vmatprep.subr.mxu0 0.0
        %v4242 = vand.u32 %v2761, 4294901760
        %4243 = vmatpush1.msra.mxu0 %v4242
        %4244 = vmatprep.subr.mxu0 0.0
        %4245 = vmatpush1.msra.mxu0 0.0
        %4246 = vmatprep.subr.mxu0 0.0
        %4247 = vmatpush1.msra.mxu0 0.0
        %4248 = vmatprep.subr.mxu0 0.0
        %4249 = vmatpush1.msra.mxu0 0.0
        %4250 = vmatprep.subr.mxu0 0.0
        %4251 = vmatpush1.msra.mxu0 0.0
        %4252 = vmatprep.subr.mxu0 0.0
        %4253 = vmatpush1.msra.mxu0 0.0
        %4254 = vmatprep.subr.mxu0 0.0
        %4255 = vmatpush1.msra.mxu0 0.0
        %4256 = vmatprep.subr.mxu0 0.0
        %4257 = vmatpush1.msra.mxu0 0.0
        %4258 = vmatprep.subr.mxu0 0.0
        %4259 = vmatpush1.msra.mxu0 0.0
        %4260 = vmatprep.subr.mxu0 0.0
        %4261 = vmatpush1.msra.mxu0 0.0
        %4262 = vmatprep.subr.mxu0 0.0
        %4263 = vmatpush1.msra.mxu0 0.0
        %4264 = vmatprep.subr.mxu0 0.0
        %4265 = vmatpush1.msra.mxu0 0.0
        %4266 = vmatprep.subr.mxu0 0.0
        %4267 = vmatpush1.msra.mxu0 0.0
        %4268 = vmatprep.subr.mxu0 0.0
        %4269 = vmatpush1.msra.mxu0 0.0
        %4270 = vmatprep.subr.mxu0 0.0
        %4271 = vmatpush1.msra.mxu0 0.0
        %4272 = vmatprep.subr.mxu0 0.0
        %4273 = vmatpush1.msra.mxu0 0.0
        %4274 = vmatprep.subr.mxu0 0.0
        %4275 = vmatpush1.msra.mxu0 0.0
        %4276 = vmatprep.subr.mxu0 0.0
        %4277 = vmatpush1.msra.mxu0 0.0
        %4278 = vmatprep.subr.mxu0 0.0
        %4279 = vmatpush1.msra.mxu0 0.0
        %4280 = vmatprep.subr.mxu0 0.0
        %4281 = vmatpush1.msra.mxu0 0.0
        %4282 = vmatprep.subr.mxu0 0.0
        %4283 = vmatpush1.msra.mxu0 0.0
        %4284 = vmatprep.subr.mxu0 0.0
        %4285 = vmatpush1.msra.mxu0 0.0
        %4286 = vmatprep.subr.mxu0 0.0
        %4287 = vmatpush1.msra.mxu0 0.0
        %4288 = vmatprep.subr.mxu0 0.0
        %4289 = vmatpush1.msra.mxu0 0.0
        %4290 = vmatprep.subr.mxu0 0.0
        %4291 = vmatpush1.msra.mxu0 0.0
        %4292 = vmatprep.subr.mxu0 0.0
        %4293 = vmatpush1.msra.mxu0 0.0
        %4294 = vmatprep.subr.mxu0 0.0
        %4295 = vmatpush1.msra.mxu0 0.0
        %4296 = vmatprep.subr.mxu0 0.0
        %4297 = vmatpush1.msra.mxu0 0.0
        %4298 = vmatprep.subr.mxu0 0.0
        %4299 = vmatpush1.msra.mxu0 0.0
        %4300 = vmatprep.subr.mxu0 0.0
        %4301 = vmatpush1.msra.mxu0 0.0
        %4302 = vmatprep.subr.mxu0 0.0
        %4303 = vmatpush1.msra.mxu0 0.0
        %4304 = vmatprep.mubr.f32.mxu0 0.0
        %v4305 = vand.u32 %v3810, 4294901760
        %4306 = vmatmul.mubr.f32.gmra.mrb[0].mxu0 %v4305
        %v4307 = vpop.f32.mrb[0].mxu0
        %v4308 = vadd.f32 %v4229, %v4307
        %v4309 = vpop.f32.mrb[0].mxu0
        %4310 = vmatprep.mubr.f32.mxu0 0.0
        %v4311 = vand.u32 %v3813, 4294901760
        %4312 = vmatmul.mubr.f32.gmra.mrb[0].mxu0 %v4311
        %v4313 = vpop.f32.mrb[0].mxu0
        %v4314 = vadd.f32 %v4235, %v4313
        %v4315 = vpop.f32.mrb[0].mxu0
        %4316 = vdwg.mxu0
        %v4317 = vld [vmem:[%s3 + $0x2] sm:$0x1]
        %v4318 = vlaneseq
        %v4319 = vshrl.u32 %v4318, 7
        %v4320 = vsub.s32 0, %v4319
        %v4321 = vrot.slane %v4317, %v4320
        %v4322 = vmul.f32 %v1136, %v4321
        %v4323 = vmul.f32 %v1137, %v4321
        %v4325 = vsel %vm601, %v4322, 0
        %v4328 = vsel %vm601, %v4323, 0
        %4330 = vmatprep.subr.mxu0 0.0
        %v4331 = vand.u32 %v2230, 4294901760
        %4332 = vmatpush1.xpose.msra.mxu0 %v4331
        %4333 = vmatprep.subr.mxu0 0.0
        %v4334 = vand.u32 %v2233, 4294901760
        %4335 = vmatpush1.xpose.msra.mxu0 %v4334
        %4336 = vmatprep.subr.mxu0 0.0
        %4337 = vmatpush1.xpose.msra.mxu0 0.0
        %4338 = vmatprep.subr.mxu0 0.0
        %4339 = vmatpush1.xpose.msra.mxu0 0.0
        %4340 = vmatprep.subr.mxu0 0.0
        %4341 = vmatpush1.xpose.msra.mxu0 0.0
        %4342 = vmatprep.subr.mxu0 0.0
        %4343 = vmatpush1.xpose.msra.mxu0 0.0
        %4344 = vmatprep.subr.mxu0 0.0
        %4345 = vmatpush1.xpose.msra.mxu0 0.0
        %4346 = vmatprep.subr.mxu0 0.0
        %4347 = vmatpush1.xpose.msra.mxu0 0.0
        %4348 = vmatprep.subr.mxu0 0.0
        %4349 = vmatpush1.xpose.msra.mxu0 0.0
        %4350 = vmatprep.subr.mxu0 0.0
        %4351 = vmatpush1.xpose.msra.mxu0 0.0
        %4352 = vmatprep.subr.mxu0 0.0
        %4353 = vmatpush1.xpose.msra.mxu0 0.0
        %4354 = vmatprep.subr.mxu0 0.0
        %4355 = vmatpush1.xpose.msra.mxu0 0.0
        %4356 = vmatprep.subr.mxu0 0.0
        %4357 = vmatpush1.xpose.msra.mxu0 0.0
        %4358 = vmatprep.subr.mxu0 0.0
        %4359 = vmatpush1.xpose.msra.mxu0 0.0
        %4360 = vmatprep.subr.mxu0 0.0
        %4361 = vmatpush1.xpose.msra.mxu0 0.0
        %4362 = vmatprep.subr.mxu0 0.0
        %4363 = vmatpush1.xpose.msra.mxu0 0.0
        %4364 = vmatprep.subr.mxu0 0.0
        %4365 = vmatpush1.xpose.msra.mxu0 0.0
        %4366 = vmatprep.subr.mxu0 0.0
        %4367 = vmatpush1.xpose.msra.mxu0 0.0
        %4368 = vmatprep.subr.mxu0 0.0
        %4369 = vmatpush1.xpose.msra.mxu0 0.0
        %4370 = vmatprep.subr.mxu0 0.0
        %4371 = vmatpush1.xpose.msra.mxu0 0.0
        %4372 = vmatprep.subr.mxu0 0.0
        %4373 = vmatpush1.xpose.msra.mxu0 0.0
        %4374 = vmatprep.subr.mxu0 0.0
        %4375 = vmatpush1.xpose.msra.mxu0 0.0
        %4376 = vmatprep.subr.mxu0 0.0
        %4377 = vmatpush1.xpose.msra.mxu0 0.0
        %4378 = vmatprep.subr.mxu0 0.0
        %4379 = vmatpush1.xpose.msra.mxu0 0.0
        %4380 = vmatprep.subr.mxu0 0.0
        %4381 = vmatpush1.xpose.msra.mxu0 0.0
        %4382 = vmatprep.subr.mxu0 0.0
        %4383 = vmatpush1.xpose.msra.mxu0 0.0
        %4384 = vmatprep.subr.mxu0 0.0
        %4385 = vmatpush1.xpose.msra.mxu0 0.0
        %4386 = vmatprep.subr.mxu0 0.0
        %4387 = vmatpush1.xpose.msra.mxu0 0.0
        %4388 = vmatprep.subr.mxu0 0.0
        %4389 = vmatpush1.xpose.msra.mxu0 0.0
        %4390 = vmatprep.subr.mxu0 0.0
        %4391 = vmatpush1.xpose.msra.mxu0 0.0
        %4392 = vmatprep.subr.mxu0 0.0
        %4393 = vmatpush1.xpose.msra.mxu0 0.0
        %4394 = vmatprep.subr.mxu0 0.0
        %4395 = vmatpush1.xpose.msra.mxu0 0.0
        %4396 = vmatprep.mubr.f32.mxu0 0.0
        %v4397 = vand.u32 %v4325, 4294901760
        %v4398 = vsub.f32 %v4325, %v4397
        %v4399 = vand.u32 %v4398, 4294901760
        %v4400 = vsub.f32 %v4398, %v4399
        %v4401 = vand.u32 %v4400, 4294901760
        %4402 = vmatmul.mubr.f32.gmra.mrb[0].mxu0 %v4401
        %v4403 = vpop.f32.mrb[0].mxu0
        %v4404 = vadd.f32 %v587, %v4403
        %v4405 = vpop.f32.mrb[0].mxu0
        %4406 = vmatprep.mubr.f32.mxu0 0.0
        %v4407 = vand.u32 %v4328, 4294901760
        %v4408 = vsub.f32 %v4328, %v4407
        %v4409 = vand.u32 %v4408, 4294901760
        %v4410 = vsub.f32 %v4408, %v4409
        %v4411 = vand.u32 %v4410, 4294901760
        %4412 = vmatmul.mubr.f32.gmra.mrb[0].mxu0 %v4411
        %v4413 = vpop.f32.mrb[0].mxu0
        %v4414 = vadd.f32 %v588, %v4413
        %v4415 = vpop.f32.mrb[0].mxu0
        %4416 = vdwg.mxu0
        %4417 = vmatprep.subr.mxu0 0.0
        %v4418 = vand.u32 %v2230, 4294901760
        %v4419 = vsub.f32 %v2230, %v4418
        %v4420 = vand.u32 %v4419, 4294901760
        %v4421 = vsub.f32 %v4419, %v4420
        %v4422 = vand.u32 %v4421, 4294901760
        %4423 = vmatpush1.xpose.msra.mxu0 %v4422
        %4424 = vmatprep.subr.mxu0 0.0
        %v4425 = vand.u32 %v2233, 4294901760
        %v4426 = vsub.f32 %v2233, %v4425
        %v4427 = vand.u32 %v4426, 4294901760
        %v4428 = vsub.f32 %v4426, %v4427
        %v4429 = vand.u32 %v4428, 4294901760
        %4430 = vmatpush1.xpose.msra.mxu0 %v4429
        %4431 = vmatprep.subr.mxu0 0.0
        %4432 = vmatpush1.xpose.msra.mxu0 0.0
        %4433 = vmatprep.subr.mxu0 0.0
        %4434 = vmatpush1.xpose.msra.mxu0 0.0
        %4435 = vmatprep.subr.mxu0 0.0
        %4436 = vmatpush1.xpose.msra.mxu0 0.0
        %4437 = vmatprep.subr.mxu0 0.0
        %4438 = vmatpush1.xpose.msra.mxu0 0.0
        %4439 = vmatprep.subr.mxu0 0.0
        %4440 = vmatpush1.xpose.msra.mxu0 0.0
        %4441 = vmatprep.subr.mxu0 0.0
        %4442 = vmatpush1.xpose.msra.mxu0 0.0
        %4443 = vmatprep.subr.mxu0 0.0
        %4444 = vmatpush1.xpose.msra.mxu0 0.0
        %4445 = vmatprep.subr.mxu0 0.0
        %4446 = vmatpush1.xpose.msra.mxu0 0.0
        %4447 = vmatprep.subr.mxu0 0.0
        %4448 = vmatpush1.xpose.msra.mxu0 0.0
        %4449 = vmatprep.subr.mxu0 0.0
        %4450 = vmatpush1.xpose.msra.mxu0 0.0
        %4451 = vmatprep.subr.mxu0 0.0
        %4452 = vmatpush1.xpose.msra.mxu0 0.0
        %4453 = vmatprep.subr.mxu0 0.0
        %4454 = vmatpush1.xpose.msra.mxu0 0.0
        %4455 = vmatprep.subr.mxu0 0.0
        %4456 = vmatpush1.xpose.msra.mxu0 0.0
        %4457 = vmatprep.subr.mxu0 0.0
        %4458 = vmatpush1.xpose.msra.mxu0 0.0
        %4459 = vmatprep.subr.mxu0 0.0
        %4460 = vmatpush1.xpose.msra.mxu0 0.0
        %4461 = vmatprep.subr.mxu0 0.0
        %4462 = vmatpush1.xpose.msra.mxu0 0.0
        %4463 = vmatprep.subr.mxu0 0.0
        %4464 = vmatpush1.xpose.msra.mxu0 0.0
        %4465 = vmatprep.subr.mxu0 0.0
        %4466 = vmatpush1.xpose.msra.mxu0 0.0
        %4467 = vmatprep.subr.mxu0 0.0
        %4468 = vmatpush1.xpose.msra.mxu0 0.0
        %4469 = vmatprep.subr.mxu0 0.0
        %4470 = vmatpush1.xpose.msra.mxu0 0.0
        %4471 = vmatprep.subr.mxu0 0.0
        %4472 = vmatpush1.xpose.msra.mxu0 0.0
        %4473 = vmatprep.subr.mxu0 0.0
        %4474 = vmatpush1.xpose.msra.mxu0 0.0
        %4475 = vmatprep.subr.mxu0 0.0
        %4476 = vmatpush1.xpose.msra.mxu0 0.0
        %4477 = vmatprep.subr.mxu0 0.0
        %4478 = vmatpush1.xpose.msra.mxu0 0.0
        %4479 = vmatprep.subr.mxu0 0.0
        %4480 = vmatpush1.xpose.msra.mxu0 0.0
        %4481 = vmatprep.subr.mxu0 0.0
        %4482 = vmatpush1.xpose.msra.mxu0 0.0
        %4483 = vmatprep.subr.mxu0 0.0
        %4484 = vmatpush1.xpose.msra.mxu0 0.0
        %4485 = vmatprep.subr.mxu0 0.0
        %4486 = vmatpush1.xpose.msra.mxu0 0.0
        %4487 = vmatprep.subr.mxu0 0.0
        %4488 = vmatpush1.xpose.msra.mxu0 0.0
        %4489 = vmatprep.subr.mxu0 0.0
        %4490 = vmatpush1.xpose.msra.mxu0 0.0
        %4491 = vmatprep.mubr.f32.mxu0 0.0
        %v4492 = vand.u32 %v4325, 4294901760
        %4493 = vmatmul.mubr.f32.gmra.mrb[0].mxu0 %v4492
        %v4494 = vpop.f32.mrb[0].mxu0
        %v4495 = vadd.f32 %v4404, %v4494
        %v4496 = vpop.f32.mrb[0].mxu0
        %4497 = vmatprep.mubr.f32.mxu0 0.0
        %v4498 = vand.u32 %v4328, 4294901760
        %4499 = vmatmul.mubr.f32.gmra.mrb[0].mxu0 %v4498
        %v4500 = vpop.f32.mrb[0].mxu0
        %v4501 = vadd.f32 %v4414, %v4500
        %v4502 = vpop.f32.mrb[0].mxu0
        %4503 = vdwg.mxu0
        %4504 = vmatprep.subr.mxu0 0.0
        %v4505 = vand.u32 %v2230, 4294901760
        %v4506 = vsub.f32 %v2230, %v4505
        %4507 = vmatpush1.xpose.msra.mxu0 %v4506
        %4508 = vmatprep.subr.mxu0 0.0
        %v4509 = vand.u32 %v2233, 4294901760
        %v4510 = vsub.f32 %v2233, %v4509
        %4511 = vmatpush1.xpose.msra.mxu0 %v4510
        %4512 = vmatprep.subr.mxu0 0.0
        %4513 = vmatpush1.xpose.msra.mxu0 0.0
        %4514 = vmatprep.subr.mxu0 0.0
        %4515 = vmatpush1.xpose.msra.mxu0 0.0
        %4516 = vmatprep.subr.mxu0 0.0
        %4517 = vmatpush1.xpose.msra.mxu0 0.0
        %4518 = vmatprep.subr.mxu0 0.0
        %4519 = vmatpush1.xpose.msra.mxu0 0.0
        %4520 = vmatprep.subr.mxu0 0.0
        %4521 = vmatpush1.xpose.msra.mxu0 0.0
        %4522 = vmatprep.subr.mxu0 0.0
        %4523 = vmatpush1.xpose.msra.mxu0 0.0
        %4524 = vmatprep.subr.mxu0 0.0
        %4525 = vmatpush1.xpose.msra.mxu0 0.0
        %4526 = vmatprep.subr.mxu0 0.0
        %4527 = vmatpush1.xpose.msra.mxu0 0.0
        %4528 = vmatprep.subr.mxu0 0.0
        %4529 = vmatpush1.xpose.msra.mxu0 0.0
        %4530 = vmatprep.subr.mxu0 0.0
        %4531 = vmatpush1.xpose.msra.mxu0 0.0
        %4532 = vmatprep.subr.mxu0 0.0
        %4533 = vmatpush1.xpose.msra.mxu0 0.0
        %4534 = vmatprep.subr.mxu0 0.0
        %4535 = vmatpush1.xpose.msra.mxu0 0.0
        %4536 = vmatprep.subr.mxu0 0.0
        %4537 = vmatpush1.xpose.msra.mxu0 0.0
        %4538 = vmatprep.subr.mxu0 0.0
        %4539 = vmatpush1.xpose.msra.mxu0 0.0
        %4540 = vmatprep.subr.mxu0 0.0
        %4541 = vmatpush1.xpose.msra.mxu0 0.0
        %4542 = vmatprep.subr.mxu0 0.0
        %4543 = vmatpush1.xpose.msra.mxu0 0.0
        %4544 = vmatprep.subr.mxu0 0.0
        %4545 = vmatpush1.xpose.msra.mxu0 0.0
        %4546 = vmatprep.subr.mxu0 0.0
        %4547 = vmatpush1.xpose.msra.mxu0 0.0
        %4548 = vmatprep.subr.mxu0 0.0
        %4549 = vmatpush1.xpose.msra.mxu0 0.0
        %4550 = vmatprep.subr.mxu0 0.0
        %4551 = vmatpush1.xpose.msra.mxu0 0.0
        %4552 = vmatprep.subr.mxu0 0.0
        %4553 = vmatpush1.xpose.msra.mxu0 0.0
        %4554 = vmatprep.subr.mxu0 0.0
        %4555 = vmatpush1.xpose.msra.mxu0 0.0
        %4556 = vmatprep.subr.mxu0 0.0
        %4557 = vmatpush1.xpose.msra.mxu0 0.0
        %4558 = vmatprep.subr.mxu0 0.0
        %4559 = vmatpush1.xpose.msra.mxu0 0.0
        %4560 = vmatprep.subr.mxu0 0.0
        %4561 = vmatpush1.xpose.msra.mxu0 0.0
        %4562 = vmatprep.subr.mxu0 0.0
        %4563 = vmatpush1.xpose.msra.mxu0 0.0
        %4564 = vmatprep.subr.mxu0 0.0
        %4565 = vmatpush1.xpose.msra.mxu0 0.0
        %4566 = vmatprep.subr.mxu0 0.0
        %4567 = vmatpush1.xpose.msra.mxu0 0.0
        %4568 = vmatprep.subr.mxu0 0.0
        %4569 = vmatpush1.xpose.msra.mxu0 0.0
        %4570 = vmatprep.subr.mxu0 0.0
        %4571 = vmatpush1.xpose.msra.mxu0 0.0
        %4572 = vmatprep.mubr.f32.mxu0 0.0
        %v4573 = vand.u32 %v4325, 4294901760
        %v4574 = vsub.f32 %v4325, %v4573
        %4575 = vmatmul.mubr.f32.gmra.mrb[0].mxu0 %v4574
        %v4576 = vpop.f32.mrb[0].mxu0
        %v4577 = vadd.f32 %v4495, %v4576
        %v4578 = vpop.f32.mrb[0].mxu0
        %4579 = vmatprep.mubr.f32.mxu0 0.0
        %v4580 = vand.u32 %v4328, 4294901760
        %v4581 = vsub.f32 %v4328, %v4580
        %4582 = vmatmul.mubr.f32.gmra.mrb[0].mxu0 %v4581
        %v4583 = vpop.f32.mrb[0].mxu0
        %v4584 = vadd.f32 %v4501, %v4583
        %v4585 = vpop.f32.mrb[0].mxu0
        %4586 = vdwg.mxu0
        %4587 = vmatprep.subr.mxu0 0.0
        %v4588 = vand.u32 %v2230, 4294901760
        %4589 = vmatpush1.xpose.msra.mxu0 %v4588
        %4590 = vmatprep.subr.mxu0 0.0
        %v4591 = vand.u32 %v2233, 4294901760
        %4592 = vmatpush1.xpose.msra.mxu0 %v4591
        %4593 = vmatprep.subr.mxu0 0.0
        %4594 = vmatpush1.xpose.msra.mxu0 0.0
        %4595 = vmatprep.subr.mxu0 0.0
        %4596 = vmatpush1.xpose.msra.mxu0 0.0
        %4597 = vmatprep.subr.mxu0 0.0
        %4598 = vmatpush1.xpose.msra.mxu0 0.0
        %4599 = vmatprep.subr.mxu0 0.0
        %4600 = vmatpush1.xpose.msra.mxu0 0.0
        %4601 = vmatprep.subr.mxu0 0.0
        %4602 = vmatpush1.xpose.msra.mxu0 0.0
        %4603 = vmatprep.subr.mxu0 0.0
        %4604 = vmatpush1.xpose.msra.mxu0 0.0
        %4605 = vmatprep.subr.mxu0 0.0
        %4606 = vmatpush1.xpose.msra.mxu0 0.0
        %4607 = vmatprep.subr.mxu0 0.0
        %4608 = vmatpush1.xpose.msra.mxu0 0.0
        %4609 = vmatprep.subr.mxu0 0.0
        %4610 = vmatpush1.xpose.msra.mxu0 0.0
        %4611 = vmatprep.subr.mxu0 0.0
        %4612 = vmatpush1.xpose.msra.mxu0 0.0
        %4613 = vmatprep.subr.mxu0 0.0
        %4614 = vmatpush1.xpose.msra.mxu0 0.0
        %4615 = vmatprep.subr.mxu0 0.0
        %4616 = vmatpush1.xpose.msra.mxu0 0.0
        %4617 = vmatprep.subr.mxu0 0.0
        %4618 = vmatpush1.xpose.msra.mxu0 0.0
        %4619 = vmatprep.subr.mxu0 0.0
        %4620 = vmatpush1.xpose.msra.mxu0 0.0
        %4621 = vmatprep.subr.mxu0 0.0
        %4622 = vmatpush1.xpose.msra.mxu0 0.0
        %4623 = vmatprep.subr.mxu0 0.0
        %4624 = vmatpush1.xpose.msra.mxu0 0.0
        %4625 = vmatprep.subr.mxu0 0.0
        %4626 = vmatpush1.xpose.msra.mxu0 0.0
        %4627 = vmatprep.subr.mxu0 0.0
        %4628 = vmatpush1.xpose.msra.mxu0 0.0
        %4629 = vmatprep.subr.mxu0 0.0
        %4630 = vmatpush1.xpose.msra.mxu0 0.0
        %4631 = vmatprep.subr.mxu0 0.0
        %4632 = vmatpush1.xpose.msra.mxu0 0.0
        %4633 = vmatprep.subr.mxu0 0.0
        %4634 = vmatpush1.xpose.msra.mxu0 0.0
        %4635 = vmatprep.subr.mxu0 0.0
        %4636 = vmatpush1.xpose.msra.mxu0 0.0
        %4637 = vmatprep.subr.mxu0 0.0
        %4638 = vmatpush1.xpose.msra.mxu0 0.0
        %4639 = vmatprep.subr.mxu0 0.0
        %4640 = vmatpush1.xpose.msra.mxu0 0.0
        %4641 = vmatprep.subr.mxu0 0.0
        %4642 = vmatpush1.xpose.msra.mxu0 0.0
        %4643 = vmatprep.subr.mxu0 0.0
        %4644 = vmatpush1.xpose.msra.mxu0 0.0
        %4645 = vmatprep.subr.mxu0 0.0
        %4646 = vmatpush1.xpose.msra.mxu0 0.0
        %4647 = vmatprep.subr.mxu0 0.0
        %4648 = vmatpush1.xpose.msra.mxu0 0.0
        %4649 = vmatprep.subr.mxu0 0.0
        %4650 = vmatpush1.xpose.msra.mxu0 0.0
        %4651 = vmatprep.subr.mxu0 0.0
        %4652 = vmatpush1.xpose.msra.mxu0 0.0
        %4653 = vmatprep.mubr.f32.mxu0 0.0
        %v4654 = vand.u32 %v4325, 4294901760
        %v4655 = vsub.f32 %v4325, %v4654
        %v4656 = vand.u32 %v4655, 4294901760
        %4657 = vmatmul.mubr.f32.gmra.mrb[0].mxu0 %v4656
        %v4658 = vpop.f32.mrb[0].mxu0
        %v4659 = vadd.f32 %v4577, %v4658
        %v4660 = vpop.f32.mrb[0].mxu0
        %4661 = vmatprep.mubr.f32.mxu0 0.0
        %v4662 = vand.u32 %v4328, 4294901760
        %v4663 = vsub.f32 %v4328, %v4662
        %v4664 = vand.u32 %v4663, 4294901760
        %4665 = vmatmul.mubr.f32.gmra.mrb[0].mxu0 %v4664
        %v4666 = vpop.f32.mrb[0].mxu0
        %v4667 = vadd.f32 %v4584, %v4666
        %v4668 = vpop.f32.mrb[0].mxu0
        %4669 = vdwg.mxu0
        %4670 = vmatprep.subr.mxu0 0.0
        %v4671 = vand.u32 %v2230, 4294901760
        %v4672 = vsub.f32 %v2230, %v4671
        %v4673 = vand.u32 %v4672, 4294901760
        %4674 = vmatpush1.xpose.msra.mxu0 %v4673
        %4675 = vmatprep.subr.mxu0 0.0
        %v4676 = vand.u32 %v2233, 4294901760
        %v4677 = vsub.f32 %v2233, %v4676
        %v4678 = vand.u32 %v4677, 4294901760
        %4679 = vmatpush1.xpose.msra.mxu0 %v4678
        %4680 = vmatprep.subr.mxu0 0.0
        %4681 = vmatpush1.xpose.msra.mxu0 0.0
        %4682 = vmatprep.subr.mxu0 0.0
        %4683 = vmatpush1.xpose.msra.mxu0 0.0
        %4684 = vmatprep.subr.mxu0 0.0
        %4685 = vmatpush1.xpose.msra.mxu0 0.0
        %4686 = vmatprep.subr.mxu0 0.0
        %4687 = vmatpush1.xpose.msra.mxu0 0.0
        %4688 = vmatprep.subr.mxu0 0.0
        %4689 = vmatpush1.xpose.msra.mxu0 0.0
        %4690 = vmatprep.subr.mxu0 0.0
        %4691 = vmatpush1.xpose.msra.mxu0 0.0
        %4692 = vmatprep.subr.mxu0 0.0
        %4693 = vmatpush1.xpose.msra.mxu0 0.0
        %4694 = vmatprep.subr.mxu0 0.0
        %4695 = vmatpush1.xpose.msra.mxu0 0.0
        %4696 = vmatprep.subr.mxu0 0.0
        %4697 = vmatpush1.xpose.msra.mxu0 0.0
        %4698 = vmatprep.subr.mxu0 0.0
        %4699 = vmatpush1.xpose.msra.mxu0 0.0
        %4700 = vmatprep.subr.mxu0 0.0
        %4701 = vmatpush1.xpose.msra.mxu0 0.0
        %4702 = vmatprep.subr.mxu0 0.0
        %4703 = vmatpush1.xpose.msra.mxu0 0.0
        %4704 = vmatprep.subr.mxu0 0.0
        %4705 = vmatpush1.xpose.msra.mxu0 0.0
        %4706 = vmatprep.subr.mxu0 0.0
        %4707 = vmatpush1.xpose.msra.mxu0 0.0
        %4708 = vmatprep.subr.mxu0 0.0
        %4709 = vmatpush1.xpose.msra.mxu0 0.0
        %4710 = vmatprep.subr.mxu0 0.0
        %4711 = vmatpush1.xpose.msra.mxu0 0.0
        %4712 = vmatprep.subr.mxu0 0.0
        %4713 = vmatpush1.xpose.msra.mxu0 0.0
        %4714 = vmatprep.subr.mxu0 0.0
        %4715 = vmatpush1.xpose.msra.mxu0 0.0
        %4716 = vmatprep.subr.mxu0 0.0
        %4717 = vmatpush1.xpose.msra.mxu0 0.0
        %4718 = vmatprep.subr.mxu0 0.0
        %4719 = vmatpush1.xpose.msra.mxu0 0.0
        %4720 = vmatprep.subr.mxu0 0.0
        %4721 = vmatpush1.xpose.msra.mxu0 0.0
        %4722 = vmatprep.subr.mxu0 0.0
        %4723 = vmatpush1.xpose.msra.mxu0 0.0
        %4724 = vmatprep.subr.mxu0 0.0
        %4725 = vmatpush1.xpose.msra.mxu0 0.0
        %4726 = vmatprep.subr.mxu0 0.0
        %4727 = vmatpush1.xpose.msra.mxu0 0.0
        %4728 = vmatprep.subr.mxu0 0.0
        %4729 = vmatpush1.xpose.msra.mxu0 0.0
        %4730 = vmatprep.subr.mxu0 0.0
        %4731 = vmatpush1.xpose.msra.mxu0 0.0
        %4732 = vmatprep.subr.mxu0 0.0
        %4733 = vmatpush1.xpose.msra.mxu0 0.0
        %4734 = vmatprep.subr.mxu0 0.0
        %4735 = vmatpush1.xpose.msra.mxu0 0.0
        %4736 = vmatprep.subr.mxu0 0.0
        %4737 = vmatpush1.xpose.msra.mxu0 0.0
        %4738 = vmatprep.subr.mxu0 0.0
        %4739 = vmatpush1.xpose.msra.mxu0 0.0
        %4740 = vmatprep.mubr.f32.mxu0 0.0
        %v4741 = vand.u32 %v4325, 4294901760
        %4742 = vmatmul.mubr.f32.gmra.mrb[0].mxu0 %v4741
        %v4743 = vpop.f32.mrb[0].mxu0
        %v4744 = vadd.f32 %v4659, %v4743
        %v4745 = vpop.f32.mrb[0].mxu0
        %4746 = vmatprep.mubr.f32.mxu0 0.0
        %v4747 = vand.u32 %v4328, 4294901760
        %4748 = vmatmul.mubr.f32.gmra.mrb[0].mxu0 %v4747
        %v4749 = vpop.f32.mrb[0].mxu0
        %v4750 = vadd.f32 %v4667, %v4749
        %v4751 = vpop.f32.mrb[0].mxu0
        %4752 = vdwg.mxu0
        %4753 = vmatprep.subr.mxu0 0.0
        %v4754 = vand.u32 %v2230, 4294901760
        %4755 = vmatpush1.xpose.msra.mxu0 %v4754
        %4756 = vmatprep.subr.mxu0 0.0
        %v4757 = vand.u32 %v2233, 4294901760
        %4758 = vmatpush1.xpose.msra.mxu0 %v4757
        %4759 = vmatprep.subr.mxu0 0.0
        %4760 = vmatpush1.xpose.msra.mxu0 0.0
        %4761 = vmatprep.subr.mxu0 0.0
        %4762 = vmatpush1.xpose.msra.mxu0 0.0
        %4763 = vmatprep.subr.mxu0 0.0
        %4764 = vmatpush1.xpose.msra.mxu0 0.0
        %4765 = vmatprep.subr.mxu0 0.0
        %4766 = vmatpush1.xpose.msra.mxu0 0.0
        %4767 = vmatprep.subr.mxu0 0.0
        %4768 = vmatpush1.xpose.msra.mxu0 0.0
        %4769 = vmatprep.subr.mxu0 0.0
        %4770 = vmatpush1.xpose.msra.mxu0 0.0
        %4771 = vmatprep.subr.mxu0 0.0
        %4772 = vmatpush1.xpose.msra.mxu0 0.0
        %4773 = vmatprep.subr.mxu0 0.0
        %4774 = vmatpush1.xpose.msra.mxu0 0.0
        %4775 = vmatprep.subr.mxu0 0.0
        %4776 = vmatpush1.xpose.msra.mxu0 0.0
        %4777 = vmatprep.subr.mxu0 0.0
        %4778 = vmatpush1.xpose.msra.mxu0 0.0
        %4779 = vmatprep.subr.mxu0 0.0
        %4780 = vmatpush1.xpose.msra.mxu0 0.0
        %4781 = vmatprep.subr.mxu0 0.0
        %4782 = vmatpush1.xpose.msra.mxu0 0.0
        %4783 = vmatprep.subr.mxu0 0.0
        %4784 = vmatpush1.xpose.msra.mxu0 0.0
        %4785 = vmatprep.subr.mxu0 0.0
        %4786 = vmatpush1.xpose.msra.mxu0 0.0
        %4787 = vmatprep.subr.mxu0 0.0
        %4788 = vmatpush1.xpose.msra.mxu0 0.0
        %4789 = vmatprep.subr.mxu0 0.0
        %4790 = vmatpush1.xpose.msra.mxu0 0.0
        %4791 = vmatprep.subr.mxu0 0.0
        %4792 = vmatpush1.xpose.msra.mxu0 0.0
        %4793 = vmatprep.subr.mxu0 0.0
        %4794 = vmatpush1.xpose.msra.mxu0 0.0
        %4795 = vmatprep.subr.mxu0 0.0
        %4796 = vmatpush1.xpose.msra.mxu0 0.0
        %4797 = vmatprep.subr.mxu0 0.0
        %4798 = vmatpush1.xpose.msra.mxu0 0.0
        %4799 = vmatprep.subr.mxu0 0.0
        %4800 = vmatpush1.xpose.msra.mxu0 0.0
        %4801 = vmatprep.subr.mxu0 0.0
        %4802 = vmatpush1.xpose.msra.mxu0 0.0
        %4803 = vmatprep.subr.mxu0 0.0
        %4804 = vmatpush1.xpose.msra.mxu0 0.0
        %4805 = vmatprep.subr.mxu0 0.0
        %4806 = vmatpush1.xpose.msra.mxu0 0.0
        %4807 = vmatprep.subr.mxu0 0.0
        %4808 = vmatpush1.xpose.msra.mxu0 0.0
        %4809 = vmatprep.subr.mxu0 0.0
        %4810 = vmatpush1.xpose.msra.mxu0 0.0
        %4811 = vmatprep.subr.mxu0 0.0
        %4812 = vmatpush1.xpose.msra.mxu0 0.0
        %4813 = vmatprep.subr.mxu0 0.0
        %4814 = vmatpush1.xpose.msra.mxu0 0.0
        %4815 = vmatprep.subr.mxu0 0.0
        %4816 = vmatpush1.xpose.msra.mxu0 0.0
        %4817 = vmatprep.subr.mxu0 0.0
        %4818 = vmatpush1.xpose.msra.mxu0 0.0
        %4819 = vmatprep.mubr.f32.mxu0 0.0
        %v4820 = vand.u32 %v4325, 4294901760
        %4821 = vmatmul.mubr.f32.gmra.mrb[0].mxu0 %v4820
        %v4822 = vpop.f32.mrb[0].mxu0
        %v4823 = vadd.f32 %v4744, %v4822
        %v4824 = vpop.f32.mrb[0].mxu0
        %4825 = vmatprep.mubr.f32.mxu0 0.0
        %v4826 = vand.u32 %v4328, 4294901760
        %4827 = vmatmul.mubr.f32.gmra.mrb[0].mxu0 %v4826
        %v4828 = vpop.f32.mrb[0].mxu0
        %v4829 = vadd.f32 %v4750, %v4828
        %v4830 = vpop.f32.mrb[0].mxu0
        %4831 = vdwg.mxu0
        %v4832 = vsel %vm2737, %v4823, -inf
        %4833 = vmax.xlane.f32.xlu0 %v4832
        %v4834 = vpop.xlane.xlu0 %4833
        %v4835 = vsel %vm2737, %v4829, -inf
        %4836 = vmax.xlane.f32.xlu0 %v4835
        %v4837 = vpop.xlane.xlu0 %4836
        %v4838 = vsub.f32 %v4823, %v4834
        %v4839 = vsub.f32 %v4829, %v4837
        %v4840 = vmul.f32 %v4838, 1.442695
        %v4841 = vpow.pop %v4840
        %v4842 = vmul.f32 %v4839, 1.442695
        %v4843 = vpow.pop %v4842
        %v4844 = vsel %vm2737, %v4841, 0.0
        %4845 = vadd.xlane.f32.xlu0 %v4844
        %v4846 = vpop.xlane.xlu0 %4845
        %v4847 = vsel %vm2737, %v4843, 0.0
        %4848 = vadd.xlane.f32.xlu0 %v4847
        %v4849 = vpop.xlane.xlu0 %4848
        %v4850 = vrcp.pop %v4846
        %v4851 = vmul.f32 %v4841, %v4850
        %v4852 = vrcp.pop %v4849
        %v4853 = vmul.f32 %v4843, %v4852
        %v4854 = vmul.f32 %v2207, %v4321
        %v4855 = vmul.f32 %v2213, %v4321
        %v4857 = vsel %vm2737, %v4851, 0
        %v4860 = vsel %vm2737, %v4853, 0
        %4862 = vmatprep.subr.mxu0 0.0
        %v4863 = vand.u32 %v4854, 4294901760
        %4864 = vmatpush1.msra.mxu0 %v4863
        %4865 = vmatprep.subr.mxu0 0.0
        %v4866 = vand.u32 %v4855, 4294901760
        %4867 = vmatpush1.msra.mxu0 %v4866
        %4868 = vmatprep.subr.mxu0 0.0
        %4869 = vmatpush1.msra.mxu0 0.0
        %4870 = vmatprep.subr.mxu0 0.0
        %4871 = vmatpush1.msra.mxu0 0.0
        %4872 = vmatprep.subr.mxu0 0.0
        %4873 = vmatpush1.msra.mxu0 0.0
        %4874 = vmatprep.subr.mxu0 0.0
        %4875 = vmatpush1.msra.mxu0 0.0
        %4876 = vmatprep.subr.mxu0 0.0
        %4877 = vmatpush1.msra.mxu0 0.0
        %4878 = vmatprep.subr.mxu0 0.0
        %4879 = vmatpush1.msra.mxu0 0.0
        %4880 = vmatprep.subr.mxu0 0.0
        %4881 = vmatpush1.msra.mxu0 0.0
        %4882 = vmatprep.subr.mxu0 0.0
        %4883 = vmatpush1.msra.mxu0 0.0
        %4884 = vmatprep.subr.mxu0 0.0
        %4885 = vmatpush1.msra.mxu0 0.0
        %4886 = vmatprep.subr.mxu0 0.0
        %4887 = vmatpush1.msra.mxu0 0.0
        %4888 = vmatprep.subr.mxu0 0.0
        %4889 = vmatpush1.msra.mxu0 0.0
        %4890 = vmatprep.subr.mxu0 0.0
        %4891 = vmatpush1.msra.mxu0 0.0
        %4892 = vmatprep.subr.mxu0 0.0
        %4893 = vmatpush1.msra.mxu0 0.0
        %4894 = vmatprep.subr.mxu0 0.0
        %4895 = vmatpush1.msra.mxu0 0.0
        %4896 = vmatprep.subr.mxu0 0.0
        %4897 = vmatpush1.msra.mxu0 0.0
        %4898 = vmatprep.subr.mxu0 0.0
        %4899 = vmatpush1.msra.mxu0 0.0
        %4900 = vmatprep.subr.mxu0 0.0
        %4901 = vmatpush1.msra.mxu0 0.0
        %4902 = vmatprep.subr.mxu0 0.0
        %4903 = vmatpush1.msra.mxu0 0.0
        %4904 = vmatprep.subr.mxu0 0.0
        %4905 = vmatpush1.msra.mxu0 0.0
        %4906 = vmatprep.subr.mxu0 0.0
        %4907 = vmatpush1.msra.mxu0 0.0
        %4908 = vmatprep.subr.mxu0 0.0
        %4909 = vmatpush1.msra.mxu0 0.0
        %4910 = vmatprep.subr.mxu0 0.0
        %4911 = vmatpush1.msra.mxu0 0.0
        %4912 = vmatprep.subr.mxu0 0.0
        %4913 = vmatpush1.msra.mxu0 0.0
        %4914 = vmatprep.subr.mxu0 0.0
        %4915 = vmatpush1.msra.mxu0 0.0
        %4916 = vmatprep.subr.mxu0 0.0
        %4917 = vmatpush1.msra.mxu0 0.0
        %4918 = vmatprep.subr.mxu0 0.0
        %4919 = vmatpush1.msra.mxu0 0.0
        %4920 = vmatprep.subr.mxu0 0.0
        %4921 = vmatpush1.msra.mxu0 0.0
        %4922 = vmatprep.subr.mxu0 0.0
        %4923 = vmatpush1.msra.mxu0 0.0
        %4924 = vmatprep.subr.mxu0 0.0
        %4925 = vmatpush1.msra.mxu0 0.0
        %4926 = vmatprep.subr.mxu0 0.0
        %4927 = vmatpush1.msra.mxu0 0.0
        %4928 = vmatprep.mubr.f32.mxu0 0.0
        %v4929 = vand.u32 %v4857, 4294901760
        %v4930 = vsub.f32 %v4857, %v4929
        %v4931 = vand.u32 %v4930, 4294901760
        %v4932 = vsub.f32 %v4930, %v4931
        %v4933 = vand.u32 %v4932, 4294901760
        %4934 = vmatmul.mubr.f32.gmra.mrb[0].mxu0 %v4933
        %v4935 = vpop.f32.mrb[0].mxu0
        %v4936 = vadd.f32 0.0, %v4935
        %v4937 = vpop.f32.mrb[0].mxu0
        %4938 = vmatprep.mubr.f32.mxu0 0.0
        %v4939 = vand.u32 %v4860, 4294901760
        %v4940 = vsub.f32 %v4860, %v4939
        %v4941 = vand.u32 %v4940, 4294901760
        %v4942 = vsub.f32 %v4940, %v4941
        %v4943 = vand.u32 %v4942, 4294901760
        %4944 = vmatmul.mubr.f32.gmra.mrb[0].mxu0 %v4943
        %v4945 = vpop.f32.mrb[0].mxu0
        %v4946 = vadd.f32 0.0, %v4945
        %v4947 = vpop.f32.mrb[0].mxu0
        %4948 = vdwg.mxu0
        %4949 = vmatprep.subr.mxu0 0.0
        %v4950 = vand.u32 %v4854, 4294901760
        %v4951 = vsub.f32 %v4854, %v4950
        %v4952 = vand.u32 %v4951, 4294901760
        %v4953 = vsub.f32 %v4951, %v4952
        %v4954 = vand.u32 %v4953, 4294901760
        %4955 = vmatpush1.msra.mxu0 %v4954
        %4956 = vmatprep.subr.mxu0 0.0
        %v4957 = vand.u32 %v4855, 4294901760
        %v4958 = vsub.f32 %v4855, %v4957
        %v4959 = vand.u32 %v4958, 4294901760
        %v4960 = vsub.f32 %v4958, %v4959
        %v4961 = vand.u32 %v4960, 4294901760
        %4962 = vmatpush1.msra.mxu0 %v4961
        %4963 = vmatprep.subr.mxu0 0.0
        %4964 = vmatpush1.msra.mxu0 0.0
        %4965 = vmatprep.subr.mxu0 0.0
        %4966 = vmatpush1.msra.mxu0 0.0
        %4967 = vmatprep.subr.mxu0 0.0
        %4968 = vmatpush1.msra.mxu0 0.0
        %4969 = vmatprep.subr.mxu0 0.0
        %4970 = vmatpush1.msra.mxu0 0.0
        %4971 = vmatprep.subr.mxu0 0.0
        %4972 = vmatpush1.msra.mxu0 0.0
        %4973 = vmatprep.subr.mxu0 0.0
        %4974 = vmatpush1.msra.mxu0 0.0
        %4975 = vmatprep.subr.mxu0 0.0
        %4976 = vmatpush1.msra.mxu0 0.0
        %4977 = vmatprep.subr.mxu0 0.0
        %4978 = vmatpush1.msra.mxu0 0.0
        %4979 = vmatprep.subr.mxu0 0.0
        %4980 = vmatpush1.msra.mxu0 0.0
        %4981 = vmatprep.subr.mxu0 0.0
        %4982 = vmatpush1.msra.mxu0 0.0
        %4983 = vmatprep.subr.mxu0 0.0
        %4984 = vmatpush1.msra.mxu0 0.0
        %4985 = vmatprep.subr.mxu0 0.0
        %4986 = vmatpush1.msra.mxu0 0.0
        %4987 = vmatprep.subr.mxu0 0.0
        %4988 = vmatpush1.msra.mxu0 0.0
        %4989 = vmatprep.subr.mxu0 0.0
        %4990 = vmatpush1.msra.mxu0 0.0
        %4991 = vmatprep.subr.mxu0 0.0
        %4992 = vmatpush1.msra.mxu0 0.0
        %4993 = vmatprep.subr.mxu0 0.0
        %4994 = vmatpush1.msra.mxu0 0.0
        %4995 = vmatprep.subr.mxu0 0.0
        %4996 = vmatpush1.msra.mxu0 0.0
        %4997 = vmatprep.subr.mxu0 0.0
        %4998 = vmatpush1.msra.mxu0 0.0
        %4999 = vmatprep.subr.mxu0 0.0
        %5000 = vmatpush1.msra.mxu0 0.0
        %5001 = vmatprep.subr.mxu0 0.0
        %5002 = vmatpush1.msra.mxu0 0.0
        %5003 = vmatprep.subr.mxu0 0.0
        %5004 = vmatpush1.msra.mxu0 0.0
        %5005 = vmatprep.subr.mxu0 0.0
        %5006 = vmatpush1.msra.mxu0 0.0
        %5007 = vmatprep.subr.mxu0 0.0
        %5008 = vmatpush1.msra.mxu0 0.0
        %5009 = vmatprep.subr.mxu0 0.0
        %5010 = vmatpush1.msra.mxu0 0.0
        %5011 = vmatprep.subr.mxu0 0.0
        %5012 = vmatpush1.msra.mxu0 0.0
        %5013 = vmatprep.subr.mxu0 0.0
        %5014 = vmatpush1.msra.mxu0 0.0
        %5015 = vmatprep.subr.mxu0 0.0
        %5016 = vmatpush1.msra.mxu0 0.0
        %5017 = vmatprep.subr.mxu0 0.0
        %5018 = vmatpush1.msra.mxu0 0.0
        %5019 = vmatprep.subr.mxu0 0.0
        %5020 = vmatpush1.msra.mxu0 0.0
        %5021 = vmatprep.subr.mxu0 0.0
        %5022 = vmatpush1.msra.mxu0 0.0
        %5023 = vmatprep.mubr.f32.mxu0 0.0
        %v5024 = vand.u32 %v4857, 4294901760
        %5025 = vmatmul.mubr.f32.gmra.mrb[0].mxu0 %v5024
        %v5026 = vpop.f32.mrb[0].mxu0
        %v5027 = vadd.f32 %v4936, %v5026
        %v5028 = vpop.f32.mrb[0].mxu0
        %5029 = vmatprep.mubr.f32.mxu0 0.0
        %v5030 = vand.u32 %v4860, 4294901760
        %5031 = vmatmul.mubr.f32.gmra.mrb[0].mxu0 %v5030
        %v5032 = vpop.f32.mrb[0].mxu0
        %v5033 = vadd.f32 %v4946, %v5032
        %v5034 = vpop.f32.mrb[0].mxu0
        %5035 = vdwg.mxu0
        %5036 = vmatprep.subr.mxu0 0.0
        %v5037 = vand.u32 %v4854, 4294901760
        %v5038 = vsub.f32 %v4854, %v5037
        %5039 = vmatpush1.msra.mxu0 %v5038
        %5040 = vmatprep.subr.mxu0 0.0
        %v5041 = vand.u32 %v4855, 4294901760
        %v5042 = vsub.f32 %v4855, %v5041
        %5043 = vmatpush1.msra.mxu0 %v5042
        %5044 = vmatprep.subr.mxu0 0.0
        %5045 = vmatpush1.msra.mxu0 0.0
        %5046 = vmatprep.subr.mxu0 0.0
        %5047 = vmatpush1.msra.mxu0 0.0
        %5048 = vmatprep.subr.mxu0 0.0
        %5049 = vmatpush1.msra.mxu0 0.0
        %5050 = vmatprep.subr.mxu0 0.0
        %5051 = vmatpush1.msra.mxu0 0.0
        %5052 = vmatprep.subr.mxu0 0.0
        %5053 = vmatpush1.msra.mxu0 0.0
        %5054 = vmatprep.subr.mxu0 0.0
        %5055 = vmatpush1.msra.mxu0 0.0
        %5056 = vmatprep.subr.mxu0 0.0
        %5057 = vmatpush1.msra.mxu0 0.0
        %5058 = vmatprep.subr.mxu0 0.0
        %5059 = vmatpush1.msra.mxu0 0.0
        %5060 = vmatprep.subr.mxu0 0.0
        %5061 = vmatpush1.msra.mxu0 0.0
        %5062 = vmatprep.subr.mxu0 0.0
        %5063 = vmatpush1.msra.mxu0 0.0
        %5064 = vmatprep.subr.mxu0 0.0
        %5065 = vmatpush1.msra.mxu0 0.0
        %5066 = vmatprep.subr.mxu0 0.0
        %5067 = vmatpush1.msra.mxu0 0.0
        %5068 = vmatprep.subr.mxu0 0.0
        %5069 = vmatpush1.msra.mxu0 0.0
        %5070 = vmatprep.subr.mxu0 0.0
        %5071 = vmatpush1.msra.mxu0 0.0
        %5072 = vmatprep.subr.mxu0 0.0
        %5073 = vmatpush1.msra.mxu0 0.0
        %5074 = vmatprep.subr.mxu0 0.0
        %5075 = vmatpush1.msra.mxu0 0.0
        %5076 = vmatprep.subr.mxu0 0.0
        %5077 = vmatpush1.msra.mxu0 0.0
        %5078 = vmatprep.subr.mxu0 0.0
        %5079 = vmatpush1.msra.mxu0 0.0
        %5080 = vmatprep.subr.mxu0 0.0
        %5081 = vmatpush1.msra.mxu0 0.0
        %5082 = vmatprep.subr.mxu0 0.0
        %5083 = vmatpush1.msra.mxu0 0.0
        %5084 = vmatprep.subr.mxu0 0.0
        %5085 = vmatpush1.msra.mxu0 0.0
        %5086 = vmatprep.subr.mxu0 0.0
        %5087 = vmatpush1.msra.mxu0 0.0
        %5088 = vmatprep.subr.mxu0 0.0
        %5089 = vmatpush1.msra.mxu0 0.0
        %5090 = vmatprep.subr.mxu0 0.0
        %5091 = vmatpush1.msra.mxu0 0.0
        %5092 = vmatprep.subr.mxu0 0.0
        %5093 = vmatpush1.msra.mxu0 0.0
        %5094 = vmatprep.subr.mxu0 0.0
        %5095 = vmatpush1.msra.mxu0 0.0
        %5096 = vmatprep.subr.mxu0 0.0
        %5097 = vmatpush1.msra.mxu0 0.0
        %5098 = vmatprep.subr.mxu0 0.0
        %5099 = vmatpush1.msra.mxu0 0.0
        %5100 = vmatprep.subr.mxu0 0.0
        %5101 = vmatpush1.msra.mxu0 0.0
        %5102 = vmatprep.subr.mxu0 0.0
        %5103 = vmatpush1.msra.mxu0 0.0
        %5104 = vmatprep.mubr.f32.mxu0 0.0
        %v5105 = vand.u32 %v4857, 4294901760
        %v5106 = vsub.f32 %v4857, %v5105
        %5107 = vmatmul.mubr.f32.gmra.mrb[0].mxu0 %v5106
        %v5108 = vpop.f32.mrb[0].mxu0
        %v5109 = vadd.f32 %v5027, %v5108
        %v5110 = vpop.f32.mrb[0].mxu0
        %5111 = vmatprep.mubr.f32.mxu0 0.0
        %v5112 = vand.u32 %v4860, 4294901760
        %v5113 = vsub.f32 %v4860, %v5112
        %5114 = vmatmul.mubr.f32.gmra.mrb[0].mxu0 %v5113
        %v5115 = vpop.f32.mrb[0].mxu0
        %v5116 = vadd.f32 %v5033, %v5115
        %v5117 = vpop.f32.mrb[0].mxu0
        %5118 = vdwg.mxu0
        %5119 = vmatprep.subr.mxu0 0.0
        %v5120 = vand.u32 %v4854, 4294901760
        %5121 = vmatpush1.msra.mxu0 %v5120
        %5122 = vmatprep.subr.mxu0 0.0
        %v5123 = vand.u32 %v4855, 4294901760
        %5124 = vmatpush1.msra.mxu0 %v5123
        %5125 = vmatprep.subr.mxu0 0.0
        %5126 = vmatpush1.msra.mxu0 0.0
        %5127 = vmatprep.subr.mxu0 0.0
        %5128 = vmatpush1.msra.mxu0 0.0
        %5129 = vmatprep.subr.mxu0 0.0
        %5130 = vmatpush1.msra.mxu0 0.0
        %5131 = vmatprep.subr.mxu0 0.0
        %5132 = vmatpush1.msra.mxu0 0.0
        %5133 = vmatprep.subr.mxu0 0.0
        %5134 = vmatpush1.msra.mxu0 0.0
        %5135 = vmatprep.subr.mxu0 0.0
        %5136 = vmatpush1.msra.mxu0 0.0
        %5137 = vmatprep.subr.mxu0 0.0
        %5138 = vmatpush1.msra.mxu0 0.0
        %5139 = vmatprep.subr.mxu0 0.0
        %5140 = vmatpush1.msra.mxu0 0.0
        %5141 = vmatprep.subr.mxu0 0.0
        %5142 = vmatpush1.msra.mxu0 0.0
        %5143 = vmatprep.subr.mxu0 0.0
        %5144 = vmatpush1.msra.mxu0 0.0
        %5145 = vmatprep.subr.mxu0 0.0
        %5146 = vmatpush1.msra.mxu0 0.0
        %5147 = vmatprep.subr.mxu0 0.0
        %5148 = vmatpush1.msra.mxu0 0.0
        %5149 = vmatprep.subr.mxu0 0.0
        %5150 = vmatpush1.msra.mxu0 0.0
        %5151 = vmatprep.subr.mxu0 0.0
        %5152 = vmatpush1.msra.mxu0 0.0
        %5153 = vmatprep.subr.mxu0 0.0
        %5154 = vmatpush1.msra.mxu0 0.0
        %5155 = vmatprep.subr.mxu0 0.0
        %5156 = vmatpush1.msra.mxu0 0.0
        %5157 = vmatprep.subr.mxu0 0.0
        %5158 = vmatpush1.msra.mxu0 0.0
        %5159 = vmatprep.subr.mxu0 0.0
        %5160 = vmatpush1.msra.mxu0 0.0
        %5161 = vmatprep.subr.mxu0 0.0
        %5162 = vmatpush1.msra.mxu0 0.0
        %5163 = vmatprep.subr.mxu0 0.0
        %5164 = vmatpush1.msra.mxu0 0.0
        %5165 = vmatprep.subr.mxu0 0.0
        %5166 = vmatpush1.msra.mxu0 0.0
        %5167 = vmatprep.subr.mxu0 0.0
        %5168 = vmatpush1.msra.mxu0 0.0
        %5169 = vmatprep.subr.mxu0 0.0
        %5170 = vmatpush1.msra.mxu0 0.0
        %5171 = vmatprep.subr.mxu0 0.0
        %5172 = vmatpush1.msra.mxu0 0.0
        %5173 = vmatprep.subr.mxu0 0.0
        %5174 = vmatpush1.msra.mxu0 0.0
        %5175 = vmatprep.subr.mxu0 0.0
        %5176 = vmatpush1.msra.mxu0 0.0
        %5177 = vmatprep.subr.mxu0 0.0
        %5178 = vmatpush1.msra.mxu0 0.0
        %5179 = vmatprep.subr.mxu0 0.0
        %5180 = vmatpush1.msra.mxu0 0.0
        %5181 = vmatprep.subr.mxu0 0.0
        %5182 = vmatpush1.msra.mxu0 0.0
        %5183 = vmatprep.subr.mxu0 0.0
        %5184 = vmatpush1.msra.mxu0 0.0
        %5185 = vmatprep.mubr.f32.mxu0 0.0
        %v5186 = vand.u32 %v4857, 4294901760
        %v5187 = vsub.f32 %v4857, %v5186
        %v5188 = vand.u32 %v5187, 4294901760
        %5189 = vmatmul.mubr.f32.gmra.mrb[0].mxu0 %v5188
        %v5190 = vpop.f32.mrb[0].mxu0
        %v5191 = vadd.f32 %v5109, %v5190
        %v5192 = vpop.f32.mrb[0].mxu0
        %5193 = vmatprep.mubr.f32.mxu0 0.0
        %v5194 = vand.u32 %v4860, 4294901760
        %v5195 = vsub.f32 %v4860, %v5194
        %v5196 = vand.u32 %v5195, 4294901760
        %5197 = vmatmul.mubr.f32.gmra.mrb[0].mxu0 %v5196
        %v5198 = vpop.f32.mrb[0].mxu0
        %v5199 = vadd.f32 %v5116, %v5198
        %v5200 = vpop.f32.mrb[0].mxu0
        %5201 = vdwg.mxu0
        %5202 = vmatprep.subr.mxu0 0.0
        %v5203 = vand.u32 %v4854, 4294901760
        %v5204 = vsub.f32 %v4854, %v5203
        %v5205 = vand.u32 %v5204, 4294901760
        %5206 = vmatpush1.msra.mxu0 %v5205
        %5207 = vmatprep.subr.mxu0 0.0
        %v5208 = vand.u32 %v4855, 4294901760
        %v5209 = vsub.f32 %v4855, %v5208
        %v5210 = vand.u32 %v5209, 4294901760
        %5211 = vmatpush1.msra.mxu0 %v5210
        %5212 = vmatprep.subr.mxu0 0.0
        %5213 = vmatpush1.msra.mxu0 0.0
        %5214 = vmatprep.subr.mxu0 0.0
        %5215 = vmatpush1.msra.mxu0 0.0
        %5216 = vmatprep.subr.mxu0 0.0
        %5217 = vmatpush1.msra.mxu0 0.0
        %5218 = vmatprep.subr.mxu0 0.0
        %5219 = vmatpush1.msra.mxu0 0.0
        %5220 = vmatprep.subr.mxu0 0.0
        %5221 = vmatpush1.msra.mxu0 0.0
        %5222 = vmatprep.subr.mxu0 0.0
        %5223 = vmatpush1.msra.mxu0 0.0
        %5224 = vmatprep.subr.mxu0 0.0
        %5225 = vmatpush1.msra.mxu0 0.0
        %5226 = vmatprep.subr.mxu0 0.0
        %5227 = vmatpush1.msra.mxu0 0.0
        %5228 = vmatprep.subr.mxu0 0.0
        %5229 = vmatpush1.msra.mxu0 0.0
        %5230 = vmatprep.subr.mxu0 0.0
        %5231 = vmatpush1.msra.mxu0 0.0
        %5232 = vmatprep.subr.mxu0 0.0
        %5233 = vmatpush1.msra.mxu0 0.0
        %5234 = vmatprep.subr.mxu0 0.0
        %5235 = vmatpush1.msra.mxu0 0.0
        %5236 = vmatprep.subr.mxu0 0.0
        %5237 = vmatpush1.msra.mxu0 0.0
        %5238 = vmatprep.subr.mxu0 0.0
        %5239 = vmatpush1.msra.mxu0 0.0
        %5240 = vmatprep.subr.mxu0 0.0
        %5241 = vmatpush1.msra.mxu0 0.0
        %5242 = vmatprep.subr.mxu0 0.0
        %5243 = vmatpush1.msra.mxu0 0.0
        %5244 = vmatprep.subr.mxu0 0.0
        %5245 = vmatpush1.msra.mxu0 0.0
        %5246 = vmatprep.subr.mxu0 0.0
        %5247 = vmatpush1.msra.mxu0 0.0
        %5248 = vmatprep.subr.mxu0 0.0
        %5249 = vmatpush1.msra.mxu0 0.0
        %5250 = vmatprep.subr.mxu0 0.0
        %5251 = vmatpush1.msra.mxu0 0.0
        %5252 = vmatprep.subr.mxu0 0.0
        %5253 = vmatpush1.msra.mxu0 0.0
        %5254 = vmatprep.subr.mxu0 0.0
        %5255 = vmatpush1.msra.mxu0 0.0
        %5256 = vmatprep.subr.mxu0 0.0
        %5257 = vmatpush1.msra.mxu0 0.0
        %5258 = vmatprep.subr.mxu0 0.0
        %5259 = vmatpush1.msra.mxu0 0.0
        %5260 = vmatprep.subr.mxu0 0.0
        %5261 = vmatpush1.msra.mxu0 0.0
        %5262 = vmatprep.subr.mxu0 0.0
        %5263 = vmatpush1.msra.mxu0 0.0
        %5264 = vmatprep.subr.mxu0 0.0
        %5265 = vmatpush1.msra.mxu0 0.0
        %5266 = vmatprep.subr.mxu0 0.0
        %5267 = vmatpush1.msra.mxu0 0.0
        %5268 = vmatprep.subr.mxu0 0.0
        %5269 = vmatpush1.msra.mxu0 0.0
        %5270 = vmatprep.subr.mxu0 0.0
        %5271 = vmatpush1.msra.mxu0 0.0
        %5272 = vmatprep.mubr.f32.mxu0 0.0
        %v5273 = vand.u32 %v4857, 4294901760
        %5274 = vmatmul.mubr.f32.gmra.mrb[0].mxu0 %v5273
        %v5275 = vpop.f32.mrb[0].mxu0
        %v5276 = vadd.f32 %v5191, %v5275
        %v5277 = vpop.f32.mrb[0].mxu0
        %5278 = vmatprep.mubr.f32.mxu0 0.0
        %v5279 = vand.u32 %v4860, 4294901760
        %5280 = vmatmul.mubr.f32.gmra.mrb[0].mxu0 %v5279
        %v5281 = vpop.f32.mrb[0].mxu0
        %v5282 = vadd.f32 %v5199, %v5281
        %v5283 = vpop.f32.mrb[0].mxu0
        %5284 = vdwg.mxu0
        %5285 = vmatprep.subr.mxu0 0.0
        %v5286 = vand.u32 %v4854, 4294901760
        %5287 = vmatpush1.msra.mxu0 %v5286
        %5288 = vmatprep.subr.mxu0 0.0
        %v5289 = vand.u32 %v4855, 4294901760
        %5290 = vmatpush1.msra.mxu0 %v5289
        %5291 = vmatprep.subr.mxu0 0.0
        %5292 = vmatpush1.msra.mxu0 0.0
        %5293 = vmatprep.subr.mxu0 0.0
        %5294 = vmatpush1.msra.mxu0 0.0
        %5295 = vmatprep.subr.mxu0 0.0
        %5296 = vmatpush1.msra.mxu0 0.0
        %5297 = vmatprep.subr.mxu0 0.0
        %5298 = vmatpush1.msra.mxu0 0.0
        %5299 = vmatprep.subr.mxu0 0.0
        %5300 = vmatpush1.msra.mxu0 0.0
        %5301 = vmatprep.subr.mxu0 0.0
        %5302 = vmatpush1.msra.mxu0 0.0
        %5303 = vmatprep.subr.mxu0 0.0
        %5304 = vmatpush1.msra.mxu0 0.0
        %5305 = vmatprep.subr.mxu0 0.0
        %5306 = vmatpush1.msra.mxu0 0.0
        %5307 = vmatprep.subr.mxu0 0.0
        %5308 = vmatpush1.msra.mxu0 0.0
        %5309 = vmatprep.subr.mxu0 0.0
        %5310 = vmatpush1.msra.mxu0 0.0
        %5311 = vmatprep.subr.mxu0 0.0
        %5312 = vmatpush1.msra.mxu0 0.0
        %5313 = vmatprep.subr.mxu0 0.0
        %5314 = vmatpush1.msra.mxu0 0.0
        %5315 = vmatprep.subr.mxu0 0.0
        %5316 = vmatpush1.msra.mxu0 0.0
        %5317 = vmatprep.subr.mxu0 0.0
        %5318 = vmatpush1.msra.mxu0 0.0
        %5319 = vmatprep.subr.mxu0 0.0
        %5320 = vmatpush1.msra.mxu0 0.0
        %5321 = vmatprep.subr.mxu0 0.0
        %5322 = vmatpush1.msra.mxu0 0.0
        %5323 = vmatprep.subr.mxu0 0.0
        %5324 = vmatpush1.msra.mxu0 0.0
        %5325 = vmatprep.subr.mxu0 0.0
        %5326 = vmatpush1.msra.mxu0 0.0
        %5327 = vmatprep.subr.mxu0 0.0
        %5328 = vmatpush1.msra.mxu0 0.0
        %5329 = vmatprep.subr.mxu0 0.0
        %5330 = vmatpush1.msra.mxu0 0.0
        %5331 = vmatprep.subr.mxu0 0.0
        %5332 = vmatpush1.msra.mxu0 0.0
        %5333 = vmatprep.subr.mxu0 0.0
        %5334 = vmatpush1.msra.mxu0 0.0
        %5335 = vmatprep.subr.mxu0 0.0
        %5336 = vmatpush1.msra.mxu0 0.0
        %5337 = vmatprep.subr.mxu0 0.0
        %5338 = vmatpush1.msra.mxu0 0.0
        %5339 = vmatprep.subr.mxu0 0.0
        %5340 = vmatpush1.msra.mxu0 0.0
        %5341 = vmatprep.subr.mxu0 0.0
        %5342 = vmatpush1.msra.mxu0 0.0
        %5343 = vmatprep.subr.mxu0 0.0
        %5344 = vmatpush1.msra.mxu0 0.0
        %5345 = vmatprep.subr.mxu0 0.0
        %5346 = vmatpush1.msra.mxu0 0.0
        %5347 = vmatprep.subr.mxu0 0.0
        %5348 = vmatpush1.msra.mxu0 0.0
        %5349 = vmatprep.subr.mxu0 0.0
        %5350 = vmatpush1.msra.mxu0 0.0
        %5351 = vmatprep.mubr.f32.mxu0 0.0
        %v5352 = vand.u32 %v4857, 4294901760
        %5353 = vmatmul.mubr.f32.gmra.mrb[0].mxu0 %v5352
        %v5354 = vpop.f32.mrb[0].mxu0
        %v5355 = vadd.f32 %v5276, %v5354
        %v5356 = vpop.f32.mrb[0].mxu0
        %5357 = vmatprep.mubr.f32.mxu0 0.0
        %v5358 = vand.u32 %v4860, 4294901760
        %5359 = vmatmul.mubr.f32.gmra.mrb[0].mxu0 %v5358
        %v5360 = vpop.f32.mrb[0].mxu0
        %v5361 = vadd.f32 %v5282, %v5360
        %v5362 = vpop.f32.mrb[0].mxu0
        %5363 = vdwg.mxu0
        %v5364 = vadd.f32 %v4308, %v5355
        %v5365 = vadd.f32 %v4314, %v5361
        %v5366 = vld [vmem:[%s3 + $0x3] sm:$0x1]
        %v5367 = vlaneseq
        %v5368 = vshrl.u32 %v5367, 7
        %v5369 = vsub.s32 0, %v5368
        %v5370 = vrot.slane %v5366, %v5369
        %v5371 = vmul.f32 %v1136, %v5370
        %v5372 = vmul.f32 %v1137, %v5370
        %v5374 = vsel %vm601, %v5371, 0
        %v5377 = vsel %vm601, %v5372, 0
        %5379 = vmatprep.subr.mxu0 0.0
        %v5380 = vand.u32 %v2230, 4294901760
        %5381 = vmatpush1.xpose.msra.mxu0 %v5380
        %5382 = vmatprep.subr.mxu0 0.0
        %v5383 = vand.u32 %v2233, 4294901760
        %5384 = vmatpush1.xpose.msra.mxu0 %v5383
        %5385 = vmatprep.subr.mxu0 0.0
        %5386 = vmatpush1.xpose.msra.mxu0 0.0
        %5387 = vmatprep.subr.mxu0 0.0
        %5388 = vmatpush1.xpose.msra.mxu0 0.0
        %5389 = vmatprep.subr.mxu0 0.0
        %5390 = vmatpush1.xpose.msra.mxu0 0.0
        %5391 = vmatprep.subr.mxu0 0.0
        %5392 = vmatpush1.xpose.msra.mxu0 0.0
        %5393 = vmatprep.subr.mxu0 0.0
        %5394 = vmatpush1.xpose.msra.mxu0 0.0
        %5395 = vmatprep.subr.mxu0 0.0
        %5396 = vmatpush1.xpose.msra.mxu0 0.0
        %5397 = vmatprep.subr.mxu0 0.0
        %5398 = vmatpush1.xpose.msra.mxu0 0.0
        %5399 = vmatprep.subr.mxu0 0.0
        %5400 = vmatpush1.xpose.msra.mxu0 0.0
        %5401 = vmatprep.subr.mxu0 0.0
        %5402 = vmatpush1.xpose.msra.mxu0 0.0
        %5403 = vmatprep.subr.mxu0 0.0
        %5404 = vmatpush1.xpose.msra.mxu0 0.0
        %5405 = vmatprep.subr.mxu0 0.0
        %5406 = vmatpush1.xpose.msra.mxu0 0.0
        %5407 = vmatprep.subr.mxu0 0.0
        %5408 = vmatpush1.xpose.msra.mxu0 0.0
        %5409 = vmatprep.subr.mxu0 0.0
        %5410 = vmatpush1.xpose.msra.mxu0 0.0
        %5411 = vmatprep.subr.mxu0 0.0
        %5412 = vmatpush1.xpose.msra.mxu0 0.0
        %5413 = vmatprep.subr.mxu0 0.0
        %5414 = vmatpush1.xpose.msra.mxu0 0.0
        %5415 = vmatprep.subr.mxu0 0.0
        %5416 = vmatpush1.xpose.msra.mxu0 0.0
        %5417 = vmatprep.subr.mxu0 0.0
        %5418 = vmatpush1.xpose.msra.mxu0 0.0
        %5419 = vmatprep.subr.mxu0 0.0
        %5420 = vmatpush1.xpose.msra.mxu0 0.0
        %5421 = vmatprep.subr.mxu0 0.0
        %5422 = vmatpush1.xpose.msra.mxu0 0.0
        %5423 = vmatprep.subr.mxu0 0.0
        %5424 = vmatpush1.xpose.msra.mxu0 0.0
        %5425 = vmatprep.subr.mxu0 0.0
        %5426 = vmatpush1.xpose.msra.mxu0 0.0
        %5427 = vmatprep.subr.mxu0 0.0
        %5428 = vmatpush1.xpose.msra.mxu0 0.0
        %5429 = vmatprep.subr.mxu0 0.0
        %5430 = vmatpush1.xpose.msra.mxu0 0.0
        %5431 = vmatprep.subr.mxu0 0.0
        %5432 = vmatpush1.xpose.msra.mxu0 0.0
        %5433 = vmatprep.subr.mxu0 0.0
        %5434 = vmatpush1.xpose.msra.mxu0 0.0
        %5435 = vmatprep.subr.mxu0 0.0
        %5436 = vmatpush1.xpose.msra.mxu0 0.0
        %5437 = vmatprep.subr.mxu0 0.0
        %5438 = vmatpush1.xpose.msra.mxu0 0.0
        %5439 = vmatprep.subr.mxu0 0.0
        %5440 = vmatpush1.xpose.msra.mxu0 0.0
        %5441 = vmatprep.subr.mxu0 0.0
        %5442 = vmatpush1.xpose.msra.mxu0 0.0
        %5443 = vmatprep.subr.mxu0 0.0
        %5444 = vmatpush1.xpose.msra.mxu0 0.0
        %5445 = vmatprep.mubr.f32.mxu0 0.0
        %v5446 = vand.u32 %v5374, 4294901760
        %v5447 = vsub.f32 %v5374, %v5446
        %v5448 = vand.u32 %v5447, 4294901760
        %v5449 = vsub.f32 %v5447, %v5448
        %v5450 = vand.u32 %v5449, 4294901760
        %5451 = vmatmul.mubr.f32.gmra.mrb[0].mxu0 %v5450
        %v5452 = vpop.f32.mrb[0].mxu0
        %v5453 = vadd.f32 %v587, %v5452
        %v5454 = vpop.f32.mrb[0].mxu0
        %5455 = vmatprep.mubr.f32.mxu0 0.0
        %v5456 = vand.u32 %v5377, 4294901760
        %v5457 = vsub.f32 %v5377, %v5456
        %v5458 = vand.u32 %v5457, 4294901760
        %v5459 = vsub.f32 %v5457, %v5458
        %v5460 = vand.u32 %v5459, 4294901760
        %5461 = vmatmul.mubr.f32.gmra.mrb[0].mxu0 %v5460
        %v5462 = vpop.f32.mrb[0].mxu0
        %v5463 = vadd.f32 %v588, %v5462
        %v5464 = vpop.f32.mrb[0].mxu0
        %5465 = vdwg.mxu0
        %5466 = vmatprep.subr.mxu0 0.0
        %v5467 = vand.u32 %v2230, 4294901760
        %v5468 = vsub.f32 %v2230, %v5467
        %v5469 = vand.u32 %v5468, 4294901760
        %v5470 = vsub.f32 %v5468, %v5469
        %v5471 = vand.u32 %v5470, 4294901760
        %5472 = vmatpush1.xpose.msra.mxu0 %v5471
        %5473 = vmatprep.subr.mxu0 0.0
        %v5474 = vand.u32 %v2233, 4294901760
        %v5475 = vsub.f32 %v2233, %v5474
        %v5476 = vand.u32 %v5475, 4294901760
        %v5477 = vsub.f32 %v5475, %v5476
        %v5478 = vand.u32 %v5477, 4294901760
        %5479 = vmatpush1.xpose.msra.mxu0 %v5478
        %5480 = vmatprep.subr.mxu0 0.0
        %5481 = vmatpush1.xpose.msra.mxu0 0.0
        %5482 = vmatprep.subr.mxu0 0.0
        %5483 = vmatpush1.xpose.msra.mxu0 0.0
        %5484 = vmatprep.subr.mxu0 0.0
        %5485 = vmatpush1.xpose.msra.mxu0 0.0
        %5486 = vmatprep.subr.mxu0 0.0
        %5487 = vmatpush1.xpose.msra.mxu0 0.0
        %5488 = vmatprep.subr.mxu0 0.0
        %5489 = vmatpush1.xpose.msra.mxu0 0.0
        %5490 = vmatprep.subr.mxu0 0.0
        %5491 = vmatpush1.xpose.msra.mxu0 0.0
        %5492 = vmatprep.subr.mxu0 0.0
        %5493 = vmatpush1.xpose.msra.mxu0 0.0
        %5494 = vmatprep.subr.mxu0 0.0
        %5495 = vmatpush1.xpose.msra.mxu0 0.0
        %5496 = vmatprep.subr.mxu0 0.0
        %5497 = vmatpush1.xpose.msra.mxu0 0.0
        %5498 = vmatprep.subr.mxu0 0.0
        %5499 = vmatpush1.xpose.msra.mxu0 0.0
        %5500 = vmatprep.subr.mxu0 0.0
        %5501 = vmatpush1.xpose.msra.mxu0 0.0
        %5502 = vmatprep.subr.mxu0 0.0
        %5503 = vmatpush1.xpose.msra.mxu0 0.0
        %5504 = vmatprep.subr.mxu0 0.0
        %5505 = vmatpush1.xpose.msra.mxu0 0.0
        %5506 = vmatprep.subr.mxu0 0.0
        %5507 = vmatpush1.xpose.msra.mxu0 0.0
        %5508 = vmatprep.subr.mxu0 0.0
        %5509 = vmatpush1.xpose.msra.mxu0 0.0
        %5510 = vmatprep.subr.mxu0 0.0
        %5511 = vmatpush1.xpose.msra.mxu0 0.0
        %5512 = vmatprep.subr.mxu0 0.0
        %5513 = vmatpush1.xpose.msra.mxu0 0.0
        %5514 = vmatprep.subr.mxu0 0.0
        %5515 = vmatpush1.xpose.msra.mxu0 0.0
        %5516 = vmatprep.subr.mxu0 0.0
        %5517 = vmatpush1.xpose.msra.mxu0 0.0
        %5518 = vmatprep.subr.mxu0 0.0
        %5519 = vmatpush1.xpose.msra.mxu0 0.0
        %5520 = vmatprep.subr.mxu0 0.0
        %5521 = vmatpush1.xpose.msra.mxu0 0.0
        %5522 = vmatprep.subr.mxu0 0.0
        %5523 = vmatpush1.xpose.msra.mxu0 0.0
        %5524 = vmatprep.subr.mxu0 0.0
        %5525 = vmatpush1.xpose.msra.mxu0 0.0
        %5526 = vmatprep.subr.mxu0 0.0
        %5527 = vmatpush1.xpose.msra.mxu0 0.0
        %5528 = vmatprep.subr.mxu0 0.0
        %5529 = vmatpush1.xpose.msra.mxu0 0.0
        %5530 = vmatprep.subr.mxu0 0.0
        %5531 = vmatpush1.xpose.msra.mxu0 0.0
        %5532 = vmatprep.subr.mxu0 0.0
        %5533 = vmatpush1.xpose.msra.mxu0 0.0
        %5534 = vmatprep.subr.mxu0 0.0
        %5535 = vmatpush1.xpose.msra.mxu0 0.0
        %5536 = vmatprep.subr.mxu0 0.0
        %5537 = vmatpush1.xpose.msra.mxu0 0.0
        %5538 = vmatprep.subr.mxu0 0.0
        %5539 = vmatpush1.xpose.msra.mxu0 0.0
        %5540 = vmatprep.mubr.f32.mxu0 0.0
        %v5541 = vand.u32 %v5374, 4294901760
        %5542 = vmatmul.mubr.f32.gmra.mrb[0].mxu0 %v5541
        %v5543 = vpop.f32.mrb[0].mxu0
        %v5544 = vadd.f32 %v5453, %v5543
        %v5545 = vpop.f32.mrb[0].mxu0
        %5546 = vmatprep.mubr.f32.mxu0 0.0
        %v5547 = vand.u32 %v5377, 4294901760
        %5548 = vmatmul.mubr.f32.gmra.mrb[0].mxu0 %v5547
        %v5549 = vpop.f32.mrb[0].mxu0
        %v5550 = vadd.f32 %v5463, %v5549
        %v5551 = vpop.f32.mrb[0].mxu0
        %5552 = vdwg.mxu0
        %5553 = vmatprep.subr.mxu0 0.0
        %v5554 = vand.u32 %v2230, 4294901760
        %v5555 = vsub.f32 %v2230, %v5554
        %5556 = vmatpush1.xpose.msra.mxu0 %v5555
        %5557 = vmatprep.subr.mxu0 0.0
        %v5558 = vand.u32 %v2233, 4294901760
        %v5559 = vsub.f32 %v2233, %v5558
        %5560 = vmatpush1.xpose.msra.mxu0 %v5559
        %5561 = vmatprep.subr.mxu0 0.0
        %5562 = vmatpush1.xpose.msra.mxu0 0.0
        %5563 = vmatprep.subr.mxu0 0.0
        %5564 = vmatpush1.xpose.msra.mxu0 0.0
        %5565 = vmatprep.subr.mxu0 0.0
        %5566 = vmatpush1.xpose.msra.mxu0 0.0
        %5567 = vmatprep.subr.mxu0 0.0
        %5568 = vmatpush1.xpose.msra.mxu0 0.0
        %5569 = vmatprep.subr.mxu0 0.0
        %5570 = vmatpush1.xpose.msra.mxu0 0.0
        %5571 = vmatprep.subr.mxu0 0.0
        %5572 = vmatpush1.xpose.msra.mxu0 0.0
        %5573 = vmatprep.subr.mxu0 0.0
        %5574 = vmatpush1.xpose.msra.mxu0 0.0
        %5575 = vmatprep.subr.mxu0 0.0
        %5576 = vmatpush1.xpose.msra.mxu0 0.0
        %5577 = vmatprep.subr.mxu0 0.0
        %5578 = vmatpush1.xpose.msra.mxu0 0.0
        %5579 = vmatprep.subr.mxu0 0.0
        %5580 = vmatpush1.xpose.msra.mxu0 0.0
        %5581 = vmatprep.subr.mxu0 0.0
        %5582 = vmatpush1.xpose.msra.mxu0 0.0
        %5583 = vmatprep.subr.mxu0 0.0
        %5584 = vmatpush1.xpose.msra.mxu0 0.0
        %5585 = vmatprep.subr.mxu0 0.0
        %5586 = vmatpush1.xpose.msra.mxu0 0.0
        %5587 = vmatprep.subr.mxu0 0.0
        %5588 = vmatpush1.xpose.msra.mxu0 0.0
        %5589 = vmatprep.subr.mxu0 0.0
        %5590 = vmatpush1.xpose.msra.mxu0 0.0
        %5591 = vmatprep.subr.mxu0 0.0
        %5592 = vmatpush1.xpose.msra.mxu0 0.0
        %5593 = vmatprep.subr.mxu0 0.0
        %5594 = vmatpush1.xpose.msra.mxu0 0.0
        %5595 = vmatprep.subr.mxu0 0.0
        %5596 = vmatpush1.xpose.msra.mxu0 0.0
        %5597 = vmatprep.subr.mxu0 0.0
        %5598 = vmatpush1.xpose.msra.mxu0 0.0
        %5599 = vmatprep.subr.mxu0 0.0
        %5600 = vmatpush1.xpose.msra.mxu0 0.0
        %5601 = vmatprep.subr.mxu0 0.0
        %5602 = vmatpush1.xpose.msra.mxu0 0.0
        %5603 = vmatprep.subr.mxu0 0.0
        %5604 = vmatpush1.xpose.msra.mxu0 0.0
        %5605 = vmatprep.subr.mxu0 0.0
        %5606 = vmatpush1.xpose.msra.mxu0 0.0
        %5607 = vmatprep.subr.mxu0 0.0
        %5608 = vmatpush1.xpose.msra.mxu0 0.0
        %5609 = vmatprep.subr.mxu0 0.0
        %5610 = vmatpush1.xpose.msra.mxu0 0.0
        %5611 = vmatprep.subr.mxu0 0.0
        %5612 = vmatpush1.xpose.msra.mxu0 0.0
        %5613 = vmatprep.subr.mxu0 0.0
        %5614 = vmatpush1.xpose.msra.mxu0 0.0
        %5615 = vmatprep.subr.mxu0 0.0
        %5616 = vmatpush1.xpose.msra.mxu0 0.0
        %5617 = vmatprep.subr.mxu0 0.0
        %5618 = vmatpush1.xpose.msra.mxu0 0.0
        %5619 = vmatprep.subr.mxu0 0.0
        %5620 = vmatpush1.xpose.msra.mxu0 0.0
        %5621 = vmatprep.mubr.f32.mxu0 0.0
        %v5622 = vand.u32 %v5374, 4294901760
        %v5623 = vsub.f32 %v5374, %v5622
        %5624 = vmatmul.mubr.f32.gmra.mrb[0].mxu0 %v5623
        %v5625 = vpop.f32.mrb[0].mxu0
        %v5626 = vadd.f32 %v5544, %v5625
        %v5627 = vpop.f32.mrb[0].mxu0
        %5628 = vmatprep.mubr.f32.mxu0 0.0
        %v5629 = vand.u32 %v5377, 4294901760
        %v5630 = vsub.f32 %v5377, %v5629
        %5631 = vmatmul.mubr.f32.gmra.mrb[0].mxu0 %v5630
        %v5632 = vpop.f32.mrb[0].mxu0
        %v5633 = vadd.f32 %v5550, %v5632
        %v5634 = vpop.f32.mrb[0].mxu0
        %5635 = vdwg.mxu0
        %5636 = vmatprep.subr.mxu0 0.0
        %v5637 = vand.u32 %v2230, 4294901760
        %5638 = vmatpush1.xpose.msra.mxu0 %v5637
        %5639 = vmatprep.subr.mxu0 0.0
        %v5640 = vand.u32 %v2233, 4294901760
        %5641 = vmatpush1.xpose.msra.mxu0 %v5640
        %5642 = vmatprep.subr.mxu0 0.0
        %5643 = vmatpush1.xpose.msra.mxu0 0.0
        %5644 = vmatprep.subr.mxu0 0.0
        %5645 = vmatpush1.xpose.msra.mxu0 0.0
        %5646 = vmatprep.subr.mxu0 0.0
        %5647 = vmatpush1.xpose.msra.mxu0 0.0
        %5648 = vmatprep.subr.mxu0 0.0
        %5649 = vmatpush1.xpose.msra.mxu0 0.0
        %5650 = vmatprep.subr.mxu0 0.0
        %5651 = vmatpush1.xpose.msra.mxu0 0.0
        %5652 = vmatprep.subr.mxu0 0.0
        %5653 = vmatpush1.xpose.msra.mxu0 0.0
        %5654 = vmatprep.subr.mxu0 0.0
        %5655 = vmatpush1.xpose.msra.mxu0 0.0
        %5656 = vmatprep.subr.mxu0 0.0
        %5657 = vmatpush1.xpose.msra.mxu0 0.0
        %5658 = vmatprep.subr.mxu0 0.0
        %5659 = vmatpush1.xpose.msra.mxu0 0.0
        %5660 = vmatprep.subr.mxu0 0.0
        %5661 = vmatpush1.xpose.msra.mxu0 0.0
        %5662 = vmatprep.subr.mxu0 0.0
        %5663 = vmatpush1.xpose.msra.mxu0 0.0
        %5664 = vmatprep.subr.mxu0 0.0
        %5665 = vmatpush1.xpose.msra.mxu0 0.0
        %5666 = vmatprep.subr.mxu0 0.0
        %5667 = vmatpush1.xpose.msra.mxu0 0.0
        %5668 = vmatprep.subr.mxu0 0.0
        %5669 = vmatpush1.xpose.msra.mxu0 0.0
        %5670 = vmatprep.subr.mxu0 0.0
        %5671 = vmatpush1.xpose.msra.mxu0 0.0
        %5672 = vmatprep.subr.mxu0 0.0
        %5673 = vmatpush1.xpose.msra.mxu0 0.0
        %5674 = vmatprep.subr.mxu0 0.0
        %5675 = vmatpush1.xpose.msra.mxu0 0.0
        %5676 = vmatprep.subr.mxu0 0.0
        %5677 = vmatpush1.xpose.msra.mxu0 0.0
        %5678 = vmatprep.subr.mxu0 0.0
        %5679 = vmatpush1.xpose.msra.mxu0 0.0
        %5680 = vmatprep.subr.mxu0 0.0
        %5681 = vmatpush1.xpose.msra.mxu0 0.0
        %5682 = vmatprep.subr.mxu0 0.0
        %5683 = vmatpush1.xpose.msra.mxu0 0.0
        %5684 = vmatprep.subr.mxu0 0.0
        %5685 = vmatpush1.xpose.msra.mxu0 0.0
        %5686 = vmatprep.subr.mxu0 0.0
        %5687 = vmatpush1.xpose.msra.mxu0 0.0
        %5688 = vmatprep.subr.mxu0 0.0
        %5689 = vmatpush1.xpose.msra.mxu0 0.0
        %5690 = vmatprep.subr.mxu0 0.0
        %5691 = vmatpush1.xpose.msra.mxu0 0.0
        %5692 = vmatprep.subr.mxu0 0.0
        %5693 = vmatpush1.xpose.msra.mxu0 0.0
        %5694 = vmatprep.subr.mxu0 0.0
        %5695 = vmatpush1.xpose.msra.mxu0 0.0
        %5696 = vmatprep.subr.mxu0 0.0
        %5697 = vmatpush1.xpose.msra.mxu0 0.0
        %5698 = vmatprep.subr.mxu0 0.0
        %5699 = vmatpush1.xpose.msra.mxu0 0.0
        %5700 = vmatprep.subr.mxu0 0.0
        %5701 = vmatpush1.xpose.msra.mxu0 0.0
        %5702 = vmatprep.mubr.f32.mxu0 0.0
        %v5703 = vand.u32 %v5374, 4294901760
        %v5704 = vsub.f32 %v5374, %v5703
        %v5705 = vand.u32 %v5704, 4294901760
        %5706 = vmatmul.mubr.f32.gmra.mrb[0].mxu0 %v5705
        %v5707 = vpop.f32.mrb[0].mxu0
        %v5708 = vadd.f32 %v5626, %v5707
        %v5709 = vpop.f32.mrb[0].mxu0
        %5710 = vmatprep.mubr.f32.mxu0 0.0
        %v5711 = vand.u32 %v5377, 4294901760
        %v5712 = vsub.f32 %v5377, %v5711
        %v5713 = vand.u32 %v5712, 4294901760
        %5714 = vmatmul.mubr.f32.gmra.mrb[0].mxu0 %v5713
        %v5715 = vpop.f32.mrb[0].mxu0
        %v5716 = vadd.f32 %v5633, %v5715
        %v5717 = vpop.f32.mrb[0].mxu0
        %5718 = vdwg.mxu0
        %5719 = vmatprep.subr.mxu0 0.0
        %v5720 = vand.u32 %v2230, 4294901760
        %v5721 = vsub.f32 %v2230, %v5720
        %v5722 = vand.u32 %v5721, 4294901760
        %5723 = vmatpush1.xpose.msra.mxu0 %v5722
        %5724 = vmatprep.subr.mxu0 0.0
        %v5725 = vand.u32 %v2233, 4294901760
        %v5726 = vsub.f32 %v2233, %v5725
        %v5727 = vand.u32 %v5726, 4294901760
        %5728 = vmatpush1.xpose.msra.mxu0 %v5727
        %5729 = vmatprep.subr.mxu0 0.0
        %5730 = vmatpush1.xpose.msra.mxu0 0.0
        %5731 = vmatprep.subr.mxu0 0.0
        %5732 = vmatpush1.xpose.msra.mxu0 0.0
        %5733 = vmatprep.subr.mxu0 0.0
        %5734 = vmatpush1.xpose.msra.mxu0 0.0
        %5735 = vmatprep.subr.mxu0 0.0
        %5736 = vmatpush1.xpose.msra.mxu0 0.0
        %5737 = vmatprep.subr.mxu0 0.0
        %5738 = vmatpush1.xpose.msra.mxu0 0.0
        %5739 = vmatprep.subr.mxu0 0.0
        %5740 = vmatpush1.xpose.msra.mxu0 0.0
        %5741 = vmatprep.subr.mxu0 0.0
        %5742 = vmatpush1.xpose.msra.mxu0 0.0
        %5743 = vmatprep.subr.mxu0 0.0
        %5744 = vmatpush1.xpose.msra.mxu0 0.0
        %5745 = vmatprep.subr.mxu0 0.0
        %5746 = vmatpush1.xpose.msra.mxu0 0.0
        %5747 = vmatprep.subr.mxu0 0.0
        %5748 = vmatpush1.xpose.msra.mxu0 0.0
        %5749 = vmatprep.subr.mxu0 0.0
        %5750 = vmatpush1.xpose.msra.mxu0 0.0
        %5751 = vmatprep.subr.mxu0 0.0
        %5752 = vmatpush1.xpose.msra.mxu0 0.0
        %5753 = vmatprep.subr.mxu0 0.0
        %5754 = vmatpush1.xpose.msra.mxu0 0.0
        %5755 = vmatprep.subr.mxu0 0.0
        %5756 = vmatpush1.xpose.msra.mxu0 0.0
        %5757 = vmatprep.subr.mxu0 0.0
        %5758 = vmatpush1.xpose.msra.mxu0 0.0
        %5759 = vmatprep.subr.mxu0 0.0
        %5760 = vmatpush1.xpose.msra.mxu0 0.0
        %5761 = vmatprep.subr.mxu0 0.0
        %5762 = vmatpush1.xpose.msra.mxu0 0.0
        %5763 = vmatprep.subr.mxu0 0.0
        %5764 = vmatpush1.xpose.msra.mxu0 0.0
        %5765 = vmatprep.subr.mxu0 0.0
        %5766 = vmatpush1.xpose.msra.mxu0 0.0
        %5767 = vmatprep.subr.mxu0 0.0
        %5768 = vmatpush1.xpose.msra.mxu0 0.0
        %5769 = vmatprep.subr.mxu0 0.0
        %5770 = vmatpush1.xpose.msra.mxu0 0.0
        %5771 = vmatprep.subr.mxu0 0.0
        %5772 = vmatpush1.xpose.msra.mxu0 0.0
        %5773 = vmatprep.subr.mxu0 0.0
        %5774 = vmatpush1.xpose.msra.mxu0 0.0
        %5775 = vmatprep.subr.mxu0 0.0
        %5776 = vmatpush1.xpose.msra.mxu0 0.0
        %5777 = vmatprep.subr.mxu0 0.0
        %5778 = vmatpush1.xpose.msra.mxu0 0.0
        %5779 = vmatprep.subr.mxu0 0.0
        %5780 = vmatpush1.xpose.msra.mxu0 0.0
        %5781 = vmatprep.subr.mxu0 0.0
        %5782 = vmatpush1.xpose.msra.mxu0 0.0
        %5783 = vmatprep.subr.mxu0 0.0
        %5784 = vmatpush1.xpose.msra.mxu0 0.0
        %5785 = vmatprep.subr.mxu0 0.0
        %5786 = vmatpush1.xpose.msra.mxu0 0.0
        %5787 = vmatprep.subr.mxu0 0.0
        %5788 = vmatpush1.xpose.msra.mxu0 0.0
        %5789 = vmatprep.mubr.f32.mxu0 0.0
        %v5790 = vand.u32 %v5374, 4294901760
        %5791 = vmatmul.mubr.f32.gmra.mrb[0].mxu0 %v5790
        %v5792 = vpop.f32.mrb[0].mxu0
        %v5793 = vadd.f32 %v5708, %v5792
        %v5794 = vpop.f32.mrb[0].mxu0
        %5795 = vmatprep.mubr.f32.mxu0 0.0
        %v5796 = vand.u32 %v5377, 4294901760
        %5797 = vmatmul.mubr.f32.gmra.mrb[0].mxu0 %v5796
        %v5798 = vpop.f32.mrb[0].mxu0
        %v5799 = vadd.f32 %v5716, %v5798
        %v5800 = vpop.f32.mrb[0].mxu0
        %5801 = vdwg.mxu0
        %5802 = vmatprep.subr.mxu0 0.0
        %v5803 = vand.u32 %v2230, 4294901760
        %5804 = vmatpush1.xpose.msra.mxu0 %v5803
        %5805 = vmatprep.subr.mxu0 0.0
        %v5806 = vand.u32 %v2233, 4294901760
        %5807 = vmatpush1.xpose.msra.mxu0 %v5806
        %5808 = vmatprep.subr.mxu0 0.0
        %5809 = vmatpush1.xpose.msra.mxu0 0.0
        %5810 = vmatprep.subr.mxu0 0.0
        %5811 = vmatpush1.xpose.msra.mxu0 0.0
        %5812 = vmatprep.subr.mxu0 0.0
        %5813 = vmatpush1.xpose.msra.mxu0 0.0
        %5814 = vmatprep.subr.mxu0 0.0
        %5815 = vmatpush1.xpose.msra.mxu0 0.0
        %5816 = vmatprep.subr.mxu0 0.0
        %5817 = vmatpush1.xpose.msra.mxu0 0.0
        %5818 = vmatprep.subr.mxu0 0.0
        %5819 = vmatpush1.xpose.msra.mxu0 0.0
        %5820 = vmatprep.subr.mxu0 0.0
        %5821 = vmatpush1.xpose.msra.mxu0 0.0
        %5822 = vmatprep.subr.mxu0 0.0
        %5823 = vmatpush1.xpose.msra.mxu0 0.0
        %5824 = vmatprep.subr.mxu0 0.0
        %5825 = vmatpush1.xpose.msra.mxu0 0.0
        %5826 = vmatprep.subr.mxu0 0.0
        %5827 = vmatpush1.xpose.msra.mxu0 0.0
        %5828 = vmatprep.subr.mxu0 0.0
        %5829 = vmatpush1.xpose.msra.mxu0 0.0
        %5830 = vmatprep.subr.mxu0 0.0
        %5831 = vmatpush1.xpose.msra.mxu0 0.0
        %5832 = vmatprep.subr.mxu0 0.0
        %5833 = vmatpush1.xpose.msra.mxu0 0.0
        %5834 = vmatprep.subr.mxu0 0.0
        %5835 = vmatpush1.xpose.msra.mxu0 0.0
        %5836 = vmatprep.subr.mxu0 0.0
        %5837 = vmatpush1.xpose.msra.mxu0 0.0
        %5838 = vmatprep.subr.mxu0 0.0
        %5839 = vmatpush1.xpose.msra.mxu0 0.0
        %5840 = vmatprep.subr.mxu0 0.0
        %5841 = vmatpush1.xpose.msra.mxu0 0.0
        %5842 = vmatprep.subr.mxu0 0.0
        %5843 = vmatpush1.xpose.msra.mxu0 0.0
        %5844 = vmatprep.subr.mxu0 0.0
        %5845 = vmatpush1.xpose.msra.mxu0 0.0
        %5846 = vmatprep.subr.mxu0 0.0
        %5847 = vmatpush1.xpose.msra.mxu0 0.0
        %5848 = vmatprep.subr.mxu0 0.0
        %5849 = vmatpush1.xpose.msra.mxu0 0.0
        %5850 = vmatprep.subr.mxu0 0.0
        %5851 = vmatpush1.xpose.msra.mxu0 0.0
        %5852 = vmatprep.subr.mxu0 0.0
        %5853 = vmatpush1.xpose.msra.mxu0 0.0
        %5854 = vmatprep.subr.mxu0 0.0
        %5855 = vmatpush1.xpose.msra.mxu0 0.0
        %5856 = vmatprep.subr.mxu0 0.0
        %5857 = vmatpush1.xpose.msra.mxu0 0.0
        %5858 = vmatprep.subr.mxu0 0.0
        %5859 = vmatpush1.xpose.msra.mxu0 0.0
        %5860 = vmatprep.subr.mxu0 0.0
        %5861 = vmatpush1.xpose.msra.mxu0 0.0
        %5862 = vmatprep.subr.mxu0 0.0
        %5863 = vmatpush1.xpose.msra.mxu0 0.0
        %5864 = vmatprep.subr.mxu0 0.0
        %5865 = vmatpush1.xpose.msra.mxu0 0.0
        %5866 = vmatprep.subr.mxu0 0.0
        %5867 = vmatpush1.xpose.msra.mxu0 0.0
        %5868 = vmatprep.mubr.f32.mxu0 0.0
        %v5869 = vand.u32 %v5374, 4294901760
        %5870 = vmatmul.mubr.f32.gmra.mrb[0].mxu0 %v5869
        %v5871 = vpop.f32.mrb[0].mxu0
        %v5872 = vadd.f32 %v5793, %v5871
        %v5873 = vpop.f32.mrb[0].mxu0
        %5874 = vmatprep.mubr.f32.mxu0 0.0
        %v5875 = vand.u32 %v5377, 4294901760
        %5876 = vmatmul.mubr.f32.gmra.mrb[0].mxu0 %v5875
        %v5877 = vpop.f32.mrb[0].mxu0
        %v5878 = vadd.f32 %v5799, %v5877
        %v5879 = vpop.f32.mrb[0].mxu0
        %5880 = vdwg.mxu0
        %v5881 = vsel %vm2737, %v5872, -inf
        %5882 = vmax.xlane.f32.xlu0 %v5881
        %v5883 = vpop.xlane.xlu0 %5882
        %v5884 = vsel %vm2737, %v5878, -inf
        %5885 = vmax.xlane.f32.xlu0 %v5884
        %v5886 = vpop.xlane.xlu0 %5885
        %v5887 = vsub.f32 %v5872, %v5883
        %v5888 = vsub.f32 %v5878, %v5886
        %v5889 = vmul.f32 %v5887, 1.442695
        %v5890 = vpow.pop %v5889
        %v5891 = vmul.f32 %v5888, 1.442695
        %v5892 = vpow.pop %v5891
        %v5893 = vsel %vm2737, %v5890, 0.0
        %5894 = vadd.xlane.f32.xlu0 %v5893
        %v5895 = vpop.xlane.xlu0 %5894
        %v5896 = vsel %vm2737, %v5892, 0.0
        %5897 = vadd.xlane.f32.xlu0 %v5896
        %v5898 = vpop.xlane.xlu0 %5897
        %v5899 = vrcp.pop %v5895
        %v5900 = vmul.f32 %v5890, %v5899
        %v5901 = vrcp.pop %v5898
        %v5902 = vmul.f32 %v5892, %v5901
        %v5903 = vmul.f32 %v2207, %v5370
        %v5904 = vmul.f32 %v2213, %v5370
        %v5906 = vsel %vm2737, %v5900, 0
        %v5909 = vsel %vm2737, %v5902, 0
        %5911 = vmatprep.subr.mxu0 0.0
        %v5912 = vand.u32 %v5903, 4294901760
        %5913 = vmatpush1.msra.mxu0 %v5912
        %5914 = vmatprep.subr.mxu0 0.0
        %v5915 = vand.u32 %v5904, 4294901760
        %5916 = vmatpush1.msra.mxu0 %v5915
        %5917 = vmatprep.subr.mxu0 0.0
        %5918 = vmatpush1.msra.mxu0 0.0
        %5919 = vmatprep.subr.mxu0 0.0
        %5920 = vmatpush1.msra.mxu0 0.0
        %5921 = vmatprep.subr.mxu0 0.0
        %5922 = vmatpush1.msra.mxu0 0.0
        %5923 = vmatprep.subr.mxu0 0.0
        %5924 = vmatpush1.msra.mxu0 0.0
        %5925 = vmatprep.subr.mxu0 0.0
        %5926 = vmatpush1.msra.mxu0 0.0
        %5927 = vmatprep.subr.mxu0 0.0
        %5928 = vmatpush1.msra.mxu0 0.0
        %5929 = vmatprep.subr.mxu0 0.0
        %5930 = vmatpush1.msra.mxu0 0.0
        %5931 = vmatprep.subr.mxu0 0.0
        %5932 = vmatpush1.msra.mxu0 0.0
        %5933 = vmatprep.subr.mxu0 0.0
        %5934 = vmatpush1.msra.mxu0 0.0
        %5935 = vmatprep.subr.mxu0 0.0
        %5936 = vmatpush1.msra.mxu0 0.0
        %5937 = vmatprep.subr.mxu0 0.0
        %5938 = vmatpush1.msra.mxu0 0.0
        %5939 = vmatprep.subr.mxu0 0.0
        %5940 = vmatpush1.msra.mxu0 0.0
        %5941 = vmatprep.subr.mxu0 0.0
        %5942 = vmatpush1.msra.mxu0 0.0
        %5943 = vmatprep.subr.mxu0 0.0
        %5944 = vmatpush1.msra.mxu0 0.0
        %5945 = vmatprep.subr.mxu0 0.0
        %5946 = vmatpush1.msra.mxu0 0.0
        %5947 = vmatprep.subr.mxu0 0.0
        %5948 = vmatpush1.msra.mxu0 0.0
        %5949 = vmatprep.subr.mxu0 0.0
        %5950 = vmatpush1.msra.mxu0 0.0
        %5951 = vmatprep.subr.mxu0 0.0
        %5952 = vmatpush1.msra.mxu0 0.0
        %5953 = vmatprep.subr.mxu0 0.0
        %5954 = vmatpush1.msra.mxu0 0.0
        %5955 = vmatprep.subr.mxu0 0.0
        %5956 = vmatpush1.msra.mxu0 0.0
        %5957 = vmatprep.subr.mxu0 0.0
        %5958 = vmatpush1.msra.mxu0 0.0
        %5959 = vmatprep.subr.mxu0 0.0
        %5960 = vmatpush1.msra.mxu0 0.0
        %5961 = vmatprep.subr.mxu0 0.0
        %5962 = vmatpush1.msra.mxu0 0.0
        %5963 = vmatprep.subr.mxu0 0.0
        %5964 = vmatpush1.msra.mxu0 0.0
        %5965 = vmatprep.subr.mxu0 0.0
        %5966 = vmatpush1.msra.mxu0 0.0
        %5967 = vmatprep.subr.mxu0 0.0
        %5968 = vmatpush1.msra.mxu0 0.0
        %5969 = vmatprep.subr.mxu0 0.0
        %5970 = vmatpush1.msra.mxu0 0.0
        %5971 = vmatprep.subr.mxu0 0.0
        %5972 = vmatpush1.msra.mxu0 0.0
        %5973 = vmatprep.subr.mxu0 0.0
        %5974 = vmatpush1.msra.mxu0 0.0
        %5975 = vmatprep.subr.mxu0 0.0
        %5976 = vmatpush1.msra.mxu0 0.0
        %5977 = vmatprep.mubr.f32.mxu0 0.0
        %v5978 = vand.u32 %v5906, 4294901760
        %v5979 = vsub.f32 %v5906, %v5978
        %v5980 = vand.u32 %v5979, 4294901760
        %v5981 = vsub.f32 %v5979, %v5980
        %v5982 = vand.u32 %v5981, 4294901760
        %5983 = vmatmul.mubr.f32.gmra.mrb[0].mxu0 %v5982
        %v5984 = vpop.f32.mrb[0].mxu0
        %v5985 = vadd.f32 0.0, %v5984
        %v5986 = vpop.f32.mrb[0].mxu0
        %5987 = vmatprep.mubr.f32.mxu0 0.0
        %v5988 = vand.u32 %v5909, 4294901760
        %v5989 = vsub.f32 %v5909, %v5988
        %v5990 = vand.u32 %v5989, 4294901760
        %v5991 = vsub.f32 %v5989, %v5990
        %v5992 = vand.u32 %v5991, 4294901760
        %5993 = vmatmul.mubr.f32.gmra.mrb[0].mxu0 %v5992
        %v5994 = vpop.f32.mrb[0].mxu0
        %v5995 = vadd.f32 0.0, %v5994
        %v5996 = vpop.f32.mrb[0].mxu0
        %5997 = vdwg.mxu0
        %5998 = vmatprep.subr.mxu0 0.0
        %v5999 = vand.u32 %v5903, 4294901760
        %v6000 = vsub.f32 %v5903, %v5999
        %v6001 = vand.u32 %v6000, 4294901760
        %v6002 = vsub.f32 %v6000, %v6001
        %v6003 = vand.u32 %v6002, 4294901760
        %6004 = vmatpush1.msra.mxu0 %v6003
        %6005 = vmatprep.subr.mxu0 0.0
        %v6006 = vand.u32 %v5904, 4294901760
        %v6007 = vsub.f32 %v5904, %v6006
        %v6008 = vand.u32 %v6007, 4294901760
        %v6009 = vsub.f32 %v6007, %v6008
        %v6010 = vand.u32 %v6009, 4294901760
        %6011 = vmatpush1.msra.mxu0 %v6010
        %6012 = vmatprep.subr.mxu0 0.0
        %6013 = vmatpush1.msra.mxu0 0.0
        %6014 = vmatprep.subr.mxu0 0.0
        %6015 = vmatpush1.msra.mxu0 0.0
        %6016 = vmatprep.subr.mxu0 0.0
        %6017 = vmatpush1.msra.mxu0 0.0
        %6018 = vmatprep.subr.mxu0 0.0
        %6019 = vmatpush1.msra.mxu0 0.0
        %6020 = vmatprep.subr.mxu0 0.0
        %6021 = vmatpush1.msra.mxu0 0.0
        %6022 = vmatprep.subr.mxu0 0.0
        %6023 = vmatpush1.msra.mxu0 0.0
        %6024 = vmatprep.subr.mxu0 0.0
        %6025 = vmatpush1.msra.mxu0 0.0
        %6026 = vmatprep.subr.mxu0 0.0
        %6027 = vmatpush1.msra.mxu0 0.0
        %6028 = vmatprep.subr.mxu0 0.0
        %6029 = vmatpush1.msra.mxu0 0.0
        %6030 = vmatprep.subr.mxu0 0.0
        %6031 = vmatpush1.msra.mxu0 0.0
        %6032 = vmatprep.subr.mxu0 0.0
        %6033 = vmatpush1.msra.mxu0 0.0
        %6034 = vmatprep.subr.mxu0 0.0
        %6035 = vmatpush1.msra.mxu0 0.0
        %6036 = vmatprep.subr.mxu0 0.0
        %6037 = vmatpush1.msra.mxu0 0.0
        %6038 = vmatprep.subr.mxu0 0.0
        %6039 = vmatpush1.msra.mxu0 0.0
        %6040 = vmatprep.subr.mxu0 0.0
        %6041 = vmatpush1.msra.mxu0 0.0
        %6042 = vmatprep.subr.mxu0 0.0
        %6043 = vmatpush1.msra.mxu0 0.0
        %6044 = vmatprep.subr.mxu0 0.0
        %6045 = vmatpush1.msra.mxu0 0.0
        %6046 = vmatprep.subr.mxu0 0.0
        %6047 = vmatpush1.msra.mxu0 0.0
        %6048 = vmatprep.subr.mxu0 0.0
        %6049 = vmatpush1.msra.mxu0 0.0
        %6050 = vmatprep.subr.mxu0 0.0
        %6051 = vmatpush1.msra.mxu0 0.0
        %6052 = vmatprep.subr.mxu0 0.0
        %6053 = vmatpush1.msra.mxu0 0.0
        %6054 = vmatprep.subr.mxu0 0.0
        %6055 = vmatpush1.msra.mxu0 0.0
        %6056 = vmatprep.subr.mxu0 0.0
        %6057 = vmatpush1.msra.mxu0 0.0
        %6058 = vmatprep.subr.mxu0 0.0
        %6059 = vmatpush1.msra.mxu0 0.0
        %6060 = vmatprep.subr.mxu0 0.0
        %6061 = vmatpush1.msra.mxu0 0.0
        %6062 = vmatprep.subr.mxu0 0.0
        %6063 = vmatpush1.msra.mxu0 0.0
        %6064 = vmatprep.subr.mxu0 0.0
        %6065 = vmatpush1.msra.mxu0 0.0
        %6066 = vmatprep.subr.mxu0 0.0
        %6067 = vmatpush1.msra.mxu0 0.0
        %6068 = vmatprep.subr.mxu0 0.0
        %6069 = vmatpush1.msra.mxu0 0.0
        %6070 = vmatprep.subr.mxu0 0.0
        %6071 = vmatpush1.msra.mxu0 0.0
        %6072 = vmatprep.mubr.f32.mxu0 0.0
        %v6073 = vand.u32 %v5906, 4294901760
        %6074 = vmatmul.mubr.f32.gmra.mrb[0].mxu0 %v6073
        %v6075 = vpop.f32.mrb[0].mxu0
        %v6076 = vadd.f32 %v5985, %v6075
        %v6077 = vpop.f32.mrb[0].mxu0
        %6078 = vmatprep.mubr.f32.mxu0 0.0
        %v6079 = vand.u32 %v5909, 4294901760
        %6080 = vmatmul.mubr.f32.gmra.mrb[0].mxu0 %v6079
        %v6081 = vpop.f32.mrb[0].mxu0
        %v6082 = vadd.f32 %v5995, %v6081
        %v6083 = vpop.f32.mrb[0].mxu0
        %6084 = vdwg.mxu0
        %6085 = vmatprep.subr.mxu0 0.0
        %v6086 = vand.u32 %v5903, 4294901760
        %v6087 = vsub.f32 %v5903, %v6086
        %6088 = vmatpush1.msra.mxu0 %v6087
        %6089 = vmatprep.subr.mxu0 0.0
        %v6090 = vand.u32 %v5904, 4294901760
        %v6091 = vsub.f32 %v5904, %v6090
        %6092 = vmatpush1.msra.mxu0 %v6091
        %6093 = vmatprep.subr.mxu0 0.0
        %6094 = vmatpush1.msra.mxu0 0.0
        %6095 = vmatprep.subr.mxu0 0.0
        %6096 = vmatpush1.msra.mxu0 0.0
        %6097 = vmatprep.subr.mxu0 0.0
        %6098 = vmatpush1.msra.mxu0 0.0
        %6099 = vmatprep.subr.mxu0 0.0
        %6100 = vmatpush1.msra.mxu0 0.0
        %6101 = vmatprep.subr.mxu0 0.0
        %6102 = vmatpush1.msra.mxu0 0.0
        %6103 = vmatprep.subr.mxu0 0.0
        %6104 = vmatpush1.msra.mxu0 0.0
        %6105 = vmatprep.subr.mxu0 0.0
        %6106 = vmatpush1.msra.mxu0 0.0
        %6107 = vmatprep.subr.mxu0 0.0
        %6108 = vmatpush1.msra.mxu0 0.0
        %6109 = vmatprep.subr.mxu0 0.0
        %6110 = vmatpush1.msra.mxu0 0.0
        %6111 = vmatprep.subr.mxu0 0.0
        %6112 = vmatpush1.msra.mxu0 0.0
        %6113 = vmatprep.subr.mxu0 0.0
        %6114 = vmatpush1.msra.mxu0 0.0
        %6115 = vmatprep.subr.mxu0 0.0
        %6116 = vmatpush1.msra.mxu0 0.0
        %6117 = vmatprep.subr.mxu0 0.0
        %6118 = vmatpush1.msra.mxu0 0.0
        %6119 = vmatprep.subr.mxu0 0.0
        %6120 = vmatpush1.msra.mxu0 0.0
        %6121 = vmatprep.subr.mxu0 0.0
        %6122 = vmatpush1.msra.mxu0 0.0
        %6123 = vmatprep.subr.mxu0 0.0
        %6124 = vmatpush1.msra.mxu0 0.0
        %6125 = vmatprep.subr.mxu0 0.0
        %6126 = vmatpush1.msra.mxu0 0.0
        %6127 = vmatprep.subr.mxu0 0.0
        %6128 = vmatpush1.msra.mxu0 0.0
        %6129 = vmatprep.subr.mxu0 0.0
        %6130 = vmatpush1.msra.mxu0 0.0
        %6131 = vmatprep.subr.mxu0 0.0
        %6132 = vmatpush1.msra.mxu0 0.0
        %6133 = vmatprep.subr.mxu0 0.0
        %6134 = vmatpush1.msra.mxu0 0.0
        %6135 = vmatprep.subr.mxu0 0.0
        %6136 = vmatpush1.msra.mxu0 0.0
        %6137 = vmatprep.subr.mxu0 0.0
        %6138 = vmatpush1.msra.mxu0 0.0
        %6139 = vmatprep.subr.mxu0 0.0
        %6140 = vmatpush1.msra.mxu0 0.0
        %6141 = vmatprep.subr.mxu0 0.0
        %6142 = vmatpush1.msra.mxu0 0.0
        %6143 = vmatprep.subr.mxu0 0.0
        %6144 = vmatpush1.msra.mxu0 0.0
        %6145 = vmatprep.subr.mxu0 0.0
        %6146 = vmatpush1.msra.mxu0 0.0
        %6147 = vmatprep.subr.mxu0 0.0
        %6148 = vmatpush1.msra.mxu0 0.0
        %6149 = vmatprep.subr.mxu0 0.0
        %6150 = vmatpush1.msra.mxu0 0.0
        %6151 = vmatprep.subr.mxu0 0.0
        %6152 = vmatpush1.msra.mxu0 0.0
        %6153 = vmatprep.mubr.f32.mxu0 0.0
        %v6154 = vand.u32 %v5906, 4294901760
        %v6155 = vsub.f32 %v5906, %v6154
        %6156 = vmatmul.mubr.f32.gmra.mrb[0].mxu0 %v6155
        %v6157 = vpop.f32.mrb[0].mxu0
        %v6158 = vadd.f32 %v6076, %v6157
        %v6159 = vpop.f32.mrb[0].mxu0
        %6160 = vmatprep.mubr.f32.mxu0 0.0
        %v6161 = vand.u32 %v5909, 4294901760
        %v6162 = vsub.f32 %v5909, %v6161
        %6163 = vmatmul.mubr.f32.gmra.mrb[0].mxu0 %v6162
        %v6164 = vpop.f32.mrb[0].mxu0
        %v6165 = vadd.f32 %v6082, %v6164
        %v6166 = vpop.f32.mrb[0].mxu0
        %6167 = vdwg.mxu0
        %6168 = vmatprep.subr.mxu0 0.0
        %v6169 = vand.u32 %v5903, 4294901760
        %6170 = vmatpush1.msra.mxu0 %v6169
        %6171 = vmatprep.subr.mxu0 0.0
        %v6172 = vand.u32 %v5904, 4294901760
        %6173 = vmatpush1.msra.mxu0 %v6172
        %6174 = vmatprep.subr.mxu0 0.0
        %6175 = vmatpush1.msra.mxu0 0.0
        %6176 = vmatprep.subr.mxu0 0.0
        %6177 = vmatpush1.msra.mxu0 0.0
        %6178 = vmatprep.subr.mxu0 0.0
        %6179 = vmatpush1.msra.mxu0 0.0
        %6180 = vmatprep.subr.mxu0 0.0
        %6181 = vmatpush1.msra.mxu0 0.0
        %6182 = vmatprep.subr.mxu0 0.0
        %6183 = vmatpush1.msra.mxu0 0.0
        %6184 = vmatprep.subr.mxu0 0.0
        %6185 = vmatpush1.msra.mxu0 0.0
        %6186 = vmatprep.subr.mxu0 0.0
        %6187 = vmatpush1.msra.mxu0 0.0
        %6188 = vmatprep.subr.mxu0 0.0
        %6189 = vmatpush1.msra.mxu0 0.0
        %6190 = vmatprep.subr.mxu0 0.0
        %6191 = vmatpush1.msra.mxu0 0.0
        %6192 = vmatprep.subr.mxu0 0.0
        %6193 = vmatpush1.msra.mxu0 0.0
        %6194 = vmatprep.subr.mxu0 0.0
        %6195 = vmatpush1.msra.mxu0 0.0
        %6196 = vmatprep.subr.mxu0 0.0
        %6197 = vmatpush1.msra.mxu0 0.0
        %6198 = vmatprep.subr.mxu0 0.0
        %6199 = vmatpush1.msra.mxu0 0.0
        %6200 = vmatprep.subr.mxu0 0.0
        %6201 = vmatpush1.msra.mxu0 0.0
        %6202 = vmatprep.subr.mxu0 0.0
        %6203 = vmatpush1.msra.mxu0 0.0
        %6204 = vmatprep.subr.mxu0 0.0
        %6205 = vmatpush1.msra.mxu0 0.0
        %6206 = vmatprep.subr.mxu0 0.0
        %6207 = vmatpush1.msra.mxu0 0.0
        %6208 = vmatprep.subr.mxu0 0.0
        %6209 = vmatpush1.msra.mxu0 0.0
        %6210 = vmatprep.subr.mxu0 0.0
        %6211 = vmatpush1.msra.mxu0 0.0
        %6212 = vmatprep.subr.mxu0 0.0
        %6213 = vmatpush1.msra.mxu0 0.0
        %6214 = vmatprep.subr.mxu0 0.0
        %6215 = vmatpush1.msra.mxu0 0.0
        %6216 = vmatprep.subr.mxu0 0.0
        %6217 = vmatpush1.msra.mxu0 0.0
        %6218 = vmatprep.subr.mxu0 0.0
        %6219 = vmatpush1.msra.mxu0 0.0
        %6220 = vmatprep.subr.mxu0 0.0
        %6221 = vmatpush1.msra.mxu0 0.0
        %6222 = vmatprep.subr.mxu0 0.0
        %6223 = vmatpush1.msra.mxu0 0.0
        %6224 = vmatprep.subr.mxu0 0.0
        %6225 = vmatpush1.msra.mxu0 0.0
        %6226 = vmatprep.subr.mxu0 0.0
        %6227 = vmatpush1.msra.mxu0 0.0
        %6228 = vmatprep.subr.mxu0 0.0
        %6229 = vmatpush1.msra.mxu0 0.0
        %6230 = vmatprep.subr.mxu0 0.0
        %6231 = vmatpush1.msra.mxu0 0.0
        %6232 = vmatprep.subr.mxu0 0.0
        %6233 = vmatpush1.msra.mxu0 0.0
        %6234 = vmatprep.mubr.f32.mxu0 0.0
        %v6235 = vand.u32 %v5906, 4294901760
        %v6236 = vsub.f32 %v5906, %v6235
        %v6237 = vand.u32 %v6236, 4294901760
        %6238 = vmatmul.mubr.f32.gmra.mrb[0].mxu0 %v6237
        %v6239 = vpop.f32.mrb[0].mxu0
        %v6240 = vadd.f32 %v6158, %v6239
        %v6241 = vpop.f32.mrb[0].mxu0
        %6242 = vmatprep.mubr.f32.mxu0 0.0
        %v6243 = vand.u32 %v5909, 4294901760
        %v6244 = vsub.f32 %v5909, %v6243
        %v6245 = vand.u32 %v6244, 4294901760
        %6246 = vmatmul.mubr.f32.gmra.mrb[0].mxu0 %v6245
        %v6247 = vpop.f32.mrb[0].mxu0
        %v6248 = vadd.f32 %v6165, %v6247
        %v6249 = vpop.f32.mrb[0].mxu0
        %6250 = vdwg.mxu0
        %6251 = vmatprep.subr.mxu0 0.0
        %v6252 = vand.u32 %v5903, 4294901760
        %v6253 = vsub.f32 %v5903, %v6252
        %v6254 = vand.u32 %v6253, 4294901760
        %6255 = vmatpush1.msra.mxu0 %v6254
        %6256 = vmatprep.subr.mxu0 0.0
        %v6257 = vand.u32 %v5904, 4294901760
        %v6258 = vsub.f32 %v5904, %v6257
        %v6259 = vand.u32 %v6258, 4294901760
        %6260 = vmatpush1.msra.mxu0 %v6259
        %6261 = vmatprep.subr.mxu0 0.0
        %6262 = vmatpush1.msra.mxu0 0.0
        %6263 = vmatprep.subr.mxu0 0.0
        %6264 = vmatpush1.msra.mxu0 0.0
        %6265 = vmatprep.subr.mxu0 0.0
        %6266 = vmatpush1.msra.mxu0 0.0
        %6267 = vmatprep.subr.mxu0 0.0
        %6268 = vmatpush1.msra.mxu0 0.0
        %6269 = vmatprep.subr.mxu0 0.0
        %6270 = vmatpush1.msra.mxu0 0.0
        %6271 = vmatprep.subr.mxu0 0.0
        %6272 = vmatpush1.msra.mxu0 0.0
        %6273 = vmatprep.subr.mxu0 0.0
        %6274 = vmatpush1.msra.mxu0 0.0
        %6275 = vmatprep.subr.mxu0 0.0
        %6276 = vmatpush1.msra.mxu0 0.0
        %6277 = vmatprep.subr.mxu0 0.0
        %6278 = vmatpush1.msra.mxu0 0.0
        %6279 = vmatprep.subr.mxu0 0.0
        %6280 = vmatpush1.msra.mxu0 0.0
        %6281 = vmatprep.subr.mxu0 0.0
        %6282 = vmatpush1.msra.mxu0 0.0
        %6283 = vmatprep.subr.mxu0 0.0
        %6284 = vmatpush1.msra.mxu0 0.0
        %6285 = vmatprep.subr.mxu0 0.0
        %6286 = vmatpush1.msra.mxu0 0.0
        %6287 = vmatprep.subr.mxu0 0.0
        %6288 = vmatpush1.msra.mxu0 0.0
        %6289 = vmatprep.subr.mxu0 0.0
        %6290 = vmatpush1.msra.mxu0 0.0
        %6291 = vmatprep.subr.mxu0 0.0
        %6292 = vmatpush1.msra.mxu0 0.0
        %6293 = vmatprep.subr.mxu0 0.0
        %6294 = vmatpush1.msra.mxu0 0.0
        %6295 = vmatprep.subr.mxu0 0.0
        %6296 = vmatpush1.msra.mxu0 0.0
        %6297 = vmatprep.subr.mxu0 0.0
        %6298 = vmatpush1.msra.mxu0 0.0
        %6299 = vmatprep.subr.mxu0 0.0
        %6300 = vmatpush1.msra.mxu0 0.0
        %6301 = vmatprep.subr.mxu0 0.0
        %6302 = vmatpush1.msra.mxu0 0.0
        %6303 = vmatprep.subr.mxu0 0.0
        %6304 = vmatpush1.msra.mxu0 0.0
        %6305 = vmatprep.subr.mxu0 0.0
        %6306 = vmatpush1.msra.mxu0 0.0
        %6307 = vmatprep.subr.mxu0 0.0
        %6308 = vmatpush1.msra.mxu0 0.0
        %6309 = vmatprep.subr.mxu0 0.0
        %6310 = vmatpush1.msra.mxu0 0.0
        %6311 = vmatprep.subr.mxu0 0.0
        %6312 = vmatpush1.msra.mxu0 0.0
        %6313 = vmatprep.subr.mxu0 0.0
        %6314 = vmatpush1.msra.mxu0 0.0
        %6315 = vmatprep.subr.mxu0 0.0
        %6316 = vmatpush1.msra.mxu0 0.0
        %6317 = vmatprep.subr.mxu0 0.0
        %6318 = vmatpush1.msra.mxu0 0.0
        %6319 = vmatprep.subr.mxu0 0.0
        %6320 = vmatpush1.msra.mxu0 0.0
        %6321 = vmatprep.mubr.f32.mxu0 0.0
        %v6322 = vand.u32 %v5906, 4294901760
        %6323 = vmatmul.mubr.f32.gmra.mrb[0].mxu0 %v6322
        %v6324 = vpop.f32.mrb[0].mxu0
        %v6325 = vadd.f32 %v6240, %v6324
        %v6326 = vpop.f32.mrb[0].mxu0
        %6327 = vmatprep.mubr.f32.mxu0 0.0
        %v6328 = vand.u32 %v5909, 4294901760
        %6329 = vmatmul.mubr.f32.gmra.mrb[0].mxu0 %v6328
        %v6330 = vpop.f32.mrb[0].mxu0
        %v6331 = vadd.f32 %v6248, %v6330
        %v6332 = vpop.f32.mrb[0].mxu0
        %6333 = vdwg.mxu0
        %6334 = vmatprep.subr.mxu0 0.0
        %v6335 = vand.u32 %v5903, 4294901760
        %6336 = vmatpush1.msra.mxu0 %v6335
        %6337 = vmatprep.subr.mxu0 0.0
        %v6338 = vand.u32 %v5904, 4294901760
        %6339 = vmatpush1.msra.mxu0 %v6338
        %6340 = vmatprep.subr.mxu0 0.0
        %6341 = vmatpush1.msra.mxu0 0.0
        %6342 = vmatprep.subr.mxu0 0.0
        %6343 = vmatpush1.msra.mxu0 0.0
        %6344 = vmatprep.subr.mxu0 0.0
        %6345 = vmatpush1.msra.mxu0 0.0
        %6346 = vmatprep.subr.mxu0 0.0
        %6347 = vmatpush1.msra.mxu0 0.0
        %6348 = vmatprep.subr.mxu0 0.0
        %6349 = vmatpush1.msra.mxu0 0.0
        %6350 = vmatprep.subr.mxu0 0.0
        %6351 = vmatpush1.msra.mxu0 0.0
        %6352 = vmatprep.subr.mxu0 0.0
        %6353 = vmatpush1.msra.mxu0 0.0
        %6354 = vmatprep.subr.mxu0 0.0
        %6355 = vmatpush1.msra.mxu0 0.0
        %6356 = vmatprep.subr.mxu0 0.0
        %6357 = vmatpush1.msra.mxu0 0.0
        %6358 = vmatprep.subr.mxu0 0.0
        %6359 = vmatpush1.msra.mxu0 0.0
        %6360 = vmatprep.subr.mxu0 0.0
        %6361 = vmatpush1.msra.mxu0 0.0
        %6362 = vmatprep.subr.mxu0 0.0
        %6363 = vmatpush1.msra.mxu0 0.0
        %6364 = vmatprep.subr.mxu0 0.0
        %6365 = vmatpush1.msra.mxu0 0.0
        %6366 = vmatprep.subr.mxu0 0.0
        %6367 = vmatpush1.msra.mxu0 0.0
        %6368 = vmatprep.subr.mxu0 0.0
        %6369 = vmatpush1.msra.mxu0 0.0
        %6370 = vmatprep.subr.mxu0 0.0
        %6371 = vmatpush1.msra.mxu0 0.0
        %6372 = vmatprep.subr.mxu0 0.0
        %6373 = vmatpush1.msra.mxu0 0.0
        %6374 = vmatprep.subr.mxu0 0.0
        %6375 = vmatpush1.msra.mxu0 0.0
        %6376 = vmatprep.subr.mxu0 0.0
        %6377 = vmatpush1.msra.mxu0 0.0
        %6378 = vmatprep.subr.mxu0 0.0
        %6379 = vmatpush1.msra.mxu0 0.0
        %6380 = vmatprep.subr.mxu0 0.0
        %6381 = vmatpush1.msra.mxu0 0.0
        %6382 = vmatprep.subr.mxu0 0.0
        %6383 = vmatpush1.msra.mxu0 0.0
        %6384 = vmatprep.subr.mxu0 0.0
        %6385 = vmatpush1.msra.mxu0 0.0
        %6386 = vmatprep.subr.mxu0 0.0
        %6387 = vmatpush1.msra.mxu0 0.0
        %6388 = vmatprep.subr.mxu0 0.0
        %6389 = vmatpush1.msra.mxu0 0.0
        %6390 = vmatprep.subr.mxu0 0.0
        %6391 = vmatpush1.msra.mxu0 0.0
        %6392 = vmatprep.subr.mxu0 0.0
        %6393 = vmatpush1.msra.mxu0 0.0
        %6394 = vmatprep.subr.mxu0 0.0
        %6395 = vmatpush1.msra.mxu0 0.0
        %6396 = vmatprep.subr.mxu0 0.0
        %6397 = vmatpush1.msra.mxu0 0.0
        %6398 = vmatprep.subr.mxu0 0.0
        %6399 = vmatpush1.msra.mxu0 0.0
        %6400 = vmatprep.mubr.f32.mxu0 0.0
        %v6401 = vand.u32 %v5906, 4294901760
        %6402 = vmatmul.mubr.f32.gmra.mrb[0].mxu0 %v6401
        %v6403 = vpop.f32.mrb[0].mxu0
        %v6404 = vadd.f32 %v6325, %v6403
        %v6405 = vpop.f32.mrb[0].mxu0
        %6406 = vmatprep.mubr.f32.mxu0 0.0
        %v6407 = vand.u32 %v5909, 4294901760
        %6408 = vmatmul.mubr.f32.gmra.mrb[0].mxu0 %v6407
        %v6409 = vpop.f32.mrb[0].mxu0
        %v6410 = vadd.f32 %v6331, %v6409
        %v6411 = vpop.f32.mrb[0].mxu0
        %6412 = vdwg.mxu0
        %v6413 = vadd.f32 %v5364, %v6404
        %v6414 = vadd.f32 %v5365, %v6410
        %v6415 = vld [vmem:[%s476] sm:$0xff]
        %v6416 = vld [vmem:[%s476 + $0x8] sm:$0xff]
        %v6417 = vld [vmem:[%s476 + $0x10] sm:$0xff]
        %v6418 = vld [vmem:[%s476 + $0x18] sm:$0xff]
        %v6419 = vlaneseq
        %v6420 = vshrl.u32 %v6419, 7
        %v6421 = vsub.s32 3, %v6420
        %v6422 = vrot.slane %v589, %v6421
        %v6424 = vsel %vm601, %v6413, 0
        %v6427 = vsel %vm601, %v6414, 0
        %6429 = vmatprep.subr.mxu0 0.0
        %v6430 = vand.u32 %v6415, 4294901760
        %6431 = vmatpush1.msra.mxu0 %v6430
        %6432 = vmatprep.subr.mxu0 0.0
        %v6433 = vand.u32 %v6416, 4294901760
        %6434 = vmatpush1.msra.mxu0 %v6433
        %6435 = vmatprep.subr.mxu0 0.0
        %v6436 = vand.u32 %v6417, 4294901760
        %6437 = vmatpush1.msra.mxu0 %v6436
        %6438 = vmatprep.subr.mxu0 0.0
        %v6439 = vand.u32 %v6418, 4294901760
        %6440 = vmatpush1.msra.mxu0 %v6439
        %6441 = vmatprep.subr.mxu0 0.0
        %6442 = vmatpush1.msra.mxu0 0.0
        %6443 = vmatprep.subr.mxu0 0.0
        %6444 = vmatpush1.msra.mxu0 0.0
        %6445 = vmatprep.subr.mxu0 0.0
        %6446 = vmatpush1.msra.mxu0 0.0
        %6447 = vmatprep.subr.mxu0 0.0
        %6448 = vmatpush1.msra.mxu0 0.0
        %6449 = vmatprep.subr.mxu0 0.0
        %6450 = vmatpush1.msra.mxu0 0.0
        %6451 = vmatprep.subr.mxu0 0.0
        %6452 = vmatpush1.msra.mxu0 0.0
        %6453 = vmatprep.subr.mxu0 0.0
        %6454 = vmatpush1.msra.mxu0 0.0
        %6455 = vmatprep.subr.mxu0 0.0
        %6456 = vmatpush1.msra.mxu0 0.0
        %6457 = vmatprep.subr.mxu0 0.0
        %6458 = vmatpush1.msra.mxu0 0.0
        %6459 = vmatprep.subr.mxu0 0.0
        %6460 = vmatpush1.msra.mxu0 0.0
        %6461 = vmatprep.subr.mxu0 0.0
        %6462 = vmatpush1.msra.mxu0 0.0
        %6463 = vmatprep.subr.mxu0 0.0
        %6464 = vmatpush1.msra.mxu0 0.0
        %6465 = vmatprep.subr.mxu0 0.0
        %6466 = vmatpush1.msra.mxu0 0.0
        %6467 = vmatprep.subr.mxu0 0.0
        %6468 = vmatpush1.msra.mxu0 0.0
        %6469 = vmatprep.subr.mxu0 0.0
        %6470 = vmatpush1.msra.mxu0 0.0
        %6471 = vmatprep.subr.mxu0 0.0
        %6472 = vmatpush1.msra.mxu0 0.0
        %6473 = vmatprep.subr.mxu0 0.0
        %6474 = vmatpush1.msra.mxu0 0.0
        %6475 = vmatprep.subr.mxu0 0.0
        %6476 = vmatpush1.msra.mxu0 0.0
        %6477 = vmatprep.subr.mxu0 0.0
        %6478 = vmatpush1.msra.mxu0 0.0
        %6479 = vmatprep.subr.mxu0 0.0
        %6480 = vmatpush1.msra.mxu0 0.0
        %6481 = vmatprep.subr.mxu0 0.0
        %6482 = vmatpush1.msra.mxu0 0.0
        %6483 = vmatprep.subr.mxu0 0.0
        %6484 = vmatpush1.msra.mxu0 0.0
        %6485 = vmatprep.subr.mxu0 0.0
        %6486 = vmatpush1.msra.mxu0 0.0
        %6487 = vmatprep.subr.mxu0 0.0
        %6488 = vmatpush1.msra.mxu0 0.0
        %6489 = vmatprep.subr.mxu0 0.0
        %6490 = vmatpush1.msra.mxu0 0.0
        %6491 = vmatprep.subr.mxu0 0.0
        %6492 = vmatpush1.msra.mxu0 0.0
        %6493 = vmatprep.subr.mxu0 0.0
        %6494 = vmatpush1.msra.mxu0 0.0
        %6495 = vmatprep.subr.mxu0 0.0
        %6496 = vmatpush1.msra.mxu0 0.0
        %6497 = vmatprep.mubr.f32.mxu0 0.0
        %v6498 = vand.u32 %v6424, 4294901760
        %v6499 = vsub.f32 %v6424, %v6498
        %v6500 = vand.u32 %v6499, 4294901760
        %v6501 = vsub.f32 %v6499, %v6500
        %v6502 = vand.u32 %v6501, 4294901760
        %6503 = vmatmul.mubr.f32.gmra.mrb[0].mxu0 %v6502
        %v6504 = vpop.f32.mrb[0].mxu0
        %v6505 = vadd.f32 %v6422, %v6504
        %v6506 = vpop.f32.mrb[0].mxu0
        %6507 = vmatprep.mubr.f32.mxu0 0.0
        %v6508 = vand.u32 %v6427, 4294901760
        %v6509 = vsub.f32 %v6427, %v6508
        %v6510 = vand.u32 %v6509, 4294901760
        %v6511 = vsub.f32 %v6509, %v6510
        %v6512 = vand.u32 %v6511, 4294901760
        %6513 = vmatmul.mubr.f32.gmra.mrb[0].mxu0 %v6512
        %v6514 = vpop.f32.mrb[0].mxu0
        %v6515 = vadd.f32 %v6422, %v6514
        %v6516 = vpop.f32.mrb[0].mxu0
        %6517 = vdwg.mxu0
        %6518 = vmatprep.subr.mxu0 0.0
        %v6519 = vand.u32 %v6415, 4294901760
        %v6520 = vsub.f32 %v6415, %v6519
        %v6521 = vand.u32 %v6520, 4294901760
        %v6522 = vsub.f32 %v6520, %v6521
        %v6523 = vand.u32 %v6522, 4294901760
        %6524 = vmatpush1.msra.mxu0 %v6523
        %6525 = vmatprep.subr.mxu0 0.0
        %v6526 = vand.u32 %v6416, 4294901760
        %v6527 = vsub.f32 %v6416, %v6526
        %v6528 = vand.u32 %v6527, 4294901760
        %v6529 = vsub.f32 %v6527, %v6528
        %v6530 = vand.u32 %v6529, 4294901760
        %6531 = vmatpush1.msra.mxu0 %v6530
        %6532 = vmatprep.subr.mxu0 0.0
        %v6533 = vand.u32 %v6417, 4294901760
        %v6534 = vsub.f32 %v6417, %v6533
        %v6535 = vand.u32 %v6534, 4294901760
        %v6536 = vsub.f32 %v6534, %v6535
        %v6537 = vand.u32 %v6536, 4294901760
        %6538 = vmatpush1.msra.mxu0 %v6537
        %6539 = vmatprep.subr.mxu0 0.0
        %v6540 = vand.u32 %v6418, 4294901760
        %v6541 = vsub.f32 %v6418, %v6540
        %v6542 = vand.u32 %v6541, 4294901760
        %v6543 = vsub.f32 %v6541, %v6542
        %v6544 = vand.u32 %v6543, 4294901760
        %6545 = vmatpush1.msra.mxu0 %v6544
        %6546 = vmatprep.subr.mxu0 0.0
        %6547 = vmatpush1.msra.mxu0 0.0
        %6548 = vmatprep.subr.mxu0 0.0
        %6549 = vmatpush1.msra.mxu0 0.0
        %6550 = vmatprep.subr.mxu0 0.0
        %6551 = vmatpush1.msra.mxu0 0.0
        %6552 = vmatprep.subr.mxu0 0.0
        %6553 = vmatpush1.msra.mxu0 0.0
        %6554 = vmatprep.subr.mxu0 0.0
        %6555 = vmatpush1.msra.mxu0 0.0
        %6556 = vmatprep.subr.mxu0 0.0
        %6557 = vmatpush1.msra.mxu0 0.0
        %6558 = vmatprep.subr.mxu0 0.0
        %6559 = vmatpush1.msra.mxu0 0.0
        %6560 = vmatprep.subr.mxu0 0.0
        %6561 = vmatpush1.msra.mxu0 0.0
        %6562 = vmatprep.subr.mxu0 0.0
        %6563 = vmatpush1.msra.mxu0 0.0
        %6564 = vmatprep.subr.mxu0 0.0
        %6565 = vmatpush1.msra.mxu0 0.0
        %6566 = vmatprep.subr.mxu0 0.0
        %6567 = vmatpush1.msra.mxu0 0.0
        %6568 = vmatprep.subr.mxu0 0.0
        %6569 = vmatpush1.msra.mxu0 0.0
        %6570 = vmatprep.subr.mxu0 0.0
        %6571 = vmatpush1.msra.mxu0 0.0
        %6572 = vmatprep.subr.mxu0 0.0
        %6573 = vmatpush1.msra.mxu0 0.0
        %6574 = vmatprep.subr.mxu0 0.0
        %6575 = vmatpush1.msra.mxu0 0.0
        %6576 = vmatprep.subr.mxu0 0.0
        %6577 = vmatpush1.msra.mxu0 0.0
        %6578 = vmatprep.subr.mxu0 0.0
        %6579 = vmatpush1.msra.mxu0 0.0
        %6580 = vmatprep.subr.mxu0 0.0
        %6581 = vmatpush1.msra.mxu0 0.0
        %6582 = vmatprep.subr.mxu0 0.0
        %6583 = vmatpush1.msra.mxu0 0.0
        %6584 = vmatprep.subr.mxu0 0.0
        %6585 = vmatpush1.msra.mxu0 0.0
        %6586 = vmatprep.subr.mxu0 0.0
        %6587 = vmatpush1.msra.mxu0 0.0
        %6588 = vmatprep.subr.mxu0 0.0
        %6589 = vmatpush1.msra.mxu0 0.0
        %6590 = vmatprep.subr.mxu0 0.0
        %6591 = vmatpush1.msra.mxu0 0.0
        %6592 = vmatprep.subr.mxu0 0.0
        %6593 = vmatpush1.msra.mxu0 0.0
        %6594 = vmatprep.subr.mxu0 0.0
        %6595 = vmatpush1.msra.mxu0 0.0
        %6596 = vmatprep.subr.mxu0 0.0
        %6597 = vmatpush1.msra.mxu0 0.0
        %6598 = vmatprep.subr.mxu0 0.0
        %6599 = vmatpush1.msra.mxu0 0.0
        %6600 = vmatprep.subr.mxu0 0.0
        %6601 = vmatpush1.msra.mxu0 0.0
        %6602 = vmatprep.mubr.f32.mxu0 0.0
        %v6603 = vand.u32 %v6424, 4294901760
        %6604 = vmatmul.mubr.f32.gmra.mrb[0].mxu0 %v6603
        %v6605 = vpop.f32.mrb[0].mxu0
        %v6606 = vadd.f32 %v6505, %v6605
        %v6607 = vpop.f32.mrb[0].mxu0
        %6608 = vmatprep.mubr.f32.mxu0 0.0
        %v6609 = vand.u32 %v6427, 4294901760
        %6610 = vmatmul.mubr.f32.gmra.mrb[0].mxu0 %v6609
        %v6611 = vpop.f32.mrb[0].mxu0
        %v6612 = vadd.f32 %v6515, %v6611
        %v6613 = vpop.f32.mrb[0].mxu0
        %6614 = vdwg.mxu0
        %6615 = vmatprep.subr.mxu0 0.0
        %v6616 = vand.u32 %v6415, 4294901760
        %v6617 = vsub.f32 %v6415, %v6616
        %6618 = vmatpush1.msra.mxu0 %v6617
        %6619 = vmatprep.subr.mxu0 0.0
        %v6620 = vand.u32 %v6416, 4294901760
        %v6621 = vsub.f32 %v6416, %v6620
        %6622 = vmatpush1.msra.mxu0 %v6621
        %6623 = vmatprep.subr.mxu0 0.0
        %v6624 = vand.u32 %v6417, 4294901760
        %v6625 = vsub.f32 %v6417, %v6624
        %6626 = vmatpush1.msra.mxu0 %v6625
        %6627 = vmatprep.subr.mxu0 0.0
        %v6628 = vand.u32 %v6418, 4294901760
        %v6629 = vsub.f32 %v6418, %v6628
        %6630 = vmatpush1.msra.mxu0 %v6629
        %6631 = vmatprep.subr.mxu0 0.0
        %6632 = vmatpush1.msra.mxu0 0.0
        %6633 = vmatprep.subr.mxu0 0.0
        %6634 = vmatpush1.msra.mxu0 0.0
        %6635 = vmatprep.subr.mxu0 0.0
        %6636 = vmatpush1.msra.mxu0 0.0
        %6637 = vmatprep.subr.mxu0 0.0
        %6638 = vmatpush1.msra.mxu0 0.0
        %6639 = vmatprep.subr.mxu0 0.0
        %6640 = vmatpush1.msra.mxu0 0.0
        %6641 = vmatprep.subr.mxu0 0.0
        %6642 = vmatpush1.msra.mxu0 0.0
        %6643 = vmatprep.subr.mxu0 0.0
        %6644 = vmatpush1.msra.mxu0 0.0
        %6645 = vmatprep.subr.mxu0 0.0
        %6646 = vmatpush1.msra.mxu0 0.0
        %6647 = vmatprep.subr.mxu0 0.0
        %6648 = vmatpush1.msra.mxu0 0.0
        %6649 = vmatprep.subr.mxu0 0.0
        %6650 = vmatpush1.msra.mxu0 0.0
        %6651 = vmatprep.subr.mxu0 0.0
        %6652 = vmatpush1.msra.mxu0 0.0
        %6653 = vmatprep.subr.mxu0 0.0
        %6654 = vmatpush1.msra.mxu0 0.0
        %6655 = vmatprep.subr.mxu0 0.0
        %6656 = vmatpush1.msra.mxu0 0.0
        %6657 = vmatprep.subr.mxu0 0.0
        %6658 = vmatpush1.msra.mxu0 0.0
        %6659 = vmatprep.subr.mxu0 0.0
        %6660 = vmatpush1.msra.mxu0 0.0
        %6661 = vmatprep.subr.mxu0 0.0
        %6662 = vmatpush1.msra.mxu0 0.0
        %6663 = vmatprep.subr.mxu0 0.0
        %6664 = vmatpush1.msra.mxu0 0.0
        %6665 = vmatprep.subr.mxu0 0.0
        %6666 = vmatpush1.msra.mxu0 0.0
        %6667 = vmatprep.subr.mxu0 0.0
        %6668 = vmatpush1.msra.mxu0 0.0
        %6669 = vmatprep.subr.mxu0 0.0
        %6670 = vmatpush1.msra.mxu0 0.0
        %6671 = vmatprep.subr.mxu0 0.0
        %6672 = vmatpush1.msra.mxu0 0.0
        %6673 = vmatprep.subr.mxu0 0.0
        %6674 = vmatpush1.msra.mxu0 0.0
        %6675 = vmatprep.subr.mxu0 0.0
        %6676 = vmatpush1.msra.mxu0 0.0
        %6677 = vmatprep.subr.mxu0 0.0
        %6678 = vmatpush1.msra.mxu0 0.0
        %6679 = vmatprep.subr.mxu0 0.0
        %6680 = vmatpush1.msra.mxu0 0.0
        %6681 = vmatprep.subr.mxu0 0.0
        %6682 = vmatpush1.msra.mxu0 0.0
        %6683 = vmatprep.subr.mxu0 0.0
        %6684 = vmatpush1.msra.mxu0 0.0
        %6685 = vmatprep.subr.mxu0 0.0
        %6686 = vmatpush1.msra.mxu0 0.0
        %6687 = vmatprep.mubr.f32.mxu0 0.0
        %v6688 = vand.u32 %v6424, 4294901760
        %v6689 = vsub.f32 %v6424, %v6688
        %6690 = vmatmul.mubr.f32.gmra.mrb[0].mxu0 %v6689
        %v6691 = vpop.f32.mrb[0].mxu0
        %v6692 = vadd.f32 %v6606, %v6691
        %v6693 = vpop.f32.mrb[0].mxu0
        %6694 = vmatprep.mubr.f32.mxu0 0.0
        %v6695 = vand.u32 %v6427, 4294901760
        %v6696 = vsub.f32 %v6427, %v6695
        %6697 = vmatmul.mubr.f32.gmra.mrb[0].mxu0 %v6696
        %v6698 = vpop.f32.mrb[0].mxu0
        %v6699 = vadd.f32 %v6612, %v6698
        %v6700 = vpop.f32.mrb[0].mxu0
        %6701 = vdwg.mxu0
        %6702 = vmatprep.subr.mxu0 0.0
        %v6703 = vand.u32 %v6415, 4294901760
        %6704 = vmatpush1.msra.mxu0 %v6703
        %6705 = vmatprep.subr.mxu0 0.0
        %v6706 = vand.u32 %v6416, 4294901760
        %6707 = vmatpush1.msra.mxu0 %v6706
        %6708 = vmatprep.subr.mxu0 0.0
        %v6709 = vand.u32 %v6417, 4294901760
        %6710 = vmatpush1.msra.mxu0 %v6709
        %6711 = vmatprep.subr.mxu0 0.0
        %v6712 = vand.u32 %v6418, 4294901760
        %6713 = vmatpush1.msra.mxu0 %v6712
        %6714 = vmatprep.subr.mxu0 0.0
        %6715 = vmatpush1.msra.mxu0 0.0
        %6716 = vmatprep.subr.mxu0 0.0
        %6717 = vmatpush1.msra.mxu0 0.0
        %6718 = vmatprep.subr.mxu0 0.0
        %6719 = vmatpush1.msra.mxu0 0.0
        %6720 = vmatprep.subr.mxu0 0.0
        %6721 = vmatpush1.msra.mxu0 0.0
        %6722 = vmatprep.subr.mxu0 0.0
        %6723 = vmatpush1.msra.mxu0 0.0
        %6724 = vmatprep.subr.mxu0 0.0
        %6725 = vmatpush1.msra.mxu0 0.0
        %6726 = vmatprep.subr.mxu0 0.0
        %6727 = vmatpush1.msra.mxu0 0.0
        %6728 = vmatprep.subr.mxu0 0.0
        %6729 = vmatpush1.msra.mxu0 0.0
        %6730 = vmatprep.subr.mxu0 0.0
        %6731 = vmatpush1.msra.mxu0 0.0
        %6732 = vmatprep.subr.mxu0 0.0
        %6733 = vmatpush1.msra.mxu0 0.0
        %6734 = vmatprep.subr.mxu0 0.0
        %6735 = vmatpush1.msra.mxu0 0.0
        %6736 = vmatprep.subr.mxu0 0.0
        %6737 = vmatpush1.msra.mxu0 0.0
        %6738 = vmatprep.subr.mxu0 0.0
        %6739 = vmatpush1.msra.mxu0 0.0
        %6740 = vmatprep.subr.mxu0 0.0
        %6741 = vmatpush1.msra.mxu0 0.0
        %6742 = vmatprep.subr.mxu0 0.0
        %6743 = vmatpush1.msra.mxu0 0.0
        %6744 = vmatprep.subr.mxu0 0.0
        %6745 = vmatpush1.msra.mxu0 0.0
        %6746 = vmatprep.subr.mxu0 0.0
        %6747 = vmatpush1.msra.mxu0 0.0
        %6748 = vmatprep.subr.mxu0 0.0
        %6749 = vmatpush1.msra.mxu0 0.0
        %6750 = vmatprep.subr.mxu0 0.0
        %6751 = vmatpush1.msra.mxu0 0.0
        %6752 = vmatprep.subr.mxu0 0.0
        %6753 = vmatpush1.msra.mxu0 0.0
        %6754 = vmatprep.subr.mxu0 0.0
        %6755 = vmatpush1.msra.mxu0 0.0
        %6756 = vmatprep.subr.mxu0 0.0
        %6757 = vmatpush1.msra.mxu0 0.0
        %6758 = vmatprep.subr.mxu0 0.0
        %6759 = vmatpush1.msra.mxu0 0.0
        %6760 = vmatprep.subr.mxu0 0.0
        %6761 = vmatpush1.msra.mxu0 0.0
        %6762 = vmatprep.subr.mxu0 0.0
        %6763 = vmatpush1.msra.mxu0 0.0
        %6764 = vmatprep.subr.mxu0 0.0
        %6765 = vmatpush1.msra.mxu0 0.0
        %6766 = vmatprep.subr.mxu0 0.0
        %6767 = vmatpush1.msra.mxu0 0.0
        %6768 = vmatprep.subr.mxu0 0.0
        %6769 = vmatpush1.msra.mxu0 0.0
        %6770 = vmatprep.mubr.f32.mxu0 0.0
        %v6771 = vand.u32 %v6424, 4294901760
        %v6772 = vsub.f32 %v6424, %v6771
        %v6773 = vand.u32 %v6772, 4294901760
        %6774 = vmatmul.mubr.f32.gmra.mrb[0].mxu0 %v6773
        %v6775 = vpop.f32.mrb[0].mxu0
        %v6776 = vadd.f32 %v6692, %v6775
        %v6777 = vpop.f32.mrb[0].mxu0
        %6778 = vmatprep.mubr.f32.mxu0 0.0
        %v6779 = vand.u32 %v6427, 4294901760
        %v6780 = vsub.f32 %v6427, %v6779
        %v6781 = vand.u32 %v6780, 4294901760
        %6782 = vmatmul.mubr.f32.gmra.mrb[0].mxu0 %v6781
        %v6783 = vpop.f32.mrb[0].mxu0
        %v6784 = vadd.f32 %v6699, %v6783
        %v6785 = vpop.f32.mrb[0].mxu0
        %6786 = vdwg.mxu0
        %6787 = vmatprep.subr.mxu0 0.0
        %v6788 = vand.u32 %v6415, 4294901760
        %v6789 = vsub.f32 %v6415, %v6788
        %v6790 = vand.u32 %v6789, 4294901760
        %6791 = vmatpush1.msra.mxu0 %v6790
        %6792 = vmatprep.subr.mxu0 0.0
        %v6793 = vand.u32 %v6416, 4294901760
        %v6794 = vsub.f32 %v6416, %v6793
        %v6795 = vand.u32 %v6794, 4294901760
        %6796 = vmatpush1.msra.mxu0 %v6795
        %6797 = vmatprep.subr.mxu0 0.0
        %v6798 = vand.u32 %v6417, 4294901760
        %v6799 = vsub.f32 %v6417, %v6798
        %v6800 = vand.u32 %v6799, 4294901760
        %6801 = vmatpush1.msra.mxu0 %v6800
        %6802 = vmatprep.subr.mxu0 0.0
        %v6803 = vand.u32 %v6418, 4294901760
        %v6804 = vsub.f32 %v6418, %v6803
        %v6805 = vand.u32 %v6804, 4294901760
        %6806 = vmatpush1.msra.mxu0 %v6805
        %6807 = vmatprep.subr.mxu0 0.0
        %6808 = vmatpush1.msra.mxu0 0.0
        %6809 = vmatprep.subr.mxu0 0.0
        %6810 = vmatpush1.msra.mxu0 0.0
        %6811 = vmatprep.subr.mxu0 0.0
        %6812 = vmatpush1.msra.mxu0 0.0
        %6813 = vmatprep.subr.mxu0 0.0
        %6814 = vmatpush1.msra.mxu0 0.0
        %6815 = vmatprep.subr.mxu0 0.0
        %6816 = vmatpush1.msra.mxu0 0.0
        %6817 = vmatprep.subr.mxu0 0.0
        %6818 = vmatpush1.msra.mxu0 0.0
        %6819 = vmatprep.subr.mxu0 0.0
        %6820 = vmatpush1.msra.mxu0 0.0
        %6821 = vmatprep.subr.mxu0 0.0
        %6822 = vmatpush1.msra.mxu0 0.0
        %6823 = vmatprep.subr.mxu0 0.0
        %6824 = vmatpush1.msra.mxu0 0.0
        %6825 = vmatprep.subr.mxu0 0.0
        %6826 = vmatpush1.msra.mxu0 0.0
        %6827 = vmatprep.subr.mxu0 0.0
        %6828 = vmatpush1.msra.mxu0 0.0
        %6829 = vmatprep.subr.mxu0 0.0
        %6830 = vmatpush1.msra.mxu0 0.0
        %6831 = vmatprep.subr.mxu0 0.0
        %6832 = vmatpush1.msra.mxu0 0.0
        %6833 = vmatprep.subr.mxu0 0.0
        %6834 = vmatpush1.msra.mxu0 0.0
        %6835 = vmatprep.subr.mxu0 0.0
        %6836 = vmatpush1.msra.mxu0 0.0
        %6837 = vmatprep.subr.mxu0 0.0
        %6838 = vmatpush1.msra.mxu0 0.0
        %6839 = vmatprep.subr.mxu0 0.0
        %6840 = vmatpush1.msra.mxu0 0.0
        %6841 = vmatprep.subr.mxu0 0.0
        %6842 = vmatpush1.msra.mxu0 0.0
        %6843 = vmatprep.subr.mxu0 0.0
        %6844 = vmatpush1.msra.mxu0 0.0
        %6845 = vmatprep.subr.mxu0 0.0
        %6846 = vmatpush1.msra.mxu0 0.0
        %6847 = vmatprep.subr.mxu0 0.0
        %6848 = vmatpush1.msra.mxu0 0.0
        %6849 = vmatprep.subr.mxu0 0.0
        %6850 = vmatpush1.msra.mxu0 0.0
        %6851 = vmatprep.subr.mxu0 0.0
        %6852 = vmatpush1.msra.mxu0 0.0
        %6853 = vmatprep.subr.mxu0 0.0
        %6854 = vmatpush1.msra.mxu0 0.0
        %6855 = vmatprep.subr.mxu0 0.0
        %6856 = vmatpush1.msra.mxu0 0.0
        %6857 = vmatprep.subr.mxu0 0.0
        %6858 = vmatpush1.msra.mxu0 0.0
        %6859 = vmatprep.subr.mxu0 0.0
        %6860 = vmatpush1.msra.mxu0 0.0
        %6861 = vmatprep.subr.mxu0 0.0
        %6862 = vmatpush1.msra.mxu0 0.0
        %6863 = vmatprep.mubr.f32.mxu0 0.0
        %v6864 = vand.u32 %v6424, 4294901760
        %6865 = vmatmul.mubr.f32.gmra.mrb[0].mxu0 %v6864
        %v6866 = vpop.f32.mrb[0].mxu0
        %v6867 = vadd.f32 %v6776, %v6866
        %v6868 = vpop.f32.mrb[0].mxu0
        %6869 = vmatprep.mubr.f32.mxu0 0.0
        %v6870 = vand.u32 %v6427, 4294901760
        %6871 = vmatmul.mubr.f32.gmra.mrb[0].mxu0 %v6870
        %v6872 = vpop.f32.mrb[0].mxu0
        %v6873 = vadd.f32 %v6784, %v6872
        %v6874 = vpop.f32.mrb[0].mxu0
        %6875 = vdwg.mxu0
        %6876 = vmatprep.subr.mxu0 0.0
        %v6877 = vand.u32 %v6415, 4294901760
        %6878 = vmatpush1.msra.mxu0 %v6877
        %6879 = vmatprep.subr.mxu0 0.0
        %v6880 = vand.u32 %v6416, 4294901760
        %6881 = vmatpush1.msra.mxu0 %v6880
        %6882 = vmatprep.subr.mxu0 0.0
        %v6883 = vand.u32 %v6417, 4294901760
        %6884 = vmatpush1.msra.mxu0 %v6883
        %6885 = vmatprep.subr.mxu0 0.0
        %v6886 = vand.u32 %v6418, 4294901760
        %6887 = vmatpush1.msra.mxu0 %v6886
        %6888 = vmatprep.subr.mxu0 0.0
        %6889 = vmatpush1.msra.mxu0 0.0
        %6890 = vmatprep.subr.mxu0 0.0
        %6891 = vmatpush1.msra.mxu0 0.0
        %6892 = vmatprep.subr.mxu0 0.0
        %6893 = vmatpush1.msra.mxu0 0.0
        %6894 = vmatprep.subr.mxu0 0.0
        %6895 = vmatpush1.msra.mxu0 0.0
        %6896 = vmatprep.subr.mxu0 0.0
        %6897 = vmatpush1.msra.mxu0 0.0
        %6898 = vmatprep.subr.mxu0 0.0
        %6899 = vmatpush1.msra.mxu0 0.0
        %6900 = vmatprep.subr.mxu0 0.0
        %6901 = vmatpush1.msra.mxu0 0.0
        %6902 = vmatprep.subr.mxu0 0.0
        %6903 = vmatpush1.msra.mxu0 0.0
        %6904 = vmatprep.subr.mxu0 0.0
        %6905 = vmatpush1.msra.mxu0 0.0
        %6906 = vmatprep.subr.mxu0 0.0
        %6907 = vmatpush1.msra.mxu0 0.0
        %6908 = vmatprep.subr.mxu0 0.0
        %6909 = vmatpush1.msra.mxu0 0.0
        %6910 = vmatprep.subr.mxu0 0.0
        %6911 = vmatpush1.msra.mxu0 0.0
        %6912 = vmatprep.subr.mxu0 0.0
        %6913 = vmatpush1.msra.mxu0 0.0
        %6914 = vmatprep.subr.mxu0 0.0
        %6915 = vmatpush1.msra.mxu0 0.0
        %6916 = vmatprep.subr.mxu0 0.0
        %6917 = vmatpush1.msra.mxu0 0.0
        %6918 = vmatprep.subr.mxu0 0.0
        %6919 = vmatpush1.msra.mxu0 0.0
        %6920 = vmatprep.subr.mxu0 0.0
        %6921 = vmatpush1.msra.mxu0 0.0
        %6922 = vmatprep.subr.mxu0 0.0
        %6923 = vmatpush1.msra.mxu0 0.0
        %6924 = vmatprep.subr.mxu0 0.0
        %6925 = vmatpush1.msra.mxu0 0.0
        %6926 = vmatprep.subr.mxu0 0.0
        %6927 = vmatpush1.msra.mxu0 0.0
        %6928 = vmatprep.subr.mxu0 0.0
        %6929 = vmatpush1.msra.mxu0 0.0
        %6930 = vmatprep.subr.mxu0 0.0
        %6931 = vmatpush1.msra.mxu0 0.0
        %6932 = vmatprep.subr.mxu0 0.0
        %6933 = vmatpush1.msra.mxu0 0.0
        %6934 = vmatprep.subr.mxu0 0.0
        %6935 = vmatpush1.msra.mxu0 0.0
        %6936 = vmatprep.subr.mxu0 0.0
        %6937 = vmatpush1.msra.mxu0 0.0
        %6938 = vmatprep.subr.mxu0 0.0
        %6939 = vmatpush1.msra.mxu0 0.0
        %6940 = vmatprep.subr.mxu0 0.0
        %6941 = vmatpush1.msra.mxu0 0.0
        %6942 = vmatprep.subr.mxu0 0.0
        %6943 = vmatpush1.msra.mxu0 0.0
        %6944 = vmatprep.mubr.f32.mxu0 0.0
        %v6945 = vand.u32 %v6424, 4294901760
        %6946 = vmatmul.mubr.f32.gmra.mrb[0].mxu0 %v6945
        %v6947 = vpop.f32.mrb[0].mxu0
        %v6948 = vadd.f32 %v6867, %v6947
        %v6949 = vpop.f32.mrb[0].mxu0
        %6950 = vmatprep.mubr.f32.mxu0 0.0
        %v6951 = vand.u32 %v6427, 4294901760
        %6952 = vmatmul.mubr.f32.gmra.mrb[0].mxu0 %v6951
        %v6953 = vpop.f32.mrb[0].mxu0
        %v6954 = vadd.f32 %v6873, %v6953
        %v6955 = vpop.f32.mrb[0].mxu0
        %6956 = vdwg.mxu0
        %v6957 = vadd.f32 %v583, %v6948
        %v6958 = vadd.f32 %v584, %v6954
        %v6959 = vsel %vm601, %v6957, 0.0
        %6960 = vadd.xlane.f32.xlu0 %v6959
        %v6961 = vpop.xlane.xlu0 %6960
        %v6962 = vsel %vm601, %v6958, 0.0
        %6963 = vadd.xlane.f32.xlu0 %v6962
        %v6964 = vpop.xlane.xlu0 %6963
        %v6965 = vrcp.pop 32.0
        %v6966 = vmul.f32 %v6961, %v6965
        %v6967 = vmul.f32 %v6964, %v6965
        %v6968 = vsub.f32 %v6957, %v6966
        %v6969 = vsub.f32 %v6958, %v6967
        %v6970 = vmul.f32 %v6968, %v6968
        %v6971 = vmul.f32 %v6969, %v6969
        %v6972 = vsel %vm601, %v6970, 0.0
        %6973 = vadd.xlane.f32.xlu0 %v6972
        %v6974 = vpop.xlane.xlu0 %6973
        %v6975 = vsel %vm601, %v6971, 0.0
        %6976 = vadd.xlane.f32.xlu0 %v6975
        %v6977 = vpop.xlane.xlu0 %6976
        %v6978 = vmul.f32 %v6974, %v6965
        %v6979 = vmul.f32 %v6977, %v6965
        %v6980 = vadd.f32 %v6978, 1e-05
        %v6981 = vadd.f32 %v6979, 1e-05
        %v6982 = vrsqrt.pop %v6980
        %v6983 = vrsqrt.pop %v6981
        %v6984 = vmul.f32 %v6968, %v6982
        %v6985 = vmul.f32 %v6969, %v6983
        %v6986 = vlaneseq
        %v6987 = vshrl.u32 %v6986, 7
        %v6988 = vsub.s32 6, %v6987
        %v6989 = vrot.slane %v589, %v6988
        %v6990 = vmul.f32 %v6984, %v6989
        %v6991 = vmul.f32 %v6985, %v6989
        %v6992 = vlaneseq
        %v6993 = vshrl.u32 %v6992, 7
        %v6994 = vsub.s32 7, %v6993
        %v6995 = vrot.slane %v589, %v6994
        %v6996 = vadd.f32 %v6990, %v6995
        %v6997 = vadd.f32 %v6991, %v6995
        %v6998 = vld [vmem:[%s485] sm:$0xff]
        %v6999 = vld [vmem:[%s485 + $0x8] sm:$0xff]
        %v7000 = vld [vmem:[%s485 + $0x10] sm:$0xff]
        %v7001 = vld [vmem:[%s485 + $0x18] sm:$0xff]
        %v7002 = vlaneseq
        %v7003 = vshrl.u32 %v7002, 7
        %v7004 = vsub.s32 4, %v7003
        %v7005 = vrot.slane %v589, %v7004
        %v7007 = vsel %vm601, %v6996, 0
        %v7010 = vsel %vm601, %v6997, 0
        %7012 = vmatprep.subr.mxu0 0.0
        %v7013 = vand.u32 %v6998, 4294901760
        %7014 = vmatpush1.msra.mxu0 %v7013
        %7015 = vmatprep.subr.mxu0 0.0
        %v7016 = vand.u32 %v6999, 4294901760
        %7017 = vmatpush1.msra.mxu0 %v7016
        %7018 = vmatprep.subr.mxu0 0.0
        %v7019 = vand.u32 %v7000, 4294901760
        %7020 = vmatpush1.msra.mxu0 %v7019
        %7021 = vmatprep.subr.mxu0 0.0
        %v7022 = vand.u32 %v7001, 4294901760
        %7023 = vmatpush1.msra.mxu0 %v7022
        %7024 = vmatprep.subr.mxu0 0.0
        %7025 = vmatpush1.msra.mxu0 0.0
        %7026 = vmatprep.subr.mxu0 0.0
        %7027 = vmatpush1.msra.mxu0 0.0
        %7028 = vmatprep.subr.mxu0 0.0
        %7029 = vmatpush1.msra.mxu0 0.0
        %7030 = vmatprep.subr.mxu0 0.0
        %7031 = vmatpush1.msra.mxu0 0.0
        %7032 = vmatprep.subr.mxu0 0.0
        %7033 = vmatpush1.msra.mxu0 0.0
        %7034 = vmatprep.subr.mxu0 0.0
        %7035 = vmatpush1.msra.mxu0 0.0
        %7036 = vmatprep.subr.mxu0 0.0
        %7037 = vmatpush1.msra.mxu0 0.0
        %7038 = vmatprep.subr.mxu0 0.0
        %7039 = vmatpush1.msra.mxu0 0.0
        %7040 = vmatprep.subr.mxu0 0.0
        %7041 = vmatpush1.msra.mxu0 0.0
        %7042 = vmatprep.subr.mxu0 0.0
        %7043 = vmatpush1.msra.mxu0 0.0
        %7044 = vmatprep.subr.mxu0 0.0
        %7045 = vmatpush1.msra.mxu0 0.0
        %7046 = vmatprep.subr.mxu0 0.0
        %7047 = vmatpush1.msra.mxu0 0.0
        %7048 = vmatprep.subr.mxu0 0.0
        %7049 = vmatpush1.msra.mxu0 0.0
        %7050 = vmatprep.subr.mxu0 0.0
        %7051 = vmatpush1.msra.mxu0 0.0
        %7052 = vmatprep.subr.mxu0 0.0
        %7053 = vmatpush1.msra.mxu0 0.0
        %7054 = vmatprep.subr.mxu0 0.0
        %7055 = vmatpush1.msra.mxu0 0.0
        %7056 = vmatprep.subr.mxu0 0.0
        %7057 = vmatpush1.msra.mxu0 0.0
        %7058 = vmatprep.subr.mxu0 0.0
        %7059 = vmatpush1.msra.mxu0 0.0
        %7060 = vmatprep.subr.mxu0 0.0
        %7061 = vmatpush1.msra.mxu0 0.0
        %7062 = vmatprep.subr.mxu0 0.0
        %7063 = vmatpush1.msra.mxu0 0.0
        %7064 = vmatprep.subr.mxu0 0.0
        %7065 = vmatpush1.msra.mxu0 0.0
        %7066 = vmatprep.subr.mxu0 0.0
        %7067 = vmatpush1.msra.mxu0 0.0
        %7068 = vmatprep.subr.mxu0 0.0
        %7069 = vmatpush1.msra.mxu0 0.0
        %7070 = vmatprep.subr.mxu0 0.0
        %7071 = vmatpush1.msra.mxu0 0.0
        %7072 = vmatprep.subr.mxu0 0.0
        %7073 = vmatpush1.msra.mxu0 0.0
        %7074 = vmatprep.subr.mxu0 0.0
        %7075 = vmatpush1.msra.mxu0 0.0
        %7076 = vmatprep.subr.mxu0 0.0
        %7077 = vmatpush1.msra.mxu0 0.0
        %7078 = vmatprep.subr.mxu0 0.0
        %7079 = vmatpush1.msra.mxu0 0.0
        %7080 = vmatprep.mubr.f32.mxu0 0.0
        %v7081 = vand.u32 %v7007, 4294901760
        %v7082 = vsub.f32 %v7007, %v7081
        %v7083 = vand.u32 %v7082, 4294901760
        %v7084 = vsub.f32 %v7082, %v7083
        %v7085 = vand.u32 %v7084, 4294901760
        %7086 = vmatmul.mubr.f32.gmra.mrb[0].mxu0 %v7085
        %v7087 = vpop.f32.mrb[0].mxu0
        %v7088 = vadd.f32 %v7005, %v7087
        %v7089 = vpop.f32.mrb[0].mxu0
        %7090 = vmatprep.mubr.f32.mxu0 0.0
        %v7091 = vand.u32 %v7010, 4294901760
        %v7092 = vsub.f32 %v7010, %v7091
        %v7093 = vand.u32 %v7092, 4294901760
        %v7094 = vsub.f32 %v7092, %v7093
        %v7095 = vand.u32 %v7094, 4294901760
        %7096 = vmatmul.mubr.f32.gmra.mrb[0].mxu0 %v7095
        %v7097 = vpop.f32.mrb[0].mxu0
        %v7098 = vadd.f32 %v7005, %v7097
        %v7099 = vpop.f32.mrb[0].mxu0
        %7100 = vdwg.mxu0
        %7101 = vmatprep.subr.mxu0 0.0
        %v7102 = vand.u32 %v6998, 4294901760
        %v7103 = vsub.f32 %v6998, %v7102
        %v7104 = vand.u32 %v7103, 4294901760
        %v7105 = vsub.f32 %v7103, %v7104
        %v7106 = vand.u32 %v7105, 4294901760
        %7107 = vmatpush1.msra.mxu0 %v7106
        %7108 = vmatprep.subr.mxu0 0.0
        %v7109 = vand.u32 %v6999, 4294901760
        %v7110 = vsub.f32 %v6999, %v7109
        %v7111 = vand.u32 %v7110, 4294901760
        %v7112 = vsub.f32 %v7110, %v7111
        %v7113 = vand.u32 %v7112, 4294901760
        %7114 = vmatpush1.msra.mxu0 %v7113
        %7115 = vmatprep.subr.mxu0 0.0
        %v7116 = vand.u32 %v7000, 4294901760
        %v7117 = vsub.f32 %v7000, %v7116
        %v7118 = vand.u32 %v7117, 4294901760
        %v7119 = vsub.f32 %v7117, %v7118
        %v7120 = vand.u32 %v7119, 4294901760
        %7121 = vmatpush1.msra.mxu0 %v7120
        %7122 = vmatprep.subr.mxu0 0.0
        %v7123 = vand.u32 %v7001, 4294901760
        %v7124 = vsub.f32 %v7001, %v7123
        %v7125 = vand.u32 %v7124, 4294901760
        %v7126 = vsub.f32 %v7124, %v7125
        %v7127 = vand.u32 %v7126, 4294901760
        %7128 = vmatpush1.msra.mxu0 %v7127
        %7129 = vmatprep.subr.mxu0 0.0
        %7130 = vmatpush1.msra.mxu0 0.0
        %7131 = vmatprep.subr.mxu0 0.0
        %7132 = vmatpush1.msra.mxu0 0.0
        %7133 = vmatprep.subr.mxu0 0.0
        %7134 = vmatpush1.msra.mxu0 0.0
        %7135 = vmatprep.subr.mxu0 0.0
        %7136 = vmatpush1.msra.mxu0 0.0
        %7137 = vmatprep.subr.mxu0 0.0
        %7138 = vmatpush1.msra.mxu0 0.0
        %7139 = vmatprep.subr.mxu0 0.0
        %7140 = vmatpush1.msra.mxu0 0.0
        %7141 = vmatprep.subr.mxu0 0.0
        %7142 = vmatpush1.msra.mxu0 0.0
        %7143 = vmatprep.subr.mxu0 0.0
        %7144 = vmatpush1.msra.mxu0 0.0
        %7145 = vmatprep.subr.mxu0 0.0
        %7146 = vmatpush1.msra.mxu0 0.0
        %7147 = vmatprep.subr.mxu0 0.0
        %7148 = vmatpush1.msra.mxu0 0.0
        %7149 = vmatprep.subr.mxu0 0.0
        %7150 = vmatpush1.msra.mxu0 0.0
        %7151 = vmatprep.subr.mxu0 0.0
        %7152 = vmatpush1.msra.mxu0 0.0
        %7153 = vmatprep.subr.mxu0 0.0
        %7154 = vmatpush1.msra.mxu0 0.0
        %7155 = vmatprep.subr.mxu0 0.0
        %7156 = vmatpush1.msra.mxu0 0.0
        %7157 = vmatprep.subr.mxu0 0.0
        %7158 = vmatpush1.msra.mxu0 0.0
        %7159 = vmatprep.subr.mxu0 0.0
        %7160 = vmatpush1.msra.mxu0 0.0
        %7161 = vmatprep.subr.mxu0 0.0
        %7162 = vmatpush1.msra.mxu0 0.0
        %7163 = vmatprep.subr.mxu0 0.0
        %7164 = vmatpush1.msra.mxu0 0.0
        %7165 = vmatprep.subr.mxu0 0.0
        %7166 = vmatpush1.msra.mxu0 0.0
        %7167 = vmatprep.subr.mxu0 0.0
        %7168 = vmatpush1.msra.mxu0 0.0
        %7169 = vmatprep.subr.mxu0 0.0
        %7170 = vmatpush1.msra.mxu0 0.0
        %7171 = vmatprep.subr.mxu0 0.0
        %7172 = vmatpush1.msra.mxu0 0.0
        %7173 = vmatprep.subr.mxu0 0.0
        %7174 = vmatpush1.msra.mxu0 0.0
        %7175 = vmatprep.subr.mxu0 0.0
        %7176 = vmatpush1.msra.mxu0 0.0
        %7177 = vmatprep.subr.mxu0 0.0
        %7178 = vmatpush1.msra.mxu0 0.0
        %7179 = vmatprep.subr.mxu0 0.0
        %7180 = vmatpush1.msra.mxu0 0.0
        %7181 = vmatprep.subr.mxu0 0.0
        %7182 = vmatpush1.msra.mxu0 0.0
        %7183 = vmatprep.subr.mxu0 0.0
        %7184 = vmatpush1.msra.mxu0 0.0
        %7185 = vmatprep.mubr.f32.mxu0 0.0
        %v7186 = vand.u32 %v7007, 4294901760
        %7187 = vmatmul.mubr.f32.gmra.mrb[0].mxu0 %v7186
        %v7188 = vpop.f32.mrb[0].mxu0
        %v7189 = vadd.f32 %v7088, %v7188
        %v7190 = vpop.f32.mrb[0].mxu0
        %7191 = vmatprep.mubr.f32.mxu0 0.0
        %v7192 = vand.u32 %v7010, 4294901760
        %7193 = vmatmul.mubr.f32.gmra.mrb[0].mxu0 %v7192
        %v7194 = vpop.f32.mrb[0].mxu0
        %v7195 = vadd.f32 %v7098, %v7194
        %v7196 = vpop.f32.mrb[0].mxu0
        %7197 = vdwg.mxu0
        %7198 = vmatprep.subr.mxu0 0.0
        %v7199 = vand.u32 %v6998, 4294901760
        %v7200 = vsub.f32 %v6998, %v7199
        %7201 = vmatpush1.msra.mxu0 %v7200
        %7202 = vmatprep.subr.mxu0 0.0
        %v7203 = vand.u32 %v6999, 4294901760
        %v7204 = vsub.f32 %v6999, %v7203
        %7205 = vmatpush1.msra.mxu0 %v7204
        %7206 = vmatprep.subr.mxu0 0.0
        %v7207 = vand.u32 %v7000, 4294901760
        %v7208 = vsub.f32 %v7000, %v7207
        %7209 = vmatpush1.msra.mxu0 %v7208
        %7210 = vmatprep.subr.mxu0 0.0
        %v7211 = vand.u32 %v7001, 4294901760
        %v7212 = vsub.f32 %v7001, %v7211
        %7213 = vmatpush1.msra.mxu0 %v7212
        %7214 = vmatprep.subr.mxu0 0.0
        %7215 = vmatpush1.msra.mxu0 0.0
        %7216 = vmatprep.subr.mxu0 0.0
        %7217 = vmatpush1.msra.mxu0 0.0
        %7218 = vmatprep.subr.mxu0 0.0
        %7219 = vmatpush1.msra.mxu0 0.0
        %7220 = vmatprep.subr.mxu0 0.0
        %7221 = vmatpush1.msra.mxu0 0.0
        %7222 = vmatprep.subr.mxu0 0.0
        %7223 = vmatpush1.msra.mxu0 0.0
        %7224 = vmatprep.subr.mxu0 0.0
        %7225 = vmatpush1.msra.mxu0 0.0
        %7226 = vmatprep.subr.mxu0 0.0
        %7227 = vmatpush1.msra.mxu0 0.0
        %7228 = vmatprep.subr.mxu0 0.0
        %7229 = vmatpush1.msra.mxu0 0.0
        %7230 = vmatprep.subr.mxu0 0.0
        %7231 = vmatpush1.msra.mxu0 0.0
        %7232 = vmatprep.subr.mxu0 0.0
        %7233 = vmatpush1.msra.mxu0 0.0
        %7234 = vmatprep.subr.mxu0 0.0
        %7235 = vmatpush1.msra.mxu0 0.0
        %7236 = vmatprep.subr.mxu0 0.0
        %7237 = vmatpush1.msra.mxu0 0.0
        %7238 = vmatprep.subr.mxu0 0.0
        %7239 = vmatpush1.msra.mxu0 0.0
        %7240 = vmatprep.subr.mxu0 0.0
        %7241 = vmatpush1.msra.mxu0 0.0
        %7242 = vmatprep.subr.mxu0 0.0
        %7243 = vmatpush1.msra.mxu0 0.0
        %7244 = vmatprep.subr.mxu0 0.0
        %7245 = vmatpush1.msra.mxu0 0.0
        %7246 = vmatprep.subr.mxu0 0.0
        %7247 = vmatpush1.msra.mxu0 0.0
        %7248 = vmatprep.subr.mxu0 0.0
        %7249 = vmatpush1.msra.mxu0 0.0
        %7250 = vmatprep.subr.mxu0 0.0
        %7251 = vmatpush1.msra.mxu0 0.0
        %7252 = vmatprep.subr.mxu0 0.0
        %7253 = vmatpush1.msra.mxu0 0.0
        %7254 = vmatprep.subr.mxu0 0.0
        %7255 = vmatpush1.msra.mxu0 0.0
        %7256 = vmatprep.subr.mxu0 0.0
        %7257 = vmatpush1.msra.mxu0 0.0
        %7258 = vmatprep.subr.mxu0 0.0
        %7259 = vmatpush1.msra.mxu0 0.0
        %7260 = vmatprep.subr.mxu0 0.0
        %7261 = vmatpush1.msra.mxu0 0.0
        %7262 = vmatprep.subr.mxu0 0.0
        %7263 = vmatpush1.msra.mxu0 0.0
        %7264 = vmatprep.subr.mxu0 0.0
        %7265 = vmatpush1.msra.mxu0 0.0
        %7266 = vmatprep.subr.mxu0 0.0
        %7267 = vmatpush1.msra.mxu0 0.0
        %7268 = vmatprep.subr.mxu0 0.0
        %7269 = vmatpush1.msra.mxu0 0.0
        %7270 = vmatprep.mubr.f32.mxu0 0.0
        %v7271 = vand.u32 %v7007, 4294901760
        %v7272 = vsub.f32 %v7007, %v7271
        %7273 = vmatmul.mubr.f32.gmra.mrb[0].mxu0 %v7272
        %v7274 = vpop.f32.mrb[0].mxu0
        %v7275 = vadd.f32 %v7189, %v7274
        %v7276 = vpop.f32.mrb[0].mxu0
        %7277 = vmatprep.mubr.f32.mxu0 0.0
        %v7278 = vand.u32 %v7010, 4294901760
        %v7279 = vsub.f32 %v7010, %v7278
        %7280 = vmatmul.mubr.f32.gmra.mrb[0].mxu0 %v7279
        %v7281 = vpop.f32.mrb[0].mxu0
        %v7282 = vadd.f32 %v7195, %v7281
        %v7283 = vpop.f32.mrb[0].mxu0
        %7284 = vdwg.mxu0
        %7285 = vmatprep.subr.mxu0 0.0
        %v7286 = vand.u32 %v6998, 4294901760
        %7287 = vmatpush1.msra.mxu0 %v7286
        %7288 = vmatprep.subr.mxu0 0.0
        %v7289 = vand.u32 %v6999, 4294901760
        %7290 = vmatpush1.msra.mxu0 %v7289
        %7291 = vmatprep.subr.mxu0 0.0
        %v7292 = vand.u32 %v7000, 4294901760
        %7293 = vmatpush1.msra.mxu0 %v7292
        %7294 = vmatprep.subr.mxu0 0.0
        %v7295 = vand.u32 %v7001, 4294901760
        %7296 = vmatpush1.msra.mxu0 %v7295
        %7297 = vmatprep.subr.mxu0 0.0
        %7298 = vmatpush1.msra.mxu0 0.0
        %7299 = vmatprep.subr.mxu0 0.0
        %7300 = vmatpush1.msra.mxu0 0.0
        %7301 = vmatprep.subr.mxu0 0.0
        %7302 = vmatpush1.msra.mxu0 0.0
        %7303 = vmatprep.subr.mxu0 0.0
        %7304 = vmatpush1.msra.mxu0 0.0
        %7305 = vmatprep.subr.mxu0 0.0
        %7306 = vmatpush1.msra.mxu0 0.0
        %7307 = vmatprep.subr.mxu0 0.0
        %7308 = vmatpush1.msra.mxu0 0.0
        %7309 = vmatprep.subr.mxu0 0.0
        %7310 = vmatpush1.msra.mxu0 0.0
        %7311 = vmatprep.subr.mxu0 0.0
        %7312 = vmatpush1.msra.mxu0 0.0
        %7313 = vmatprep.subr.mxu0 0.0
        %7314 = vmatpush1.msra.mxu0 0.0
        %7315 = vmatprep.subr.mxu0 0.0
        %7316 = vmatpush1.msra.mxu0 0.0
        %7317 = vmatprep.subr.mxu0 0.0
        %7318 = vmatpush1.msra.mxu0 0.0
        %7319 = vmatprep.subr.mxu0 0.0
        %7320 = vmatpush1.msra.mxu0 0.0
        %7321 = vmatprep.subr.mxu0 0.0
        %7322 = vmatpush1.msra.mxu0 0.0
        %7323 = vmatprep.subr.mxu0 0.0
        %7324 = vmatpush1.msra.mxu0 0.0
        %7325 = vmatprep.subr.mxu0 0.0
        %7326 = vmatpush1.msra.mxu0 0.0
        %7327 = vmatprep.subr.mxu0 0.0
        %7328 = vmatpush1.msra.mxu0 0.0
        %7329 = vmatprep.subr.mxu0 0.0
        %7330 = vmatpush1.msra.mxu0 0.0
        %7331 = vmatprep.subr.mxu0 0.0
        %7332 = vmatpush1.msra.mxu0 0.0
        %7333 = vmatprep.subr.mxu0 0.0
        %7334 = vmatpush1.msra.mxu0 0.0
        %7335 = vmatprep.subr.mxu0 0.0
        %7336 = vmatpush1.msra.mxu0 0.0
        %7337 = vmatprep.subr.mxu0 0.0
        %7338 = vmatpush1.msra.mxu0 0.0
        %7339 = vmatprep.subr.mxu0 0.0
        %7340 = vmatpush1.msra.mxu0 0.0
        %7341 = vmatprep.subr.mxu0 0.0
        %7342 = vmatpush1.msra.mxu0 0.0
        %7343 = vmatprep.subr.mxu0 0.0
        %7344 = vmatpush1.msra.mxu0 0.0
        %7345 = vmatprep.subr.mxu0 0.0
        %7346 = vmatpush1.msra.mxu0 0.0
        %7347 = vmatprep.subr.mxu0 0.0
        %7348 = vmatpush1.msra.mxu0 0.0
        %7349 = vmatprep.subr.mxu0 0.0
        %7350 = vmatpush1.msra.mxu0 0.0
        %7351 = vmatprep.subr.mxu0 0.0
        %7352 = vmatpush1.msra.mxu0 0.0
        %7353 = vmatprep.mubr.f32.mxu0 0.0
        %v7354 = vand.u32 %v7007, 4294901760
        %v7355 = vsub.f32 %v7007, %v7354
        %v7356 = vand.u32 %v7355, 4294901760
        %7357 = vmatmul.mubr.f32.gmra.mrb[0].mxu0 %v7356
        %v7358 = vpop.f32.mrb[0].mxu0
        %v7359 = vadd.f32 %v7275, %v7358
        %v7360 = vpop.f32.mrb[0].mxu0
        %7361 = vmatprep.mubr.f32.mxu0 0.0
        %v7362 = vand.u32 %v7010, 4294901760
        %v7363 = vsub.f32 %v7010, %v7362
        %v7364 = vand.u32 %v7363, 4294901760
        %7365 = vmatmul.mubr.f32.gmra.mrb[0].mxu0 %v7364
        %v7366 = vpop.f32.mrb[0].mxu0
        %v7367 = vadd.f32 %v7282, %v7366
        %v7368 = vpop.f32.mrb[0].mxu0
        %7369 = vdwg.mxu0
        %7370 = vmatprep.subr.mxu0 0.0
        %v7371 = vand.u32 %v6998, 4294901760
        %v7372 = vsub.f32 %v6998, %v7371
        %v7373 = vand.u32 %v7372, 4294901760
        %7374 = vmatpush1.msra.mxu0 %v7373
        %7375 = vmatprep.subr.mxu0 0.0
        %v7376 = vand.u32 %v6999, 4294901760
        %v7377 = vsub.f32 %v6999, %v7376
        %v7378 = vand.u32 %v7377, 4294901760
        %7379 = vmatpush1.msra.mxu0 %v7378
        %7380 = vmatprep.subr.mxu0 0.0
        %v7381 = vand.u32 %v7000, 4294901760
        %v7382 = vsub.f32 %v7000, %v7381
        %v7383 = vand.u32 %v7382, 4294901760
        %7384 = vmatpush1.msra.mxu0 %v7383
        %7385 = vmatprep.subr.mxu0 0.0
        %v7386 = vand.u32 %v7001, 4294901760
        %v7387 = vsub.f32 %v7001, %v7386
        %v7388 = vand.u32 %v7387, 4294901760
        %7389 = vmatpush1.msra.mxu0 %v7388
        %7390 = vmatprep.subr.mxu0 0.0
        %7391 = vmatpush1.msra.mxu0 0.0
        %7392 = vmatprep.subr.mxu0 0.0
        %7393 = vmatpush1.msra.mxu0 0.0
        %7394 = vmatprep.subr.mxu0 0.0
        %7395 = vmatpush1.msra.mxu0 0.0
        %7396 = vmatprep.subr.mxu0 0.0
        %7397 = vmatpush1.msra.mxu0 0.0
        %7398 = vmatprep.subr.mxu0 0.0
        %7399 = vmatpush1.msra.mxu0 0.0
        %7400 = vmatprep.subr.mxu0 0.0
        %7401 = vmatpush1.msra.mxu0 0.0
        %7402 = vmatprep.subr.mxu0 0.0
        %7403 = vmatpush1.msra.mxu0 0.0
        %7404 = vmatprep.subr.mxu0 0.0
        %7405 = vmatpush1.msra.mxu0 0.0
        %7406 = vmatprep.subr.mxu0 0.0
        %7407 = vmatpush1.msra.mxu0 0.0
        %7408 = vmatprep.subr.mxu0 0.0
        %7409 = vmatpush1.msra.mxu0 0.0
        %7410 = vmatprep.subr.mxu0 0.0
        %7411 = vmatpush1.msra.mxu0 0.0
        %7412 = vmatprep.subr.mxu0 0.0
        %7413 = vmatpush1.msra.mxu0 0.0
        %7414 = vmatprep.subr.mxu0 0.0
        %7415 = vmatpush1.msra.mxu0 0.0
        %7416 = vmatprep.subr.mxu0 0.0
        %7417 = vmatpush1.msra.mxu0 0.0
        %7418 = vmatprep.subr.mxu0 0.0
        %7419 = vmatpush1.msra.mxu0 0.0
        %7420 = vmatprep.subr.mxu0 0.0
        %7421 = vmatpush1.msra.mxu0 0.0
        %7422 = vmatprep.subr.mxu0 0.0
        %7423 = vmatpush1.msra.mxu0 0.0
        %7424 = vmatprep.subr.mxu0 0.0
        %7425 = vmatpush1.msra.mxu0 0.0
        %7426 = vmatprep.subr.mxu0 0.0
        %7427 = vmatpush1.msra.mxu0 0.0
        %7428 = vmatprep.subr.mxu0 0.0
        %7429 = vmatpush1.msra.mxu0 0.0
        %7430 = vmatprep.subr.mxu0 0.0
        %7431 = vmatpush1.msra.mxu0 0.0
        %7432 = vmatprep.subr.mxu0 0.0
        %7433 = vmatpush1.msra.mxu0 0.0
        %7434 = vmatprep.subr.mxu0 0.0
        %7435 = vmatpush1.msra.mxu0 0.0
        %7436 = vmatprep.subr.mxu0 0.0
        %7437 = vmatpush1.msra.mxu0 0.0
        %7438 = vmatprep.subr.mxu0 0.0
        %7439 = vmatpush1.msra.mxu0 0.0
        %7440 = vmatprep.subr.mxu0 0.0
        %7441 = vmatpush1.msra.mxu0 0.0
        %7442 = vmatprep.subr.mxu0 0.0
        %7443 = vmatpush1.msra.mxu0 0.0
        %7444 = vmatprep.subr.mxu0 0.0
        %7445 = vmatpush1.msra.mxu0 0.0
        %7446 = vmatprep.mubr.f32.mxu0 0.0
        %v7447 = vand.u32 %v7007, 4294901760
        %7448 = vmatmul.mubr.f32.gmra.mrb[0].mxu0 %v7447
        %v7449 = vpop.f32.mrb[0].mxu0
        %v7450 = vadd.f32 %v7359, %v7449
        %v7451 = vpop.f32.mrb[0].mxu0
        %7452 = vmatprep.mubr.f32.mxu0 0.0
        %v7453 = vand.u32 %v7010, 4294901760
        %7454 = vmatmul.mubr.f32.gmra.mrb[0].mxu0 %v7453
        %v7455 = vpop.f32.mrb[0].mxu0
        %v7456 = vadd.f32 %v7367, %v7455
        %v7457 = vpop.f32.mrb[0].mxu0
        %7458 = vdwg.mxu0
        %7459 = vmatprep.subr.mxu0 0.0
        %v7460 = vand.u32 %v6998, 4294901760
        %7461 = vmatpush1.msra.mxu0 %v7460
        %7462 = vmatprep.subr.mxu0 0.0
        %v7463 = vand.u32 %v6999, 4294901760
        %7464 = vmatpush1.msra.mxu0 %v7463
        %7465 = vmatprep.subr.mxu0 0.0
        %v7466 = vand.u32 %v7000, 4294901760
        %7467 = vmatpush1.msra.mxu0 %v7466
        %7468 = vmatprep.subr.mxu0 0.0
        %v7469 = vand.u32 %v7001, 4294901760
        %7470 = vmatpush1.msra.mxu0 %v7469
        %7471 = vmatprep.subr.mxu0 0.0
        %7472 = vmatpush1.msra.mxu0 0.0
        %7473 = vmatprep.subr.mxu0 0.0
        %7474 = vmatpush1.msra.mxu0 0.0
        %7475 = vmatprep.subr.mxu0 0.0
        %7476 = vmatpush1.msra.mxu0 0.0
        %7477 = vmatprep.subr.mxu0 0.0
        %7478 = vmatpush1.msra.mxu0 0.0
        %7479 = vmatprep.subr.mxu0 0.0
        %7480 = vmatpush1.msra.mxu0 0.0
        %7481 = vmatprep.subr.mxu0 0.0
        %7482 = vmatpush1.msra.mxu0 0.0
        %7483 = vmatprep.subr.mxu0 0.0
        %7484 = vmatpush1.msra.mxu0 0.0
        %7485 = vmatprep.subr.mxu0 0.0
        %7486 = vmatpush1.msra.mxu0 0.0
        %7487 = vmatprep.subr.mxu0 0.0
        %7488 = vmatpush1.msra.mxu0 0.0
        %7489 = vmatprep.subr.mxu0 0.0
        %7490 = vmatpush1.msra.mxu0 0.0
        %7491 = vmatprep.subr.mxu0 0.0
        %7492 = vmatpush1.msra.mxu0 0.0
        %7493 = vmatprep.subr.mxu0 0.0
        %7494 = vmatpush1.msra.mxu0 0.0
        %7495 = vmatprep.subr.mxu0 0.0
        %7496 = vmatpush1.msra.mxu0 0.0
        %7497 = vmatprep.subr.mxu0 0.0
        %7498 = vmatpush1.msra.mxu0 0.0
        %7499 = vmatprep.subr.mxu0 0.0
        %7500 = vmatpush1.msra.mxu0 0.0
        %7501 = vmatprep.subr.mxu0 0.0
        %7502 = vmatpush1.msra.mxu0 0.0
        %7503 = vmatprep.subr.mxu0 0.0
        %7504 = vmatpush1.msra.mxu0 0.0
        %7505 = vmatprep.subr.mxu0 0.0
        %7506 = vmatpush1.msra.mxu0 0.0
        %7507 = vmatprep.subr.mxu0 0.0
        %7508 = vmatpush1.msra.mxu0 0.0
        %7509 = vmatprep.subr.mxu0 0.0
        %7510 = vmatpush1.msra.mxu0 0.0
        %7511 = vmatprep.subr.mxu0 0.0
        %7512 = vmatpush1.msra.mxu0 0.0
        %7513 = vmatprep.subr.mxu0 0.0
        %7514 = vmatpush1.msra.mxu0 0.0
        %7515 = vmatprep.subr.mxu0 0.0
        %7516 = vmatpush1.msra.mxu0 0.0
        %7517 = vmatprep.subr.mxu0 0.0
        %7518 = vmatpush1.msra.mxu0 0.0
        %7519 = vmatprep.subr.mxu0 0.0
        %7520 = vmatpush1.msra.mxu0 0.0
        %7521 = vmatprep.subr.mxu0 0.0
        %7522 = vmatpush1.msra.mxu0 0.0
        %7523 = vmatprep.subr.mxu0 0.0
        %7524 = vmatpush1.msra.mxu0 0.0
        %7525 = vmatprep.subr.mxu0 0.0
        %7526 = vmatpush1.msra.mxu0 0.0
        %7527 = vmatprep.mubr.f32.mxu0 0.0
        %v7528 = vand.u32 %v7007, 4294901760
        %7529 = vmatmul.mubr.f32.gmra.mrb[0].mxu0 %v7528
        %v7530 = vpop.f32.mrb[0].mxu0
        %v7531 = vadd.f32 %v7450, %v7530
        %v7532 = vpop.f32.mrb[0].mxu0
        %7533 = vmatprep.mubr.f32.mxu0 0.0
        %v7534 = vand.u32 %v7010, 4294901760
        %7535 = vmatmul.mubr.f32.gmra.mrb[0].mxu0 %v7534
        %v7536 = vpop.f32.mrb[0].mxu0
        %v7537 = vadd.f32 %v7456, %v7536
        %v7538 = vpop.f32.mrb[0].mxu0
        %7539 = vdwg.mxu0
        %v7540 = vmax.f32 %v7531, 0.0
        %v7541 = vmax.f32 %v7537, 0.0
        %v7542 = vld [vmem:[%s568] sm:$0xff]
        %v7543 = vld [vmem:[%s568 + $0x8] sm:$0xff]
        %v7544 = vld [vmem:[%s568 + $0x10] sm:$0xff]
        %v7545 = vld [vmem:[%s568 + $0x18] sm:$0xff]
        %v7546 = vld [vmem:[%s568 + $0x20] sm:$0xff]
        %v7547 = vld [vmem:[%s568 + $0x28] sm:$0xff]
        %v7548 = vld [vmem:[%s568 + $0x30] sm:$0xff]
        %v7549 = vld [vmem:[%s568 + $0x38] sm:$0xff]
        %v7550 = vlaneseq
        %v7551 = vshrl.u32 %v7550, 7
        %v7552 = vsub.s32 5, %v7551
        %v7553 = vrot.slane %v589, %v7552
        %vm7554 = vcmask 523264
        %v7556 = vsel %vm7554, %v7540, 0
        %v7559 = vsel %vm7554, %v7541, 0
        %7561 = vmatprep.subr.mxu0 0.0
        %v7562 = vand.u32 %v7542, 4294901760
        %7563 = vmatpush1.msra.mxu0 %v7562
        %7564 = vmatprep.subr.mxu0 0.0
        %v7565 = vand.u32 %v7543, 4294901760
        %7566 = vmatpush1.msra.mxu0 %v7565
        %7567 = vmatprep.subr.mxu0 0.0
        %v7568 = vand.u32 %v7544, 4294901760
        %7569 = vmatpush1.msra.mxu0 %v7568
        %7570 = vmatprep.subr.mxu0 0.0
        %v7571 = vand.u32 %v7545, 4294901760
        %7572 = vmatpush1.msra.mxu0 %v7571
        %7573 = vmatprep.subr.mxu0 0.0
        %v7574 = vand.u32 %v7546, 4294901760
        %7575 = vmatpush1.msra.mxu0 %v7574
        %7576 = vmatprep.subr.mxu0 0.0
        %v7577 = vand.u32 %v7547, 4294901760
        %7578 = vmatpush1.msra.mxu0 %v7577
        %7579 = vmatprep.subr.mxu0 0.0
        %v7580 = vand.u32 %v7548, 4294901760
        %7581 = vmatpush1.msra.mxu0 %v7580
        %7582 = vmatprep.subr.mxu0 0.0
        %v7583 = vand.u32 %v7549, 4294901760
        %7584 = vmatpush1.msra.mxu0 %v7583
        %7585 = vmatprep.subr.mxu0 0.0
        %7586 = vmatpush1.msra.mxu0 0.0
        %7587 = vmatprep.subr.mxu0 0.0
        %7588 = vmatpush1.msra.mxu0 0.0
        %7589 = vmatprep.subr.mxu0 0.0
        %7590 = vmatpush1.msra.mxu0 0.0
        %7591 = vmatprep.subr.mxu0 0.0
        %7592 = vmatpush1.msra.mxu0 0.0
        %7593 = vmatprep.subr.mxu0 0.0
        %7594 = vmatpush1.msra.mxu0 0.0
        %7595 = vmatprep.subr.mxu0 0.0
        %7596 = vmatpush1.msra.mxu0 0.0
        %7597 = vmatprep.subr.mxu0 0.0
        %7598 = vmatpush1.msra.mxu0 0.0
        %7599 = vmatprep.subr.mxu0 0.0
        %7600 = vmatpush1.msra.mxu0 0.0
        %7601 = vmatprep.subr.mxu0 0.0
        %7602 = vmatpush1.msra.mxu0 0.0
        %7603 = vmatprep.subr.mxu0 0.0
        %7604 = vmatpush1.msra.mxu0 0.0
        %7605 = vmatprep.subr.mxu0 0.0
        %7606 = vmatpush1.msra.mxu0 0.0
        %7607 = vmatprep.subr.mxu0 0.0
        %7608 = vmatpush1.msra.mxu0 0.0
        %7609 = vmatprep.subr.mxu0 0.0
        %7610 = vmatpush1.msra.mxu0 0.0
        %7611 = vmatprep.subr.mxu0 0.0
        %7612 = vmatpush1.msra.mxu0 0.0
        %7613 = vmatprep.subr.mxu0 0.0
        %7614 = vmatpush1.msra.mxu0 0.0
        %7615 = vmatprep.subr.mxu0 0.0
        %7616 = vmatpush1.msra.mxu0 0.0
        %7617 = vmatprep.subr.mxu0 0.0
        %7618 = vmatpush1.msra.mxu0 0.0
        %7619 = vmatprep.subr.mxu0 0.0
        %7620 = vmatpush1.msra.mxu0 0.0
        %7621 = vmatprep.subr.mxu0 0.0
        %7622 = vmatpush1.msra.mxu0 0.0
        %7623 = vmatprep.subr.mxu0 0.0
        %7624 = vmatpush1.msra.mxu0 0.0
        %7625 = vmatprep.subr.mxu0 0.0
        %7626 = vmatpush1.msra.mxu0 0.0
        %7627 = vmatprep.subr.mxu0 0.0
        %7628 = vmatpush1.msra.mxu0 0.0
        %7629 = vmatprep.subr.mxu0 0.0
        %7630 = vmatpush1.msra.mxu0 0.0
        %7631 = vmatprep.subr.mxu0 0.0
        %7632 = vmatpush1.msra.mxu0 0.0
        %7633 = vmatprep.mubr.f32.mxu0 0.0
        %v7634 = vand.u32 %v7556, 4294901760
        %v7635 = vsub.f32 %v7556, %v7634
        %v7636 = vand.u32 %v7635, 4294901760
        %v7637 = vsub.f32 %v7635, %v7636
        %v7638 = vand.u32 %v7637, 4294901760
        %7639 = vmatmul.mubr.f32.gmra.mrb[0].mxu0 %v7638
        %v7640 = vpop.f32.mrb[0].mxu0
        %v7641 = vadd.f32 %v7553, %v7640
        %v7642 = vpop.f32.mrb[0].mxu0
        %7643 = vmatprep.mubr.f32.mxu0 0.0
        %v7644 = vand.u32 %v7559, 4294901760
        %v7645 = vsub.f32 %v7559, %v7644
        %v7646 = vand.u32 %v7645, 4294901760
        %v7647 = vsub.f32 %v7645, %v7646
        %v7648 = vand.u32 %v7647, 4294901760
        %7649 = vmatmul.mubr.f32.gmra.mrb[0].mxu0 %v7648
        %v7650 = vpop.f32.mrb[0].mxu0
        %v7651 = vadd.f32 %v7553, %v7650
        %v7652 = vpop.f32.mrb[0].mxu0
        %7653 = vdwg.mxu0
        %7654 = vmatprep.subr.mxu0 0.0
        %v7655 = vand.u32 %v7542, 4294901760
        %v7656 = vsub.f32 %v7542, %v7655
        %v7657 = vand.u32 %v7656, 4294901760
        %v7658 = vsub.f32 %v7656, %v7657
        %v7659 = vand.u32 %v7658, 4294901760
        %7660 = vmatpush1.msra.mxu0 %v7659
        %7661 = vmatprep.subr.mxu0 0.0
        %v7662 = vand.u32 %v7543, 4294901760
        %v7663 = vsub.f32 %v7543, %v7662
        %v7664 = vand.u32 %v7663, 4294901760
        %v7665 = vsub.f32 %v7663, %v7664
        %v7666 = vand.u32 %v7665, 4294901760
        %7667 = vmatpush1.msra.mxu0 %v7666
        %7668 = vmatprep.subr.mxu0 0.0
        %v7669 = vand.u32 %v7544, 4294901760
        %v7670 = vsub.f32 %v7544, %v7669
        %v7671 = vand.u32 %v7670, 4294901760
        %v7672 = vsub.f32 %v7670, %v7671
        %v7673 = vand.u32 %v7672, 4294901760
        %7674 = vmatpush1.msra.mxu0 %v7673
        %7675 = vmatprep.subr.mxu0 0.0
        %v7676 = vand.u32 %v7545, 4294901760
        %v7677 = vsub.f32 %v7545, %v7676
        %v7678 = vand.u32 %v7677, 4294901760
        %v7679 = vsub.f32 %v7677, %v7678
        %v7680 = vand.u32 %v7679, 4294901760
        %7681 = vmatpush1.msra.mxu0 %v7680
        %7682 = vmatprep.subr.mxu0 0.0
        %v7683 = vand.u32 %v7546, 4294901760
        %v7684 = vsub.f32 %v7546, %v7683
        %v7685 = vand.u32 %v7684, 4294901760
        %v7686 = vsub.f32 %v7684, %v7685
        %v7687 = vand.u32 %v7686, 4294901760
        %7688 = vmatpush1.msra.mxu0 %v7687
        %7689 = vmatprep.subr.mxu0 0.0
        %v7690 = vand.u32 %v7547, 4294901760
        %v7691 = vsub.f32 %v7547, %v7690
        %v7692 = vand.u32 %v7691, 4294901760
        %v7693 = vsub.f32 %v7691, %v7692
        %v7694 = vand.u32 %v7693, 4294901760
        %7695 = vmatpush1.msra.mxu0 %v7694
        %7696 = vmatprep.subr.mxu0 0.0
        %v7697 = vand.u32 %v7548, 4294901760
        %v7698 = vsub.f32 %v7548, %v7697
        %v7699 = vand.u32 %v7698, 4294901760
        %v7700 = vsub.f32 %v7698, %v7699
        %v7701 = vand.u32 %v7700, 4294901760
        %7702 = vmatpush1.msra.mxu0 %v7701
        %7703 = vmatprep.subr.mxu0 0.0
        %v7704 = vand.u32 %v7549, 4294901760
        %v7705 = vsub.f32 %v7549, %v7704
        %v7706 = vand.u32 %v7705, 4294901760
        %v7707 = vsub.f32 %v7705, %v7706
        %v7708 = vand.u32 %v7707, 4294901760
        %7709 = vmatpush1.msra.mxu0 %v7708
        %7710 = vmatprep.subr.mxu0 0.0
        %7711 = vmatpush1.msra.mxu0 0.0
        %7712 = vmatprep.subr.mxu0 0.0
        %7713 = vmatpush1.msra.mxu0 0.0
        %7714 = vmatprep.subr.mxu0 0.0
        %7715 = vmatpush1.msra.mxu0 0.0
        %7716 = vmatprep.subr.mxu0 0.0
        %7717 = vmatpush1.msra.mxu0 0.0
        %7718 = vmatprep.subr.mxu0 0.0
        %7719 = vmatpush1.msra.mxu0 0.0
        %7720 = vmatprep.subr.mxu0 0.0
        %7721 = vmatpush1.msra.mxu0 0.0
        %7722 = vmatprep.subr.mxu0 0.0
        %7723 = vmatpush1.msra.mxu0 0.0
        %7724 = vmatprep.subr.mxu0 0.0
        %7725 = vmatpush1.msra.mxu0 0.0
        %7726 = vmatprep.subr.mxu0 0.0
        %7727 = vmatpush1.msra.mxu0 0.0
        %7728 = vmatprep.subr.mxu0 0.0
        %7729 = vmatpush1.msra.mxu0 0.0
        %7730 = vmatprep.subr.mxu0 0.0
        %7731 = vmatpush1.msra.mxu0 0.0
        %7732 = vmatprep.subr.mxu0 0.0
        %7733 = vmatpush1.msra.mxu0 0.0
        %7734 = vmatprep.subr.mxu0 0.0
        %7735 = vmatpush1.msra.mxu0 0.0
        %7736 = vmatprep.subr.mxu0 0.0
        %7737 = vmatpush1.msra.mxu0 0.0
        %7738 = vmatprep.subr.mxu0 0.0
        %7739 = vmatpush1.msra.mxu0 0.0
        %7740 = vmatprep.subr.mxu0 0.0
        %7741 = vmatpush1.msra.mxu0 0.0
        %7742 = vmatprep.subr.mxu0 0.0
        %7743 = vmatpush1.msra.mxu0 0.0
        %7744 = vmatprep.subr.mxu0 0.0
        %7745 = vmatpush1.msra.mxu0 0.0
        %7746 = vmatprep.subr.mxu0 0.0
        %7747 = vmatpush1.msra.mxu0 0.0
        %7748 = vmatprep.subr.mxu0 0.0
        %7749 = vmatpush1.msra.mxu0 0.0
        %7750 = vmatprep.subr.mxu0 0.0
        %7751 = vmatpush1.msra.mxu0 0.0
        %7752 = vmatprep.subr.mxu0 0.0
        %7753 = vmatpush1.msra.mxu0 0.0
        %7754 = vmatprep.subr.mxu0 0.0
        %7755 = vmatpush1.msra.mxu0 0.0
        %7756 = vmatprep.subr.mxu0 0.0
        %7757 = vmatpush1.msra.mxu0 0.0
        %7758 = vmatprep.mubr.f32.mxu0 0.0
        %v7759 = vand.u32 %v7556, 4294901760
        %7760 = vmatmul.mubr.f32.gmra.mrb[0].mxu0 %v7759
        %v7761 = vpop.f32.mrb[0].mxu0
        %v7762 = vadd.f32 %v7641, %v7761
        %v7763 = vpop.f32.mrb[0].mxu0
        %7764 = vmatprep.mubr.f32.mxu0 0.0
        %v7765 = vand.u32 %v7559, 4294901760
        %7766 = vmatmul.mubr.f32.gmra.mrb[0].mxu0 %v7765
        %v7767 = vpop.f32.mrb[0].mxu0
        %v7768 = vadd.f32 %v7651, %v7767
        %v7769 = vpop.f32.mrb[0].mxu0
        %7770 = vdwg.mxu0
        %7771 = vmatprep.subr.mxu0 0.0
        %v7772 = vand.u32 %v7542, 4294901760
        %v7773 = vsub.f32 %v7542, %v7772
        %7774 = vmatpush1.msra.mxu0 %v7773
        %7775 = vmatprep.subr.mxu0 0.0
        %v7776 = vand.u32 %v7543, 4294901760
        %v7777 = vsub.f32 %v7543, %v7776
        %7778 = vmatpush1.msra.mxu0 %v7777
        %7779 = vmatprep.subr.mxu0 0.0
        %v7780 = vand.u32 %v7544, 4294901760
        %v7781 = vsub.f32 %v7544, %v7780
        %7782 = vmatpush1.msra.mxu0 %v7781
        %7783 = vmatprep.subr.mxu0 0.0
        %v7784 = vand.u32 %v7545, 4294901760
        %v7785 = vsub.f32 %v7545, %v7784
        %7786 = vmatpush1.msra.mxu0 %v7785
        %7787 = vmatprep.subr.mxu0 0.0
        %v7788 = vand.u32 %v7546, 4294901760
        %v7789 = vsub.f32 %v7546, %v7788
        %7790 = vmatpush1.msra.mxu0 %v7789
        %7791 = vmatprep.subr.mxu0 0.0
        %v7792 = vand.u32 %v7547, 4294901760
        %v7793 = vsub.f32 %v7547, %v7792
        %7794 = vmatpush1.msra.mxu0 %v7793
        %7795 = vmatprep.subr.mxu0 0.0
        %v7796 = vand.u32 %v7548, 4294901760
        %v7797 = vsub.f32 %v7548, %v7796
        %7798 = vmatpush1.msra.mxu0 %v7797
        %7799 = vmatprep.subr.mxu0 0.0
        %v7800 = vand.u32 %v7549, 4294901760
        %v7801 = vsub.f32 %v7549, %v7800
        %7802 = vmatpush1.msra.mxu0 %v7801
        %7803 = vmatprep.subr.mxu0 0.0
        %7804 = vmatpush1.msra.mxu0 0.0
        %7805 = vmatprep.subr.mxu0 0.0
        %7806 = vmatpush1.msra.mxu0 0.0
        %7807 = vmatprep.subr.mxu0 0.0
        %7808 = vmatpush1.msra.mxu0 0.0
        %7809 = vmatprep.subr.mxu0 0.0
        %7810 = vmatpush1.msra.mxu0 0.0
        %7811 = vmatprep.subr.mxu0 0.0
        %7812 = vmatpush1.msra.mxu0 0.0
        %7813 = vmatprep.subr.mxu0 0.0
        %7814 = vmatpush1.msra.mxu0 0.0
        %7815 = vmatprep.subr.mxu0 0.0
        %7816 = vmatpush1.msra.mxu0 0.0
        %7817 = vmatprep.subr.mxu0 0.0
        %7818 = vmatpush1.msra.mxu0 0.0
        %7819 = vmatprep.subr.mxu0 0.0
        %7820 = vmatpush1.msra.mxu0 0.0
        %7821 = vmatprep.subr.mxu0 0.0
        %7822 = vmatpush1.msra.mxu0 0.0
        %7823 = vmatprep.subr.mxu0 0.0
        %7824 = vmatpush1.msra.mxu0 0.0
        %7825 = vmatprep.subr.mxu0 0.0
        %7826 = vmatpush1.msra.mxu0 0.0
        %7827 = vmatprep.subr.mxu0 0.0
        %7828 = vmatpush1.msra.mxu0 0.0
        %7829 = vmatprep.subr.mxu0 0.0
        %7830 = vmatpush1.msra.mxu0 0.0
        %7831 = vmatprep.subr.mxu0 0.0
        %7832 = vmatpush1.msra.mxu0 0.0
        %7833 = vmatprep.subr.mxu0 0.0
        %7834 = vmatpush1.msra.mxu0 0.0
        %7835 = vmatprep.subr.mxu0 0.0
        %7836 = vmatpush1.msra.mxu0 0.0
        %7837 = vmatprep.subr.mxu0 0.0
        %7838 = vmatpush1.msra.mxu0 0.0
        %7839 = vmatprep.subr.mxu0 0.0
        %7840 = vmatpush1.msra.mxu0 0.0
        %7841 = vmatprep.subr.mxu0 0.0
        %7842 = vmatpush1.msra.mxu0 0.0
        %7843 = vmatprep.subr.mxu0 0.0
        %7844 = vmatpush1.msra.mxu0 0.0
        %7845 = vmatprep.subr.mxu0 0.0
        %7846 = vmatpush1.msra.mxu0 0.0
        %7847 = vmatprep.subr.mxu0 0.0
        %7848 = vmatpush1.msra.mxu0 0.0
        %7849 = vmatprep.subr.mxu0 0.0
        %7850 = vmatpush1.msra.mxu0 0.0
        %7851 = vmatprep.mubr.f32.mxu0 0.0
        %v7852 = vand.u32 %v7556, 4294901760
        %v7853 = vsub.f32 %v7556, %v7852
        %7854 = vmatmul.mubr.f32.gmra.mrb[0].mxu0 %v7853
        %v7855 = vpop.f32.mrb[0].mxu0
        %v7856 = vadd.f32 %v7762, %v7855
        %v7857 = vpop.f32.mrb[0].mxu0
        %7858 = vmatprep.mubr.f32.mxu0 0.0
        %v7859 = vand.u32 %v7559, 4294901760
        %v7860 = vsub.f32 %v7559, %v7859
        %7861 = vmatmul.mubr.f32.gmra.mrb[0].mxu0 %v7860
        %v7862 = vpop.f32.mrb[0].mxu0
        %v7863 = vadd.f32 %v7768, %v7862
        %v7864 = vpop.f32.mrb[0].mxu0
        %7865 = vdwg.mxu0
        %7866 = vmatprep.subr.mxu0 0.0
        %v7867 = vand.u32 %v7542, 4294901760
        %7868 = vmatpush1.msra.mxu0 %v7867
        %7869 = vmatprep.subr.mxu0 0.0
        %v7870 = vand.u32 %v7543, 4294901760
        %7871 = vmatpush1.msra.mxu0 %v7870
        %7872 = vmatprep.subr.mxu0 0.0
        %v7873 = vand.u32 %v7544, 4294901760
        %7874 = vmatpush1.msra.mxu0 %v7873
        %7875 = vmatprep.subr.mxu0 0.0
        %v7876 = vand.u32 %v7545, 4294901760
        %7877 = vmatpush1.msra.mxu0 %v7876
        %7878 = vmatprep.subr.mxu0 0.0
        %v7879 = vand.u32 %v7546, 4294901760
        %7880 = vmatpush1.msra.mxu0 %v7879
        %7881 = vmatprep.subr.mxu0 0.0
        %v7882 = vand.u32 %v7547, 4294901760
        %7883 = vmatpush1.msra.mxu0 %v7882
        %7884 = vmatprep.subr.mxu0 0.0
        %v7885 = vand.u32 %v7548, 4294901760
        %7886 = vmatpush1.msra.mxu0 %v7885
        %7887 = vmatprep.subr.mxu0 0.0
        %v7888 = vand.u32 %v7549, 4294901760
        %7889 = vmatpush1.msra.mxu0 %v7888
        %7890 = vmatprep.subr.mxu0 0.0
        %7891 = vmatpush1.msra.mxu0 0.0
        %7892 = vmatprep.subr.mxu0 0.0
        %7893 = vmatpush1.msra.mxu0 0.0
        %7894 = vmatprep.subr.mxu0 0.0
        %7895 = vmatpush1.msra.mxu0 0.0
        %7896 = vmatprep.subr.mxu0 0.0
        %7897 = vmatpush1.msra.mxu0 0.0
        %7898 = vmatprep.subr.mxu0 0.0
        %7899 = vmatpush1.msra.mxu0 0.0
        %7900 = vmatprep.subr.mxu0 0.0
        %7901 = vmatpush1.msra.mxu0 0.0
        %7902 = vmatprep.subr.mxu0 0.0
        %7903 = vmatpush1.msra.mxu0 0.0
        %7904 = vmatprep.subr.mxu0 0.0
        %7905 = vmatpush1.msra.mxu0 0.0
        %7906 = vmatprep.subr.mxu0 0.0
        %7907 = vmatpush1.msra.mxu0 0.0
        %7908 = vmatprep.subr.mxu0 0.0
        %7909 = vmatpush1.msra.mxu0 0.0
        %7910 = vmatprep.subr.mxu0 0.0
        %7911 = vmatpush1.msra.mxu0 0.0
        %7912 = vmatprep.subr.mxu0 0.0
        %7913 = vmatpush1.msra.mxu0 0.0
        %7914 = vmatprep.subr.mxu0 0.0
        %7915 = vmatpush1.msra.mxu0 0.0
        %7916 = vmatprep.subr.mxu0 0.0
        %7917 = vmatpush1.msra.mxu0 0.0
        %7918 = vmatprep.subr.mxu0 0.0
        %7919 = vmatpush1.msra.mxu0 0.0
        %7920 = vmatprep.subr.mxu0 0.0
        %7921 = vmatpush1.msra.mxu0 0.0
        %7922 = vmatprep.subr.mxu0 0.0
        %7923 = vmatpush1.msra.mxu0 0.0
        %7924 = vmatprep.subr.mxu0 0.0
        %7925 = vmatpush1.msra.mxu0 0.0
        %7926 = vmatprep.subr.mxu0 0.0
        %7927 = vmatpush1.msra.mxu0 0.0
        %7928 = vmatprep.subr.mxu0 0.0
        %7929 = vmatpush1.msra.mxu0 0.0
        %7930 = vmatprep.subr.mxu0 0.0
        %7931 = vmatpush1.msra.mxu0 0.0
        %7932 = vmatprep.subr.mxu0 0.0
        %7933 = vmatpush1.msra.mxu0 0.0
        %7934 = vmatprep.subr.mxu0 0.0
        %7935 = vmatpush1.msra.mxu0 0.0
        %7936 = vmatprep.subr.mxu0 0.0
        %7937 = vmatpush1.msra.mxu0 0.0
        %7938 = vmatprep.mubr.f32.mxu0 0.0
        %v7939 = vand.u32 %v7556, 4294901760
        %v7940 = vsub.f32 %v7556, %v7939
        %v7941 = vand.u32 %v7940, 4294901760
        %7942 = vmatmul.mubr.f32.gmra.mrb[0].mxu0 %v7941
        %v7943 = vpop.f32.mrb[0].mxu0
        %v7944 = vadd.f32 %v7856, %v7943
        %v7945 = vpop.f32.mrb[0].mxu0
        %7946 = vmatprep.mubr.f32.mxu0 0.0
        %v7947 = vand.u32 %v7559, 4294901760
        %v7948 = vsub.f32 %v7559, %v7947
        %v7949 = vand.u32 %v7948, 4294901760
        %7950 = vmatmul.mubr.f32.gmra.mrb[0].mxu0 %v7949
        %v7951 = vpop.f32.mrb[0].mxu0
        %v7952 = vadd.f32 %v7863, %v7951
        %v7953 = vpop.f32.mrb[0].mxu0
        %7954 = vdwg.mxu0
        %7955 = vmatprep.subr.mxu0 0.0
        %v7956 = vand.u32 %v7542, 4294901760
        %v7957 = vsub.f32 %v7542, %v7956
        %v7958 = vand.u32 %v7957, 4294901760
        %7959 = vmatpush1.msra.mxu0 %v7958
        %7960 = vmatprep.subr.mxu0 0.0
        %v7961 = vand.u32 %v7543, 4294901760
        %v7962 = vsub.f32 %v7543, %v7961
        %v7963 = vand.u32 %v7962, 4294901760
        %7964 = vmatpush1.msra.mxu0 %v7963
        %7965 = vmatprep.subr.mxu0 0.0
        %v7966 = vand.u32 %v7544, 4294901760
        %v7967 = vsub.f32 %v7544, %v7966
        %v7968 = vand.u32 %v7967, 4294901760
        %7969 = vmatpush1.msra.mxu0 %v7968
        %7970 = vmatprep.subr.mxu0 0.0
        %v7971 = vand.u32 %v7545, 4294901760
        %v7972 = vsub.f32 %v7545, %v7971
        %v7973 = vand.u32 %v7972, 4294901760
        %7974 = vmatpush1.msra.mxu0 %v7973
        %7975 = vmatprep.subr.mxu0 0.0
        %v7976 = vand.u32 %v7546, 4294901760
        %v7977 = vsub.f32 %v7546, %v7976
        %v7978 = vand.u32 %v7977, 4294901760
        %7979 = vmatpush1.msra.mxu0 %v7978
        %7980 = vmatprep.subr.mxu0 0.0
        %v7981 = vand.u32 %v7547, 4294901760
        %v7982 = vsub.f32 %v7547, %v7981
        %v7983 = vand.u32 %v7982, 4294901760
        %7984 = vmatpush1.msra.mxu0 %v7983
        %7985 = vmatprep.subr.mxu0 0.0
        %v7986 = vand.u32 %v7548, 4294901760
        %v7987 = vsub.f32 %v7548, %v7986
        %v7988 = vand.u32 %v7987, 4294901760
        %7989 = vmatpush1.msra.mxu0 %v7988
        %7990 = vmatprep.subr.mxu0 0.0
        %v7991 = vand.u32 %v7549, 4294901760
        %v7992 = vsub.f32 %v7549, %v7991
        %v7993 = vand.u32 %v7992, 4294901760
        %7994 = vmatpush1.msra.mxu0 %v7993
        %7995 = vmatprep.subr.mxu0 0.0
        %7996 = vmatpush1.msra.mxu0 0.0
        %7997 = vmatprep.subr.mxu0 0.0
        %7998 = vmatpush1.msra.mxu0 0.0
        %7999 = vmatprep.subr.mxu0 0.0
        %8000 = vmatpush1.msra.mxu0 0.0
        %8001 = vmatprep.subr.mxu0 0.0
        %8002 = vmatpush1.msra.mxu0 0.0
        %8003 = vmatprep.subr.mxu0 0.0
        %8004 = vmatpush1.msra.mxu0 0.0
        %8005 = vmatprep.subr.mxu0 0.0
        %8006 = vmatpush1.msra.mxu0 0.0
        %8007 = vmatprep.subr.mxu0 0.0
        %8008 = vmatpush1.msra.mxu0 0.0
        %8009 = vmatprep.subr.mxu0 0.0
        %8010 = vmatpush1.msra.mxu0 0.0
        %8011 = vmatprep.subr.mxu0 0.0
        %8012 = vmatpush1.msra.mxu0 0.0
        %8013 = vmatprep.subr.mxu0 0.0
        %8014 = vmatpush1.msra.mxu0 0.0
        %8015 = vmatprep.subr.mxu0 0.0
        %8016 = vmatpush1.msra.mxu0 0.0
        %8017 = vmatprep.subr.mxu0 0.0
        %8018 = vmatpush1.msra.mxu0 0.0
        %8019 = vmatprep.subr.mxu0 0.0
        %8020 = vmatpush1.msra.mxu0 0.0
        %8021 = vmatprep.subr.mxu0 0.0
        %8022 = vmatpush1.msra.mxu0 0.0
        %8023 = vmatprep.subr.mxu0 0.0
        %8024 = vmatpush1.msra.mxu0 0.0
        %8025 = vmatprep.subr.mxu0 0.0
        %8026 = vmatpush1.msra.mxu0 0.0
        %8027 = vmatprep.subr.mxu0 0.0
        %8028 = vmatpush1.msra.mxu0 0.0
        %8029 = vmatprep.subr.mxu0 0.0
        %8030 = vmatpush1.msra.mxu0 0.0
        %8031 = vmatprep.subr.mxu0 0.0
        %8032 = vmatpush1.msra.mxu0 0.0
        %8033 = vmatprep.subr.mxu0 0.0
        %8034 = vmatpush1.msra.mxu0 0.0
        %8035 = vmatprep.subr.mxu0 0.0
        %8036 = vmatpush1.msra.mxu0 0.0
        %8037 = vmatprep.subr.mxu0 0.0
        %8038 = vmatpush1.msra.mxu0 0.0
        %8039 = vmatprep.subr.mxu0 0.0
        %8040 = vmatpush1.msra.mxu0 0.0
        %8041 = vmatprep.subr.mxu0 0.0
        %8042 = vmatpush1.msra.mxu0 0.0
        %8043 = vmatprep.mubr.f32.mxu0 0.0
        %v8044 = vand.u32 %v7556, 4294901760
        %8045 = vmatmul.mubr.f32.gmra.mrb[0].mxu0 %v8044
        %v8046 = vpop.f32.mrb[0].mxu0
        %v8047 = vadd.f32 %v7944, %v8046
        %v8048 = vpop.f32.mrb[0].mxu0
        %8049 = vmatprep.mubr.f32.mxu0 0.0
        %v8050 = vand.u32 %v7559, 4294901760
        %8051 = vmatmul.mubr.f32.gmra.mrb[0].mxu0 %v8050
        %v8052 = vpop.f32.mrb[0].mxu0
        %v8053 = vadd.f32 %v7952, %v8052
        %v8054 = vpop.f32.mrb[0].mxu0
        %8055 = vdwg.mxu0
        %8056 = vmatprep.subr.mxu0 0.0
        %v8057 = vand.u32 %v7542, 4294901760
        %8058 = vmatpush1.msra.mxu0 %v8057
        %8059 = vmatprep.subr.mxu0 0.0
        %v8060 = vand.u32 %v7543, 4294901760
        %8061 = vmatpush1.msra.mxu0 %v8060
        %8062 = vmatprep.subr.mxu0 0.0
        %v8063 = vand.u32 %v7544, 4294901760
        %8064 = vmatpush1.msra.mxu0 %v8063
        %8065 = vmatprep.subr.mxu0 0.0
        %v8066 = vand.u32 %v7545, 4294901760
        %8067 = vmatpush1.msra.mxu0 %v8066
        %8068 = vmatprep.subr.mxu0 0.0
        %v8069 = vand.u32 %v7546, 4294901760
        %8070 = vmatpush1.msra.mxu0 %v8069
        %8071 = vmatprep.subr.mxu0 0.0
        %v8072 = vand.u32 %v7547, 4294901760
        %8073 = vmatpush1.msra.mxu0 %v8072
        %8074 = vmatprep.subr.mxu0 0.0
        %v8075 = vand.u32 %v7548, 4294901760
        %8076 = vmatpush1.msra.mxu0 %v8075
        %8077 = vmatprep.subr.mxu0 0.0
        %v8078 = vand.u32 %v7549, 4294901760
        %8079 = vmatpush1.msra.mxu0 %v8078
        %8080 = vmatprep.subr.mxu0 0.0
        %8081 = vmatpush1.msra.mxu0 0.0
        %8082 = vmatprep.subr.mxu0 0.0
        %8083 = vmatpush1.msra.mxu0 0.0
        %8084 = vmatprep.subr.mxu0 0.0
        %8085 = vmatpush1.msra.mxu0 0.0
        %8086 = vmatprep.subr.mxu0 0.0
        %8087 = vmatpush1.msra.mxu0 0.0
        %8088 = vmatprep.subr.mxu0 0.0
        %8089 = vmatpush1.msra.mxu0 0.0
        %8090 = vmatprep.subr.mxu0 0.0
        %8091 = vmatpush1.msra.mxu0 0.0
        %8092 = vmatprep.subr.mxu0 0.0
        %8093 = vmatpush1.msra.mxu0 0.0
        %8094 = vmatprep.subr.mxu0 0.0
        %8095 = vmatpush1.msra.mxu0 0.0
        %8096 = vmatprep.subr.mxu0 0.0
        %8097 = vmatpush1.msra.mxu0 0.0
        %8098 = vmatprep.subr.mxu0 0.0
        %8099 = vmatpush1.msra.mxu0 0.0
        %8100 = vmatprep.subr.mxu0 0.0
        %8101 = vmatpush1.msra.mxu0 0.0
        %8102 = vmatprep.subr.mxu0 0.0
        %8103 = vmatpush1.msra.mxu0 0.0
        %8104 = vmatprep.subr.mxu0 0.0
        %8105 = vmatpush1.msra.mxu0 0.0
        %8106 = vmatprep.subr.mxu0 0.0
        %8107 = vmatpush1.msra.mxu0 0.0
        %8108 = vmatprep.subr.mxu0 0.0
        %8109 = vmatpush1.msra.mxu0 0.0
        %8110 = vmatprep.subr.mxu0 0.0
        %8111 = vmatpush1.msra.mxu0 0.0
        %8112 = vmatprep.subr.mxu0 0.0
        %8113 = vmatpush1.msra.mxu0 0.0
        %8114 = vmatprep.subr.mxu0 0.0
        %8115 = vmatpush1.msra.mxu0 0.0
        %8116 = vmatprep.subr.mxu0 0.0
        %8117 = vmatpush1.msra.mxu0 0.0
        %8118 = vmatprep.subr.mxu0 0.0
        %8119 = vmatpush1.msra.mxu0 0.0
        %8120 = vmatprep.subr.mxu0 0.0
        %8121 = vmatpush1.msra.mxu0 0.0
        %8122 = vmatprep.subr.mxu0 0.0
        %8123 = vmatpush1.msra.mxu0 0.0
        %8124 = vmatprep.subr.mxu0 0.0
        %8125 = vmatpush1.msra.mxu0 0.0
        %8126 = vmatprep.subr.mxu0 0.0
        %8127 = vmatpush1.msra.mxu0 0.0
        %8128 = vmatprep.mubr.f32.mxu0 0.0
        %v8129 = vand.u32 %v7556, 4294901760
        %8130 = vmatmul.mubr.f32.gmra.mrb[0].mxu0 %v8129
        %v8131 = vpop.f32.mrb[0].mxu0
        %v8132 = vadd.f32 %v8047, %v8131
        %v8133 = vpop.f32.mrb[0].mxu0
        %8134 = vmatprep.mubr.f32.mxu0 0.0
        %v8135 = vand.u32 %v7559, 4294901760
        %8136 = vmatmul.mubr.f32.gmra.mrb[0].mxu0 %v8135
        %v8137 = vpop.f32.mrb[0].mxu0
        %v8138 = vadd.f32 %v8053, %v8137
        %v8139 = vpop.f32.mrb[0].mxu0
        %8140 = vdwg.mxu0
        %v8141 = vadd.f32 %v6996, %v8132
        %v8142 = vadd.f32 %v6997, %v8138
        %v8143 = vsel %vm601, %v8141, 0.0
        %8144 = vadd.xlane.f32.xlu0 %v8143
        %v8145 = vpop.xlane.xlu0 %8144
        %v8146 = vsel %vm601, %v8142, 0.0
        %8147 = vadd.xlane.f32.xlu0 %v8146
        %v8148 = vpop.xlane.xlu0 %8147
        %v8149 = vmul.f32 %v8145, %v6965
        %v8150 = vmul.f32 %v8148, %v6965
        %v8151 = vsub.f32 %v8141, %v8149
        %v8152 = vsub.f32 %v8142, %v8150
        %v8153 = vmul.f32 %v8151, %v8151
        %v8154 = vmul.f32 %v8152, %v8152
        %v8155 = vsel %vm601, %v8153, 0.0
        %8156 = vadd.xlane.f32.xlu0 %v8155
        %v8157 = vpop.xlane.xlu0 %8156
        %v8158 = vsel %vm601, %v8154, 0.0
        %8159 = vadd.xlane.f32.xlu0 %v8158
        %v8160 = vpop.xlane.xlu0 %8159
        %v8161 = vmul.f32 %v8157, %v6965
        %v8162 = vmul.f32 %v8160, %v6965
        %v8163 = vadd.f32 %v8161, 1e-05
        %v8164 = vadd.f32 %v8162, 1e-05
        %v8165 = vrsqrt.pop %v8163
        %v8166 = vrsqrt.pop %v8164
        %v8167 = vmul.f32 %v8151, %v8165
        %v8168 = vmul.f32 %v8152, %v8166
        %v8169 = vlaneseq
        %v8170 = vshrl.u32 %v8169, 7
        %v8171 = vsub.s32 0, %v8170
        %v8172 = vrot.slane %v590, %v8171
        %v8173 = vmul.f32 %v8167, %v8172
        %v8174 = vmul.f32 %v8168, %v8172
        %v8175 = vlaneseq
        %v8176 = vshrl.u32 %v8175, 7
        %v8177 = vsub.s32 1, %v8176
        %v8178 = vrot.slane %v590, %v8177
        %v8179 = vadd.f32 %v8173, %v8178
        %v8180 = vadd.f32 %v8174, %v8178
        %8181 = vst.msk [vmem:[#allocation11] sm:$0xff] %vm601, %v8179
        %8182 = vst.msk [vmem:[#allocation11 + $0x8] sm:$0xff] %vm601, %v8180
        // Predicated region
        $region89: #{tpu_custom_call.1} parent=63 // pred_check
          %p8183 = pneg %p307
        $region90: #{tpu_custom_call.1} parent=63 // pred_check_branch
          %8185 = sbr.rel (%p8183) target = $region92
        $region91: #{tpu_custom_call.1} parent=63 // pred_region
          %s8187 = ssub.s32 256, 256
          %8188 = vsyncadd [#allocation4], %s8187
          %s8189 = sshll.u32 [#allocation11], 4
          %s8190 = int_to_ptr.vmem [resolvable:$true] %s8189
          %8195 = dma.vmem_to_hbm [thread:$0]  %s8190, 256, %s11, [#allocation4], 128, 128, 8
        $region92: #{tpu_custom_call.1} parent=63 // pred_fallthru
          _
        // Predicated region
        $region93: #{tpu_custom_call.1} parent=63 // pred_check
          %p8196 = pneg %p307
        $region94: #{tpu_custom_call.1} parent=63 // pred_check_branch
          %8198 = sbr.rel (%p8196) target = $region96
        $region95: #{tpu_custom_call.1} parent=63 // pred_region
          %8199 = dma.done [#allocation4], 256
        $region96: #{tpu_custom_call.1} parent=63 // pred_fallthru
          _
      $region64: #{tpu_custom_call.1} parent=5 // pred_fallthru
        _
      %p8200 = scmp.le.s32.totalorder 2, %s23
      // Predicated region
      $region97: #{tpu_custom_call.1} parent=5 // pred_check
        %p8201 = pneg %p8200
      $region98: #{tpu_custom_call.1} parent=5 // pred_check_branch
        %8203 = sbr.rel (%p8201) target = $region100
      $region99: #{tpu_custom_call.1} parent=5 // pred_region
        %s8204 = ssub.s32 %s23, 2
      $region100: #{tpu_custom_call.1} parent=5 // pred_fallthru
        _
    $region6: #{tpu_custom_call.1} parent=1 // loop_footer
      %s27 = sadd.s32 1, %s23
    $region7: #{tpu_custom_call.1} parent=1 // loop_footer_branch
      %22 = sbr.rel target = $region3
    $region8: #{tpu_custom_call.1} parent=1 // loop_exit
      _
    %8205 = vsyncpa [#allocation3], 1
    %s8206 = scalar_lea.sflag [#allocation3], 1
    %8207 = vsyncpa %s8206, 1
    %8208 = vsyncpa [#allocation6], 1
    %8209 = vsyncpa [#allocation9], 1
    %s8210 = scalar_lea.sflag [#allocation9], 1
    %8211 = vsyncpa %s8210, 1
    %8212 = vsyncpa [#allocation4], 1
    %s8213 = scalar_lea.sflag [#allocation4], 1
    %8214 = vsyncpa %s8213, 1

</llo_original>
